<compile_context>
chip_gen: v7x
topology: tpu7x:2x2x1
jax: 0.10.0
libtpu: 0.0.40
codegen_flags: <defaults>
</compile_context>

<pallas_src>
import functools

import jax
import jax.numpy as jnp
from jax import lax
from jax.experimental import pallas as pl
from jax.experimental.pallas import tpu as pltpu

HEAD_NAMES = [
    "plane_center", "plane_offset", "plane_wh",
    "plane_params_pixelwise", "plane_params_instance",
    "line_region", "line_params",
]
HEAD_COUTS = [3, 2, 2, 4, 4, 1, 2]          # real out-channels of each 1x1 conv
HEAD_OFFSETS = [0]                           # packed lane offset of each head
for _c in HEAD_COUTS[:-1]:
    HEAD_OFFSETS.append(HEAD_OFFSETS[-1] + _c)   # -> [0,3,5,7,11,15,16], total 18
COUT_PAD = 128                               # lane-dense packed output width
N_HEADS = len(HEAD_COUTS)


def heads_kernel(x_ref, w1_ref, b1_ref, w2_ref, b2_ref, o_ref, z_ref,
                 *, H, W, Cin):
    # x_ref : (1, H, W, Cin)          f32, one batch element (no host-side pad)
    # w1_ref: (7, 3, 3, Cin, Cin)     bf16, 3x3 conv weights (HWIO), all heads
    # b1_ref: (7, 1, Cin)             f32
    # w2_ref: (7, Cin, COUT_PAD)      bf16, 1x1 weights packed into disjoint lanes
    # b2_ref: (1, COUT_PAD)           f32, packed 1x1 biases
    # o_ref : (1, H, W, COUT_PAD)     f32, packed output slab
    # z_ref : (3, H+2, W, Cin) bf16 scratch; z_ref[dx, r, w, :] = X_pad[r, dx+w, :]

    # ---- build the 3 column-shifted, zero-haloed copies of the input -------
    z_ref[...] = jnp.zeros_like(z_ref)                   # halo rows/cols = 0
    x = x_ref[0].astype(jnp.bfloat16)                    # (H, W, Cin)
    z_ref[1, 1:H + 1, :, :] = x                          # dx = 1 (centre column)
    z_ref[0, 1:H + 1, 1:W, :] = x[:, :W - 1, :]          # dx = 0 (left halo)
    z_ref[2, 1:H + 1, 0:W - 1, :] = x[:, 1:, :]          # dx = 2 (right halo)

    out_acc = jnp.zeros((H * W, COUT_PAD), dtype=jnp.float32)
    for h in range(N_HEADS):
        # 3x3 conv = 9 shifted matmuls; tap (dy, dx) = z_ref[dx, dy:dy+H] flat.
        acc = jnp.zeros((H * W, Cin), dtype=jnp.float32)
        for dx in range(3):
            for dy in range(3):
                patch = z_ref[dx, dy:dy + H, :, :].reshape(H * W, Cin)
                acc = acc + jnp.dot(patch, w1_ref[h, dy, dx],
                                    preferred_element_type=jnp.float32)
        hidden = jnp.maximum(acc + b1_ref[h], 0.0)       # bias + ReLU in f32
        # packed 1x1 conv: heads own disjoint output lanes -> just accumulate.
        out_acc = out_acc + jnp.dot(hidden.astype(jnp.bfloat16), w2_ref[h],
                                    preferred_element_type=jnp.float32)
    out = out_acc + b2_ref[...]
    o_ref[...] = out.reshape(1, H, W, COUT_PAD)


def heads_forward(x_nchw, params):
    """x_nchw: (B, Cin, H, W) float32.  Returns a dict like the PyTorch module."""
    B, Cin, H, W = x_nchw.shape
    x_nhwc = jnp.transpose(x_nchw, (0, 2, 3, 1))         # channels on lanes

    out = pl.pallas_call(
        functools.partial(heads_kernel, H=H, W=W, Cin=Cin),
        out_shape=jax.ShapeDtypeStruct((B, H, W, COUT_PAD), jnp.float32),
        grid_spec=pltpu.PrefetchScalarGridSpec(
            num_scalar_prefetch=0,
            grid=(B,),
            in_specs=[
                pl.BlockSpec((1, H, W, Cin),            lambda b: (b, 0, 0, 0)),
                # Weight blocks have constant index_maps -> DMA'd once and kept
                # resident in VMEM for the whole grid.
                pl.BlockSpec((N_HEADS, 3, 3, Cin, Cin), lambda b: (0, 0, 0, 0, 0)),
                pl.BlockSpec((N_HEADS, 1, Cin),         lambda b: (0, 0, 0)),
                pl.BlockSpec((N_HEADS, Cin, COUT_PAD),  lambda b: (0, 0, 0)),
                pl.BlockSpec((1, COUT_PAD),             lambda b: (0, 0)),
            ],
            out_specs=pl.BlockSpec((1, H, W, COUT_PAD), lambda b: (b, 0, 0, 0)),
            scratch_shapes=[pltpu.VMEM((3, H + 2, W, Cin), jnp.bfloat16)],
        ),
        compiler_params=pltpu.CompilerParams(
            dimension_semantics=("parallel",)),
    )(x_nhwc, params["w1"], params["b1"], params["w2"], params["b2"])

    # Glue: unpack each head's lanes, back to NCHW, package into a dict.
    result = {}
    for name, off, cout in zip(HEAD_NAMES, HEAD_OFFSETS, HEAD_COUTS):
        result[name] = jnp.transpose(out[:, :, :, off:off + cout], (0, 3, 1, 2))
    result["feature"] = x_nchw
    return result


def init_params(key, Cin):
    """Deterministic PyTorch-Conv2d-style uniform init; weights stored in bf16,
    1x1 weights/biases packed into the disjoint-lane layout used by the kernel."""
    n = N_HEADS
    k1, k2, k3, k4 = jax.random.split(key, 4)
    bound1 = 1.0 / float((Cin * 9) ** 0.5)
    w1 = jax.random.uniform(k1, (n, 3, 3, Cin, Cin), jnp.float32, -bound1, bound1)
    b1 = jax.random.uniform(k2, (n, 1, Cin), jnp.float32, -bound1, bound1)
    bound2 = 1.0 / float(Cin ** 0.5)
    w2 = jax.random.uniform(k3, (n, Cin, COUT_PAD), jnp.float32, -bound2, bound2)
    b2 = jax.random.uniform(k4, (n, COUT_PAD), jnp.float32, -bound2, bound2)
    # head i owns output lanes [off_i, off_i + cout_i); zero everything else
    lane = jnp.arange(COUT_PAD)[None, :]
    offs = jnp.array(HEAD_OFFSETS)[:, None]
    couts = jnp.array(HEAD_COUTS)[:, None]
    mask = ((lane >= offs) & (lane < offs + couts)).astype(jnp.float32)  # (n,128)
    w2 = w2 * mask[:, None, :]
    b2_packed = jnp.sum(b2 * mask, axis=0, keepdims=True)               # (1,128)
    return {"w1": w1.astype(jnp.bfloat16), "b1": b1,
            "w2": w2.astype(jnp.bfloat16), "b2": b2_packed}


def _reference_head(x_nhwc, w1_bf, b1, w2_bf, b2_packed, off, cout):
    """Pure-XLA reference for one head, matched to the kernel's bf16 casts."""
    xb = x_nhwc.astype(jnp.bfloat16).astype(jnp.float32)
    y = lax.conv_general_dilated(
        xb, w1_bf.astype(jnp.float32), window_strides=(1, 1), padding="SAME",
        dimension_numbers=("NHWC", "HWIO", "NHWC"),
        precision=lax.Precision.HIGHEST)
    y = jax.nn.relu(y + b1.reshape(1, 1, 1, -1))
    yb = y.astype(jnp.bfloat16).astype(jnp.float32)
    z = jnp.einsum("nhwc,cd->nhwd", yb,
                   w2_bf.astype(jnp.float32)[:, off:off + cout],
                   precision=lax.Precision.HIGHEST) + b2_packed[0, off:off + cout]
    return jnp.transpose(z, (0, 3, 1, 2))   # NCHW


if __name__ == "__main__":
    # Small shapes consistent with the module (in_planes configurable; 128 keeps
    # it lane-aligned and small).
    B, Cin, H, W = 2, 128, 8, 8
    key = jax.random.PRNGKey(0)
    kx, kp = jax.random.split(key)
    x = jax.random.normal(kx, (B, Cin, H, W), jnp.float32)
    params = init_params(kp, Cin)

    out = jax.jit(heads_forward)(x, params)
    out = jax.block_until_ready(out)

    # Shape checks (match PyTorch NCHW outputs).
    for name, cout in zip(HEAD_NAMES, HEAD_COUTS):
        assert out[name].shape == (B, cout, H, W), (name, out[name].shape)
    assert out["feature"].shape == (B, Cin, H, W)

    # Numerical check vs. pure-XLA convolutions (bf16-matched, tight tolerance).
    x_nhwc = jnp.transpose(x, (0, 2, 3, 1))
    max_err = 0.0
    for i, (name, off, cout) in enumerate(zip(HEAD_NAMES, HEAD_OFFSETS, HEAD_COUTS)):
        ref = _reference_head(x_nhwc, params["w1"][i], params["b1"][i],
                              params["w2"][i], params["b2"], off, cout)
        max_err = max(max_err, float(jnp.max(jnp.abs(ref - out[name]))))
    assert max_err < 5e-3, f"max abs error too large: {max_err}"

    print("KERNEL_OK")
</pallas_src>

<mosaic_0001>
module attributes {stable_mosaic.version = 11 : i64} {
  func.func @heads_kernel(%arg0: i32, %arg1: memref<1x8x8x128xf32, #tpu.memory_space<vmem>>, %arg2: memref<7x3x3x128x128xbf16, #tpu.memory_space<vmem>>, %arg3: memref<7x1x128xf32, #tpu.memory_space<vmem>>, %arg4: memref<7x128x128xbf16, #tpu.memory_space<vmem>>, %arg5: memref<1x128xf32, #tpu.memory_space<vmem>>, %arg6: memref<1x8x8x128xf32, #tpu.memory_space<vmem>>, %arg7: memref<3x10x8x128xbf16, #tpu.memory_space<vmem>>) attributes {dimension_semantics = [#tpu.dimension_semantics<parallel>], iteration_bounds = array<i64: 2>, scalar_prefetch = 0 : i64, scratch_operands = 1 : i64, tpu.core_type = #tpu.core_type<tc>, window_params = [{transform_indices = @transform_0, window_bounds = array<i64: 1, 8, 8, 128>}, {pipeline_mode = #tpu.pipeline_mode<synchronous>, transform_indices = @transform_1, window_bounds = array<i64: 7, 3, 3, 128, 128>}, {pipeline_mode = #tpu.pipeline_mode<synchronous>, transform_indices = @transform_2, window_bounds = array<i64: 7, 1, 128>}, {pipeline_mode = #tpu.pipeline_mode<synchronous>, transform_indices = @transform_3, window_bounds = array<i64: 7, 128, 128>}, {pipeline_mode = #tpu.pipeline_mode<synchronous>, transform_indices = @transform_4, window_bounds = array<i64: 1, 128>}, {transform_indices = @transform_5, window_bounds = array<i64: 1, 8, 8, 128>}]} {
    %cst = arith.constant 0.000000e+00 : bf16
    %0 = vector.broadcast %cst : bf16 to vector<3x10x8x128xbf16>
    %c0 = arith.constant 0 : index
    %c0_0 = arith.constant 0 : index
    %c0_1 = arith.constant 0 : index
    %c0_2 = arith.constant 0 : index
    %1 = vector.load %arg7[%c0, %c0_0, %c0_1, %c0_2] : memref<3x10x8x128xbf16, #tpu.memory_space<vmem>>, vector<3x10x8x128xbf16>
    tpu.vector_store %arg7[%c0, %c0_0, %c0_1, %c0_2], %0 {strides = array<i32>} : memref<3x10x8x128xbf16, #tpu.memory_space<vmem>>, vector<3x10x8x128xbf16>,
    %c0_3 = arith.constant 0 : index
    %c0_4 = arith.constant 0 : index
    %c0_5 = arith.constant 0 : index
    %c0_6 = arith.constant 0 : index
    %2 = vector.load %arg1[%c0_3, %c0_4, %c0_5, %c0_6] : memref<1x8x8x128xf32, #tpu.memory_space<vmem>>, vector<1x8x8x128xf32>
    %3 = vector.shape_cast %2 : vector<1x8x8x128xf32> to vector<8x8x128xf32>
    %4 = arith.truncf %3 : vector<8x8x128xf32> to vector<8x8x128xbf16>
    %c1 = arith.constant 1 : index
    %c1_7 = arith.constant 1 : index
    %c0_8 = arith.constant 0 : index
    %c0_9 = arith.constant 0 : index
    %5 = vector.load %arg7[%c1, %c1_7, %c0_8, %c0_9] : memref<3x10x8x128xbf16, #tpu.memory_space<vmem>>, vector<1x8x8x128xbf16>
    %6 = vector.shape_cast %5 : vector<1x8x8x128xbf16> to vector<8x8x128xbf16>
    %7 = vector.shape_cast %4 : vector<8x8x128xbf16> to vector<1x8x8x128xbf16>
    tpu.vector_store %arg7[%c1, %c1_7, %c0_8, %c0_9], %7 {strides = array<i32>} : memref<3x10x8x128xbf16, #tpu.memory_space<vmem>>, vector<1x8x8x128xbf16>,
    %8 = vector.extract_strided_slice %4 {offsets = [0, 0, 0], sizes = [8, 7, 128], strides = [1, 1, 1]} : vector<8x8x128xbf16> to vector<8x7x128xbf16>
    %c0_10 = arith.constant 0 : index
    %c1_11 = arith.constant 1 : index
    %c1_12 = arith.constant 1 : index
    %c0_13 = arith.constant 0 : index
    %9 = vector.load %arg7[%c0_10, %c1_11, %c1_12, %c0_13] : memref<3x10x8x128xbf16, #tpu.memory_space<vmem>>, vector<1x8x7x128xbf16>
    %10 = vector.shape_cast %9 : vector<1x8x7x128xbf16> to vector<8x7x128xbf16>
    %11 = vector.shape_cast %8 : vector<8x7x128xbf16> to vector<1x8x7x128xbf16>
    tpu.vector_store %arg7[%c0_10, %c1_11, %c1_12, %c0_13], %11 {strides = array<i32>} : memref<3x10x8x128xbf16, #tpu.memory_space<vmem>>, vector<1x8x7x128xbf16>,
    %12 = vector.extract_strided_slice %4 {offsets = [0, 1, 0], sizes = [8, 7, 128], strides = [1, 1, 1]} : vector<8x8x128xbf16> to vector<8x7x128xbf16>
    %c2 = arith.constant 2 : index
    %c1_14 = arith.constant 1 : index
    %c0_15 = arith.constant 0 : index
    %c0_16 = arith.constant 0 : index
    %13 = vector.load %arg7[%c2, %c1_14, %c0_15, %c0_16] : memref<3x10x8x128xbf16, #tpu.memory_space<vmem>>, vector<1x8x7x128xbf16>
    %14 = vector.shape_cast %13 : vector<1x8x7x128xbf16> to vector<8x7x128xbf16>
    %15 = vector.shape_cast %12 : vector<8x7x128xbf16> to vector<1x8x7x128xbf16>
    tpu.vector_store %arg7[%c2, %c1_14, %c0_15, %c0_16], %15 {strides = array<i32>} : memref<3x10x8x128xbf16, #tpu.memory_space<vmem>>, vector<1x8x7x128xbf16>,
    %cst_17 = arith.constant 0.000000e+00 : f32
    %16 = vector.broadcast %cst_17 : f32 to vector<64x128xf32>
    %cst_18 = arith.constant 0.000000e+00 : f32
    %17 = vector.broadcast %cst_18 : f32 to vector<64x128xf32>
    %c0_19 = arith.constant 0 : index
    %c0_20 = arith.constant 0 : index
    %c0_21 = arith.constant 0 : index
    %c0_22 = arith.constant 0 : index
    %18 = vector.load %arg7[%c0_19, %c0_20, %c0_21, %c0_22] : memref<3x10x8x128xbf16, #tpu.memory_space<vmem>>, vector<1x8x8x128xbf16>
    %19 = vector.shape_cast %18 : vector<1x8x8x128xbf16> to vector<8x8x128xbf16>
    %20 = vector.shape_cast %19 : vector<8x8x128xbf16> to vector<64x128xbf16>
    %c0_23 = arith.constant 0 : index
    %c0_24 = arith.constant 0 : index
    %c0_25 = arith.constant 0 : index
    %c0_26 = arith.constant 0 : index
    %c0_27 = arith.constant 0 : index
    %21 = vector.load %arg2[%c0_23, %c0_24, %c0_25, %c0_26, %c0_27] : memref<7x3x3x128x128xbf16, #tpu.memory_space<vmem>>, vector<1x1x1x128x128xbf16>
    %22 = vector.shape_cast %21 : vector<1x1x1x128x128xbf16> to vector<128x128xbf16>
    %cst_28 = arith.constant dense<0.000000e+00> : vector<64x128xf32>
    %23 = tpu.matmul %20, %22, %cst_28 {dimension_numbers = #tpu.dot_dimension_numbers<[1], [0], [0], [1], [0, 0, 1, 1], [], []>} : vector<64x128xbf16>, vector<128x128xbf16>, vector<64x128xf32> -> vector<64x128xf32>
    %24 = arith.addf %17, %23 : vector<64x128xf32>
    %c0_29 = arith.constant 0 : index
    %c1_30 = arith.constant 1 : index
    %c0_31 = arith.constant 0 : index
    %c0_32 = arith.constant 0 : index
    %25 = vector.load %arg7[%c0_29, %c1_30, %c0_31, %c0_32] : memref<3x10x8x128xbf16, #tpu.memory_space<vmem>>, vector<1x8x8x128xbf16>
    %26 = vector.shape_cast %25 : vector<1x8x8x128xbf16> to vector<8x8x128xbf16>
    %27 = vector.shape_cast %26 : vector<8x8x128xbf16> to vector<64x128xbf16>
    %c0_33 = arith.constant 0 : index
    %c1_34 = arith.constant 1 : index
    %c0_35 = arith.constant 0 : index
    %c0_36 = arith.constant 0 : index
    %c0_37 = arith.constant 0 : index
    %28 = vector.load %arg2[%c0_33, %c1_34, %c0_35, %c0_36, %c0_37] : memref<7x3x3x128x128xbf16, #tpu.memory_space<vmem>>, vector<1x1x1x128x128xbf16>
    %29 = vector.shape_cast %28 : vector<1x1x1x128x128xbf16> to vector<128x128xbf16>
    %cst_38 = arith.constant dense<0.000000e+00> : vector<64x128xf32>
    %30 = tpu.matmul %27, %29, %cst_38 {dimension_numbers = #tpu.dot_dimension_numbers<[1], [0], [0], [1], [0, 0, 1, 1], [], []>} : vector<64x128xbf16>, vector<128x128xbf16>, vector<64x128xf32> -> vector<64x128xf32>
    %31 = arith.addf %24, %30 : vector<64x128xf32>
    %c0_39 = arith.constant 0 : index
    %c2_40 = arith.constant 2 : index
    %c0_41 = arith.constant 0 : index
    %c0_42 = arith.constant 0 : index
    %32 = vector.load %arg7[%c0_39, %c2_40, %c0_41, %c0_42] : memref<3x10x8x128xbf16, #tpu.memory_space<vmem>>, vector<1x8x8x128xbf16>
    %33 = vector.shape_cast %32 : vector<1x8x8x128xbf16> to vector<8x8x128xbf16>
    %34 = vector.shape_cast %33 : vector<8x8x128xbf16> to vector<64x128xbf16>
    %c0_43 = arith.constant 0 : index
    %c2_44 = arith.constant 2 : index
    %c0_45 = arith.constant 0 : index
    %c0_46 = arith.constant 0 : index
    %c0_47 = arith.constant 0 : index
    %35 = vector.load %arg2[%c0_43, %c2_44, %c0_45, %c0_46, %c0_47] : memref<7x3x3x128x128xbf16, #tpu.memory_space<vmem>>, vector<1x1x1x128x128xbf16>
    %36 = vector.shape_cast %35 : vector<1x1x1x128x128xbf16> to vector<128x128xbf16>
    %cst_48 = arith.constant dense<0.000000e+00> : vector<64x128xf32>
    %37 = tpu.matmul %34, %36, %cst_48 {dimension_numbers = #tpu.dot_dimension_numbers<[1], [0], [0], [1], [0, 0, 1, 1], [], []>} : vector<64x128xbf16>, vector<128x128xbf16>, vector<64x128xf32> -> vector<64x128xf32>
    %38 = arith.addf %31, %37 : vector<64x128xf32>
    %c1_49 = arith.constant 1 : index
    %c0_50 = arith.constant 0 : index
    %c0_51 = arith.constant 0 : index
    %c0_52 = arith.constant 0 : index
    %39 = vector.load %arg7[%c1_49, %c0_50, %c0_51, %c0_52] : memref<3x10x8x128xbf16, #tpu.memory_space<vmem>>, vector<1x8x8x128xbf16>
    %40 = vector.shape_cast %39 : vector<1x8x8x128xbf16> to vector<8x8x128xbf16>
    %41 = vector.shape_cast %40 : vector<8x8x128xbf16> to vector<64x128xbf16>
    %c0_53 = arith.constant 0 : index
    %c0_54 = arith.constant 0 : index
    %c1_55 = arith.constant 1 : index
    %c0_56 = arith.constant 0 : index
    %c0_57 = arith.constant 0 : index
    %42 = vector.load %arg2[%c0_53, %c0_54, %c1_55, %c0_56, %c0_57] : memref<7x3x3x128x128xbf16, #tpu.memory_space<vmem>>, vector<1x1x1x128x128xbf16>
    %43 = vector.shape_cast %42 : vector<1x1x1x128x128xbf16> to vector<128x128xbf16>
    %cst_58 = arith.constant dense<0.000000e+00> : vector<64x128xf32>
    %44 = tpu.matmul %41, %43, %cst_58 {dimension_numbers = #tpu.dot_dimension_numbers<[1], [0], [0], [1], [0, 0, 1, 1], [], []>} : vector<64x128xbf16>, vector<128x128xbf16>, vector<64x128xf32> -> vector<64x128xf32>
    %45 = arith.addf %38, %44 : vector<64x128xf32>
    %c1_59 = arith.constant 1 : index
    %c1_60 = arith.constant 1 : index
    %c0_61 = arith.constant 0 : index
    %c0_62 = arith.constant 0 : index
    %46 = vector.load %arg7[%c1_59, %c1_60, %c0_61, %c0_62] : memref<3x10x8x128xbf16, #tpu.memory_space<vmem>>, vector<1x8x8x128xbf16>
    %47 = vector.shape_cast %46 : vector<1x8x8x128xbf16> to vector<8x8x128xbf16>
    %48 = vector.shape_cast %47 : vector<8x8x128xbf16> to vector<64x128xbf16>
    %c0_63 = arith.constant 0 : index
    %c1_64 = arith.constant 1 : index
    %c1_65 = arith.constant 1 : index
    %c0_66 = arith.constant 0 : index
    %c0_67 = arith.constant 0 : index
    %49 = vector.load %arg2[%c0_63, %c1_64, %c1_65, %c0_66, %c0_67] : memref<7x3x3x128x128xbf16, #tpu.memory_space<vmem>>, vector<1x1x1x128x128xbf16>
    %50 = vector.shape_cast %49 : vector<1x1x1x128x128xbf16> to vector<128x128xbf16>
    %cst_68 = arith.constant dense<0.000000e+00> : vector<64x128xf32>
    %51 = tpu.matmul %48, %50, %cst_68 {dimension_numbers = #tpu.dot_dimension_numbers<[1], [0], [0], [1], [0, 0, 1, 1], [], []>} : vector<64x128xbf16>, vector<128x128xbf16>, vector<64x128xf32> -> vector<64x128xf32>
    %52 = arith.addf %45, %51 : vector<64x128xf32>
    %c1_69 = arith.constant 1 : index
    %c2_70 = arith.constant 2 : index
    %c0_71 = arith.constant 0 : index
    %c0_72 = arith.constant 0 : index
    %53 = vector.load %arg7[%c1_69, %c2_70, %c0_71, %c0_72] : memref<3x10x8x128xbf16, #tpu.memory_space<vmem>>, vector<1x8x8x128xbf16>
    %54 = vector.shape_cast %53 : vector<1x8x8x128xbf16> to vector<8x8x128xbf16>
    %55 = vector.shape_cast %54 : vector<8x8x128xbf16> to vector<64x128xbf16>
    %c0_73 = arith.constant 0 : index
    %c2_74 = arith.constant 2 : index
    %c1_75 = arith.constant 1 : index
    %c0_76 = arith.constant 0 : index
    %c0_77 = arith.constant 0 : index
    %56 = vector.load %arg2[%c0_73, %c2_74, %c1_75, %c0_76, %c0_77] : memref<7x3x3x128x128xbf16, #tpu.memory_space<vmem>>, vector<1x1x1x128x128xbf16>
    %57 = vector.shape_cast %56 : vector<1x1x1x128x128xbf16> to vector<128x128xbf16>
    %cst_78 = arith.constant dense<0.000000e+00> : vector<64x128xf32>
    %58 = tpu.matmul %55, %57, %cst_78 {dimension_numbers = #tpu.dot_dimension_numbers<[1], [0], [0], [1], [0, 0, 1, 1], [], []>} : vector<64x128xbf16>, vector<128x128xbf16>, vector<64x128xf32> -> vector<64x128xf32>
    %59 = arith.addf %52, %58 : vector<64x128xf32>
    %c2_79 = arith.constant 2 : index
    %c0_80 = arith.constant 0 : index
    %c0_81 = arith.constant 0 : index
    %c0_82 = arith.constant 0 : index
    %60 = vector.load %arg7[%c2_79, %c0_80, %c0_81, %c0_82] : memref<3x10x8x128xbf16, #tpu.memory_space<vmem>>, vector<1x8x8x128xbf16>
    %61 = vector.shape_cast %60 : vector<1x8x8x128xbf16> to vector<8x8x128xbf16>
    %62 = vector.shape_cast %61 : vector<8x8x128xbf16> to vector<64x128xbf16>
    %c0_83 = arith.constant 0 : index
    %c0_84 = arith.constant 0 : index
    %c2_85 = arith.constant 2 : index
    %c0_86 = arith.constant 0 : index
    %c0_87 = arith.constant 0 : index
    %63 = vector.load %arg2[%c0_83, %c0_84, %c2_85, %c0_86, %c0_87] : memref<7x3x3x128x128xbf16, #tpu.memory_space<vmem>>, vector<1x1x1x128x128xbf16>
    %64 = vector.shape_cast %63 : vector<1x1x1x128x128xbf16> to vector<128x128xbf16>
    %cst_88 = arith.constant dense<0.000000e+00> : vector<64x128xf32>
    %65 = tpu.matmul %62, %64, %cst_88 {dimension_numbers = #tpu.dot_dimension_numbers<[1], [0], [0], [1], [0, 0, 1, 1], [], []>} : vector<64x128xbf16>, vector<128x128xbf16>, vector<64x128xf32> -> vector<64x128xf32>
    %66 = arith.addf %59, %65 : vector<64x128xf32>
    %c2_89 = arith.constant 2 : index
    %c1_90 = arith.constant 1 : index
    %c0_91 = arith.constant 0 : index
    %c0_92 = arith.constant 0 : index
    %67 = vector.load %arg7[%c2_89, %c1_90, %c0_91, %c0_92] : memref<3x10x8x128xbf16, #tpu.memory_space<vmem>>, vector<1x8x8x128xbf16>
    %68 = vector.shape_cast %67 : vector<1x8x8x128xbf16> to vector<8x8x128xbf16>
    %69 = vector.shape_cast %68 : vector<8x8x128xbf16> to vector<64x128xbf16>
    %c0_93 = arith.constant 0 : index
    %c1_94 = arith.constant 1 : index
    %c2_95 = arith.constant 2 : index
    %c0_96 = arith.constant 0 : index
    %c0_97 = arith.constant 0 : index
    %70 = vector.load %arg2[%c0_93, %c1_94, %c2_95, %c0_96, %c0_97] : memref<7x3x3x128x128xbf16, #tpu.memory_space<vmem>>, vector<1x1x1x128x128xbf16>
    %71 = vector.shape_cast %70 : vector<1x1x1x128x128xbf16> to vector<128x128xbf16>
    %cst_98 = arith.constant dense<0.000000e+00> : vector<64x128xf32>
    %72 = tpu.matmul %69, %71, %cst_98 {dimension_numbers = #tpu.dot_dimension_numbers<[1], [0], [0], [1], [0, 0, 1, 1], [], []>} : vector<64x128xbf16>, vector<128x128xbf16>, vector<64x128xf32> -> vector<64x128xf32>
    %73 = arith.addf %66, %72 : vector<64x128xf32>
    %c2_99 = arith.constant 2 : index
    %c2_100 = arith.constant 2 : index
    %c0_101 = arith.constant 0 : index
    %c0_102 = arith.constant 0 : index
    %74 = vector.load %arg7[%c2_99, %c2_100, %c0_101, %c0_102] : memref<3x10x8x128xbf16, #tpu.memory_space<vmem>>, vector<1x8x8x128xbf16>
    %75 = vector.shape_cast %74 : vector<1x8x8x128xbf16> to vector<8x8x128xbf16>
    %76 = vector.shape_cast %75 : vector<8x8x128xbf16> to vector<64x128xbf16>
    %c0_103 = arith.constant 0 : index
    %c2_104 = arith.constant 2 : index
    %c2_105 = arith.constant 2 : index
    %c0_106 = arith.constant 0 : index
    %c0_107 = arith.constant 0 : index
    %77 = vector.load %arg2[%c0_103, %c2_104, %c2_105, %c0_106, %c0_107] : memref<7x3x3x128x128xbf16, #tpu.memory_space<vmem>>, vector<1x1x1x128x128xbf16>
    %78 = vector.shape_cast %77 : vector<1x1x1x128x128xbf16> to vector<128x128xbf16>
    %cst_108 = arith.constant dense<0.000000e+00> : vector<64x128xf32>
    %79 = tpu.matmul %76, %78, %cst_108 {dimension_numbers = #tpu.dot_dimension_numbers<[1], [0], [0], [1], [0, 0, 1, 1], [], []>} : vector<64x128xbf16>, vector<128x128xbf16>, vector<64x128xf32> -> vector<64x128xf32>
    %80 = arith.addf %73, %79 : vector<64x128xf32>
    %c0_109 = arith.constant 0 : index
    %c0_110 = arith.constant 0 : index
    %c0_111 = arith.constant 0 : index
    %81 = vector.load %arg3[%c0_109, %c0_110, %c0_111] : memref<7x1x128xf32, #tpu.memory_space<vmem>>, vector<1x1x128xf32>
    %82 = vector.shape_cast %81 : vector<1x1x128xf32> to vector<1x128xf32>
    %83 = vector.broadcast %82 : vector<1x128xf32> to vector<64x128xf32>
    %84 = arith.addf %80, %83 : vector<64x128xf32>
    %cst_112 = arith.constant 0.000000e+00 : f32
    %85 = vector.broadcast %cst_112 : f32 to vector<64x128xf32>
    %86 = arith.maximumf %84, %85 : vector<64x128xf32>
    %87 = arith.truncf %86 : vector<64x128xf32> to vector<64x128xbf16>
    %c0_113 = arith.constant 0 : index
    %c0_114 = arith.constant 0 : index
    %c0_115 = arith.constant 0 : index
    %88 = vector.load %arg4[%c0_113, %c0_114, %c0_115] : memref<7x128x128xbf16, #tpu.memory_space<vmem>>, vector<1x128x128xbf16>
    %89 = vector.shape_cast %88 : vector<1x128x128xbf16> to vector<128x128xbf16>
    %cst_116 = arith.constant dense<0.000000e+00> : vector<64x128xf32>
    %90 = tpu.matmul %87, %89, %cst_116 {dimension_numbers = #tpu.dot_dimension_numbers<[1], [0], [0], [1], [0, 0, 1, 1], [], []>} : vector<64x128xbf16>, vector<128x128xbf16>, vector<64x128xf32> -> vector<64x128xf32>
    %91 = arith.addf %16, %90 : vector<64x128xf32>
    %cst_117 = arith.constant 0.000000e+00 : f32
    %92 = vector.broadcast %cst_117 : f32 to vector<64x128xf32>
    %c0_118 = arith.constant 0 : index
    %c0_119 = arith.constant 0 : index
    %c0_120 = arith.constant 0 : index
    %c0_121 = arith.constant 0 : index
    %93 = vector.load %arg7[%c0_118, %c0_119, %c0_120, %c0_121] : memref<3x10x8x128xbf16, #tpu.memory_space<vmem>>, vector<1x8x8x128xbf16>
    %94 = vector.shape_cast %93 : vector<1x8x8x128xbf16> to vector<8x8x128xbf16>
    %95 = vector.shape_cast %94 : vector<8x8x128xbf16> to vector<64x128xbf16>
    %c1_122 = arith.constant 1 : index
    %c0_123 = arith.constant 0 : index
    %c0_124 = arith.constant 0 : index
    %c0_125 = arith.constant 0 : index
    %c0_126 = arith.constant 0 : index
    %96 = vector.load %arg2[%c1_122, %c0_123, %c0_124, %c0_125, %c0_126] : memref<7x3x3x128x128xbf16, #tpu.memory_space<vmem>>, vector<1x1x1x128x128xbf16>
    %97 = vector.shape_cast %96 : vector<1x1x1x128x128xbf16> to vector<128x128xbf16>
    %cst_127 = arith.constant dense<0.000000e+00> : vector<64x128xf32>
    %98 = tpu.matmul %95, %97, %cst_127 {dimension_numbers = #tpu.dot_dimension_numbers<[1], [0], [0], [1], [0, 0, 1, 1], [], []>} : vector<64x128xbf16>, vector<128x128xbf16>, vector<64x128xf32> -> vector<64x128xf32>
    %99 = arith.addf %92, %98 : vector<64x128xf32>
    %c0_128 = arith.constant 0 : index
    %c1_129 = arith.constant 1 : index
    %c0_130 = arith.constant 0 : index
    %c0_131 = arith.constant 0 : index
    %100 = vector.load %arg7[%c0_128, %c1_129, %c0_130, %c0_131] : memref<3x10x8x128xbf16, #tpu.memory_space<vmem>>, vector<1x8x8x128xbf16>
    %101 = vector.shape_cast %100 : vector<1x8x8x128xbf16> to vector<8x8x128xbf16>
    %102 = vector.shape_cast %101 : vector<8x8x128xbf16> to vector<64x128xbf16>
    %c1_132 = arith.constant 1 : index
    %c1_133 = arith.constant 1 : index
    %c0_134 = arith.constant 0 : index
    %c0_135 = arith.constant 0 : index
    %c0_136 = arith.constant 0 : index
    %103 = vector.load %arg2[%c1_132, %c1_133, %c0_134, %c0_135, %c0_136] : memref<7x3x3x128x128xbf16, #tpu.memory_space<vmem>>, vector<1x1x1x128x128xbf16>
    %104 = vector.shape_cast %103 : vector<1x1x1x128x128xbf16> to vector<128x128xbf16>
    %cst_137 = arith.constant dense<0.000000e+00> : vector<64x128xf32>
    %105 = tpu.matmul %102, %104, %cst_137 {dimension_numbers = #tpu.dot_dimension_numbers<[1], [0], [0], [1], [0, 0, 1, 1], [], []>} : vector<64x128xbf16>, vector<128x128xbf16>, vector<64x128xf32> -> vector<64x128xf32>
    %106 = arith.addf %99, %105 : vector<64x128xf32>
    %c0_138 = arith.constant 0 : index
    %c2_139 = arith.constant 2 : index
    %c0_140 = arith.constant 0 : index
    %c0_141 = arith.constant 0 : index
    %107 = vector.load %arg7[%c0_138, %c2_139, %c0_140, %c0_141] : memref<3x10x8x128xbf16, #tpu.memory_space<vmem>>, vector<1x8x8x128xbf16>
    %108 = vector.shape_cast %107 : vector<1x8x8x128xbf16> to vector<8x8x128xbf16>
    %109 = vector.shape_cast %108 : vector<8x8x128xbf16> to vector<64x128xbf16>
    %c1_142 = arith.constant 1 : index
    %c2_143 = arith.constant 2 : index
    %c0_144 = arith.constant 0 : index
    %c0_145 = arith.constant 0 : index
    %c0_146 = arith.constant 0 : index
    %110 = vector.load %arg2[%c1_142, %c2_143, %c0_144, %c0_145, %c0_146] : memref<7x3x3x128x128xbf16, #tpu.memory_space<vmem>>, vector<1x1x1x128x128xbf16>
    %111 = vector.shape_cast %110 : vector<1x1x1x128x128xbf16> to vector<128x128xbf16>
    %cst_147 = arith.constant dense<0.000000e+00> : vector<64x128xf32>
    %112 = tpu.matmul %109, %111, %cst_147 {dimension_numbers = #tpu.dot_dimension_numbers<[1], [0], [0], [1], [0, 0, 1, 1], [], []>} : vector<64x128xbf16>, vector<128x128xbf16>, vector<64x128xf32> -> vector<64x128xf32>
    %113 = arith.addf %106, %112 : vector<64x128xf32>
    %c1_148 = arith.constant 1 : index
    %c0_149 = arith.constant 0 : index
    %c0_150 = arith.constant 0 : index
    %c0_151 = arith.constant 0 : index
    %114 = vector.load %arg7[%c1_148, %c0_149, %c0_150, %c0_151] : memref<3x10x8x128xbf16, #tpu.memory_space<vmem>>, vector<1x8x8x128xbf16>
    %115 = vector.shape_cast %114 : vector<1x8x8x128xbf16> to vector<8x8x128xbf16>
    %116 = vector.shape_cast %115 : vector<8x8x128xbf16> to vector<64x128xbf16>
    %c1_152 = arith.constant 1 : index
    %c0_153 = arith.constant 0 : index
    %c1_154 = arith.constant 1 : index
    %c0_155 = arith.constant 0 : index
    %c0_156 = arith.constant 0 : index
    %117 = vector.load %arg2[%c1_152, %c0_153, %c1_154, %c0_155, %c0_156] : memref<7x3x3x128x128xbf16, #tpu.memory_space<vmem>>, vector<1x1x1x128x128xbf16>
    %118 = vector.shape_cast %117 : vector<1x1x1x128x128xbf16> to vector<128x128xbf16>
    %cst_157 = arith.constant dense<0.000000e+00> : vector<64x128xf32>
    %119 = tpu.matmul %116, %118, %cst_157 {dimension_numbers = #tpu.dot_dimension_numbers<[1], [0], [0], [1], [0, 0, 1, 1], [], []>} : vector<64x128xbf16>, vector<128x128xbf16>, vector<64x128xf32> -> vector<64x128xf32>
    %120 = arith.addf %113, %119 : vector<64x128xf32>
    %c1_158 = arith.constant 1 : index
    %c1_159 = arith.constant 1 : index
    %c0_160 = arith.constant 0 : index
    %c0_161 = arith.constant 0 : index
    %121 = vector.load %arg7[%c1_158, %c1_159, %c0_160, %c0_161] : memref<3x10x8x128xbf16, #tpu.memory_space<vmem>>, vector<1x8x8x128xbf16>
    %122 = vector.shape_cast %121 : vector<1x8x8x128xbf16> to vector<8x8x128xbf16>
    %123 = vector.shape_cast %122 : vector<8x8x128xbf16> to vector<64x128xbf16>
    %c1_162 = arith.constant 1 : index
    %c1_163 = arith.constant 1 : index
    %c1_164 = arith.constant 1 : index
    %c0_165 = arith.constant 0 : index
    %c0_166 = arith.constant 0 : index
    %124 = vector.load %arg2[%c1_162, %c1_163, %c1_164, %c0_165, %c0_166] : memref<7x3x3x128x128xbf16, #tpu.memory_space<vmem>>, vector<1x1x1x128x128xbf16>
    %125 = vector.shape_cast %124 : vector<1x1x1x128x128xbf16> to vector<128x128xbf16>
    %cst_167 = arith.constant dense<0.000000e+00> : vector<64x128xf32>
    %126 = tpu.matmul %123, %125, %cst_167 {dimension_numbers = #tpu.dot_dimension_numbers<[1], [0], [0], [1], [0, 0, 1, 1], [], []>} : vector<64x128xbf16>, vector<128x128xbf16>, vector<64x128xf32> -> vector<64x128xf32>
    %127 = arith.addf %120, %126 : vector<64x128xf32>
    %c1_168 = arith.constant 1 : index
    %c2_169 = arith.constant 2 : index
    %c0_170 = arith.constant 0 : index
    %c0_171 = arith.constant 0 : index
    %128 = vector.load %arg7[%c1_168, %c2_169, %c0_170, %c0_171] : memref<3x10x8x128xbf16, #tpu.memory_space<vmem>>, vector<1x8x8x128xbf16>
    %129 = vector.shape_cast %128 : vector<1x8x8x128xbf16> to vector<8x8x128xbf16>
    %130 = vector.shape_cast %129 : vector<8x8x128xbf16> to vector<64x128xbf16>
    %c1_172 = arith.constant 1 : index
    %c2_173 = arith.constant 2 : index
    %c1_174 = arith.constant 1 : index
    %c0_175 = arith.constant 0 : index
    %c0_176 = arith.constant 0 : index
    %131 = vector.load %arg2[%c1_172, %c2_173, %c1_174, %c0_175, %c0_176] : memref<7x3x3x128x128xbf16, #tpu.memory_space<vmem>>, vector<1x1x1x128x128xbf16>
    %132 = vector.shape_cast %131 : vector<1x1x1x128x128xbf16> to vector<128x128xbf16>
    %cst_177 = arith.constant dense<0.000000e+00> : vector<64x128xf32>
    %133 = tpu.matmul %130, %132, %cst_177 {dimension_numbers = #tpu.dot_dimension_numbers<[1], [0], [0], [1], [0, 0, 1, 1], [], []>} : vector<64x128xbf16>, vector<128x128xbf16>, vector<64x128xf32> -> vector<64x128xf32>
    %134 = arith.addf %127, %133 : vector<64x128xf32>
    %c2_178 = arith.constant 2 : index
    %c0_179 = arith.constant 0 : index
    %c0_180 = arith.constant 0 : index
    %c0_181 = arith.constant 0 : index
    %135 = vector.load %arg7[%c2_178, %c0_179, %c0_180, %c0_181] : memref<3x10x8x128xbf16, #tpu.memory_space<vmem>>, vector<1x8x8x128xbf16>
    %136 = vector.shape_cast %135 : vector<1x8x8x128xbf16> to vector<8x8x128xbf16>
    %137 = vector.shape_cast %136 : vector<8x8x128xbf16> to vector<64x128xbf16>
    %c1_182 = arith.constant 1 : index
    %c0_183 = arith.constant 0 : index
    %c2_184 = arith.constant 2 : index
    %c0_185 = arith.constant 0 : index
    %c0_186 = arith.constant 0 : index
    %138 = vector.load %arg2[%c1_182, %c0_183, %c2_184, %c0_185, %c0_186] : memref<7x3x3x128x128xbf16, #tpu.memory_space<vmem>>, vector<1x1x1x128x128xbf16>
    %139 = vector.shape_cast %138 : vector<1x1x1x128x128xbf16> to vector<128x128xbf16>
    %cst_187 = arith.constant dense<0.000000e+00> : vector<64x128xf32>
    %140 = tpu.matmul %137, %139, %cst_187 {dimension_numbers = #tpu.dot_dimension_numbers<[1], [0], [0], [1], [0, 0, 1, 1], [], []>} : vector<64x128xbf16>, vector<128x128xbf16>, vector<64x128xf32> -> vector<64x128xf32>
    %141 = arith.addf %134, %140 : vector<64x128xf32>
    %c2_188 = arith.constant 2 : index
    %c1_189 = arith.constant 1 : index
    %c0_190 = arith.constant 0 : index
    %c0_191 = arith.constant 0 : index
    %142 = vector.load %arg7[%c2_188, %c1_189, %c0_190, %c0_191] : memref<3x10x8x128xbf16, #tpu.memory_space<vmem>>, vector<1x8x8x128xbf16>
    %143 = vector.shape_cast %142 : vector<1x8x8x128xbf16> to vector<8x8x128xbf16>
    %144 = vector.shape_cast %143 : vector<8x8x128xbf16> to vector<64x128xbf16>
    %c1_192 = arith.constant 1 : index
    %c1_193 = arith.constant 1 : index
    %c2_194 = arith.constant 2 : index
    %c0_195 = arith.constant 0 : index
    %c0_196 = arith.constant 0 : index
    %145 = vector.load %arg2[%c1_192, %c1_193, %c2_194, %c0_195, %c0_196] : memref<7x3x3x128x128xbf16, #tpu.memory_space<vmem>>, vector<1x1x1x128x128xbf16>
    %146 = vector.shape_cast %145 : vector<1x1x1x128x128xbf16> to vector<128x128xbf16>
    %cst_197 = arith.constant dense<0.000000e+00> : vector<64x128xf32>
    %147 = tpu.matmul %144, %146, %cst_197 {dimension_numbers = #tpu.dot_dimension_numbers<[1], [0], [0], [1], [0, 0, 1, 1], [], []>} : vector<64x128xbf16>, vector<128x128xbf16>, vector<64x128xf32> -> vector<64x128xf32>
    %148 = arith.addf %141, %147 : vector<64x128xf32>
    %c2_198 = arith.constant 2 : index
    %c2_199 = arith.constant 2 : index
    %c0_200 = arith.constant 0 : index
    %c0_201 = arith.constant 0 : index
    %149 = vector.load %arg7[%c2_198, %c2_199, %c0_200, %c0_201] : memref<3x10x8x128xbf16, #tpu.memory_space<vmem>>, vector<1x8x8x128xbf16>
    %150 = vector.shape_cast %149 : vector<1x8x8x128xbf16> to vector<8x8x128xbf16>
    %151 = vector.shape_cast %150 : vector<8x8x128xbf16> to vector<64x128xbf16>
    %c1_202 = arith.constant 1 : index
    %c2_203 = arith.constant 2 : index
    %c2_204 = arith.constant 2 : index
    %c0_205 = arith.constant 0 : index
    %c0_206 = arith.constant 0 : index
    %152 = vector.load %arg2[%c1_202, %c2_203, %c2_204, %c0_205, %c0_206] : memref<7x3x3x128x128xbf16, #tpu.memory_space<vmem>>, vector<1x1x1x128x128xbf16>
    %153 = vector.shape_cast %152 : vector<1x1x1x128x128xbf16> to vector<128x128xbf16>
    %cst_207 = arith.constant dense<0.000000e+00> : vector<64x128xf32>
    %154 = tpu.matmul %151, %153, %cst_207 {dimension_numbers = #tpu.dot_dimension_numbers<[1], [0], [0], [1], [0, 0, 1, 1], [], []>} : vector<64x128xbf16>, vector<128x128xbf16>, vector<64x128xf32> -> vector<64x128xf32>
    %155 = arith.addf %148, %154 : vector<64x128xf32>
    %c1_208 = arith.constant 1 : index
    %c0_209 = arith.constant 0 : index
    %c0_210 = arith.constant 0 : index
    %156 = vector.load %arg3[%c1_208, %c0_209, %c0_210] : memref<7x1x128xf32, #tpu.memory_space<vmem>>, vector<1x1x128xf32>
    %157 = vector.shape_cast %156 : vector<1x1x128xf32> to vector<1x128xf32>
    %158 = vector.broadcast %157 : vector<1x128xf32> to vector<64x128xf32>
    %159 = arith.addf %155, %158 : vector<64x128xf32>
    %cst_211 = arith.constant 0.000000e+00 : f32
    %160 = vector.broadcast %cst_211 : f32 to vector<64x128xf32>
    %161 = arith.maximumf %159, %160 : vector<64x128xf32>
    %162 = arith.truncf %161 : vector<64x128xf32> to vector<64x128xbf16>
    %c1_212 = arith.constant 1 : index
    %c0_213 = arith.constant 0 : index
    %c0_214 = arith.constant 0 : index
    %163 = vector.load %arg4[%c1_212, %c0_213, %c0_214] : memref<7x128x128xbf16, #tpu.memory_space<vmem>>, vector<1x128x128xbf16>
    %164 = vector.shape_cast %163 : vector<1x128x128xbf16> to vector<128x128xbf16>
    %cst_215 = arith.constant dense<0.000000e+00> : vector<64x128xf32>
    %165 = tpu.matmul %162, %164, %cst_215 {dimension_numbers = #tpu.dot_dimension_numbers<[1], [0], [0], [1], [0, 0, 1, 1], [], []>} : vector<64x128xbf16>, vector<128x128xbf16>, vector<64x128xf32> -> vector<64x128xf32>
    %166 = arith.addf %91, %165 : vector<64x128xf32>
    %cst_216 = arith.constant 0.000000e+00 : f32
    %167 = vector.broadcast %cst_216 : f32 to vector<64x128xf32>
    %c0_217 = arith.constant 0 : index
    %c0_218 = arith.constant 0 : index
    %c0_219 = arith.constant 0 : index
    %c0_220 = arith.constant 0 : index
    %168 = vector.load %arg7[%c0_217, %c0_218, %c0_219, %c0_220] : memref<3x10x8x128xbf16, #tpu.memory_space<vmem>>, vector<1x8x8x128xbf16>
    %169 = vector.shape_cast %168 : vector<1x8x8x128xbf16> to vector<8x8x128xbf16>
    %170 = vector.shape_cast %169 : vector<8x8x128xbf16> to vector<64x128xbf16>
    %c2_221 = arith.constant 2 : index
    %c0_222 = arith.constant 0 : index
    %c0_223 = arith.constant 0 : index
    %c0_224 = arith.constant 0 : index
    %c0_225 = arith.constant 0 : index
    %171 = vector.load %arg2[%c2_221, %c0_222, %c0_223, %c0_224, %c0_225] : memref<7x3x3x128x128xbf16, #tpu.memory_space<vmem>>, vector<1x1x1x128x128xbf16>
    %172 = vector.shape_cast %171 : vector<1x1x1x128x128xbf16> to vector<128x128xbf16>
    %cst_226 = arith.constant dense<0.000000e+00> : vector<64x128xf32>
    %173 = tpu.matmul %170, %172, %cst_226 {dimension_numbers = #tpu.dot_dimension_numbers<[1], [0], [0], [1], [0, 0, 1, 1], [], []>} : vector<64x128xbf16>, vector<128x128xbf16>, vector<64x128xf32> -> vector<64x128xf32>
    %174 = arith.addf %167, %173 : vector<64x128xf32>
    %c0_227 = arith.constant 0 : index
    %c1_228 = arith.constant 1 : index
    %c0_229 = arith.constant 0 : index
    %c0_230 = arith.constant 0 : index
    %175 = vector.load %arg7[%c0_227, %c1_228, %c0_229, %c0_230] : memref<3x10x8x128xbf16, #tpu.memory_space<vmem>>, vector<1x8x8x128xbf16>
    %176 = vector.shape_cast %175 : vector<1x8x8x128xbf16> to vector<8x8x128xbf16>
    %177 = vector.shape_cast %176 : vector<8x8x128xbf16> to vector<64x128xbf16>
    %c2_231 = arith.constant 2 : index
    %c1_232 = arith.constant 1 : index
    %c0_233 = arith.constant 0 : index
    %c0_234 = arith.constant 0 : index
    %c0_235 = arith.constant 0 : index
    %178 = vector.load %arg2[%c2_231, %c1_232, %c0_233, %c0_234, %c0_235] : memref<7x3x3x128x128xbf16, #tpu.memory_space<vmem>>, vector<1x1x1x128x128xbf16>
    %179 = vector.shape_cast %178 : vector<1x1x1x128x128xbf16> to vector<128x128xbf16>
    %cst_236 = arith.constant dense<0.000000e+00> : vector<64x128xf32>
    %180 = tpu.matmul %177, %179, %cst_236 {dimension_numbers = #tpu.dot_dimension_numbers<[1], [0], [0], [1], [0, 0, 1, 1], [], []>} : vector<64x128xbf16>, vector<128x128xbf16>, vector<64x128xf32> -> vector<64x128xf32>
    %181 = arith.addf %174, %180 : vector<64x128xf32>
    %c0_237 = arith.constant 0 : index
    %c2_238 = arith.constant 2 : index
    %c0_239 = arith.constant 0 : index
    %c0_240 = arith.constant 0 : index
    %182 = vector.load %arg7[%c0_237, %c2_238, %c0_239, %c0_240] : memref<3x10x8x128xbf16, #tpu.memory_space<vmem>>, vector<1x8x8x128xbf16>
    %183 = vector.shape_cast %182 : vector<1x8x8x128xbf16> to vector<8x8x128xbf16>
    %184 = vector.shape_cast %183 : vector<8x8x128xbf16> to vector<64x128xbf16>
    %c2_241 = arith.constant 2 : index
    %c2_242 = arith.constant 2 : index
    %c0_243 = arith.constant 0 : index
    %c0_244 = arith.constant 0 : index
    %c0_245 = arith.constant 0 : index
    %185 = vector.load %arg2[%c2_241, %c2_242, %c0_243, %c0_244, %c0_245] : memref<7x3x3x128x128xbf16, #tpu.memory_space<vmem>>, vector<1x1x1x128x128xbf16>
    %186 = vector.shape_cast %185 : vector<1x1x1x128x128xbf16> to vector<128x128xbf16>
    %cst_246 = arith.constant dense<0.000000e+00> : vector<64x128xf32>
    %187 = tpu.matmul %184, %186, %cst_246 {dimension_numbers = #tpu.dot_dimension_numbers<[1], [0], [0], [1], [0, 0, 1, 1], [], []>} : vector<64x128xbf16>, vector<128x128xbf16>, vector<64x128xf32> -> vector<64x128xf32>
    %188 = arith.addf %181, %187 : vector<64x128xf32>
    %c1_247 = arith.constant 1 : index
    %c0_248 = arith.constant 0 : index
    %c0_249 = arith.constant 0 : index
    %c0_250 = arith.constant 0 : index
    %189 = vector.load %arg7[%c1_247, %c0_248, %c0_249, %c0_250] : memref<3x10x8x128xbf16, #tpu.memory_space<vmem>>, vector<1x8x8x128xbf16>
    %190 = vector.shape_cast %189 : vector<1x8x8x128xbf16> to vector<8x8x128xbf16>
    %191 = vector.shape_cast %190 : vector<8x8x128xbf16> to vector<64x128xbf16>
    %c2_251 = arith.constant 2 : index
    %c0_252 = arith.constant 0 : index
    %c1_253 = arith.constant 1 : index
    %c0_254 = arith.constant 0 : index
    %c0_255 = arith.constant 0 : index
    %192 = vector.load %arg2[%c2_251, %c0_252, %c1_253, %c0_254, %c0_255] : memref<7x3x3x128x128xbf16, #tpu.memory_space<vmem>>, vector<1x1x1x128x128xbf16>
    %193 = vector.shape_cast %192 : vector<1x1x1x128x128xbf16> to vector<128x128xbf16>
    %cst_256 = arith.constant dense<0.000000e+00> : vector<64x128xf32>
    %194 = tpu.matmul %191, %193, %cst_256 {dimension_numbers = #tpu.dot_dimension_numbers<[1], [0], [0], [1], [0, 0, 1, 1], [], []>} : vector<64x128xbf16>, vector<128x128xbf16>, vector<64x128xf32> -> vector<64x128xf32>
    %195 = arith.addf %188, %194 : vector<64x128xf32>
    %c1_257 = arith.constant 1 : index
    %c1_258 = arith.constant 1 : index
    %c0_259 = arith.constant 0 : index
    %c0_260 = arith.constant 0 : index
    %196 = vector.load %arg7[%c1_257, %c1_258, %c0_259, %c0_260] : memref<3x10x8x128xbf16, #tpu.memory_space<vmem>>, vector<1x8x8x128xbf16>
    %197 = vector.shape_cast %196 : vector<1x8x8x128xbf16> to vector<8x8x128xbf16>
    %198 = vector.shape_cast %197 : vector<8x8x128xbf16> to vector<64x128xbf16>
    %c2_261 = arith.constant 2 : index
    %c1_262 = arith.constant 1 : index
    %c1_263 = arith.constant 1 : index
    %c0_264 = arith.constant 0 : index
    %c0_265 = arith.constant 0 : index
    %199 = vector.load %arg2[%c2_261, %c1_262, %c1_263, %c0_264, %c0_265] : memref<7x3x3x128x128xbf16, #tpu.memory_space<vmem>>, vector<1x1x1x128x128xbf16>
    %200 = vector.shape_cast %199 : vector<1x1x1x128x128xbf16> to vector<128x128xbf16>
    %cst_266 = arith.constant dense<0.000000e+00> : vector<64x128xf32>
    %201 = tpu.matmul %198, %200, %cst_266 {dimension_numbers = #tpu.dot_dimension_numbers<[1], [0], [0], [1], [0, 0, 1, 1], [], []>} : vector<64x128xbf16>, vector<128x128xbf16>, vector<64x128xf32> -> vector<64x128xf32>
    %202 = arith.addf %195, %201 : vector<64x128xf32>
    %c1_267 = arith.constant 1 : index
    %c2_268 = arith.constant 2 : index
    %c0_269 = arith.constant 0 : index
    %c0_270 = arith.constant 0 : index
    %203 = vector.load %arg7[%c1_267, %c2_268, %c0_269, %c0_270] : memref<3x10x8x128xbf16, #tpu.memory_space<vmem>>, vector<1x8x8x128xbf16>
    %204 = vector.shape_cast %203 : vector<1x8x8x128xbf16> to vector<8x8x128xbf16>
    %205 = vector.shape_cast %204 : vector<8x8x128xbf16> to vector<64x128xbf16>
    %c2_271 = arith.constant 2 : index
    %c2_272 = arith.constant 2 : index
    %c1_273 = arith.constant 1 : index
    %c0_274 = arith.constant 0 : index
    %c0_275 = arith.constant 0 : index
    %206 = vector.load %arg2[%c2_271, %c2_272, %c1_273, %c0_274, %c0_275] : memref<7x3x3x128x128xbf16, #tpu.memory_space<vmem>>, vector<1x1x1x128x128xbf16>
    %207 = vector.shape_cast %206 : vector<1x1x1x128x128xbf16> to vector<128x128xbf16>
    %cst_276 = arith.constant dense<0.000000e+00> : vector<64x128xf32>
    %208 = tpu.matmul %205, %207, %cst_276 {dimension_numbers = #tpu.dot_dimension_numbers<[1], [0], [0], [1], [0, 0, 1, 1], [], []>} : vector<64x128xbf16>, vector<128x128xbf16>, vector<64x128xf32> -> vector<64x128xf32>
    %209 = arith.addf %202, %208 : vector<64x128xf32>
    %c2_277 = arith.constant 2 : index
    %c0_278 = arith.constant 0 : index
    %c0_279 = arith.constant 0 : index
    %c0_280 = arith.constant 0 : index
    %210 = vector.load %arg7[%c2_277, %c0_278, %c0_279, %c0_280] : memref<3x10x8x128xbf16, #tpu.memory_space<vmem>>, vector<1x8x8x128xbf16>
    %211 = vector.shape_cast %210 : vector<1x8x8x128xbf16> to vector<8x8x128xbf16>
    %212 = vector.shape_cast %211 : vector<8x8x128xbf16> to vector<64x128xbf16>
    %c2_281 = arith.constant 2 : index
    %c0_282 = arith.constant 0 : index
    %c2_283 = arith.constant 2 : index
    %c0_284 = arith.constant 0 : index
    %c0_285 = arith.constant 0 : index
    %213 = vector.load %arg2[%c2_281, %c0_282, %c2_283, %c0_284, %c0_285] : memref<7x3x3x128x128xbf16, #tpu.memory_space<vmem>>, vector<1x1x1x128x128xbf16>
    %214 = vector.shape_cast %213 : vector<1x1x1x128x128xbf16> to vector<128x128xbf16>
    %cst_286 = arith.constant dense<0.000000e+00> : vector<64x128xf32>
    %215 = tpu.matmul %212, %214, %cst_286 {dimension_numbers = #tpu.dot_dimension_numbers<[1], [0], [0], [1], [0, 0, 1, 1], [], []>} : vector<64x128xbf16>, vector<128x128xbf16>, vector<64x128xf32> -> vector<64x128xf32>
    %216 = arith.addf %209, %215 : vector<64x128xf32>
    %c2_287 = arith.constant 2 : index
    %c1_288 = arith.constant 1 : index
    %c0_289 = arith.constant 0 : index
    %c0_290 = arith.constant 0 : index
    %217 = vector.load %arg7[%c2_287, %c1_288, %c0_289, %c0_290] : memref<3x10x8x128xbf16, #tpu.memory_space<vmem>>, vector<1x8x8x128xbf16>
    %218 = vector.shape_cast %217 : vector<1x8x8x128xbf16> to vector<8x8x128xbf16>
    %219 = vector.shape_cast %218 : vector<8x8x128xbf16> to vector<64x128xbf16>
    %c2_291 = arith.constant 2 : index
    %c1_292 = arith.constant 1 : index
    %c2_293 = arith.constant 2 : index
    %c0_294 = arith.constant 0 : index
    %c0_295 = arith.constant 0 : index
    %220 = vector.load %arg2[%c2_291, %c1_292, %c2_293, %c0_294, %c0_295] : memref<7x3x3x128x128xbf16, #tpu.memory_space<vmem>>, vector<1x1x1x128x128xbf16>
    %221 = vector.shape_cast %220 : vector<1x1x1x128x128xbf16> to vector<128x128xbf16>
    %cst_296 = arith.constant dense<0.000000e+00> : vector<64x128xf32>
    %222 = tpu.matmul %219, %221, %cst_296 {dimension_numbers = #tpu.dot_dimension_numbers<[1], [0], [0], [1], [0, 0, 1, 1], [], []>} : vector<64x128xbf16>, vector<128x128xbf16>, vector<64x128xf32> -> vector<64x128xf32>
    %223 = arith.addf %216, %222 : vector<64x128xf32>
    %c2_297 = arith.constant 2 : index
    %c2_298 = arith.constant 2 : index
    %c0_299 = arith.constant 0 : index
    %c0_300 = arith.constant 0 : index
    %224 = vector.load %arg7[%c2_297, %c2_298, %c0_299, %c0_300] : memref<3x10x8x128xbf16, #tpu.memory_space<vmem>>, vector<1x8x8x128xbf16>
    %225 = vector.shape_cast %224 : vector<1x8x8x128xbf16> to vector<8x8x128xbf16>
    %226 = vector.shape_cast %225 : vector<8x8x128xbf16> to vector<64x128xbf16>
    %c2_301 = arith.constant 2 : index
    %c2_302 = arith.constant 2 : index
    %c2_303 = arith.constant 2 : index
    %c0_304 = arith.constant 0 : index
    %c0_305 = arith.constant 0 : index
    %227 = vector.load %arg2[%c2_301, %c2_302, %c2_303, %c0_304, %c0_305] : memref<7x3x3x128x128xbf16, #tpu.memory_space<vmem>>, vector<1x1x1x128x128xbf16>
    %228 = vector.shape_cast %227 : vector<1x1x1x128x128xbf16> to vector<128x128xbf16>
    %cst_306 = arith.constant dense<0.000000e+00> : vector<64x128xf32>
    %229 = tpu.matmul %226, %228, %cst_306 {dimension_numbers = #tpu.dot_dimension_numbers<[1], [0], [0], [1], [0, 0, 1, 1], [], []>} : vector<64x128xbf16>, vector<128x128xbf16>, vector<64x128xf32> -> vector<64x128xf32>
    %230 = arith.addf %223, %229 : vector<64x128xf32>
    %c2_307 = arith.constant 2 : index
    %c0_308 = arith.constant 0 : index
    %c0_309 = arith.constant 0 : index
    %231 = vector.load %arg3[%c2_307, %c0_308, %c0_309] : memref<7x1x128xf32, #tpu.memory_space<vmem>>, vector<1x1x128xf32>
    %232 = vector.shape_cast %231 : vector<1x1x128xf32> to vector<1x128xf32>
    %233 = vector.broadcast %232 : vector<1x128xf32> to vector<64x128xf32>
    %234 = arith.addf %230, %233 : vector<64x128xf32>
    %cst_310 = arith.constant 0.000000e+00 : f32
    %235 = vector.broadcast %cst_310 : f32 to vector<64x128xf32>
    %236 = arith.maximumf %234, %235 : vector<64x128xf32>
    %237 = arith.truncf %236 : vector<64x128xf32> to vector<64x128xbf16>
    %c2_311 = arith.constant 2 : index
    %c0_312 = arith.constant 0 : index
    %c0_313 = arith.constant 0 : index
    %238 = vector.load %arg4[%c2_311, %c0_312, %c0_313] : memref<7x128x128xbf16, #tpu.memory_space<vmem>>, vector<1x128x128xbf16>
    %239 = vector.shape_cast %238 : vector<1x128x128xbf16> to vector<128x128xbf16>
    %cst_314 = arith.constant dense<0.000000e+00> : vector<64x128xf32>
    %240 = tpu.matmul %237, %239, %cst_314 {dimension_numbers = #tpu.dot_dimension_numbers<[1], [0], [0], [1], [0, 0, 1, 1], [], []>} : vector<64x128xbf16>, vector<128x128xbf16>, vector<64x128xf32> -> vector<64x128xf32>
    %241 = arith.addf %166, %240 : vector<64x128xf32>
    %cst_315 = arith.constant 0.000000e+00 : f32
    %242 = vector.broadcast %cst_315 : f32 to vector<64x128xf32>
    %c0_316 = arith.constant 0 : index
    %c0_317 = arith.constant 0 : index
    %c0_318 = arith.constant 0 : index
    %c0_319 = arith.constant 0 : index
    %243 = vector.load %arg7[%c0_316, %c0_317, %c0_318, %c0_319] : memref<3x10x8x128xbf16, #tpu.memory_space<vmem>>, vector<1x8x8x128xbf16>
    %244 = vector.shape_cast %243 : vector<1x8x8x128xbf16> to vector<8x8x128xbf16>
    %245 = vector.shape_cast %244 : vector<8x8x128xbf16> to vector<64x128xbf16>
    %c3 = arith.constant 3 : index
    %c0_320 = arith.constant 0 : index
    %c0_321 = arith.constant 0 : index
    %c0_322 = arith.constant 0 : index
    %c0_323 = arith.constant 0 : index
    %246 = vector.load %arg2[%c3, %c0_320, %c0_321, %c0_322, %c0_323] : memref<7x3x3x128x128xbf16, #tpu.memory_space<vmem>>, vector<1x1x1x128x128xbf16>
    %247 = vector.shape_cast %246 : vector<1x1x1x128x128xbf16> to vector<128x128xbf16>
    %cst_324 = arith.constant dense<0.000000e+00> : vector<64x128xf32>
    %248 = tpu.matmul %245, %247, %cst_324 {dimension_numbers = #tpu.dot_dimension_numbers<[1], [0], [0], [1], [0, 0, 1, 1], [], []>} : vector<64x128xbf16>, vector<128x128xbf16>, vector<64x128xf32> -> vector<64x128xf32>
    %249 = arith.addf %242, %248 : vector<64x128xf32>
    %c0_325 = arith.constant 0 : index
    %c1_326 = arith.constant 1 : index
    %c0_327 = arith.constant 0 : index
    %c0_328 = arith.constant 0 : index
    %250 = vector.load %arg7[%c0_325, %c1_326, %c0_327, %c0_328] : memref<3x10x8x128xbf16, #tpu.memory_space<vmem>>, vector<1x8x8x128xbf16>
    %251 = vector.shape_cast %250 : vector<1x8x8x128xbf16> to vector<8x8x128xbf16>
    %252 = vector.shape_cast %251 : vector<8x8x128xbf16> to vector<64x128xbf16>
    %c3_329 = arith.constant 3 : index
    %c1_330 = arith.constant 1 : index
    %c0_331 = arith.constant 0 : index
    %c0_332 = arith.constant 0 : index
    %c0_333 = arith.constant 0 : index
    %253 = vector.load %arg2[%c3_329, %c1_330, %c0_331, %c0_332, %c0_333] : memref<7x3x3x128x128xbf16, #tpu.memory_space<vmem>>, vector<1x1x1x128x128xbf16>
    %254 = vector.shape_cast %253 : vector<1x1x1x128x128xbf16> to vector<128x128xbf16>
    %cst_334 = arith.constant dense<0.000000e+00> : vector<64x128xf32>
    %255 = tpu.matmul %252, %254, %cst_334 {dimension_numbers = #tpu.dot_dimension_numbers<[1], [0], [0], [1], [0, 0, 1, 1], [], []>} : vector<64x128xbf16>, vector<128x128xbf16>, vector<64x128xf32> -> vector<64x128xf32>
    %256 = arith.addf %249, %255 : vector<64x128xf32>
    %c0_335 = arith.constant 0 : index
    %c2_336 = arith.constant 2 : index
    %c0_337 = arith.constant 0 : index
    %c0_338 = arith.constant 0 : index
    %257 = vector.load %arg7[%c0_335, %c2_336, %c0_337, %c0_338] : memref<3x10x8x128xbf16, #tpu.memory_space<vmem>>, vector<1x8x8x128xbf16>
    %258 = vector.shape_cast %257 : vector<1x8x8x128xbf16> to vector<8x8x128xbf16>
    %259 = vector.shape_cast %258 : vector<8x8x128xbf16> to vector<64x128xbf16>
    %c3_339 = arith.constant 3 : index
    %c2_340 = arith.constant 2 : index
    %c0_341 = arith.constant 0 : index
    %c0_342 = arith.constant 0 : index
    %c0_343 = arith.constant 0 : index
    %260 = vector.load %arg2[%c3_339, %c2_340, %c0_341, %c0_342, %c0_343] : memref<7x3x3x128x128xbf16, #tpu.memory_space<vmem>>, vector<1x1x1x128x128xbf16>
    %261 = vector.shape_cast %260 : vector<1x1x1x128x128xbf16> to vector<128x128xbf16>
    %cst_344 = arith.constant dense<0.000000e+00> : vector<64x128xf32>
    %262 = tpu.matmul %259, %261, %cst_344 {dimension_numbers = #tpu.dot_dimension_numbers<[1], [0], [0], [1], [0, 0, 1, 1], [], []>} : vector<64x128xbf16>, vector<128x128xbf16>, vector<64x128xf32> -> vector<64x128xf32>
    %263 = arith.addf %256, %262 : vector<64x128xf32>
    %c1_345 = arith.constant 1 : index
    %c0_346 = arith.constant 0 : index
    %c0_347 = arith.constant 0 : index
    %c0_348 = arith.constant 0 : index
    %264 = vector.load %arg7[%c1_345, %c0_346, %c0_347, %c0_348] : memref<3x10x8x128xbf16, #tpu.memory_space<vmem>>, vector<1x8x8x128xbf16>
    %265 = vector.shape_cast %264 : vector<1x8x8x128xbf16> to vector<8x8x128xbf16>
    %266 = vector.shape_cast %265 : vector<8x8x128xbf16> to vector<64x128xbf16>
    %c3_349 = arith.constant 3 : index
    %c0_350 = arith.constant 0 : index
    %c1_351 = arith.constant 1 : index
    %c0_352 = arith.constant 0 : index
    %c0_353 = arith.constant 0 : index
    %267 = vector.load %arg2[%c3_349, %c0_350, %c1_351, %c0_352, %c0_353] : memref<7x3x3x128x128xbf16, #tpu.memory_space<vmem>>, vector<1x1x1x128x128xbf16>
    %268 = vector.shape_cast %267 : vector<1x1x1x128x128xbf16> to vector<128x128xbf16>
    %cst_354 = arith.constant dense<0.000000e+00> : vector<64x128xf32>
    %269 = tpu.matmul %266, %268, %cst_354 {dimension_numbers = #tpu.dot_dimension_numbers<[1], [0], [0], [1], [0, 0, 1, 1], [], []>} : vector<64x128xbf16>, vector<128x128xbf16>, vector<64x128xf32> -> vector<64x128xf32>
    %270 = arith.addf %263, %269 : vector<64x128xf32>
    %c1_355 = arith.constant 1 : index
    %c1_356 = arith.constant 1 : index
    %c0_357 = arith.constant 0 : index
    %c0_358 = arith.constant 0 : index
    %271 = vector.load %arg7[%c1_355, %c1_356, %c0_357, %c0_358] : memref<3x10x8x128xbf16, #tpu.memory_space<vmem>>, vector<1x8x8x128xbf16>
    %272 = vector.shape_cast %271 : vector<1x8x8x128xbf16> to vector<8x8x128xbf16>
    %273 = vector.shape_cast %272 : vector<8x8x128xbf16> to vector<64x128xbf16>
    %c3_359 = arith.constant 3 : index
    %c1_360 = arith.constant 1 : index
    %c1_361 = arith.constant 1 : index
    %c0_362 = arith.constant 0 : index
    %c0_363 = arith.constant 0 : index
    %274 = vector.load %arg2[%c3_359, %c1_360, %c1_361, %c0_362, %c0_363] : memref<7x3x3x128x128xbf16, #tpu.memory_space<vmem>>, vector<1x1x1x128x128xbf16>
    %275 = vector.shape_cast %274 : vector<1x1x1x128x128xbf16> to vector<128x128xbf16>
    %cst_364 = arith.constant dense<0.000000e+00> : vector<64x128xf32>
    %276 = tpu.matmul %273, %275, %cst_364 {dimension_numbers = #tpu.dot_dimension_numbers<[1], [0], [0], [1], [0, 0, 1, 1], [], []>} : vector<64x128xbf16>, vector<128x128xbf16>, vector<64x128xf32> -> vector<64x128xf32>
    %277 = arith.addf %270, %276 : vector<64x128xf32>
    %c1_365 = arith.constant 1 : index
    %c2_366 = arith.constant 2 : index
    %c0_367 = arith.constant 0 : index
    %c0_368 = arith.constant 0 : index
    %278 = vector.load %arg7[%c1_365, %c2_366, %c0_367, %c0_368] : memref<3x10x8x128xbf16, #tpu.memory_space<vmem>>, vector<1x8x8x128xbf16>
    %279 = vector.shape_cast %278 : vector<1x8x8x128xbf16> to vector<8x8x128xbf16>
    %280 = vector.shape_cast %279 : vector<8x8x128xbf16> to vector<64x128xbf16>
    %c3_369 = arith.constant 3 : index
    %c2_370 = arith.constant 2 : index
    %c1_371 = arith.constant 1 : index
    %c0_372 = arith.constant 0 : index
    %c0_373 = arith.constant 0 : index
    %281 = vector.load %arg2[%c3_369, %c2_370, %c1_371, %c0_372, %c0_373] : memref<7x3x3x128x128xbf16, #tpu.memory_space<vmem>>, vector<1x1x1x128x128xbf16>
    %282 = vector.shape_cast %281 : vector<1x1x1x128x128xbf16> to vector<128x128xbf16>
    %cst_374 = arith.constant dense<0.000000e+00> : vector<64x128xf32>
    %283 = tpu.matmul %280, %282, %cst_374 {dimension_numbers = #tpu.dot_dimension_numbers<[1], [0], [0], [1], [0, 0, 1, 1], [], []>} : vector<64x128xbf16>, vector<128x128xbf16>, vector<64x128xf32> -> vector<64x128xf32>
    %284 = arith.addf %277, %283 : vector<64x128xf32>
    %c2_375 = arith.constant 2 : index
    %c0_376 = arith.constant 0 : index
    %c0_377 = arith.constant 0 : index
    %c0_378 = arith.constant 0 : index
    %285 = vector.load %arg7[%c2_375, %c0_376, %c0_377, %c0_378] : memref<3x10x8x128xbf16, #tpu.memory_space<vmem>>, vector<1x8x8x128xbf16>
    %286 = vector.shape_cast %285 : vector<1x8x8x128xbf16> to vector<8x8x128xbf16>
    %287 = vector.shape_cast %286 : vector<8x8x128xbf16> to vector<64x128xbf16>
    %c3_379 = arith.constant 3 : index
    %c0_380 = arith.constant 0 : index
    %c2_381 = arith.constant 2 : index
    %c0_382 = arith.constant 0 : index
    %c0_383 = arith.constant 0 : index
    %288 = vector.load %arg2[%c3_379, %c0_380, %c2_381, %c0_382, %c0_383] : memref<7x3x3x128x128xbf16, #tpu.memory_space<vmem>>, vector<1x1x1x128x128xbf16>
    %289 = vector.shape_cast %288 : vector<1x1x1x128x128xbf16> to vector<128x128xbf16>
    %cst_384 = arith.constant dense<0.000000e+00> : vector<64x128xf32>
    %290 = tpu.matmul %287, %289, %cst_384 {dimension_numbers = #tpu.dot_dimension_numbers<[1], [0], [0], [1], [0, 0, 1, 1], [], []>} : vector<64x128xbf16>, vector<128x128xbf16>, vector<64x128xf32> -> vector<64x128xf32>
    %291 = arith.addf %284, %290 : vector<64x128xf32>
    %c2_385 = arith.constant 2 : index
    %c1_386 = arith.constant 1 : index
    %c0_387 = arith.constant 0 : index
    %c0_388 = arith.constant 0 : index
    %292 = vector.load %arg7[%c2_385, %c1_386, %c0_387, %c0_388] : memref<3x10x8x128xbf16, #tpu.memory_space<vmem>>, vector<1x8x8x128xbf16>
    %293 = vector.shape_cast %292 : vector<1x8x8x128xbf16> to vector<8x8x128xbf16>
    %294 = vector.shape_cast %293 : vector<8x8x128xbf16> to vector<64x128xbf16>
    %c3_389 = arith.constant 3 : index
    %c1_390 = arith.constant 1 : index
    %c2_391 = arith.constant 2 : index
    %c0_392 = arith.constant 0 : index
    %c0_393 = arith.constant 0 : index
    %295 = vector.load %arg2[%c3_389, %c1_390, %c2_391, %c0_392, %c0_393] : memref<7x3x3x128x128xbf16, #tpu.memory_space<vmem>>, vector<1x1x1x128x128xbf16>
    %296 = vector.shape_cast %295 : vector<1x1x1x128x128xbf16> to vector<128x128xbf16>
    %cst_394 = arith.constant dense<0.000000e+00> : vector<64x128xf32>
    %297 = tpu.matmul %294, %296, %cst_394 {dimension_numbers = #tpu.dot_dimension_numbers<[1], [0], [0], [1], [0, 0, 1, 1], [], []>} : vector<64x128xbf16>, vector<128x128xbf16>, vector<64x128xf32> -> vector<64x128xf32>
    %298 = arith.addf %291, %297 : vector<64x128xf32>
    %c2_395 = arith.constant 2 : index
    %c2_396 = arith.constant 2 : index
    %c0_397 = arith.constant 0 : index
    %c0_398 = arith.constant 0 : index
    %299 = vector.load %arg7[%c2_395, %c2_396, %c0_397, %c0_398] : memref<3x10x8x128xbf16, #tpu.memory_space<vmem>>, vector<1x8x8x128xbf16>
    %300 = vector.shape_cast %299 : vector<1x8x8x128xbf16> to vector<8x8x128xbf16>
    %301 = vector.shape_cast %300 : vector<8x8x128xbf16> to vector<64x128xbf16>
    %c3_399 = arith.constant 3 : index
    %c2_400 = arith.constant 2 : index
    %c2_401 = arith.constant 2 : index
    %c0_402 = arith.constant 0 : index
    %c0_403 = arith.constant 0 : index
    %302 = vector.load %arg2[%c3_399, %c2_400, %c2_401, %c0_402, %c0_403] : memref<7x3x3x128x128xbf16, #tpu.memory_space<vmem>>, vector<1x1x1x128x128xbf16>
    %303 = vector.shape_cast %302 : vector<1x1x1x128x128xbf16> to vector<128x128xbf16>
    %cst_404 = arith.constant dense<0.000000e+00> : vector<64x128xf32>
    %304 = tpu.matmul %301, %303, %cst_404 {dimension_numbers = #tpu.dot_dimension_numbers<[1], [0], [0], [1], [0, 0, 1, 1], [], []>} : vector<64x128xbf16>, vector<128x128xbf16>, vector<64x128xf32> -> vector<64x128xf32>
    %305 = arith.addf %298, %304 : vector<64x128xf32>
    %c3_405 = arith.constant 3 : index
    %c0_406 = arith.constant 0 : index
    %c0_407 = arith.constant 0 : index
    %306 = vector.load %arg3[%c3_405, %c0_406, %c0_407] : memref<7x1x128xf32, #tpu.memory_space<vmem>>, vector<1x1x128xf32>
    %307 = vector.shape_cast %306 : vector<1x1x128xf32> to vector<1x128xf32>
    %308 = vector.broadcast %307 : vector<1x128xf32> to vector<64x128xf32>
    %309 = arith.addf %305, %308 : vector<64x128xf32>
    %cst_408 = arith.constant 0.000000e+00 : f32
    %310 = vector.broadcast %cst_408 : f32 to vector<64x128xf32>
    %311 = arith.maximumf %309, %310 : vector<64x128xf32>
    %312 = arith.truncf %311 : vector<64x128xf32> to vector<64x128xbf16>
    %c3_409 = arith.constant 3 : index
    %c0_410 = arith.constant 0 : index
    %c0_411 = arith.constant 0 : index
    %313 = vector.load %arg4[%c3_409, %c0_410, %c0_411] : memref<7x128x128xbf16, #tpu.memory_space<vmem>>, vector<1x128x128xbf16>
    %314 = vector.shape_cast %313 : vector<1x128x128xbf16> to vector<128x128xbf16>
    %cst_412 = arith.constant dense<0.000000e+00> : vector<64x128xf32>
    %315 = tpu.matmul %312, %314, %cst_412 {dimension_numbers = #tpu.dot_dimension_numbers<[1], [0], [0], [1], [0, 0, 1, 1], [], []>} : vector<64x128xbf16>, vector<128x128xbf16>, vector<64x128xf32> -> vector<64x128xf32>
    %316 = arith.addf %241, %315 : vector<64x128xf32>
    %cst_413 = arith.constant 0.000000e+00 : f32
    %317 = vector.broadcast %cst_413 : f32 to vector<64x128xf32>
    %c0_414 = arith.constant 0 : index
    %c0_415 = arith.constant 0 : index
    %c0_416 = arith.constant 0 : index
    %c0_417 = arith.constant 0 : index
    %318 = vector.load %arg7[%c0_414, %c0_415, %c0_416, %c0_417] : memref<3x10x8x128xbf16, #tpu.memory_space<vmem>>, vector<1x8x8x128xbf16>
    %319 = vector.shape_cast %318 : vector<1x8x8x128xbf16> to vector<8x8x128xbf16>
    %320 = vector.shape_cast %319 : vector<8x8x128xbf16> to vector<64x128xbf16>
    %c4 = arith.constant 4 : index
    %c0_418 = arith.constant 0 : index
    %c0_419 = arith.constant 0 : index
    %c0_420 = arith.constant 0 : index
    %c0_421 = arith.constant 0 : index
    %321 = vector.load %arg2[%c4, %c0_418, %c0_419, %c0_420, %c0_421] : memref<7x3x3x128x128xbf16, #tpu.memory_space<vmem>>, vector<1x1x1x128x128xbf16>
    %322 = vector.shape_cast %321 : vector<1x1x1x128x128xbf16> to vector<128x128xbf16>
    %cst_422 = arith.constant dense<0.000000e+00> : vector<64x128xf32>
    %323 = tpu.matmul %320, %322, %cst_422 {dimension_numbers = #tpu.dot_dimension_numbers<[1], [0], [0], [1], [0, 0, 1, 1], [], []>} : vector<64x128xbf16>, vector<128x128xbf16>, vector<64x128xf32> -> vector<64x128xf32>
    %324 = arith.addf %317, %323 : vector<64x128xf32>
    %c0_423 = arith.constant 0 : index
    %c1_424 = arith.constant 1 : index
    %c0_425 = arith.constant 0 : index
    %c0_426 = arith.constant 0 : index
    %325 = vector.load %arg7[%c0_423, %c1_424, %c0_425, %c0_426] : memref<3x10x8x128xbf16, #tpu.memory_space<vmem>>, vector<1x8x8x128xbf16>
    %326 = vector.shape_cast %325 : vector<1x8x8x128xbf16> to vector<8x8x128xbf16>
    %327 = vector.shape_cast %326 : vector<8x8x128xbf16> to vector<64x128xbf16>
    %c4_427 = arith.constant 4 : index
    %c1_428 = arith.constant 1 : index
    %c0_429 = arith.constant 0 : index
    %c0_430 = arith.constant 0 : index
    %c0_431 = arith.constant 0 : index
    %328 = vector.load %arg2[%c4_427, %c1_428, %c0_429, %c0_430, %c0_431] : memref<7x3x3x128x128xbf16, #tpu.memory_space<vmem>>, vector<1x1x1x128x128xbf16>
    %329 = vector.shape_cast %328 : vector<1x1x1x128x128xbf16> to vector<128x128xbf16>
    %cst_432 = arith.constant dense<0.000000e+00> : vector<64x128xf32>
    %330 = tpu.matmul %327, %329, %cst_432 {dimension_numbers = #tpu.dot_dimension_numbers<[1], [0], [0], [1], [0, 0, 1, 1], [], []>} : vector<64x128xbf16>, vector<128x128xbf16>, vector<64x128xf32> -> vector<64x128xf32>
    %331 = arith.addf %324, %330 : vector<64x128xf32>
    %c0_433 = arith.constant 0 : index
    %c2_434 = arith.constant 2 : index
    %c0_435 = arith.constant 0 : index
    %c0_436 = arith.constant 0 : index
    %332 = vector.load %arg7[%c0_433, %c2_434, %c0_435, %c0_436] : memref<3x10x8x128xbf16, #tpu.memory_space<vmem>>, vector<1x8x8x128xbf16>
    %333 = vector.shape_cast %332 : vector<1x8x8x128xbf16> to vector<8x8x128xbf16>
    %334 = vector.shape_cast %333 : vector<8x8x128xbf16> to vector<64x128xbf16>
    %c4_437 = arith.constant 4 : index
    %c2_438 = arith.constant 2 : index
    %c0_439 = arith.constant 0 : index
    %c0_440 = arith.constant 0 : index
    %c0_441 = arith.constant 0 : index
    %335 = vector.load %arg2[%c4_437, %c2_438, %c0_439, %c0_440, %c0_441] : memref<7x3x3x128x128xbf16, #tpu.memory_space<vmem>>, vector<1x1x1x128x128xbf16>
    %336 = vector.shape_cast %335 : vector<1x1x1x128x128xbf16> to vector<128x128xbf16>
    %cst_442 = arith.constant dense<0.000000e+00> : vector<64x128xf32>
    %337 = tpu.matmul %334, %336, %cst_442 {dimension_numbers = #tpu.dot_dimension_numbers<[1], [0], [0], [1], [0, 0, 1, 1], [], []>} : vector<64x128xbf16>, vector<128x128xbf16>, vector<64x128xf32> -> vector<64x128xf32>
    %338 = arith.addf %331, %337 : vector<64x128xf32>
    %c1_443 = arith.constant 1 : index
    %c0_444 = arith.constant 0 : index
    %c0_445 = arith.constant 0 : index
    %c0_446 = arith.constant 0 : index
    %339 = vector.load %arg7[%c1_443, %c0_444, %c0_445, %c0_446] : memref<3x10x8x128xbf16, #tpu.memory_space<vmem>>, vector<1x8x8x128xbf16>
    %340 = vector.shape_cast %339 : vector<1x8x8x128xbf16> to vector<8x8x128xbf16>
    %341 = vector.shape_cast %340 : vector<8x8x128xbf16> to vector<64x128xbf16>
    %c4_447 = arith.constant 4 : index
    %c0_448 = arith.constant 0 : index
    %c1_449 = arith.constant 1 : index
    %c0_450 = arith.constant 0 : index
    %c0_451 = arith.constant 0 : index
    %342 = vector.load %arg2[%c4_447, %c0_448, %c1_449, %c0_450, %c0_451] : memref<7x3x3x128x128xbf16, #tpu.memory_space<vmem>>, vector<1x1x1x128x128xbf16>
    %343 = vector.shape_cast %342 : vector<1x1x1x128x128xbf16> to vector<128x128xbf16>
    %cst_452 = arith.constant dense<0.000000e+00> : vector<64x128xf32>
    %344 = tpu.matmul %341, %343, %cst_452 {dimension_numbers = #tpu.dot_dimension_numbers<[1], [0], [0], [1], [0, 0, 1, 1], [], []>} : vector<64x128xbf16>, vector<128x128xbf16>, vector<64x128xf32> -> vector<64x128xf32>
    %345 = arith.addf %338, %344 : vector<64x128xf32>
    %c1_453 = arith.constant 1 : index
    %c1_454 = arith.constant 1 : index
    %c0_455 = arith.constant 0 : index
    %c0_456 = arith.constant 0 : index
    %346 = vector.load %arg7[%c1_453, %c1_454, %c0_455, %c0_456] : memref<3x10x8x128xbf16, #tpu.memory_space<vmem>>, vector<1x8x8x128xbf16>
    %347 = vector.shape_cast %346 : vector<1x8x8x128xbf16> to vector<8x8x128xbf16>
    %348 = vector.shape_cast %347 : vector<8x8x128xbf16> to vector<64x128xbf16>
    %c4_457 = arith.constant 4 : index
    %c1_458 = arith.constant 1 : index
    %c1_459 = arith.constant 1 : index
    %c0_460 = arith.constant 0 : index
    %c0_461 = arith.constant 0 : index
    %349 = vector.load %arg2[%c4_457, %c1_458, %c1_459, %c0_460, %c0_461] : memref<7x3x3x128x128xbf16, #tpu.memory_space<vmem>>, vector<1x1x1x128x128xbf16>
    %350 = vector.shape_cast %349 : vector<1x1x1x128x128xbf16> to vector<128x128xbf16>
    %cst_462 = arith.constant dense<0.000000e+00> : vector<64x128xf32>
    %351 = tpu.matmul %348, %350, %cst_462 {dimension_numbers = #tpu.dot_dimension_numbers<[1], [0], [0], [1], [0, 0, 1, 1], [], []>} : vector<64x128xbf16>, vector<128x128xbf16>, vector<64x128xf32> -> vector<64x128xf32>
    %352 = arith.addf %345, %351 : vector<64x128xf32>
    %c1_463 = arith.constant 1 : index
    %c2_464 = arith.constant 2 : index
    %c0_465 = arith.constant 0 : index
    %c0_466 = arith.constant 0 : index
    %353 = vector.load %arg7[%c1_463, %c2_464, %c0_465, %c0_466] : memref<3x10x8x128xbf16, #tpu.memory_space<vmem>>, vector<1x8x8x128xbf16>
    %354 = vector.shape_cast %353 : vector<1x8x8x128xbf16> to vector<8x8x128xbf16>
    %355 = vector.shape_cast %354 : vector<8x8x128xbf16> to vector<64x128xbf16>
    %c4_467 = arith.constant 4 : index
    %c2_468 = arith.constant 2 : index
    %c1_469 = arith.constant 1 : index
    %c0_470 = arith.constant 0 : index
    %c0_471 = arith.constant 0 : index
    %356 = vector.load %arg2[%c4_467, %c2_468, %c1_469, %c0_470, %c0_471] : memref<7x3x3x128x128xbf16, #tpu.memory_space<vmem>>, vector<1x1x1x128x128xbf16>
    %357 = vector.shape_cast %356 : vector<1x1x1x128x128xbf16> to vector<128x128xbf16>
    %cst_472 = arith.constant dense<0.000000e+00> : vector<64x128xf32>
    %358 = tpu.matmul %355, %357, %cst_472 {dimension_numbers = #tpu.dot_dimension_numbers<[1], [0], [0], [1], [0, 0, 1, 1], [], []>} : vector<64x128xbf16>, vector<128x128xbf16>, vector<64x128xf32> -> vector<64x128xf32>
    %359 = arith.addf %352, %358 : vector<64x128xf32>
    %c2_473 = arith.constant 2 : index
    %c0_474 = arith.constant 0 : index
    %c0_475 = arith.constant 0 : index
    %c0_476 = arith.constant 0 : index
    %360 = vector.load %arg7[%c2_473, %c0_474, %c0_475, %c0_476] : memref<3x10x8x128xbf16, #tpu.memory_space<vmem>>, vector<1x8x8x128xbf16>
    %361 = vector.shape_cast %360 : vector<1x8x8x128xbf16> to vector<8x8x128xbf16>
    %362 = vector.shape_cast %361 : vector<8x8x128xbf16> to vector<64x128xbf16>
    %c4_477 = arith.constant 4 : index
    %c0_478 = arith.constant 0 : index
    %c2_479 = arith.constant 2 : index
    %c0_480 = arith.constant 0 : index
    %c0_481 = arith.constant 0 : index
    %363 = vector.load %arg2[%c4_477, %c0_478, %c2_479, %c0_480, %c0_481] : memref<7x3x3x128x128xbf16, #tpu.memory_space<vmem>>, vector<1x1x1x128x128xbf16>
    %364 = vector.shape_cast %363 : vector<1x1x1x128x128xbf16> to vector<128x128xbf16>
    %cst_482 = arith.constant dense<0.000000e+00> : vector<64x128xf32>
    %365 = tpu.matmul %362, %364, %cst_482 {dimension_numbers = #tpu.dot_dimension_numbers<[1], [0], [0], [1], [0, 0, 1, 1], [], []>} : vector<64x128xbf16>, vector<128x128xbf16>, vector<64x128xf32> -> vector<64x128xf32>
    %366 = arith.addf %359, %365 : vector<64x128xf32>
    %c2_483 = arith.constant 2 : index
    %c1_484 = arith.constant 1 : index
    %c0_485 = arith.constant 0 : index
    %c0_486 = arith.constant 0 : index
    %367 = vector.load %arg7[%c2_483, %c1_484, %c0_485, %c0_486] : memref<3x10x8x128xbf16, #tpu.memory_space<vmem>>, vector<1x8x8x128xbf16>
    %368 = vector.shape_cast %367 : vector<1x8x8x128xbf16> to vector<8x8x128xbf16>
    %369 = vector.shape_cast %368 : vector<8x8x128xbf16> to vector<64x128xbf16>
    %c4_487 = arith.constant 4 : index
    %c1_488 = arith.constant 1 : index
    %c2_489 = arith.constant 2 : index
    %c0_490 = arith.constant 0 : index
    %c0_491 = arith.constant 0 : index
    %370 = vector.load %arg2[%c4_487, %c1_488, %c2_489, %c0_490, %c0_491] : memref<7x3x3x128x128xbf16, #tpu.memory_space<vmem>>, vector<1x1x1x128x128xbf16>
    %371 = vector.shape_cast %370 : vector<1x1x1x128x128xbf16> to vector<128x128xbf16>
    %cst_492 = arith.constant dense<0.000000e+00> : vector<64x128xf32>
    %372 = tpu.matmul %369, %371, %cst_492 {dimension_numbers = #tpu.dot_dimension_numbers<[1], [0], [0], [1], [0, 0, 1, 1], [], []>} : vector<64x128xbf16>, vector<128x128xbf16>, vector<64x128xf32> -> vector<64x128xf32>
    %373 = arith.addf %366, %372 : vector<64x128xf32>
    %c2_493 = arith.constant 2 : index
    %c2_494 = arith.constant 2 : index
    %c0_495 = arith.constant 0 : index
    %c0_496 = arith.constant 0 : index
    %374 = vector.load %arg7[%c2_493, %c2_494, %c0_495, %c0_496] : memref<3x10x8x128xbf16, #tpu.memory_space<vmem>>, vector<1x8x8x128xbf16>
    %375 = vector.shape_cast %374 : vector<1x8x8x128xbf16> to vector<8x8x128xbf16>
    %376 = vector.shape_cast %375 : vector<8x8x128xbf16> to vector<64x128xbf16>
    %c4_497 = arith.constant 4 : index
    %c2_498 = arith.constant 2 : index
    %c2_499 = arith.constant 2 : index
    %c0_500 = arith.constant 0 : index
    %c0_501 = arith.constant 0 : index
    %377 = vector.load %arg2[%c4_497, %c2_498, %c2_499, %c0_500, %c0_501] : memref<7x3x3x128x128xbf16, #tpu.memory_space<vmem>>, vector<1x1x1x128x128xbf16>
    %378 = vector.shape_cast %377 : vector<1x1x1x128x128xbf16> to vector<128x128xbf16>
    %cst_502 = arith.constant dense<0.000000e+00> : vector<64x128xf32>
    %379 = tpu.matmul %376, %378, %cst_502 {dimension_numbers = #tpu.dot_dimension_numbers<[1], [0], [0], [1], [0, 0, 1, 1], [], []>} : vector<64x128xbf16>, vector<128x128xbf16>, vector<64x128xf32> -> vector<64x128xf32>
    %380 = arith.addf %373, %379 : vector<64x128xf32>
    %c4_503 = arith.constant 4 : index
    %c0_504 = arith.constant 0 : index
    %c0_505 = arith.constant 0 : index
    %381 = vector.load %arg3[%c4_503, %c0_504, %c0_505] : memref<7x1x128xf32, #tpu.memory_space<vmem>>, vector<1x1x128xf32>
    %382 = vector.shape_cast %381 : vector<1x1x128xf32> to vector<1x128xf32>
    %383 = vector.broadcast %382 : vector<1x128xf32> to vector<64x128xf32>
    %384 = arith.addf %380, %383 : vector<64x128xf32>
    %cst_506 = arith.constant 0.000000e+00 : f32
    %385 = vector.broadcast %cst_506 : f32 to vector<64x128xf32>
    %386 = arith.maximumf %384, %385 : vector<64x128xf32>
    %387 = arith.truncf %386 : vector<64x128xf32> to vector<64x128xbf16>
    %c4_507 = arith.constant 4 : index
    %c0_508 = arith.constant 0 : index
    %c0_509 = arith.constant 0 : index
    %388 = vector.load %arg4[%c4_507, %c0_508, %c0_509] : memref<7x128x128xbf16, #tpu.memory_space<vmem>>, vector<1x128x128xbf16>
    %389 = vector.shape_cast %388 : vector<1x128x128xbf16> to vector<128x128xbf16>
    %cst_510 = arith.constant dense<0.000000e+00> : vector<64x128xf32>
    %390 = tpu.matmul %387, %389, %cst_510 {dimension_numbers = #tpu.dot_dimension_numbers<[1], [0], [0], [1], [0, 0, 1, 1], [], []>} : vector<64x128xbf16>, vector<128x128xbf16>, vector<64x128xf32> -> vector<64x128xf32>
    %391 = arith.addf %316, %390 : vector<64x128xf32>
    %cst_511 = arith.constant 0.000000e+00 : f32
    %392 = vector.broadcast %cst_511 : f32 to vector<64x128xf32>
    %c0_512 = arith.constant 0 : index
    %c0_513 = arith.constant 0 : index
    %c0_514 = arith.constant 0 : index
    %c0_515 = arith.constant 0 : index
    %393 = vector.load %arg7[%c0_512, %c0_513, %c0_514, %c0_515] : memref<3x10x8x128xbf16, #tpu.memory_space<vmem>>, vector<1x8x8x128xbf16>
    %394 = vector.shape_cast %393 : vector<1x8x8x128xbf16> to vector<8x8x128xbf16>
    %395 = vector.shape_cast %394 : vector<8x8x128xbf16> to vector<64x128xbf16>
    %c5 = arith.constant 5 : index
    %c0_516 = arith.constant 0 : index
    %c0_517 = arith.constant 0 : index
    %c0_518 = arith.constant 0 : index
    %c0_519 = arith.constant 0 : index
    %396 = vector.load %arg2[%c5, %c0_516, %c0_517, %c0_518, %c0_519] : memref<7x3x3x128x128xbf16, #tpu.memory_space<vmem>>, vector<1x1x1x128x128xbf16>
    %397 = vector.shape_cast %396 : vector<1x1x1x128x128xbf16> to vector<128x128xbf16>
    %cst_520 = arith.constant dense<0.000000e+00> : vector<64x128xf32>
    %398 = tpu.matmul %395, %397, %cst_520 {dimension_numbers = #tpu.dot_dimension_numbers<[1], [0], [0], [1], [0, 0, 1, 1], [], []>} : vector<64x128xbf16>, vector<128x128xbf16>, vector<64x128xf32> -> vector<64x128xf32>
    %399 = arith.addf %392, %398 : vector<64x128xf32>
    %c0_521 = arith.constant 0 : index
    %c1_522 = arith.constant 1 : index
    %c0_523 = arith.constant 0 : index
    %c0_524 = arith.constant 0 : index
    %400 = vector.load %arg7[%c0_521, %c1_522, %c0_523, %c0_524] : memref<3x10x8x128xbf16, #tpu.memory_space<vmem>>, vector<1x8x8x128xbf16>
    %401 = vector.shape_cast %400 : vector<1x8x8x128xbf16> to vector<8x8x128xbf16>
    %402 = vector.shape_cast %401 : vector<8x8x128xbf16> to vector<64x128xbf16>
    %c5_525 = arith.constant 5 : index
    %c1_526 = arith.constant 1 : index
    %c0_527 = arith.constant 0 : index
    %c0_528 = arith.constant 0 : index
    %c0_529 = arith.constant 0 : index
    %403 = vector.load %arg2[%c5_525, %c1_526, %c0_527, %c0_528, %c0_529] : memref<7x3x3x128x128xbf16, #tpu.memory_space<vmem>>, vector<1x1x1x128x128xbf16>
    %404 = vector.shape_cast %403 : vector<1x1x1x128x128xbf16> to vector<128x128xbf16>
    %cst_530 = arith.constant dense<0.000000e+00> : vector<64x128xf32>
    %405 = tpu.matmul %402, %404, %cst_530 {dimension_numbers = #tpu.dot_dimension_numbers<[1], [0], [0], [1], [0, 0, 1, 1], [], []>} : vector<64x128xbf16>, vector<128x128xbf16>, vector<64x128xf32> -> vector<64x128xf32>
    %406 = arith.addf %399, %405 : vector<64x128xf32>
    %c0_531 = arith.constant 0 : index
    %c2_532 = arith.constant 2 : index
    %c0_533 = arith.constant 0 : index
    %c0_534 = arith.constant 0 : index
    %407 = vector.load %arg7[%c0_531, %c2_532, %c0_533, %c0_534] : memref<3x10x8x128xbf16, #tpu.memory_space<vmem>>, vector<1x8x8x128xbf16>
    %408 = vector.shape_cast %407 : vector<1x8x8x128xbf16> to vector<8x8x128xbf16>
    %409 = vector.shape_cast %408 : vector<8x8x128xbf16> to vector<64x128xbf16>
    %c5_535 = arith.constant 5 : index
    %c2_536 = arith.constant 2 : index
    %c0_537 = arith.constant 0 : index
    %c0_538 = arith.constant 0 : index
    %c0_539 = arith.constant 0 : index
    %410 = vector.load %arg2[%c5_535, %c2_536, %c0_537, %c0_538, %c0_539] : memref<7x3x3x128x128xbf16, #tpu.memory_space<vmem>>, vector<1x1x1x128x128xbf16>
    %411 = vector.shape_cast %410 : vector<1x1x1x128x128xbf16> to vector<128x128xbf16>
    %cst_540 = arith.constant dense<0.000000e+00> : vector<64x128xf32>
    %412 = tpu.matmul %409, %411, %cst_540 {dimension_numbers = #tpu.dot_dimension_numbers<[1], [0], [0], [1], [0, 0, 1, 1], [], []>} : vector<64x128xbf16>, vector<128x128xbf16>, vector<64x128xf32> -> vector<64x128xf32>
    %413 = arith.addf %406, %412 : vector<64x128xf32>
    %c1_541 = arith.constant 1 : index
    %c0_542 = arith.constant 0 : index
    %c0_543 = arith.constant 0 : index
    %c0_544 = arith.constant 0 : index
    %414 = vector.load %arg7[%c1_541, %c0_542, %c0_543, %c0_544] : memref<3x10x8x128xbf16, #tpu.memory_space<vmem>>, vector<1x8x8x128xbf16>
    %415 = vector.shape_cast %414 : vector<1x8x8x128xbf16> to vector<8x8x128xbf16>
    %416 = vector.shape_cast %415 : vector<8x8x128xbf16> to vector<64x128xbf16>
    %c5_545 = arith.constant 5 : index
    %c0_546 = arith.constant 0 : index
    %c1_547 = arith.constant 1 : index
    %c0_548 = arith.constant 0 : index
    %c0_549 = arith.constant 0 : index
    %417 = vector.load %arg2[%c5_545, %c0_546, %c1_547, %c0_548, %c0_549] : memref<7x3x3x128x128xbf16, #tpu.memory_space<vmem>>, vector<1x1x1x128x128xbf16>
    %418 = vector.shape_cast %417 : vector<1x1x1x128x128xbf16> to vector<128x128xbf16>
    %cst_550 = arith.constant dense<0.000000e+00> : vector<64x128xf32>
    %419 = tpu.matmul %416, %418, %cst_550 {dimension_numbers = #tpu.dot_dimension_numbers<[1], [0], [0], [1], [0, 0, 1, 1], [], []>} : vector<64x128xbf16>, vector<128x128xbf16>, vector<64x128xf32> -> vector<64x128xf32>
    %420 = arith.addf %413, %419 : vector<64x128xf32>
    %c1_551 = arith.constant 1 : index
    %c1_552 = arith.constant 1 : index
    %c0_553 = arith.constant 0 : index
    %c0_554 = arith.constant 0 : index
    %421 = vector.load %arg7[%c1_551, %c1_552, %c0_553, %c0_554] : memref<3x10x8x128xbf16, #tpu.memory_space<vmem>>, vector<1x8x8x128xbf16>
    %422 = vector.shape_cast %421 : vector<1x8x8x128xbf16> to vector<8x8x128xbf16>
    %423 = vector.shape_cast %422 : vector<8x8x128xbf16> to vector<64x128xbf16>
    %c5_555 = arith.constant 5 : index
    %c1_556 = arith.constant 1 : index
    %c1_557 = arith.constant 1 : index
    %c0_558 = arith.constant 0 : index
    %c0_559 = arith.constant 0 : index
    %424 = vector.load %arg2[%c5_555, %c1_556, %c1_557, %c0_558, %c0_559] : memref<7x3x3x128x128xbf16, #tpu.memory_space<vmem>>, vector<1x1x1x128x128xbf16>
    %425 = vector.shape_cast %424 : vector<1x1x1x128x128xbf16> to vector<128x128xbf16>
    %cst_560 = arith.constant dense<0.000000e+00> : vector<64x128xf32>
    %426 = tpu.matmul %423, %425, %cst_560 {dimension_numbers = #tpu.dot_dimension_numbers<[1], [0], [0], [1], [0, 0, 1, 1], [], []>} : vector<64x128xbf16>, vector<128x128xbf16>, vector<64x128xf32> -> vector<64x128xf32>
    %427 = arith.addf %420, %426 : vector<64x128xf32>
    %c1_561 = arith.constant 1 : index
    %c2_562 = arith.constant 2 : index
    %c0_563 = arith.constant 0 : index
    %c0_564 = arith.constant 0 : index
    %428 = vector.load %arg7[%c1_561, %c2_562, %c0_563, %c0_564] : memref<3x10x8x128xbf16, #tpu.memory_space<vmem>>, vector<1x8x8x128xbf16>
    %429 = vector.shape_cast %428 : vector<1x8x8x128xbf16> to vector<8x8x128xbf16>
    %430 = vector.shape_cast %429 : vector<8x8x128xbf16> to vector<64x128xbf16>
    %c5_565 = arith.constant 5 : index
    %c2_566 = arith.constant 2 : index
    %c1_567 = arith.constant 1 : index
    %c0_568 = arith.constant 0 : index
    %c0_569 = arith.constant 0 : index
    %431 = vector.load %arg2[%c5_565, %c2_566, %c1_567, %c0_568, %c0_569] : memref<7x3x3x128x128xbf16, #tpu.memory_space<vmem>>, vector<1x1x1x128x128xbf16>
    %432 = vector.shape_cast %431 : vector<1x1x1x128x128xbf16> to vector<128x128xbf16>
    %cst_570 = arith.constant dense<0.000000e+00> : vector<64x128xf32>
    %433 = tpu.matmul %430, %432, %cst_570 {dimension_numbers = #tpu.dot_dimension_numbers<[1], [0], [0], [1], [0, 0, 1, 1], [], []>} : vector<64x128xbf16>, vector<128x128xbf16>, vector<64x128xf32> -> vector<64x128xf32>
    %434 = arith.addf %427, %433 : vector<64x128xf32>
    %c2_571 = arith.constant 2 : index
    %c0_572 = arith.constant 0 : index
    %c0_573 = arith.constant 0 : index
    %c0_574 = arith.constant 0 : index
    %435 = vector.load %arg7[%c2_571, %c0_572, %c0_573, %c0_574] : memref<3x10x8x128xbf16, #tpu.memory_space<vmem>>, vector<1x8x8x128xbf16>
    %436 = vector.shape_cast %435 : vector<1x8x8x128xbf16> to vector<8x8x128xbf16>
    %437 = vector.shape_cast %436 : vector<8x8x128xbf16> to vector<64x128xbf16>
    %c5_575 = arith.constant 5 : index
    %c0_576 = arith.constant 0 : index
    %c2_577 = arith.constant 2 : index
    %c0_578 = arith.constant 0 : index
    %c0_579 = arith.constant 0 : index
    %438 = vector.load %arg2[%c5_575, %c0_576, %c2_577, %c0_578, %c0_579] : memref<7x3x3x128x128xbf16, #tpu.memory_space<vmem>>, vector<1x1x1x128x128xbf16>
    %439 = vector.shape_cast %438 : vector<1x1x1x128x128xbf16> to vector<128x128xbf16>
    %cst_580 = arith.constant dense<0.000000e+00> : vector<64x128xf32>
    %440 = tpu.matmul %437, %439, %cst_580 {dimension_numbers = #tpu.dot_dimension_numbers<[1], [0], [0], [1], [0, 0, 1, 1], [], []>} : vector<64x128xbf16>, vector<128x128xbf16>, vector<64x128xf32> -> vector<64x128xf32>
    %441 = arith.addf %434, %440 : vector<64x128xf32>
    %c2_581 = arith.constant 2 : index
    %c1_582 = arith.constant 1 : index
    %c0_583 = arith.constant 0 : index
    %c0_584 = arith.constant 0 : index
    %442 = vector.load %arg7[%c2_581, %c1_582, %c0_583, %c0_584] : memref<3x10x8x128xbf16, #tpu.memory_space<vmem>>, vector<1x8x8x128xbf16>
    %443 = vector.shape_cast %442 : vector<1x8x8x128xbf16> to vector<8x8x128xbf16>
    %444 = vector.shape_cast %443 : vector<8x8x128xbf16> to vector<64x128xbf16>
    %c5_585 = arith.constant 5 : index
    %c1_586 = arith.constant 1 : index
    %c2_587 = arith.constant 2 : index
    %c0_588 = arith.constant 0 : index
    %c0_589 = arith.constant 0 : index
    %445 = vector.load %arg2[%c5_585, %c1_586, %c2_587, %c0_588, %c0_589] : memref<7x3x3x128x128xbf16, #tpu.memory_space<vmem>>, vector<1x1x1x128x128xbf16>
    %446 = vector.shape_cast %445 : vector<1x1x1x128x128xbf16> to vector<128x128xbf16>
    %cst_590 = arith.constant dense<0.000000e+00> : vector<64x128xf32>
    %447 = tpu.matmul %444, %446, %cst_590 {dimension_numbers = #tpu.dot_dimension_numbers<[1], [0], [0], [1], [0, 0, 1, 1], [], []>} : vector<64x128xbf16>, vector<128x128xbf16>, vector<64x128xf32> -> vector<64x128xf32>
    %448 = arith.addf %441, %447 : vector<64x128xf32>
    %c2_591 = arith.constant 2 : index
    %c2_592 = arith.constant 2 : index
    %c0_593 = arith.constant 0 : index
    %c0_594 = arith.constant 0 : index
    %449 = vector.load %arg7[%c2_591, %c2_592, %c0_593, %c0_594] : memref<3x10x8x128xbf16, #tpu.memory_space<vmem>>, vector<1x8x8x128xbf16>
    %450 = vector.shape_cast %449 : vector<1x8x8x128xbf16> to vector<8x8x128xbf16>
    %451 = vector.shape_cast %450 : vector<8x8x128xbf16> to vector<64x128xbf16>
    %c5_595 = arith.constant 5 : index
    %c2_596 = arith.constant 2 : index
    %c2_597 = arith.constant 2 : index
    %c0_598 = arith.constant 0 : index
    %c0_599 = arith.constant 0 : index
    %452 = vector.load %arg2[%c5_595, %c2_596, %c2_597, %c0_598, %c0_599] : memref<7x3x3x128x128xbf16, #tpu.memory_space<vmem>>, vector<1x1x1x128x128xbf16>
    %453 = vector.shape_cast %452 : vector<1x1x1x128x128xbf16> to vector<128x128xbf16>
    %cst_600 = arith.constant dense<0.000000e+00> : vector<64x128xf32>
    %454 = tpu.matmul %451, %453, %cst_600 {dimension_numbers = #tpu.dot_dimension_numbers<[1], [0], [0], [1], [0, 0, 1, 1], [], []>} : vector<64x128xbf16>, vector<128x128xbf16>, vector<64x128xf32> -> vector<64x128xf32>
    %455 = arith.addf %448, %454 : vector<64x128xf32>
    %c5_601 = arith.constant 5 : index
    %c0_602 = arith.constant 0 : index
    %c0_603 = arith.constant 0 : index
    %456 = vector.load %arg3[%c5_601, %c0_602, %c0_603] : memref<7x1x128xf32, #tpu.memory_space<vmem>>, vector<1x1x128xf32>
    %457 = vector.shape_cast %456 : vector<1x1x128xf32> to vector<1x128xf32>
    %458 = vector.broadcast %457 : vector<1x128xf32> to vector<64x128xf32>
    %459 = arith.addf %455, %458 : vector<64x128xf32>
    %cst_604 = arith.constant 0.000000e+00 : f32
    %460 = vector.broadcast %cst_604 : f32 to vector<64x128xf32>
    %461 = arith.maximumf %459, %460 : vector<64x128xf32>
    %462 = arith.truncf %461 : vector<64x128xf32> to vector<64x128xbf16>
    %c5_605 = arith.constant 5 : index
    %c0_606 = arith.constant 0 : index
    %c0_607 = arith.constant 0 : index
    %463 = vector.load %arg4[%c5_605, %c0_606, %c0_607] : memref<7x128x128xbf16, #tpu.memory_space<vmem>>, vector<1x128x128xbf16>
    %464 = vector.shape_cast %463 : vector<1x128x128xbf16> to vector<128x128xbf16>
    %cst_608 = arith.constant dense<0.000000e+00> : vector<64x128xf32>
    %465 = tpu.matmul %462, %464, %cst_608 {dimension_numbers = #tpu.dot_dimension_numbers<[1], [0], [0], [1], [0, 0, 1, 1], [], []>} : vector<64x128xbf16>, vector<128x128xbf16>, vector<64x128xf32> -> vector<64x128xf32>
    %466 = arith.addf %391, %465 : vector<64x128xf32>
    %cst_609 = arith.constant 0.000000e+00 : f32
    %467 = vector.broadcast %cst_609 : f32 to vector<64x128xf32>
    %c0_610 = arith.constant 0 : index
    %c0_611 = arith.constant 0 : index
    %c0_612 = arith.constant 0 : index
    %c0_613 = arith.constant 0 : index
    %468 = vector.load %arg7[%c0_610, %c0_611, %c0_612, %c0_613] : memref<3x10x8x128xbf16, #tpu.memory_space<vmem>>, vector<1x8x8x128xbf16>
    %469 = vector.shape_cast %468 : vector<1x8x8x128xbf16> to vector<8x8x128xbf16>
    %470 = vector.shape_cast %469 : vector<8x8x128xbf16> to vector<64x128xbf16>
    %c6 = arith.constant 6 : index
    %c0_614 = arith.constant 0 : index
    %c0_615 = arith.constant 0 : index
    %c0_616 = arith.constant 0 : index
    %c0_617 = arith.constant 0 : index
    %471 = vector.load %arg2[%c6, %c0_614, %c0_615, %c0_616, %c0_617] : memref<7x3x3x128x128xbf16, #tpu.memory_space<vmem>>, vector<1x1x1x128x128xbf16>
    %472 = vector.shape_cast %471 : vector<1x1x1x128x128xbf16> to vector<128x128xbf16>
    %cst_618 = arith.constant dense<0.000000e+00> : vector<64x128xf32>
    %473 = tpu.matmul %470, %472, %cst_618 {dimension_numbers = #tpu.dot_dimension_numbers<[1], [0], [0], [1], [0, 0, 1, 1], [], []>} : vector<64x128xbf16>, vector<128x128xbf16>, vector<64x128xf32> -> vector<64x128xf32>
    %474 = arith.addf %467, %473 : vector<64x128xf32>
    %c0_619 = arith.constant 0 : index
    %c1_620 = arith.constant 1 : index
    %c0_621 = arith.constant 0 : index
    %c0_622 = arith.constant 0 : index
    %475 = vector.load %arg7[%c0_619, %c1_620, %c0_621, %c0_622] : memref<3x10x8x128xbf16, #tpu.memory_space<vmem>>, vector<1x8x8x128xbf16>
    %476 = vector.shape_cast %475 : vector<1x8x8x128xbf16> to vector<8x8x128xbf16>
    %477 = vector.shape_cast %476 : vector<8x8x128xbf16> to vector<64x128xbf16>
    %c6_623 = arith.constant 6 : index
    %c1_624 = arith.constant 1 : index
    %c0_625 = arith.constant 0 : index
    %c0_626 = arith.constant 0 : index
    %c0_627 = arith.constant 0 : index
    %478 = vector.load %arg2[%c6_623, %c1_624, %c0_625, %c0_626, %c0_627] : memref<7x3x3x128x128xbf16, #tpu.memory_space<vmem>>, vector<1x1x1x128x128xbf16>
    %479 = vector.shape_cast %478 : vector<1x1x1x128x128xbf16> to vector<128x128xbf16>
    %cst_628 = arith.constant dense<0.000000e+00> : vector<64x128xf32>
    %480 = tpu.matmul %477, %479, %cst_628 {dimension_numbers = #tpu.dot_dimension_numbers<[1], [0], [0], [1], [0, 0, 1, 1], [], []>} : vector<64x128xbf16>, vector<128x128xbf16>, vector<64x128xf32> -> vector<64x128xf32>
    %481 = arith.addf %474, %480 : vector<64x128xf32>
    %c0_629 = arith.constant 0 : index
    %c2_630 = arith.constant 2 : index
    %c0_631 = arith.constant 0 : index
    %c0_632 = arith.constant 0 : index
    %482 = vector.load %arg7[%c0_629, %c2_630, %c0_631, %c0_632] : memref<3x10x8x128xbf16, #tpu.memory_space<vmem>>, vector<1x8x8x128xbf16>
    %483 = vector.shape_cast %482 : vector<1x8x8x128xbf16> to vector<8x8x128xbf16>
    %484 = vector.shape_cast %483 : vector<8x8x128xbf16> to vector<64x128xbf16>
    %c6_633 = arith.constant 6 : index
    %c2_634 = arith.constant 2 : index
    %c0_635 = arith.constant 0 : index
    %c0_636 = arith.constant 0 : index
    %c0_637 = arith.constant 0 : index
    %485 = vector.load %arg2[%c6_633, %c2_634, %c0_635, %c0_636, %c0_637] : memref<7x3x3x128x128xbf16, #tpu.memory_space<vmem>>, vector<1x1x1x128x128xbf16>
    %486 = vector.shape_cast %485 : vector<1x1x1x128x128xbf16> to vector<128x128xbf16>
    %cst_638 = arith.constant dense<0.000000e+00> : vector<64x128xf32>
    %487 = tpu.matmul %484, %486, %cst_638 {dimension_numbers = #tpu.dot_dimension_numbers<[1], [0], [0], [1], [0, 0, 1, 1], [], []>} : vector<64x128xbf16>, vector<128x128xbf16>, vector<64x128xf32> -> vector<64x128xf32>
    %488 = arith.addf %481, %487 : vector<64x128xf32>
    %c1_639 = arith.constant 1 : index
    %c0_640 = arith.constant 0 : index
    %c0_641 = arith.constant 0 : index
    %c0_642 = arith.constant 0 : index
    %489 = vector.load %arg7[%c1_639, %c0_640, %c0_641, %c0_642] : memref<3x10x8x128xbf16, #tpu.memory_space<vmem>>, vector<1x8x8x128xbf16>
    %490 = vector.shape_cast %489 : vector<1x8x8x128xbf16> to vector<8x8x128xbf16>
    %491 = vector.shape_cast %490 : vector<8x8x128xbf16> to vector<64x128xbf16>
    %c6_643 = arith.constant 6 : index
    %c0_644 = arith.constant 0 : index
    %c1_645 = arith.constant 1 : index
    %c0_646 = arith.constant 0 : index
    %c0_647 = arith.constant 0 : index
    %492 = vector.load %arg2[%c6_643, %c0_644, %c1_645, %c0_646, %c0_647] : memref<7x3x3x128x128xbf16, #tpu.memory_space<vmem>>, vector<1x1x1x128x128xbf16>
    %493 = vector.shape_cast %492 : vector<1x1x1x128x128xbf16> to vector<128x128xbf16>
    %cst_648 = arith.constant dense<0.000000e+00> : vector<64x128xf32>
    %494 = tpu.matmul %491, %493, %cst_648 {dimension_numbers = #tpu.dot_dimension_numbers<[1], [0], [0], [1], [0, 0, 1, 1], [], []>} : vector<64x128xbf16>, vector<128x128xbf16>, vector<64x128xf32> -> vector<64x128xf32>
    %495 = arith.addf %488, %494 : vector<64x128xf32>
    %c1_649 = arith.constant 1 : index
    %c1_650 = arith.constant 1 : index
    %c0_651 = arith.constant 0 : index
    %c0_652 = arith.constant 0 : index
    %496 = vector.load %arg7[%c1_649, %c1_650, %c0_651, %c0_652] : memref<3x10x8x128xbf16, #tpu.memory_space<vmem>>, vector<1x8x8x128xbf16>
    %497 = vector.shape_cast %496 : vector<1x8x8x128xbf16> to vector<8x8x128xbf16>
    %498 = vector.shape_cast %497 : vector<8x8x128xbf16> to vector<64x128xbf16>
    %c6_653 = arith.constant 6 : index
    %c1_654 = arith.constant 1 : index
    %c1_655 = arith.constant 1 : index
    %c0_656 = arith.constant 0 : index
    %c0_657 = arith.constant 0 : index
    %499 = vector.load %arg2[%c6_653, %c1_654, %c1_655, %c0_656, %c0_657] : memref<7x3x3x128x128xbf16, #tpu.memory_space<vmem>>, vector<1x1x1x128x128xbf16>
    %500 = vector.shape_cast %499 : vector<1x1x1x128x128xbf16> to vector<128x128xbf16>
    %cst_658 = arith.constant dense<0.000000e+00> : vector<64x128xf32>
    %501 = tpu.matmul %498, %500, %cst_658 {dimension_numbers = #tpu.dot_dimension_numbers<[1], [0], [0], [1], [0, 0, 1, 1], [], []>} : vector<64x128xbf16>, vector<128x128xbf16>, vector<64x128xf32> -> vector<64x128xf32>
    %502 = arith.addf %495, %501 : vector<64x128xf32>
    %c1_659 = arith.constant 1 : index
    %c2_660 = arith.constant 2 : index
    %c0_661 = arith.constant 0 : index
    %c0_662 = arith.constant 0 : index
    %503 = vector.load %arg7[%c1_659, %c2_660, %c0_661, %c0_662] : memref<3x10x8x128xbf16, #tpu.memory_space<vmem>>, vector<1x8x8x128xbf16>
    %504 = vector.shape_cast %503 : vector<1x8x8x128xbf16> to vector<8x8x128xbf16>
    %505 = vector.shape_cast %504 : vector<8x8x128xbf16> to vector<64x128xbf16>
    %c6_663 = arith.constant 6 : index
    %c2_664 = arith.constant 2 : index
    %c1_665 = arith.constant 1 : index
    %c0_666 = arith.constant 0 : index
    %c0_667 = arith.constant 0 : index
    %506 = vector.load %arg2[%c6_663, %c2_664, %c1_665, %c0_666, %c0_667] : memref<7x3x3x128x128xbf16, #tpu.memory_space<vmem>>, vector<1x1x1x128x128xbf16>
    %507 = vector.shape_cast %506 : vector<1x1x1x128x128xbf16> to vector<128x128xbf16>
    %cst_668 = arith.constant dense<0.000000e+00> : vector<64x128xf32>
    %508 = tpu.matmul %505, %507, %cst_668 {dimension_numbers = #tpu.dot_dimension_numbers<[1], [0], [0], [1], [0, 0, 1, 1], [], []>} : vector<64x128xbf16>, vector<128x128xbf16>, vector<64x128xf32> -> vector<64x128xf32>
    %509 = arith.addf %502, %508 : vector<64x128xf32>
    %c2_669 = arith.constant 2 : index
    %c0_670 = arith.constant 0 : index
    %c0_671 = arith.constant 0 : index
    %c0_672 = arith.constant 0 : index
    %510 = vector.load %arg7[%c2_669, %c0_670, %c0_671, %c0_672] : memref<3x10x8x128xbf16, #tpu.memory_space<vmem>>, vector<1x8x8x128xbf16>
    %511 = vector.shape_cast %510 : vector<1x8x8x128xbf16> to vector<8x8x128xbf16>
    %512 = vector.shape_cast %511 : vector<8x8x128xbf16> to vector<64x128xbf16>
    %c6_673 = arith.constant 6 : index
    %c0_674 = arith.constant 0 : index
    %c2_675 = arith.constant 2 : index
    %c0_676 = arith.constant 0 : index
    %c0_677 = arith.constant 0 : index
    %513 = vector.load %arg2[%c6_673, %c0_674, %c2_675, %c0_676, %c0_677] : memref<7x3x3x128x128xbf16, #tpu.memory_space<vmem>>, vector<1x1x1x128x128xbf16>
    %514 = vector.shape_cast %513 : vector<1x1x1x128x128xbf16> to vector<128x128xbf16>
    %cst_678 = arith.constant dense<0.000000e+00> : vector<64x128xf32>
    %515 = tpu.matmul %512, %514, %cst_678 {dimension_numbers = #tpu.dot_dimension_numbers<[1], [0], [0], [1], [0, 0, 1, 1], [], []>} : vector<64x128xbf16>, vector<128x128xbf16>, vector<64x128xf32> -> vector<64x128xf32>
    %516 = arith.addf %509, %515 : vector<64x128xf32>
    %c2_679 = arith.constant 2 : index
    %c1_680 = arith.constant 1 : index
    %c0_681 = arith.constant 0 : index
    %c0_682 = arith.constant 0 : index
    %517 = vector.load %arg7[%c2_679, %c1_680, %c0_681, %c0_682] : memref<3x10x8x128xbf16, #tpu.memory_space<vmem>>, vector<1x8x8x128xbf16>
    %518 = vector.shape_cast %517 : vector<1x8x8x128xbf16> to vector<8x8x128xbf16>
    %519 = vector.shape_cast %518 : vector<8x8x128xbf16> to vector<64x128xbf16>
    %c6_683 = arith.constant 6 : index
    %c1_684 = arith.constant 1 : index
    %c2_685 = arith.constant 2 : index
    %c0_686 = arith.constant 0 : index
    %c0_687 = arith.constant 0 : index
    %520 = vector.load %arg2[%c6_683, %c1_684, %c2_685, %c0_686, %c0_687] : memref<7x3x3x128x128xbf16, #tpu.memory_space<vmem>>, vector<1x1x1x128x128xbf16>
    %521 = vector.shape_cast %520 : vector<1x1x1x128x128xbf16> to vector<128x128xbf16>
    %cst_688 = arith.constant dense<0.000000e+00> : vector<64x128xf32>
    %522 = tpu.matmul %519, %521, %cst_688 {dimension_numbers = #tpu.dot_dimension_numbers<[1], [0], [0], [1], [0, 0, 1, 1], [], []>} : vector<64x128xbf16>, vector<128x128xbf16>, vector<64x128xf32> -> vector<64x128xf32>
    %523 = arith.addf %516, %522 : vector<64x128xf32>
    %c2_689 = arith.constant 2 : index
    %c2_690 = arith.constant 2 : index
    %c0_691 = arith.constant 0 : index
    %c0_692 = arith.constant 0 : index
    %524 = vector.load %arg7[%c2_689, %c2_690, %c0_691, %c0_692] : memref<3x10x8x128xbf16, #tpu.memory_space<vmem>>, vector<1x8x8x128xbf16>
    %525 = vector.shape_cast %524 : vector<1x8x8x128xbf16> to vector<8x8x128xbf16>
    %526 = vector.shape_cast %525 : vector<8x8x128xbf16> to vector<64x128xbf16>
    %c6_693 = arith.constant 6 : index
    %c2_694 = arith.constant 2 : index
    %c2_695 = arith.constant 2 : index
    %c0_696 = arith.constant 0 : index
    %c0_697 = arith.constant 0 : index
    %527 = vector.load %arg2[%c6_693, %c2_694, %c2_695, %c0_696, %c0_697] : memref<7x3x3x128x128xbf16, #tpu.memory_space<vmem>>, vector<1x1x1x128x128xbf16>
    %528 = vector.shape_cast %527 : vector<1x1x1x128x128xbf16> to vector<128x128xbf16>
    %cst_698 = arith.constant dense<0.000000e+00> : vector<64x128xf32>
    %529 = tpu.matmul %526, %528, %cst_698 {dimension_numbers = #tpu.dot_dimension_numbers<[1], [0], [0], [1], [0, 0, 1, 1], [], []>} : vector<64x128xbf16>, vector<128x128xbf16>, vector<64x128xf32> -> vector<64x128xf32>
    %530 = arith.addf %523, %529 : vector<64x128xf32>
    %c6_699 = arith.constant 6 : index
    %c0_700 = arith.constant 0 : index
    %c0_701 = arith.constant 0 : index
    %531 = vector.load %arg3[%c6_699, %c0_700, %c0_701] : memref<7x1x128xf32, #tpu.memory_space<vmem>>, vector<1x1x128xf32>
    %532 = vector.shape_cast %531 : vector<1x1x128xf32> to vector<1x128xf32>
    %533 = vector.broadcast %532 : vector<1x128xf32> to vector<64x128xf32>
    %534 = arith.addf %530, %533 : vector<64x128xf32>
    %cst_702 = arith.constant 0.000000e+00 : f32
    %535 = vector.broadcast %cst_702 : f32 to vector<64x128xf32>
    %536 = arith.maximumf %534, %535 : vector<64x128xf32>
    %537 = arith.truncf %536 : vector<64x128xf32> to vector<64x128xbf16>
    %c6_703 = arith.constant 6 : index
    %c0_704 = arith.constant 0 : index
    %c0_705 = arith.constant 0 : index
    %538 = vector.load %arg4[%c6_703, %c0_704, %c0_705] : memref<7x128x128xbf16, #tpu.memory_space<vmem>>, vector<1x128x128xbf16>
    %539 = vector.shape_cast %538 : vector<1x128x128xbf16> to vector<128x128xbf16>
    %cst_706 = arith.constant dense<0.000000e+00> : vector<64x128xf32>
    %540 = tpu.matmul %537, %539, %cst_706 {dimension_numbers = #tpu.dot_dimension_numbers<[1], [0], [0], [1], [0, 0, 1, 1], [], []>} : vector<64x128xbf16>, vector<128x128xbf16>, vector<64x128xf32> -> vector<64x128xf32>
    %541 = arith.addf %466, %540 : vector<64x128xf32>
    %c0_707 = arith.constant 0 : index
    %c0_708 = arith.constant 0 : index
    %542 = vector.load %arg5[%c0_707, %c0_708] : memref<1x128xf32, #tpu.memory_space<vmem>>, vector<1x128xf32>
    %543 = vector.broadcast %542 : vector<1x128xf32> to vector<64x128xf32>
    %544 = arith.addf %541, %543 : vector<64x128xf32>
    %545 = vector.shape_cast %544 : vector<64x128xf32> to vector<1x8x8x128xf32>
    %c0_709 = arith.constant 0 : index
    %c0_710 = arith.constant 0 : index
    %c0_711 = arith.constant 0 : index
    %c0_712 = arith.constant 0 : index
    %546 = vector.load %arg6[%c0_709, %c0_710, %c0_711, %c0_712] : memref<1x8x8x128xf32, #tpu.memory_space<vmem>>, vector<1x8x8x128xf32>
    tpu.vector_store %arg6[%c0_709, %c0_710, %c0_711, %c0_712], %545 {strides = array<i32>} : memref<1x8x8x128xf32, #tpu.memory_space<vmem>>, vector<1x8x8x128xf32>,
    return
  }
  func.func @transform_0(%arg0: i32) -> (i32, i32, i32, i32) {
    %c0_i32 = arith.constant 0 : i32
    %c0_i32_0 = arith.constant 0 : i32
    %c0_i32_1 = arith.constant 0 : i32
    %c0_i32_2 = arith.constant 0 : i32
    return %arg0, %c0_i32, %c0_i32_0, %c0_i32_1 : i32, i32, i32, i32
  }
  func.func @transform_1(%arg0: i32) -> (i32, i32, i32, i32, i32) {
    %c0_i32 = arith.constant 0 : i32
    %c0_i32_0 = arith.constant 0 : i32
    %c0_i32_1 = arith.constant 0 : i32
    %c0_i32_2 = arith.constant 0 : i32
    %c0_i32_3 = arith.constant 0 : i32
    %c0_i32_4 = arith.constant 0 : i32
    return %c0_i32, %c0_i32_0, %c0_i32_1, %c0_i32_2, %c0_i32_3 : i32, i32, i32, i32, i32
  }
  func.func @transform_2(%arg0: i32) -> (i32, i32, i32) {
    %c0_i32 = arith.constant 0 : i32
    %c0_i32_0 = arith.constant 0 : i32
    %c0_i32_1 = arith.constant 0 : i32
    %c0_i32_2 = arith.constant 0 : i32
    return %c0_i32, %c0_i32_0, %c0_i32_1 : i32, i32, i32
  }
  func.func @transform_3(%arg0: i32) -> (i32, i32, i32) {
    %c0_i32 = arith.constant 0 : i32
    %c0_i32_0 = arith.constant 0 : i32
    %c0_i32_1 = arith.constant 0 : i32
    %c0_i32_2 = arith.constant 0 : i32
    return %c0_i32, %c0_i32_0, %c0_i32_1 : i32, i32, i32
  }
  func.func @transform_4(%arg0: i32) -> (i32, i32) {
    %c0_i32 = arith.constant 0 : i32
    %c0_i32_0 = arith.constant 0 : i32
    %c0_i32_1 = arith.constant 0 : i32
    return %c0_i32, %c0_i32_0 : i32, i32
  }
  func.func @transform_5(%arg0: i32) -> (i32, i32, i32, i32) {
    %c0_i32 = arith.constant 0 : i32
    %c0_i32_0 = arith.constant 0 : i32
    %c0_i32_1 = arith.constant 0 : i32
    %c0_i32_2 = arith.constant 0 : i32
    return %arg0, %c0_i32, %c0_i32_0, %c0_i32_1 : i32, i32, i32, i32
  }
}

</mosaic_0001>

<llo_original>
// kernel: heads_forward.1
$region0: #{heads_forward.1}
  #allocation0 [shape = 'u32[]', space=smem, size = 0x4, offset = 0x4, fixed_abs, tag = 'smem constant byte address 0x4 - core index']
  #allocation1 [shape = 'u32[144,128]{1,0:T(1,128)}', space=vmem, size = 0x12000, scoped, tag = 'internal scratch']
  #allocation2 [shape = 'bf16[3,10,8,128]{3,2,1,0:T(8,128)(2,1)}', space=vmem, size = 0xf000, scoped, tag = 'scratch operand']
  %s0 = inlined_call_operand.hbm [shape: f32[2,8,8,128], index: 0, kind: input, shape index: {}]
  %s1 = inlined_call_operand.hbm [shape: bf16[7,3,3,128,128], index: 1, kind: input, shape index: {}]
  %s2 = inlined_call_operand.hbm [shape: f32[7,1,128], index: 2, kind: input, shape index: {}]
  %s3 = inlined_call_operand.hbm [shape: bf16[7,128,128], index: 3, kind: input, shape index: {}]
  %s4 = inlined_call_operand.hbm [shape: f32[1,128], index: 4, kind: input, shape index: {}]
  %s5 = inlined_call_operand.vmem [shape: f32[2,8,8,128], index: 5, kind: output, shape index: {}]
  %s6 = sld [smem:[#allocation0]]
  $region73: #{heads_forward.1} parent=0
    _
  %s8 = ssub.s32 1, %s6
  %s9 = scalar_select 0, %s8, %s6
  $region1: #{heads_forward.1} parent=0
    #allocation3 [shape = 'u8[65536]{0}', space=vmem, size = 0x10000, scoped, tag = 'input window, operand 0']
    #allocation4 [shape = 's32[2]{0}', space=sflag, size = 0x8, scoped, tag = 'scoped memory for heads_forward.1']
    #allocation5 [shape = 'u8[2064384]{0}', space=vmem, size = 0x1f8000, scoped, tag = 'input window, operand 1, single buffered']
    #allocation6 [shape = 's32[1]{0}', space=sflag, size = 0x4, scoped, tag = 'scoped memory for heads_forward.1']
    #allocation7 [shape = 'u8[3584]{0}', space=vmem, size = 0x1000, scoped, tag = 'input window, operand 2, single buffered']
    #allocation8 [shape = 'u8[229376]{0}', space=vmem, size = 0x38000, scoped, tag = 'input window, operand 3, single buffered']
    #allocation9 [shape = 's32[1]{0}', space=sflag, size = 0x4, scoped, tag = 'scoped memory for heads_forward.1']
    #allocation10 [shape = 'u8[512]{0}', space=vmem, size = 0x400, scoped, tag = 'input window, operand 4, single buffered']
    %10 = vsyncpa [#allocation4], 0
    %s11 = scalar_lea.sflag [#allocation4], 1
    %12 = vsyncpa %s11, 0
    %13 = vsyncpa [#allocation6], 0
    %14 = vsyncpa [#allocation9], 0
    loop: start=0, step=1, limit=4
    $region2: #{heads_forward.1} parent=1 // loop_pre_header
      _
    $region3: #{heads_forward.1} parent=1 // loop_header
      %s16 = sphi 0, %s20
      %p17 = scmp.ge.s32.totalorder %s16, 4
      %s26 = sphi 0, %s28
      %s29 = sphi 0, %s26
      %s30 = sphi 0, %s29
      %s46 = sphi 0, %s30
      %s50 = sphi 0, %s50
      %s52 = sphi 0, %s50
      %s53 = sphi 0, %s52
      %s67 = sphi 0, %s53
      %s71 = sphi 0, %s71
      %s73 = sphi 0, %s71
      %s74 = sphi 0, %s73
      %s88 = sphi 0, %s74
      %s92 = sphi 0, %s92
      %s94 = sphi 0, %s92
      %s95 = sphi 0, %s94
      %s109 = sphi 0, %s95
      %s113 = sphi 0, %s113
      %s115 = sphi 0, %s113
      %s116 = sphi 0, %s115
      %s130 = sphi 0, %s116
      %s136 = sphi 0, %s138
      %s139 = sphi 0, %s136
      %s140 = sphi 0, %s139
      %s156 = sphi 0, %s140
    $region4: #{heads_forward.1} parent=1 // loop_header_branch
      %19 = sbr.rel (%p17) target = $region8
    $region5: #{heads_forward.1} parent=1 // loop_body
      %s21 = ssub.s32 %s16, 1
      %s22 = ssub.s32 %s16, 2
      %s23 = sadd.s32 %s16, 1
      %s24 = ssub.s32 %s16, %s23
      %p25 = scmp.eq.s32.totalorder %s24, 0
      %s27 = sadd.s32 %s26, 1
      %s28 = scalar_select %p25, %s26, %s27
      %p31 = pneg %p25
      %p32 = scmp.eq.s32.totalorder %s16, 1
      %p33 = por %p31, %p32
      %p34 = scmp.ne.s32.totalorder %s26, %s29
      %p35 = scmp.eq.s32.totalorder %s16, 0
      %p36 = por %p34, %p35
      %p37 = scmp.ne.s32.totalorder %s26, %s29
      %p38 = scmp.eq.s32.totalorder %s21, 1
      %p39 = por %p37, %p38
      %p40 = scmp.ne.s32.totalorder %s29, %s30
      %p41 = scmp.eq.s32.totalorder %s21, 0
      %p42 = por %p40, %p41
      %p43 = scmp.ne.s32.totalorder %s29, %s30
      %p44 = scmp.eq.s32.totalorder %s22, 1
      %p45 = por %p43, %p44
      %p47 = scmp.ne.s32.totalorder %s30, %s46
      %p48 = scmp.eq.s32.totalorder %s22, 0
      %p49 = por %p47, %p48
      %s51 = sadd.s32 %s50, 1
      %p54 = scmp.eq.s32.totalorder %s16, 1
      %p55 = scmp.ne.s32.totalorder %s50, %s52
      %p56 = scmp.eq.s32.totalorder %s16, 0
      %p57 = por %p55, %p56
      %p58 = scmp.ne.s32.totalorder %s50, %s52
      %p59 = scmp.eq.s32.totalorder %s21, 1
      %p60 = por %p58, %p59
      %p61 = scmp.ne.s32.totalorder %s52, %s53
      %p62 = scmp.eq.s32.totalorder %s21, 0
      %p63 = por %p61, %p62
      %p64 = scmp.ne.s32.totalorder %s52, %s53
      %p65 = scmp.eq.s32.totalorder %s22, 1
      %p66 = por %p64, %p65
      %p68 = scmp.ne.s32.totalorder %s53, %s67
      %p69 = scmp.eq.s32.totalorder %s22, 0
      %p70 = por %p68, %p69
      %s72 = sadd.s32 %s71, 1
      %p75 = scmp.eq.s32.totalorder %s16, 1
      %p76 = scmp.ne.s32.totalorder %s71, %s73
      %p77 = scmp.eq.s32.totalorder %s16, 0
      %p78 = por %p76, %p77
      %p79 = scmp.ne.s32.totalorder %s71, %s73
      %p80 = scmp.eq.s32.totalorder %s21, 1
      %p81 = por %p79, %p80
      %p82 = scmp.ne.s32.totalorder %s73, %s74
      %p83 = scmp.eq.s32.totalorder %s21, 0
      %p84 = por %p82, %p83
      %p85 = scmp.ne.s32.totalorder %s73, %s74
      %p86 = scmp.eq.s32.totalorder %s22, 1
      %p87 = por %p85, %p86
      %p89 = scmp.ne.s32.totalorder %s74, %s88
      %p90 = scmp.eq.s32.totalorder %s22, 0
      %p91 = por %p89, %p90
      %s93 = sadd.s32 %s92, 1
      %p96 = scmp.eq.s32.totalorder %s16, 1
      %p97 = scmp.ne.s32.totalorder %s92, %s94
      %p98 = scmp.eq.s32.totalorder %s16, 0
      %p99 = por %p97, %p98
      %p100 = scmp.ne.s32.totalorder %s92, %s94
      %p101 = scmp.eq.s32.totalorder %s21, 1
      %p102 = por %p100, %p101
      %p103 = scmp.ne.s32.totalorder %s94, %s95
      %p104 = scmp.eq.s32.totalorder %s21, 0
      %p105 = por %p103, %p104
      %p106 = scmp.ne.s32.totalorder %s94, %s95
      %p107 = scmp.eq.s32.totalorder %s22, 1
      %p108 = por %p106, %p107
      %p110 = scmp.ne.s32.totalorder %s95, %s109
      %p111 = scmp.eq.s32.totalorder %s22, 0
      %p112 = por %p110, %p111
      %s114 = sadd.s32 %s113, 1
      %p117 = scmp.eq.s32.totalorder %s16, 1
      %p118 = scmp.ne.s32.totalorder %s113, %s115
      %p119 = scmp.eq.s32.totalorder %s16, 0
      %p120 = por %p118, %p119
      %p121 = scmp.ne.s32.totalorder %s113, %s115
      %p122 = scmp.eq.s32.totalorder %s21, 1
      %p123 = por %p121, %p122
      %p124 = scmp.ne.s32.totalorder %s115, %s116
      %p125 = scmp.eq.s32.totalorder %s21, 0
      %p126 = por %p124, %p125
      %p127 = scmp.ne.s32.totalorder %s115, %s116
      %p128 = scmp.eq.s32.totalorder %s22, 1
      %p129 = por %p127, %p128
      %p131 = scmp.ne.s32.totalorder %s116, %s130
      %p132 = scmp.eq.s32.totalorder %s22, 0
      %p133 = por %p131, %p132
      %s134 = ssub.s32 %s16, %s23
      %p135 = scmp.eq.s32.totalorder %s134, 0
      %s137 = sadd.s32 %s136, 1
      %s138 = scalar_select %p135, %s136, %s137
      %p141 = pneg %p135
      %p142 = scmp.eq.s32.totalorder %s16, 1
      %p143 = por %p141, %p142
      %p144 = scmp.ne.s32.totalorder %s136, %s139
      %p145 = scmp.eq.s32.totalorder %s16, 0
      %p146 = por %p144, %p145
      %p147 = scmp.ne.s32.totalorder %s136, %s139
      %p148 = scmp.eq.s32.totalorder %s21, 1
      %p149 = por %p147, %p148
      %p150 = scmp.ne.s32.totalorder %s139, %s140
      %p151 = scmp.eq.s32.totalorder %s21, 0
      %p152 = por %p150, %p151
      %p153 = scmp.ne.s32.totalorder %s139, %s140
      %p154 = scmp.eq.s32.totalorder %s22, 1
      %p155 = por %p153, %p154
      %p157 = scmp.ne.s32.totalorder %s140, %s156
      %p158 = scmp.eq.s32.totalorder %s22, 0
      %p159 = por %p157, %p158
      %p160 = scmp.le.s32.totalorder 1, %s16
      %p161 = scmp.lt.s32.totalorder %s16, 3
      %p162 = pnand %p160, %p161
      %p163 = pneg %p162
      // Predicated region
      $region9: #{heads_forward.1} parent=5 // pred_check
        _
      $region10: #{heads_forward.1} parent=5 // pred_check_branch
        %165 = sbr.rel (%p162) target = $region12
      $region11: #{heads_forward.1} parent=5 // pred_region
        %s166 = ssub.s32 %s16, 1
        // Predicated region
        $region13: #{heads_forward.1} parent=11 // pred_check
          %p167 = pneg %p63
        $region14: #{heads_forward.1} parent=11 // pred_check_branch
          %169 = sbr.rel (%p167) target = $region16
        $region15: #{heads_forward.1} parent=11 // pred_region
          %s171 = ssub.s32 64512, 64512
          %172 = vsyncadd [#allocation6], %s171
          %s173 = sshll.u32 [#allocation5], 4
          %s174 = int_to_ptr.vmem [resolvable:$true] %s173
          %179 = dma.hbm_to_vmem [thread:$0]  %s1, 64512, %s174, [#allocation6], 64, 64, 4
        $region16: #{heads_forward.1} parent=11 // pred_fallthru
          _
        // Predicated region
        $region17: #{heads_forward.1} parent=11 // pred_check
          %p180 = pneg %p84
        $region18: #{heads_forward.1} parent=11 // pred_check_branch
          %182 = sbr.rel (%p180) target = $region20
        $region19: #{heads_forward.1} parent=11 // pred_region
          %s184 = ssub.s32 112, 112
          %185 = vsyncadd [#allocation6], %s184
          %s186 = sshll.u32 [#allocation7], 4
          %s187 = int_to_ptr.vmem [resolvable:$true] %s186
          %192 = dma.hbm_to_vmem [thread:$0]  %s2, 112, %s187, [#allocation6], 16, 16, 1
        $region20: #{heads_forward.1} parent=11 // pred_fallthru
          _
        // Predicated region
        $region21: #{heads_forward.1} parent=11 // pred_check
          %p193 = pneg %p105
        $region22: #{heads_forward.1} parent=11 // pred_check_branch
          %195 = sbr.rel (%p193) target = $region24
        $region23: #{heads_forward.1} parent=11 // pred_region
          %s197 = ssub.s32 7168, 7168
          %198 = vsyncadd [#allocation9], %s197
          %s199 = sshll.u32 [#allocation8], 4
          %s200 = int_to_ptr.vmem [resolvable:$true] %s199
          %205 = dma.hbm_to_vmem [thread:$0]  %s3, 7168, %s200, [#allocation9], 64, 64, 4
        $region24: #{heads_forward.1} parent=11 // pred_fallthru
          _
        // Predicated region
        $region25: #{heads_forward.1} parent=11 // pred_check
          %p206 = pneg %p126
        $region26: #{heads_forward.1} parent=11 // pred_check_branch
          %208 = sbr.rel (%p206) target = $region28
        $region27: #{heads_forward.1} parent=11 // pred_region
          %s210 = ssub.s32 16, 16
          %211 = vsyncadd [#allocation9], %s210
          %s213 = sshll.u32 [#allocation10], 4
          %s214 = int_to_ptr.vmem [resolvable:$true] %s213
          %216 = dma.hbm_to_vmem [thread:$0]  %s4, 16, %s214, [#allocation9]
        $region28: #{heads_forward.1} parent=11 // pred_fallthru
          _
      $region12: #{heads_forward.1} parent=5 // pred_fallthru
        _
      %p217 = scmp.lt.s32.totalorder %s16, 2
      // Predicated region
      $region29: #{heads_forward.1} parent=5 // pred_check
        %p218 = pneg %p217
      $region30: #{heads_forward.1} parent=5 // pred_check_branch
        %220 = sbr.rel (%p218) target = $region32
      $region31: #{heads_forward.1} parent=5 // pred_region
        // Predicated region
        $region33: #{heads_forward.1} parent=31 // pred_check
          %p221 = pneg %p36
        $region34: #{heads_forward.1} parent=31 // pred_check_branch
          %223 = sbr.rel (%p221) target = $region36
        $region35: #{heads_forward.1} parent=31 // pred_region
          %s224 = sand.u32 %s26, 1
          %s225 = scalar_lea.sflag [#allocation4], %s224
          %s226 = sand.u32 %s26, 1
          %s227 = smul.addr %s226, 64
          %s228 = scalar_lea.vmem [#allocation3], %s227
          %s230 = ssub.s32 1024, 1024
          %231 = vsyncadd %s225, %s230
          %s232 = smul.addr %s16, 8
          %s233 = smul.addr %s232, 128
          %s234 = scalar_lea.hbm %s0, %s233
          %s235 = sshll.u32 %s228, 4
          %s236 = int_to_ptr.vmem [resolvable:$true] %s235
          %241 = dma.hbm_to_vmem [thread:$0]  %s234, 1024, %s236, %s225, 128, 128, 8
        $region36: #{heads_forward.1} parent=31 // pred_fallthru
          _
      $region32: #{heads_forward.1} parent=5 // pred_fallthru
        _
      %p242 = scmp.le.s32.totalorder 1, %s16
      %p243 = scmp.lt.s32.totalorder %s16, 3
      %p244 = pnand %p242, %p243
      %p245 = pneg %p244
      // Predicated region
      $region37: #{heads_forward.1} parent=5 // pred_check
        _
      $region38: #{heads_forward.1} parent=5 // pred_check_branch
        %247 = sbr.rel (%p244) target = $region40
      $region39: #{heads_forward.1} parent=5 // pred_region
        %s248 = ssub.s32 %s16, 1
        %s249 = sand.u32 %s29, 1
        %s250 = scalar_lea.sflag [#allocation4], %s249
        %s251 = sand.u32 %s29, 1
        %s252 = smul.addr %s251, 64
        %s253 = scalar_lea.vmem [#allocation3], %s252
        // Predicated region
        $region41: #{heads_forward.1} parent=39 // pred_check
          %p254 = pneg %p42
        $region42: #{heads_forward.1} parent=39 // pred_check_branch
          %256 = sbr.rel (%p254) target = $region44
        $region43: #{heads_forward.1} parent=39 // pred_region
          %257 = dma.done %s250, 1024
        $region44: #{heads_forward.1} parent=39 // pred_fallthru
          _
        // Predicated region
        $region45: #{heads_forward.1} parent=39 // pred_check
          %p258 = pneg %p63
        $region46: #{heads_forward.1} parent=39 // pred_check_branch
          %260 = sbr.rel (%p258) target = $region48
        $region47: #{heads_forward.1} parent=39 // pred_region
          %261 = dma.done [#allocation6], 64512
        $region48: #{heads_forward.1} parent=39 // pred_fallthru
          _
        // Predicated region
        $region49: #{heads_forward.1} parent=39 // pred_check
          %p262 = pneg %p84
        $region50: #{heads_forward.1} parent=39 // pred_check_branch
          %264 = sbr.rel (%p262) target = $region52
        $region51: #{heads_forward.1} parent=39 // pred_region
          %265 = dma.done [#allocation6], 112
        $region52: #{heads_forward.1} parent=39 // pred_fallthru
          _
        // Predicated region
        $region53: #{heads_forward.1} parent=39 // pred_check
          %p266 = pneg %p105
        $region54: #{heads_forward.1} parent=39 // pred_check_branch
          %268 = sbr.rel (%p266) target = $region56
        $region55: #{heads_forward.1} parent=39 // pred_region
          %269 = dma.done [#allocation9], 7168
        $region56: #{heads_forward.1} parent=39 // pred_fallthru
          _
        // Predicated region
        $region57: #{heads_forward.1} parent=39 // pred_check
          %p270 = pneg %p126
        $region58: #{heads_forward.1} parent=39 // pred_check_branch
          %272 = sbr.rel (%p270) target = $region60
        $region59: #{heads_forward.1} parent=39 // pred_region
          %273 = dma.done [#allocation9], 16
        $region60: #{heads_forward.1} parent=39 // pred_fallthru
          _
        %s274 = sand.u32 %s29, 1
        %s275 = scalar_lea.sflag [#allocation4], %s274
        %s276 = sand.u32 %s29, 1
        %s277 = smul.addr %s276, 64
        %s278 = scalar_lea.vmem [#allocation3], %s277
        %p279 = pneg %p42
        %p280 = pneg %p39
        %p281 = pneg %p63
        %p282 = pneg %p60
        %p283 = pneg %p84
        %p284 = pneg %p81
        %p285 = pneg %p105
        %p286 = pneg %p102
        %p287 = pneg %p126
        %p288 = pneg %p123
        %p289 = pneg %p152
        %p290 = pneg %p149
        %p291 = scmp.lt.s32.totalorder %s21, 1
        %s292 = scalar_select %p291, %s21, 1
        %s293 = smul.addr %s292, 8
        %s294 = smul.addr %s293, 8
        %s295 = scalar_lea.vmem %s5, %s294
        %p296 = scmp.lt.s32.totalorder %s21, 1
        %s297 = scalar_select %p296, %s21, 1
        %s298 = smul.addr %s297, 8
        %s299 = smul.addr %s298, 8
        %s300 = scalar_lea.vmem %s5, %s299
        %302 = vst [vmem:[#allocation2] sm:$0xf] 0
        %303 = vst [vmem:[#allocation2 + $0x4] sm:$0xf] 0
        %304 = vst [vmem:[#allocation2 + $0x8] sm:$0xf] 0
        %305 = vst [vmem:[#allocation2 + $0xc] sm:$0xf] 0
        %306 = vst [vmem:[#allocation2 + $0x10] sm:$0xf] 0
        %307 = vst [vmem:[#allocation2 + $0x14] sm:$0xf] 0
        %308 = vst [vmem:[#allocation2 + $0x18] sm:$0xf] 0
        %309 = vst [vmem:[#allocation2 + $0x1c] sm:$0xf] 0
        %310 = vst [vmem:[#allocation2 + $0x20] sm:$0xf] 0
        %311 = vst [vmem:[#allocation2 + $0x24] sm:$0xf] 0
        %312 = vst [vmem:[#allocation2 + $0x28] sm:$0xf] 0
        %313 = vst [vmem:[#allocation2 + $0x2c] sm:$0xf] 0
        %314 = vst [vmem:[#allocation2 + $0x30] sm:$0xf] 0
        %315 = vst [vmem:[#allocation2 + $0x34] sm:$0xf] 0
        %316 = vst [vmem:[#allocation2 + $0x38] sm:$0xf] 0
        %317 = vst [vmem:[#allocation2 + $0x3c] sm:$0xf] 0
        %318 = vst [vmem:[#allocation2 + $0x40] sm:$0xf] 0
        %319 = vst [vmem:[#allocation2 + $0x44] sm:$0xf] 0
        %320 = vst [vmem:[#allocation2 + $0x48] sm:$0xf] 0
        %321 = vst [vmem:[#allocation2 + $0x4c] sm:$0xf] 0
        %322 = vst [vmem:[#allocation2 + $0x50] sm:$0xf] 0
        %323 = vst [vmem:[#allocation2 + $0x54] sm:$0xf] 0
        %324 = vst [vmem:[#allocation2 + $0x58] sm:$0xf] 0
        %325 = vst [vmem:[#allocation2 + $0x5c] sm:$0xf] 0
        %326 = vst [vmem:[#allocation2 + $0x60] sm:$0xf] 0
        %327 = vst [vmem:[#allocation2 + $0x64] sm:$0xf] 0
        %328 = vst [vmem:[#allocation2 + $0x68] sm:$0xf] 0
        %329 = vst [vmem:[#allocation2 + $0x6c] sm:$0xf] 0
        %330 = vst [vmem:[#allocation2 + $0x70] sm:$0xf] 0
        %331 = vst [vmem:[#allocation2 + $0x74] sm:$0xf] 0
        %v332 = vld [vmem:[%s253] sm:$0xff]
        %v333 = vld [vmem:[%s253 + $0x8] sm:$0xff]
        %v334 = vld [vmem:[%s253 + $0x10] sm:$0xff]
        %v335 = vld [vmem:[%s253 + $0x18] sm:$0xff]
        %v336 = vld [vmem:[%s253 + $0x20] sm:$0xff]
        %v337 = vld [vmem:[%s253 + $0x28] sm:$0xff]
        %v338 = vld [vmem:[%s253 + $0x30] sm:$0xff]
        %v339 = vld [vmem:[%s253 + $0x38] sm:$0xff]
        %v340 = vpack.c.bf16 %v332, %v332
        %v341 = vpack.c.bf16 %v333, %v333
        %v342 = vpack.c.bf16 %v334, %v334
        %v343 = vpack.c.bf16 %v335, %v335
        %v344 = vpack.c.bf16 %v336, %v336
        %v345 = vpack.c.bf16 %v337, %v337
        %v346 = vpack.c.bf16 %v338, %v338
        %v347 = vpack.c.bf16 %v339, %v339
        %s348 = scalar_lea.vmem [#allocation2], 44
        %349 = vst [vmem:[%s348] sm:$0xf] %v340
        %350 = vst [vmem:[%s348 + $0x4] sm:$0xf] %v341
        %351 = vst [vmem:[%s348 + $0x8] sm:$0xf] %v342
        %352 = vst [vmem:[%s348 + $0xc] sm:$0xf] %v343
        %353 = vst [vmem:[%s348 + $0x10] sm:$0xf] %v344
        %354 = vst [vmem:[%s348 + $0x14] sm:$0xf] %v345
        %355 = vst [vmem:[%s348 + $0x18] sm:$0xf] %v346
        %356 = vst [vmem:[%s348 + $0x1c] sm:$0xf] %v347
        %v365 = vunpack.c.l.b16 %v340
        %v366 = vunpack.c.l.b16 %v341
        %v367 = vunpack.c.l.b16 %v342
        %v368 = vunpack.c.l.b16 %v343
        %v369 = vunpack.c.l.b16 %v344
        %v370 = vunpack.c.l.b16 %v345
        %v371 = vunpack.c.l.b16 %v346
        %v372 = vunpack.c.l.b16 %v347
        %v373 = vpack.c.b16 %v365, %v365
        %v374 = vpack.c.b16 %v366, %v366
        %v375 = vpack.c.b16 %v367, %v367
        %v376 = vpack.c.b16 %v368, %v368
        %v377 = vpack.c.b16 %v369, %v369
        %v378 = vpack.c.b16 %v370, %v370
        %v379 = vpack.c.b16 %v371, %v371
        %v380 = vpack.c.b16 %v372, %v372
        %v382 = vshrl.u32 %v373, 16
        %v384 = vrot.slane %v382, 7
        %v385 = vshll.u32 %v373, 16
        %v387 = vor.u32 %v384, %v385
        %v389 = vshrl.u32 %v374, 16
        %v391 = vrot.slane %v389, 7
        %v392 = vshll.u32 %v374, 16
        %v394 = vor.u32 %v391, %v392
        %v396 = vshrl.u32 %v375, 16
        %v398 = vrot.slane %v396, 7
        %v399 = vshll.u32 %v375, 16
        %v401 = vor.u32 %v398, %v399
        %v403 = vshrl.u32 %v376, 16
        %v405 = vrot.slane %v403, 7
        %v406 = vshll.u32 %v376, 16
        %v408 = vor.u32 %v405, %v406
        %v410 = vshrl.u32 %v377, 16
        %v412 = vrot.slane %v410, 7
        %v413 = vshll.u32 %v377, 16
        %v415 = vor.u32 %v412, %v413
        %v417 = vshrl.u32 %v378, 16
        %v419 = vrot.slane %v417, 7
        %v420 = vshll.u32 %v378, 16
        %v422 = vor.u32 %v419, %v420
        %v424 = vshrl.u32 %v379, 16
        %v426 = vrot.slane %v424, 7
        %v427 = vshll.u32 %v379, 16
        %v429 = vor.u32 %v426, %v427
        %v431 = vshrl.u32 %v380, 16
        %v433 = vrot.slane %v431, 7
        %v434 = vshll.u32 %v380, 16
        %v436 = vor.u32 %v433, %v434
        %s445 = scalar_lea.vmem [#allocation2], 4
        %vm446 = vcmask 1043456
        %vm447 = vsmask.f32 7938
        %vm448 = vmand %vm446, %vm447
        %v449 = vld [vmem:[%s445] sm:$0xf]
        %v450 = vsel %vm448, %v387, %v449
        %451 = vst [vmem:[%s445] sm:$0xf] %v450
        %v452 = vld [vmem:[%s445 + $0x4] sm:$0xf]
        %v453 = vsel %vm448, %v394, %v452
        %454 = vst [vmem:[%s445 + $0x4] sm:$0xf] %v453
        %v455 = vld [vmem:[%s445 + $0x8] sm:$0xf]
        %v456 = vsel %vm448, %v401, %v455
        %457 = vst [vmem:[%s445 + $0x8] sm:$0xf] %v456
        %v458 = vld [vmem:[%s445 + $0xc] sm:$0xf]
        %v459 = vsel %vm448, %v408, %v458
        %460 = vst [vmem:[%s445 + $0xc] sm:$0xf] %v459
        %v461 = vld [vmem:[%s445 + $0x10] sm:$0xf]
        %v462 = vsel %vm448, %v415, %v461
        %463 = vst [vmem:[%s445 + $0x10] sm:$0xf] %v462
        %v464 = vld [vmem:[%s445 + $0x14] sm:$0xf]
        %v465 = vsel %vm448, %v422, %v464
        %466 = vst [vmem:[%s445 + $0x14] sm:$0xf] %v465
        %v467 = vld [vmem:[%s445 + $0x18] sm:$0xf]
        %v468 = vsel %vm448, %v429, %v467
        %469 = vst [vmem:[%s445 + $0x18] sm:$0xf] %v468
        %v470 = vld [vmem:[%s445 + $0x1c] sm:$0xf]
        %v471 = vsel %vm448, %v436, %v470
        %472 = vst [vmem:[%s445 + $0x1c] sm:$0xf] %v471
        %v473 = vrot.slane %v382, 4
        %v474 = vrot.slane %v385, 5
        %v475 = vor.u32 %v473, %v474
        %v476 = vrot.slane %v475, 4
        %v477 = vrot.slane %v389, 4
        %v478 = vrot.slane %v392, 5
        %v479 = vor.u32 %v477, %v478
        %v480 = vrot.slane %v479, 4
        %v481 = vrot.slane %v396, 4
        %v482 = vrot.slane %v399, 5
        %v483 = vor.u32 %v481, %v482
        %v484 = vrot.slane %v483, 4
        %v485 = vrot.slane %v403, 4
        %v486 = vrot.slane %v406, 5
        %v487 = vor.u32 %v485, %v486
        %v488 = vrot.slane %v487, 4
        %v489 = vrot.slane %v410, 4
        %v490 = vrot.slane %v413, 5
        %v491 = vor.u32 %v489, %v490
        %v492 = vrot.slane %v491, 4
        %v493 = vrot.slane %v417, 4
        %v494 = vrot.slane %v420, 5
        %v495 = vor.u32 %v493, %v494
        %v496 = vrot.slane %v495, 4
        %v497 = vrot.slane %v424, 4
        %v498 = vrot.slane %v427, 5
        %v499 = vor.u32 %v497, %v498
        %v500 = vrot.slane %v499, 4
        %v501 = vrot.slane %v431, 4
        %v502 = vrot.slane %v434, 5
        %v503 = vor.u32 %v501, %v502
        %v504 = vrot.slane %v503, 4
        %s513 = scalar_lea.vmem [#allocation2], 84
        %vm514 = vsmask.f32 3328
        %vm515 = vmand %vm446, %vm514
        %v516 = vld [vmem:[%s513] sm:$0xf]
        %v517 = vsel %vm515, %v476, %v516
        %518 = vst [vmem:[%s513] sm:$0xf] %v517
        %v519 = vld [vmem:[%s513 + $0x4] sm:$0xf]
        %v520 = vsel %vm515, %v480, %v519
        %521 = vst [vmem:[%s513 + $0x4] sm:$0xf] %v520
        %v522 = vld [vmem:[%s513 + $0x8] sm:$0xf]
        %v523 = vsel %vm515, %v484, %v522
        %524 = vst [vmem:[%s513 + $0x8] sm:$0xf] %v523
        %v525 = vld [vmem:[%s513 + $0xc] sm:$0xf]
        %v526 = vsel %vm515, %v488, %v525
        %527 = vst [vmem:[%s513 + $0xc] sm:$0xf] %v526
        %v528 = vld [vmem:[%s513 + $0x10] sm:$0xf]
        %v529 = vsel %vm515, %v492, %v528
        %530 = vst [vmem:[%s513 + $0x10] sm:$0xf] %v529
        %v531 = vld [vmem:[%s513 + $0x14] sm:$0xf]
        %v532 = vsel %vm515, %v496, %v531
        %533 = vst [vmem:[%s513 + $0x14] sm:$0xf] %v532
        %v534 = vld [vmem:[%s513 + $0x18] sm:$0xf]
        %v535 = vsel %vm515, %v500, %v534
        %536 = vst [vmem:[%s513 + $0x18] sm:$0xf] %v535
        %v537 = vld [vmem:[%s513 + $0x1c] sm:$0xf]
        %v538 = vsel %vm515, %v504, %v537
        %539 = vst [vmem:[%s513 + $0x1c] sm:$0xf] %v538
        %v540 = vld [vmem:[#allocation2] sm:$0xf]
        %v541 = vld [vmem:[#allocation2 + $0x4] sm:$0xf]
        %v542 = vld [vmem:[#allocation2 + $0x8] sm:$0xf]
        %v543 = vld [vmem:[#allocation2 + $0xc] sm:$0xf]
        %v544 = vld [vmem:[#allocation2 + $0x10] sm:$0xf]
        %v545 = vld [vmem:[#allocation2 + $0x14] sm:$0xf]
        %v546 = vld [vmem:[#allocation2 + $0x18] sm:$0xf]
        %v547 = vld [vmem:[#allocation2 + $0x1c] sm:$0xf]
        %v548 = vld [vmem:[#allocation5] sm:$0xf]
        %v549 = vld [vmem:[#allocation5 + $0x4] sm:$0xf]
        %v550 = vld [vmem:[#allocation5 + $0x8] sm:$0xf]
        %v551 = vld [vmem:[#allocation5 + $0xc] sm:$0xf]
        %v552 = vld [vmem:[#allocation5 + $0x10] sm:$0xf]
        %v553 = vld [vmem:[#allocation5 + $0x14] sm:$0xf]
        %v554 = vld [vmem:[#allocation5 + $0x18] sm:$0xf]
        %v555 = vld [vmem:[#allocation5 + $0x1c] sm:$0xf]
        %v556 = vld [vmem:[#allocation5 + $0x20] sm:$0xf]
        %v557 = vld [vmem:[#allocation5 + $0x24] sm:$0xf]
        %v558 = vld [vmem:[#allocation5 + $0x28] sm:$0xf]
        %v559 = vld [vmem:[#allocation5 + $0x2c] sm:$0xf]
        %v560 = vld [vmem:[#allocation5 + $0x30] sm:$0xf]
        %v561 = vld [vmem:[#allocation5 + $0x34] sm:$0xf]
        %v562 = vld [vmem:[#allocation5 + $0x38] sm:$0xf]
        %v563 = vld [vmem:[#allocation5 + $0x3c] sm:$0xf]
        %v564 = vld [vmem:[%s445] sm:$0xf]
        %v565 = vld [vmem:[%s445 + $0x4] sm:$0xf]
        %v566 = vld [vmem:[%s445 + $0x8] sm:$0xf]
        %v567 = vld [vmem:[%s445 + $0xc] sm:$0xf]
        %v568 = vld [vmem:[%s445 + $0x10] sm:$0xf]
        %v569 = vld [vmem:[%s445 + $0x14] sm:$0xf]
        %v570 = vld [vmem:[%s445 + $0x18] sm:$0xf]
        %v571 = vld [vmem:[%s445 + $0x1c] sm:$0xf]
        %s572 = scalar_lea.vmem [#allocation5], 192
        %v573 = vld [vmem:[%s572] sm:$0xf]
        %v574 = vld [vmem:[%s572 + $0x4] sm:$0xf]
        %v575 = vld [vmem:[%s572 + $0x8] sm:$0xf]
        %v576 = vld [vmem:[%s572 + $0xc] sm:$0xf]
        %v577 = vld [vmem:[%s572 + $0x10] sm:$0xf]
        %v578 = vld [vmem:[%s572 + $0x14] sm:$0xf]
        %v579 = vld [vmem:[%s572 + $0x18] sm:$0xf]
        %v580 = vld [vmem:[%s572 + $0x1c] sm:$0xf]
        %v581 = vld [vmem:[%s572 + $0x20] sm:$0xf]
        %v582 = vld [vmem:[%s572 + $0x24] sm:$0xf]
        %v583 = vld [vmem:[%s572 + $0x28] sm:$0xf]
        %v584 = vld [vmem:[%s572 + $0x2c] sm:$0xf]
        %v585 = vld [vmem:[%s572 + $0x30] sm:$0xf]
        %v586 = vld [vmem:[%s572 + $0x34] sm:$0xf]
        %v587 = vld [vmem:[%s572 + $0x38] sm:$0xf]
        %v588 = vld [vmem:[%s572 + $0x3c] sm:$0xf]
        %v597 = vunpack.c.l.b16 %v564
        %v598 = vunpack.c.l.b16 %v565
        %v599 = vunpack.c.l.b16 %v566
        %v600 = vunpack.c.l.b16 %v567
        %v601 = vunpack.c.l.b16 %v568
        %v602 = vunpack.c.l.b16 %v569
        %v603 = vunpack.c.l.b16 %v570
        %v604 = vunpack.c.l.b16 %v571
        %v605 = vpack.c.b16 %v598, %v597
        %v606 = vpack.c.b16 %v600, %v599
        %v607 = vpack.c.b16 %v602, %v601
        %v608 = vpack.c.b16 %v604, %v603
        %v629 = vunpack.c.l.b16 %v573
        %v630 = vunpack.c.l.b16 %v574
        %v631 = vunpack.c.l.b16 %v575
        %v632 = vunpack.c.l.b16 %v576
        %v633 = vunpack.c.l.b16 %v577
        %v634 = vunpack.c.l.b16 %v578
        %v635 = vunpack.c.l.b16 %v579
        %v636 = vunpack.c.l.b16 %v580
        %v637 = vunpack.c.l.b16 %v581
        %v638 = vunpack.c.l.b16 %v582
        %v639 = vunpack.c.l.b16 %v583
        %v640 = vunpack.c.l.b16 %v584
        %v641 = vunpack.c.l.b16 %v585
        %v642 = vunpack.c.l.b16 %v586
        %v643 = vunpack.c.l.b16 %v587
        %v644 = vunpack.c.l.b16 %v588
        %v645 = vpack.c.b16 %v630, %v629
        %v646 = vpack.c.b16 %v632, %v631
        %v647 = vpack.c.b16 %v634, %v633
        %v648 = vpack.c.b16 %v636, %v635
        %v649 = vpack.c.b16 %v638, %v637
        %v650 = vpack.c.b16 %v640, %v639
        %v651 = vpack.c.b16 %v642, %v641
        %v652 = vpack.c.b16 %v644, %v643
        %661 = vmatprep.subr.bf16.mxu0 0
        %662 = vmatpush1.bf16.msra.mxu0 %v645
        %663 = vmatprep.subr.bf16.mxu0 0
        %664 = vmatpush1.bf16.msra.mxu0 %v646
        %665 = vmatprep.subr.bf16.mxu0 0
        %666 = vmatpush1.bf16.msra.mxu0 %v647
        %667 = vmatprep.subr.bf16.mxu0 0
        %668 = vmatpush1.bf16.msra.mxu0 %v648
        %669 = vmatprep.subr.bf16.mxu0 0
        %670 = vmatpush1.bf16.msra.mxu0 %v649
        %671 = vmatprep.subr.bf16.mxu0 0
        %672 = vmatpush1.bf16.msra.mxu0 %v650
        %673 = vmatprep.subr.bf16.mxu0 0
        %674 = vmatpush1.bf16.msra.mxu0 %v651
        %675 = vmatprep.subr.bf16.mxu0 0
        %676 = vmatpush1.bf16.msra.mxu0 %v652
        %677 = vmatprep.subr.bf16.mxu0 0
        %678 = vmatpush1.bf16.msra.mxu0 0
        %679 = vmatprep.subr.bf16.mxu0 0
        %680 = vmatpush1.bf16.msra.mxu0 0
        %681 = vmatprep.subr.bf16.mxu0 0
        %682 = vmatpush1.bf16.msra.mxu0 0
        %683 = vmatprep.subr.bf16.mxu0 0
        %684 = vmatpush1.bf16.msra.mxu0 0
        %685 = vmatprep.subr.bf16.mxu0 0
        %686 = vmatpush1.bf16.msra.mxu0 0
        %687 = vmatprep.subr.bf16.mxu0 0
        %688 = vmatpush1.bf16.msra.mxu0 0
        %689 = vmatprep.subr.bf16.mxu0 0
        %690 = vmatpush1.bf16.msra.mxu0 0
        %691 = vmatprep.subr.bf16.mxu0 0
        %692 = vmatpush1.bf16.msra.mxu0 0
        %693 = vmatprep.mubr.bf16.mxu0 0
        %694 = vmatmul.mubr.bf16.gmra.mrb[0].mxu0 %v605
        %v695 = vpop.f32.mrb[0].mxu0
        %v696 = vadd.f32 0.0, %v695
        %v697 = vpop.f32.mrb[0].mxu0
        %v698 = vpop.f32.mrb[0].mxu0
        %v699 = vadd.f32 0.0, %v698
        %v700 = vpop.f32.mrb[0].mxu0
        %701 = vmatprep.mubr.bf16.mxu0 0
        %702 = vmatmul.mubr.bf16.gmra.mrb[0].mxu0 %v606
        %v703 = vpop.f32.mrb[0].mxu0
        %v704 = vadd.f32 0.0, %v703
        %v705 = vpop.f32.mrb[0].mxu0
        %v706 = vpop.f32.mrb[0].mxu0
        %v707 = vadd.f32 0.0, %v706
        %v708 = vpop.f32.mrb[0].mxu0
        %709 = vmatprep.mubr.bf16.mxu0 0
        %710 = vmatmul.mubr.bf16.gmra.mrb[0].mxu0 %v607
        %v711 = vpop.f32.mrb[0].mxu0
        %v712 = vadd.f32 0.0, %v711
        %v713 = vpop.f32.mrb[0].mxu0
        %v714 = vpop.f32.mrb[0].mxu0
        %v715 = vadd.f32 0.0, %v714
        %v716 = vpop.f32.mrb[0].mxu0
        %717 = vmatprep.mubr.bf16.mxu0 0
        %718 = vmatmul.mubr.bf16.gmra.mrb[0].mxu0 %v608
        %v719 = vpop.f32.mrb[0].mxu0
        %v720 = vadd.f32 0.0, %v719
        %v721 = vpop.f32.mrb[0].mxu0
        %v722 = vpop.f32.mrb[0].mxu0
        %v723 = vadd.f32 0.0, %v722
        %v724 = vpop.f32.mrb[0].mxu0
        %725 = vdwg.mxu0
        %v734 = vunpack.c.l.b16 %v540
        %v735 = vunpack.c.l.b16 %v541
        %v736 = vunpack.c.l.b16 %v542
        %v737 = vunpack.c.l.b16 %v543
        %v738 = vunpack.c.l.b16 %v544
        %v739 = vunpack.c.l.b16 %v545
        %v740 = vunpack.c.l.b16 %v546
        %v741 = vunpack.c.l.b16 %v547
        %v742 = vpack.c.b16 %v735, %v734
        %v743 = vpack.c.b16 %v737, %v736
        %v744 = vpack.c.b16 %v739, %v738
        %v745 = vpack.c.b16 %v741, %v740
        %v766 = vunpack.c.l.b16 %v548
        %v767 = vunpack.c.l.b16 %v549
        %v768 = vunpack.c.l.b16 %v550
        %v769 = vunpack.c.l.b16 %v551
        %v770 = vunpack.c.l.b16 %v552
        %v771 = vunpack.c.l.b16 %v553
        %v772 = vunpack.c.l.b16 %v554
        %v773 = vunpack.c.l.b16 %v555
        %v774 = vunpack.c.l.b16 %v556
        %v775 = vunpack.c.l.b16 %v557
        %v776 = vunpack.c.l.b16 %v558
        %v777 = vunpack.c.l.b16 %v559
        %v778 = vunpack.c.l.b16 %v560
        %v779 = vunpack.c.l.b16 %v561
        %v780 = vunpack.c.l.b16 %v562
        %v781 = vunpack.c.l.b16 %v563
        %v782 = vpack.c.b16 %v767, %v766
        %v783 = vpack.c.b16 %v769, %v768
        %v784 = vpack.c.b16 %v771, %v770
        %v785 = vpack.c.b16 %v773, %v772
        %v786 = vpack.c.b16 %v775, %v774
        %v787 = vpack.c.b16 %v777, %v776
        %v788 = vpack.c.b16 %v779, %v778
        %v789 = vpack.c.b16 %v781, %v780
        %798 = vmatprep.subr.bf16.mxu0 0
        %799 = vmatpush1.bf16.msra.mxu0 %v782
        %800 = vmatprep.subr.bf16.mxu0 0
        %801 = vmatpush1.bf16.msra.mxu0 %v783
        %802 = vmatprep.subr.bf16.mxu0 0
        %803 = vmatpush1.bf16.msra.mxu0 %v784
        %804 = vmatprep.subr.bf16.mxu0 0
        %805 = vmatpush1.bf16.msra.mxu0 %v785
        %806 = vmatprep.subr.bf16.mxu0 0
        %807 = vmatpush1.bf16.msra.mxu0 %v786
        %808 = vmatprep.subr.bf16.mxu0 0
        %809 = vmatpush1.bf16.msra.mxu0 %v787
        %810 = vmatprep.subr.bf16.mxu0 0
        %811 = vmatpush1.bf16.msra.mxu0 %v788
        %812 = vmatprep.subr.bf16.mxu0 0
        %813 = vmatpush1.bf16.msra.mxu0 %v789
        %814 = vmatprep.subr.bf16.mxu0 0
        %815 = vmatpush1.bf16.msra.mxu0 0
        %816 = vmatprep.subr.bf16.mxu0 0
        %817 = vmatpush1.bf16.msra.mxu0 0
        %818 = vmatprep.subr.bf16.mxu0 0
        %819 = vmatpush1.bf16.msra.mxu0 0
        %820 = vmatprep.subr.bf16.mxu0 0
        %821 = vmatpush1.bf16.msra.mxu0 0
        %822 = vmatprep.subr.bf16.mxu0 0
        %823 = vmatpush1.bf16.msra.mxu0 0
        %824 = vmatprep.subr.bf16.mxu0 0
        %825 = vmatpush1.bf16.msra.mxu0 0
        %826 = vmatprep.subr.bf16.mxu0 0
        %827 = vmatpush1.bf16.msra.mxu0 0
        %828 = vmatprep.subr.bf16.mxu0 0
        %829 = vmatpush1.bf16.msra.mxu0 0
        %830 = vmatprep.mubr.bf16.mxu0 0
        %831 = vmatmul.mubr.bf16.gmra.mrb[0].mxu0 %v742
        %v832 = vpop.f32.mrb[0].mxu0
        %v833 = vadd.f32 %v696, %v832
        %v834 = vpop.f32.mrb[0].mxu0
        %v835 = vpop.f32.mrb[0].mxu0
        %v836 = vadd.f32 %v699, %v835
        %v837 = vpop.f32.mrb[0].mxu0
        %838 = vmatprep.mubr.bf16.mxu0 0
        %839 = vmatmul.mubr.bf16.gmra.mrb[0].mxu0 %v743
        %v840 = vpop.f32.mrb[0].mxu0
        %v841 = vadd.f32 %v704, %v840
        %v842 = vpop.f32.mrb[0].mxu0
        %v843 = vpop.f32.mrb[0].mxu0
        %v844 = vadd.f32 %v707, %v843
        %v845 = vpop.f32.mrb[0].mxu0
        %846 = vmatprep.mubr.bf16.mxu0 0
        %847 = vmatmul.mubr.bf16.gmra.mrb[0].mxu0 %v744
        %v848 = vpop.f32.mrb[0].mxu0
        %v849 = vadd.f32 %v712, %v848
        %v850 = vpop.f32.mrb[0].mxu0
        %v851 = vpop.f32.mrb[0].mxu0
        %v852 = vadd.f32 %v715, %v851
        %v853 = vpop.f32.mrb[0].mxu0
        %854 = vmatprep.mubr.bf16.mxu0 0
        %855 = vmatmul.mubr.bf16.gmra.mrb[0].mxu0 %v745
        %v856 = vpop.f32.mrb[0].mxu0
        %v857 = vadd.f32 %v720, %v856
        %v858 = vpop.f32.mrb[0].mxu0
        %v859 = vpop.f32.mrb[0].mxu0
        %v860 = vadd.f32 %v723, %v859
        %v861 = vpop.f32.mrb[0].mxu0
        %862 = vdwg.mxu0
        %s863 = scalar_lea.vmem [#allocation2], 8
        %v864 = vld [vmem:[%s863] sm:$0xf]
        %v865 = vld [vmem:[%s863 + $0x4] sm:$0xf]
        %v866 = vld [vmem:[%s863 + $0x8] sm:$0xf]
        %v867 = vld [vmem:[%s863 + $0xc] sm:$0xf]
        %v868 = vld [vmem:[%s863 + $0x10] sm:$0xf]
        %v869 = vld [vmem:[%s863 + $0x14] sm:$0xf]
        %v870 = vld [vmem:[%s863 + $0x18] sm:$0xf]
        %v871 = vld [vmem:[%s863 + $0x1c] sm:$0xf]
        %s872 = scalar_lea.vmem [#allocation5], 384
        %v873 = vld [vmem:[%s872] sm:$0xf]
        %v874 = vld [vmem:[%s872 + $0x4] sm:$0xf]
        %v875 = vld [vmem:[%s872 + $0x8] sm:$0xf]
        %v876 = vld [vmem:[%s872 + $0xc] sm:$0xf]
        %v877 = vld [vmem:[%s872 + $0x10] sm:$0xf]
        %v878 = vld [vmem:[%s872 + $0x14] sm:$0xf]
        %v879 = vld [vmem:[%s872 + $0x18] sm:$0xf]
        %v880 = vld [vmem:[%s872 + $0x1c] sm:$0xf]
        %v881 = vld [vmem:[%s872 + $0x20] sm:$0xf]
        %v882 = vld [vmem:[%s872 + $0x24] sm:$0xf]
        %v883 = vld [vmem:[%s872 + $0x28] sm:$0xf]
        %v884 = vld [vmem:[%s872 + $0x2c] sm:$0xf]
        %v885 = vld [vmem:[%s872 + $0x30] sm:$0xf]
        %v886 = vld [vmem:[%s872 + $0x34] sm:$0xf]
        %v887 = vld [vmem:[%s872 + $0x38] sm:$0xf]
        %v888 = vld [vmem:[%s872 + $0x3c] sm:$0xf]
        %v897 = vunpack.c.l.b16 %v864
        %v898 = vunpack.c.l.b16 %v865
        %v899 = vunpack.c.l.b16 %v866
        %v900 = vunpack.c.l.b16 %v867
        %v901 = vunpack.c.l.b16 %v868
        %v902 = vunpack.c.l.b16 %v869
        %v903 = vunpack.c.l.b16 %v870
        %v904 = vunpack.c.l.b16 %v871
        %v905 = vpack.c.b16 %v898, %v897
        %v906 = vpack.c.b16 %v900, %v899
        %v907 = vpack.c.b16 %v902, %v901
        %v908 = vpack.c.b16 %v904, %v903
        %v929 = vunpack.c.l.b16 %v873
        %v930 = vunpack.c.l.b16 %v874
        %v931 = vunpack.c.l.b16 %v875
        %v932 = vunpack.c.l.b16 %v876
        %v933 = vunpack.c.l.b16 %v877
        %v934 = vunpack.c.l.b16 %v878
        %v935 = vunpack.c.l.b16 %v879
        %v936 = vunpack.c.l.b16 %v880
        %v937 = vunpack.c.l.b16 %v881
        %v938 = vunpack.c.l.b16 %v882
        %v939 = vunpack.c.l.b16 %v883
        %v940 = vunpack.c.l.b16 %v884
        %v941 = vunpack.c.l.b16 %v885
        %v942 = vunpack.c.l.b16 %v886
        %v943 = vunpack.c.l.b16 %v887
        %v944 = vunpack.c.l.b16 %v888
        %v945 = vpack.c.b16 %v930, %v929
        %v946 = vpack.c.b16 %v932, %v931
        %v947 = vpack.c.b16 %v934, %v933
        %v948 = vpack.c.b16 %v936, %v935
        %v949 = vpack.c.b16 %v938, %v937
        %v950 = vpack.c.b16 %v940, %v939
        %v951 = vpack.c.b16 %v942, %v941
        %v952 = vpack.c.b16 %v944, %v943
        %961 = vmatprep.subr.bf16.mxu0 0
        %962 = vmatpush1.bf16.msra.mxu0 %v945
        %963 = vmatprep.subr.bf16.mxu0 0
        %964 = vmatpush1.bf16.msra.mxu0 %v946
        %965 = vmatprep.subr.bf16.mxu0 0
        %966 = vmatpush1.bf16.msra.mxu0 %v947
        %967 = vmatprep.subr.bf16.mxu0 0
        %968 = vmatpush1.bf16.msra.mxu0 %v948
        %969 = vmatprep.subr.bf16.mxu0 0
        %970 = vmatpush1.bf16.msra.mxu0 %v949
        %971 = vmatprep.subr.bf16.mxu0 0
        %972 = vmatpush1.bf16.msra.mxu0 %v950
        %973 = vmatprep.subr.bf16.mxu0 0
        %974 = vmatpush1.bf16.msra.mxu0 %v951
        %975 = vmatprep.subr.bf16.mxu0 0
        %976 = vmatpush1.bf16.msra.mxu0 %v952
        %977 = vmatprep.subr.bf16.mxu0 0
        %978 = vmatpush1.bf16.msra.mxu0 0
        %979 = vmatprep.subr.bf16.mxu0 0
        %980 = vmatpush1.bf16.msra.mxu0 0
        %981 = vmatprep.subr.bf16.mxu0 0
        %982 = vmatpush1.bf16.msra.mxu0 0
        %983 = vmatprep.subr.bf16.mxu0 0
        %984 = vmatpush1.bf16.msra.mxu0 0
        %985 = vmatprep.subr.bf16.mxu0 0
        %986 = vmatpush1.bf16.msra.mxu0 0
        %987 = vmatprep.subr.bf16.mxu0 0
        %988 = vmatpush1.bf16.msra.mxu0 0
        %989 = vmatprep.subr.bf16.mxu0 0
        %990 = vmatpush1.bf16.msra.mxu0 0
        %991 = vmatprep.subr.bf16.mxu0 0
        %992 = vmatpush1.bf16.msra.mxu0 0
        %993 = vmatprep.mubr.bf16.mxu0 0
        %994 = vmatmul.mubr.bf16.gmra.mrb[0].mxu0 %v905
        %v995 = vpop.f32.mrb[0].mxu0
        %v996 = vadd.f32 0.0, %v995
        %v997 = vpop.f32.mrb[0].mxu0
        %v998 = vpop.f32.mrb[0].mxu0
        %v999 = vadd.f32 0.0, %v998
        %v1000 = vpop.f32.mrb[0].mxu0
        %1001 = vmatprep.mubr.bf16.mxu0 0
        %1002 = vmatmul.mubr.bf16.gmra.mrb[0].mxu0 %v906
        %v1003 = vpop.f32.mrb[0].mxu0
        %v1004 = vadd.f32 0.0, %v1003
        %v1005 = vpop.f32.mrb[0].mxu0
        %v1006 = vpop.f32.mrb[0].mxu0
        %v1007 = vadd.f32 0.0, %v1006
        %v1008 = vpop.f32.mrb[0].mxu0
        %1009 = vmatprep.mubr.bf16.mxu0 0
        %1010 = vmatmul.mubr.bf16.gmra.mrb[0].mxu0 %v907
        %v1011 = vpop.f32.mrb[0].mxu0
        %v1012 = vadd.f32 0.0, %v1011
        %v1013 = vpop.f32.mrb[0].mxu0
        %v1014 = vpop.f32.mrb[0].mxu0
        %v1015 = vadd.f32 0.0, %v1014
        %v1016 = vpop.f32.mrb[0].mxu0
        %1017 = vmatprep.mubr.bf16.mxu0 0
        %1018 = vmatmul.mubr.bf16.gmra.mrb[0].mxu0 %v908
        %v1019 = vpop.f32.mrb[0].mxu0
        %v1020 = vadd.f32 0.0, %v1019
        %v1021 = vpop.f32.mrb[0].mxu0
        %v1022 = vpop.f32.mrb[0].mxu0
        %v1023 = vadd.f32 0.0, %v1022
        %v1024 = vpop.f32.mrb[0].mxu0
        %1025 = vdwg.mxu0
        %v1026 = vadd.f32 %v833, %v996
        %v1027 = vadd.f32 %v836, %v999
        %v1028 = vadd.f32 %v841, %v1004
        %v1029 = vadd.f32 %v844, %v1007
        %v1030 = vadd.f32 %v849, %v1012
        %v1031 = vadd.f32 %v852, %v1015
        %v1032 = vadd.f32 %v857, %v1020
        %v1033 = vadd.f32 %v860, %v1023
        %s1034 = scalar_lea.vmem [#allocation2], 40
        %v1035 = vld [vmem:[%s1034] sm:$0xf]
        %v1036 = vld [vmem:[%s1034 + $0x4] sm:$0xf]
        %v1037 = vld [vmem:[%s1034 + $0x8] sm:$0xf]
        %v1038 = vld [vmem:[%s1034 + $0xc] sm:$0xf]
        %v1039 = vld [vmem:[%s1034 + $0x10] sm:$0xf]
        %v1040 = vld [vmem:[%s1034 + $0x14] sm:$0xf]
        %v1041 = vld [vmem:[%s1034 + $0x18] sm:$0xf]
        %v1042 = vld [vmem:[%s1034 + $0x1c] sm:$0xf]
        %s1043 = scalar_lea.vmem [#allocation5], 64
        %v1044 = vld [vmem:[%s1043] sm:$0xf]
        %v1045 = vld [vmem:[%s1043 + $0x4] sm:$0xf]
        %v1046 = vld [vmem:[%s1043 + $0x8] sm:$0xf]
        %v1047 = vld [vmem:[%s1043 + $0xc] sm:$0xf]
        %v1048 = vld [vmem:[%s1043 + $0x10] sm:$0xf]
        %v1049 = vld [vmem:[%s1043 + $0x14] sm:$0xf]
        %v1050 = vld [vmem:[%s1043 + $0x18] sm:$0xf]
        %v1051 = vld [vmem:[%s1043 + $0x1c] sm:$0xf]
        %v1052 = vld [vmem:[%s1043 + $0x20] sm:$0xf]
        %v1053 = vld [vmem:[%s1043 + $0x24] sm:$0xf]
        %v1054 = vld [vmem:[%s1043 + $0x28] sm:$0xf]
        %v1055 = vld [vmem:[%s1043 + $0x2c] sm:$0xf]
        %v1056 = vld [vmem:[%s1043 + $0x30] sm:$0xf]
        %v1057 = vld [vmem:[%s1043 + $0x34] sm:$0xf]
        %v1058 = vld [vmem:[%s1043 + $0x38] sm:$0xf]
        %v1059 = vld [vmem:[%s1043 + $0x3c] sm:$0xf]
        %v1068 = vunpack.c.l.b16 %v1035
        %v1069 = vunpack.c.l.b16 %v1036
        %v1070 = vunpack.c.l.b16 %v1037
        %v1071 = vunpack.c.l.b16 %v1038
        %v1072 = vunpack.c.l.b16 %v1039
        %v1073 = vunpack.c.l.b16 %v1040
        %v1074 = vunpack.c.l.b16 %v1041
        %v1075 = vunpack.c.l.b16 %v1042
        %v1076 = vpack.c.b16 %v1069, %v1068
        %v1077 = vpack.c.b16 %v1071, %v1070
        %v1078 = vpack.c.b16 %v1073, %v1072
        %v1079 = vpack.c.b16 %v1075, %v1074
        %v1100 = vunpack.c.l.b16 %v1044
        %v1101 = vunpack.c.l.b16 %v1045
        %v1102 = vunpack.c.l.b16 %v1046
        %v1103 = vunpack.c.l.b16 %v1047
        %v1104 = vunpack.c.l.b16 %v1048
        %v1105 = vunpack.c.l.b16 %v1049
        %v1106 = vunpack.c.l.b16 %v1050
        %v1107 = vunpack.c.l.b16 %v1051
        %v1108 = vunpack.c.l.b16 %v1052
        %v1109 = vunpack.c.l.b16 %v1053
        %v1110 = vunpack.c.l.b16 %v1054
        %v1111 = vunpack.c.l.b16 %v1055
        %v1112 = vunpack.c.l.b16 %v1056
        %v1113 = vunpack.c.l.b16 %v1057
        %v1114 = vunpack.c.l.b16 %v1058
        %v1115 = vunpack.c.l.b16 %v1059
        %v1116 = vpack.c.b16 %v1101, %v1100
        %v1117 = vpack.c.b16 %v1103, %v1102
        %v1118 = vpack.c.b16 %v1105, %v1104
        %v1119 = vpack.c.b16 %v1107, %v1106
        %v1120 = vpack.c.b16 %v1109, %v1108
        %v1121 = vpack.c.b16 %v1111, %v1110
        %v1122 = vpack.c.b16 %v1113, %v1112
        %v1123 = vpack.c.b16 %v1115, %v1114
        %1132 = vmatprep.subr.bf16.mxu0 0
        %1133 = vmatpush1.bf16.msra.mxu0 %v1116
        %1134 = vmatprep.subr.bf16.mxu0 0
        %1135 = vmatpush1.bf16.msra.mxu0 %v1117
        %1136 = vmatprep.subr.bf16.mxu0 0
        %1137 = vmatpush1.bf16.msra.mxu0 %v1118
        %1138 = vmatprep.subr.bf16.mxu0 0
        %1139 = vmatpush1.bf16.msra.mxu0 %v1119
        %1140 = vmatprep.subr.bf16.mxu0 0
        %1141 = vmatpush1.bf16.msra.mxu0 %v1120
        %1142 = vmatprep.subr.bf16.mxu0 0
        %1143 = vmatpush1.bf16.msra.mxu0 %v1121
        %1144 = vmatprep.subr.bf16.mxu0 0
        %1145 = vmatpush1.bf16.msra.mxu0 %v1122
        %1146 = vmatprep.subr.bf16.mxu0 0
        %1147 = vmatpush1.bf16.msra.mxu0 %v1123
        %1148 = vmatprep.subr.bf16.mxu0 0
        %1149 = vmatpush1.bf16.msra.mxu0 0
        %1150 = vmatprep.subr.bf16.mxu0 0
        %1151 = vmatpush1.bf16.msra.mxu0 0
        %1152 = vmatprep.subr.bf16.mxu0 0
        %1153 = vmatpush1.bf16.msra.mxu0 0
        %1154 = vmatprep.subr.bf16.mxu0 0
        %1155 = vmatpush1.bf16.msra.mxu0 0
        %1156 = vmatprep.subr.bf16.mxu0 0
        %1157 = vmatpush1.bf16.msra.mxu0 0
        %1158 = vmatprep.subr.bf16.mxu0 0
        %1159 = vmatpush1.bf16.msra.mxu0 0
        %1160 = vmatprep.subr.bf16.mxu0 0
        %1161 = vmatpush1.bf16.msra.mxu0 0
        %1162 = vmatprep.subr.bf16.mxu0 0
        %1163 = vmatpush1.bf16.msra.mxu0 0
        %1164 = vmatprep.mubr.bf16.mxu0 0
        %1165 = vmatmul.mubr.bf16.gmra.mrb[0].mxu0 %v1076
        %v1166 = vpop.f32.mrb[0].mxu0
        %v1167 = vadd.f32 0.0, %v1166
        %v1168 = vpop.f32.mrb[0].mxu0
        %v1169 = vpop.f32.mrb[0].mxu0
        %v1170 = vadd.f32 0.0, %v1169
        %v1171 = vpop.f32.mrb[0].mxu0
        %1172 = vmatprep.mubr.bf16.mxu0 0
        %1173 = vmatmul.mubr.bf16.gmra.mrb[0].mxu0 %v1077
        %v1174 = vpop.f32.mrb[0].mxu0
        %v1175 = vadd.f32 0.0, %v1174
        %v1176 = vpop.f32.mrb[0].mxu0
        %v1177 = vpop.f32.mrb[0].mxu0
        %v1178 = vadd.f32 0.0, %v1177
        %v1179 = vpop.f32.mrb[0].mxu0
        %1180 = vmatprep.mubr.bf16.mxu0 0
        %1181 = vmatmul.mubr.bf16.gmra.mrb[0].mxu0 %v1078
        %v1182 = vpop.f32.mrb[0].mxu0
        %v1183 = vadd.f32 0.0, %v1182
        %v1184 = vpop.f32.mrb[0].mxu0
        %v1185 = vpop.f32.mrb[0].mxu0
        %v1186 = vadd.f32 0.0, %v1185
        %v1187 = vpop.f32.mrb[0].mxu0
        %1188 = vmatprep.mubr.bf16.mxu0 0
        %1189 = vmatmul.mubr.bf16.gmra.mrb[0].mxu0 %v1079
        %v1190 = vpop.f32.mrb[0].mxu0
        %v1191 = vadd.f32 0.0, %v1190
        %v1192 = vpop.f32.mrb[0].mxu0
        %v1193 = vpop.f32.mrb[0].mxu0
        %v1194 = vadd.f32 0.0, %v1193
        %v1195 = vpop.f32.mrb[0].mxu0
        %1196 = vdwg.mxu0
        %v1197 = vadd.f32 %v1026, %v1167
        %v1198 = vadd.f32 %v1027, %v1170
        %v1199 = vadd.f32 %v1028, %v1175
        %v1200 = vadd.f32 %v1029, %v1178
        %v1201 = vadd.f32 %v1030, %v1183
        %v1202 = vadd.f32 %v1031, %v1186
        %v1203 = vadd.f32 %v1032, %v1191
        %v1204 = vadd.f32 %v1033, %v1194
        %v1205 = vld [vmem:[%s348] sm:$0xf]
        %v1206 = vld [vmem:[%s348 + $0x4] sm:$0xf]
        %v1207 = vld [vmem:[%s348 + $0x8] sm:$0xf]
        %v1208 = vld [vmem:[%s348 + $0xc] sm:$0xf]
        %v1209 = vld [vmem:[%s348 + $0x10] sm:$0xf]
        %v1210 = vld [vmem:[%s348 + $0x14] sm:$0xf]
        %v1211 = vld [vmem:[%s348 + $0x18] sm:$0xf]
        %v1212 = vld [vmem:[%s348 + $0x1c] sm:$0xf]
        %s1213 = scalar_lea.vmem [#allocation5], 256
        %v1214 = vld [vmem:[%s1213] sm:$0xf]
        %v1215 = vld [vmem:[%s1213 + $0x4] sm:$0xf]
        %v1216 = vld [vmem:[%s1213 + $0x8] sm:$0xf]
        %v1217 = vld [vmem:[%s1213 + $0xc] sm:$0xf]
        %v1218 = vld [vmem:[%s1213 + $0x10] sm:$0xf]
        %v1219 = vld [vmem:[%s1213 + $0x14] sm:$0xf]
        %v1220 = vld [vmem:[%s1213 + $0x18] sm:$0xf]
        %v1221 = vld [vmem:[%s1213 + $0x1c] sm:$0xf]
        %v1222 = vld [vmem:[%s1213 + $0x20] sm:$0xf]
        %v1223 = vld [vmem:[%s1213 + $0x24] sm:$0xf]
        %v1224 = vld [vmem:[%s1213 + $0x28] sm:$0xf]
        %v1225 = vld [vmem:[%s1213 + $0x2c] sm:$0xf]
        %v1226 = vld [vmem:[%s1213 + $0x30] sm:$0xf]
        %v1227 = vld [vmem:[%s1213 + $0x34] sm:$0xf]
        %v1228 = vld [vmem:[%s1213 + $0x38] sm:$0xf]
        %v1229 = vld [vmem:[%s1213 + $0x3c] sm:$0xf]
        %v1238 = vunpack.c.l.b16 %v1205
        %v1239 = vunpack.c.l.b16 %v1206
        %v1240 = vunpack.c.l.b16 %v1207
        %v1241 = vunpack.c.l.b16 %v1208
        %v1242 = vunpack.c.l.b16 %v1209
        %v1243 = vunpack.c.l.b16 %v1210
        %v1244 = vunpack.c.l.b16 %v1211
        %v1245 = vunpack.c.l.b16 %v1212
        %v1246 = vpack.c.b16 %v1239, %v1238
        %v1247 = vpack.c.b16 %v1241, %v1240
        %v1248 = vpack.c.b16 %v1243, %v1242
        %v1249 = vpack.c.b16 %v1245, %v1244
        %v1270 = vunpack.c.l.b16 %v1214
        %v1271 = vunpack.c.l.b16 %v1215
        %v1272 = vunpack.c.l.b16 %v1216
        %v1273 = vunpack.c.l.b16 %v1217
        %v1274 = vunpack.c.l.b16 %v1218
        %v1275 = vunpack.c.l.b16 %v1219
        %v1276 = vunpack.c.l.b16 %v1220
        %v1277 = vunpack.c.l.b16 %v1221
        %v1278 = vunpack.c.l.b16 %v1222
        %v1279 = vunpack.c.l.b16 %v1223
        %v1280 = vunpack.c.l.b16 %v1224
        %v1281 = vunpack.c.l.b16 %v1225
        %v1282 = vunpack.c.l.b16 %v1226
        %v1283 = vunpack.c.l.b16 %v1227
        %v1284 = vunpack.c.l.b16 %v1228
        %v1285 = vunpack.c.l.b16 %v1229
        %v1286 = vpack.c.b16 %v1271, %v1270
        %v1287 = vpack.c.b16 %v1273, %v1272
        %v1288 = vpack.c.b16 %v1275, %v1274
        %v1289 = vpack.c.b16 %v1277, %v1276
        %v1290 = vpack.c.b16 %v1279, %v1278
        %v1291 = vpack.c.b16 %v1281, %v1280
        %v1292 = vpack.c.b16 %v1283, %v1282
        %v1293 = vpack.c.b16 %v1285, %v1284
        %1302 = vmatprep.subr.bf16.mxu0 0
        %1303 = vmatpush1.bf16.msra.mxu0 %v1286
        %1304 = vmatprep.subr.bf16.mxu0 0
        %1305 = vmatpush1.bf16.msra.mxu0 %v1287
        %1306 = vmatprep.subr.bf16.mxu0 0
        %1307 = vmatpush1.bf16.msra.mxu0 %v1288
        %1308 = vmatprep.subr.bf16.mxu0 0
        %1309 = vmatpush1.bf16.msra.mxu0 %v1289
        %1310 = vmatprep.subr.bf16.mxu0 0
        %1311 = vmatpush1.bf16.msra.mxu0 %v1290
        %1312 = vmatprep.subr.bf16.mxu0 0
        %1313 = vmatpush1.bf16.msra.mxu0 %v1291
        %1314 = vmatprep.subr.bf16.mxu0 0
        %1315 = vmatpush1.bf16.msra.mxu0 %v1292
        %1316 = vmatprep.subr.bf16.mxu0 0
        %1317 = vmatpush1.bf16.msra.mxu0 %v1293
        %1318 = vmatprep.subr.bf16.mxu0 0
        %1319 = vmatpush1.bf16.msra.mxu0 0
        %1320 = vmatprep.subr.bf16.mxu0 0
        %1321 = vmatpush1.bf16.msra.mxu0 0
        %1322 = vmatprep.subr.bf16.mxu0 0
        %1323 = vmatpush1.bf16.msra.mxu0 0
        %1324 = vmatprep.subr.bf16.mxu0 0
        %1325 = vmatpush1.bf16.msra.mxu0 0
        %1326 = vmatprep.subr.bf16.mxu0 0
        %1327 = vmatpush1.bf16.msra.mxu0 0
        %1328 = vmatprep.subr.bf16.mxu0 0
        %1329 = vmatpush1.bf16.msra.mxu0 0
        %1330 = vmatprep.subr.bf16.mxu0 0
        %1331 = vmatpush1.bf16.msra.mxu0 0
        %1332 = vmatprep.subr.bf16.mxu0 0
        %1333 = vmatpush1.bf16.msra.mxu0 0
        %1334 = vmatprep.mubr.bf16.mxu0 0
        %1335 = vmatmul.mubr.bf16.gmra.mrb[0].mxu0 %v1246
        %v1336 = vpop.f32.mrb[0].mxu0
        %v1337 = vadd.f32 0.0, %v1336
        %v1338 = vpop.f32.mrb[0].mxu0
        %v1339 = vpop.f32.mrb[0].mxu0
        %v1340 = vadd.f32 0.0, %v1339
        %v1341 = vpop.f32.mrb[0].mxu0
        %1342 = vmatprep.mubr.bf16.mxu0 0
        %1343 = vmatmul.mubr.bf16.gmra.mrb[0].mxu0 %v1247
        %v1344 = vpop.f32.mrb[0].mxu0
        %v1345 = vadd.f32 0.0, %v1344
        %v1346 = vpop.f32.mrb[0].mxu0
        %v1347 = vpop.f32.mrb[0].mxu0
        %v1348 = vadd.f32 0.0, %v1347
        %v1349 = vpop.f32.mrb[0].mxu0
        %1350 = vmatprep.mubr.bf16.mxu0 0
        %1351 = vmatmul.mubr.bf16.gmra.mrb[0].mxu0 %v1248
        %v1352 = vpop.f32.mrb[0].mxu0
        %v1353 = vadd.f32 0.0, %v1352
        %v1354 = vpop.f32.mrb[0].mxu0
        %v1355 = vpop.f32.mrb[0].mxu0
        %v1356 = vadd.f32 0.0, %v1355
        %v1357 = vpop.f32.mrb[0].mxu0
        %1358 = vmatprep.mubr.bf16.mxu0 0
        %1359 = vmatmul.mubr.bf16.gmra.mrb[0].mxu0 %v1249
        %v1360 = vpop.f32.mrb[0].mxu0
        %v1361 = vadd.f32 0.0, %v1360
        %v1362 = vpop.f32.mrb[0].mxu0
        %v1363 = vpop.f32.mrb[0].mxu0
        %v1364 = vadd.f32 0.0, %v1363
        %v1365 = vpop.f32.mrb[0].mxu0
        %1366 = vdwg.mxu0
        %v1367 = vadd.f32 %v1197, %v1337
        %v1368 = vadd.f32 %v1198, %v1340
        %v1369 = vadd.f32 %v1199, %v1345
        %v1370 = vadd.f32 %v1200, %v1348
        %v1371 = vadd.f32 %v1201, %v1353
        %v1372 = vadd.f32 %v1202, %v1356
        %v1373 = vadd.f32 %v1203, %v1361
        %v1374 = vadd.f32 %v1204, %v1364
        %s1375 = scalar_lea.vmem [#allocation2], 48
        %v1376 = vld [vmem:[%s1375] sm:$0xf]
        %v1377 = vld [vmem:[%s1375 + $0x4] sm:$0xf]
        %v1378 = vld [vmem:[%s1375 + $0x8] sm:$0xf]
        %v1379 = vld [vmem:[%s1375 + $0xc] sm:$0xf]
        %v1380 = vld [vmem:[%s1375 + $0x10] sm:$0xf]
        %v1381 = vld [vmem:[%s1375 + $0x14] sm:$0xf]
        %v1382 = vld [vmem:[%s1375 + $0x18] sm:$0xf]
        %v1383 = vld [vmem:[%s1375 + $0x1c] sm:$0xf]
        %s1384 = scalar_lea.vmem [#allocation5], 448
        %v1385 = vld [vmem:[%s1384] sm:$0xf]
        %v1386 = vld [vmem:[%s1384 + $0x4] sm:$0xf]
        %v1387 = vld [vmem:[%s1384 + $0x8] sm:$0xf]
        %v1388 = vld [vmem:[%s1384 + $0xc] sm:$0xf]
        %v1389 = vld [vmem:[%s1384 + $0x10] sm:$0xf]
        %v1390 = vld [vmem:[%s1384 + $0x14] sm:$0xf]
        %v1391 = vld [vmem:[%s1384 + $0x18] sm:$0xf]
        %v1392 = vld [vmem:[%s1384 + $0x1c] sm:$0xf]
        %v1393 = vld [vmem:[%s1384 + $0x20] sm:$0xf]
        %v1394 = vld [vmem:[%s1384 + $0x24] sm:$0xf]
        %v1395 = vld [vmem:[%s1384 + $0x28] sm:$0xf]
        %v1396 = vld [vmem:[%s1384 + $0x2c] sm:$0xf]
        %v1397 = vld [vmem:[%s1384 + $0x30] sm:$0xf]
        %v1398 = vld [vmem:[%s1384 + $0x34] sm:$0xf]
        %v1399 = vld [vmem:[%s1384 + $0x38] sm:$0xf]
        %v1400 = vld [vmem:[%s1384 + $0x3c] sm:$0xf]
        %v1409 = vunpack.c.l.b16 %v1376
        %v1410 = vunpack.c.l.b16 %v1377
        %v1411 = vunpack.c.l.b16 %v1378
        %v1412 = vunpack.c.l.b16 %v1379
        %v1413 = vunpack.c.l.b16 %v1380
        %v1414 = vunpack.c.l.b16 %v1381
        %v1415 = vunpack.c.l.b16 %v1382
        %v1416 = vunpack.c.l.b16 %v1383
        %v1417 = vpack.c.b16 %v1410, %v1409
        %v1418 = vpack.c.b16 %v1412, %v1411
        %v1419 = vpack.c.b16 %v1414, %v1413
        %v1420 = vpack.c.b16 %v1416, %v1415
        %v1441 = vunpack.c.l.b16 %v1385
        %v1442 = vunpack.c.l.b16 %v1386
        %v1443 = vunpack.c.l.b16 %v1387
        %v1444 = vunpack.c.l.b16 %v1388
        %v1445 = vunpack.c.l.b16 %v1389
        %v1446 = vunpack.c.l.b16 %v1390
        %v1447 = vunpack.c.l.b16 %v1391
        %v1448 = vunpack.c.l.b16 %v1392
        %v1449 = vunpack.c.l.b16 %v1393
        %v1450 = vunpack.c.l.b16 %v1394
        %v1451 = vunpack.c.l.b16 %v1395
        %v1452 = vunpack.c.l.b16 %v1396
        %v1453 = vunpack.c.l.b16 %v1397
        %v1454 = vunpack.c.l.b16 %v1398
        %v1455 = vunpack.c.l.b16 %v1399
        %v1456 = vunpack.c.l.b16 %v1400
        %v1457 = vpack.c.b16 %v1442, %v1441
        %v1458 = vpack.c.b16 %v1444, %v1443
        %v1459 = vpack.c.b16 %v1446, %v1445
        %v1460 = vpack.c.b16 %v1448, %v1447
        %v1461 = vpack.c.b16 %v1450, %v1449
        %v1462 = vpack.c.b16 %v1452, %v1451
        %v1463 = vpack.c.b16 %v1454, %v1453
        %v1464 = vpack.c.b16 %v1456, %v1455
        %1473 = vmatprep.subr.bf16.mxu0 0
        %1474 = vmatpush1.bf16.msra.mxu0 %v1457
        %1475 = vmatprep.subr.bf16.mxu0 0
        %1476 = vmatpush1.bf16.msra.mxu0 %v1458
        %1477 = vmatprep.subr.bf16.mxu0 0
        %1478 = vmatpush1.bf16.msra.mxu0 %v1459
        %1479 = vmatprep.subr.bf16.mxu0 0
        %1480 = vmatpush1.bf16.msra.mxu0 %v1460
        %1481 = vmatprep.subr.bf16.mxu0 0
        %1482 = vmatpush1.bf16.msra.mxu0 %v1461
        %1483 = vmatprep.subr.bf16.mxu0 0
        %1484 = vmatpush1.bf16.msra.mxu0 %v1462
        %1485 = vmatprep.subr.bf16.mxu0 0
        %1486 = vmatpush1.bf16.msra.mxu0 %v1463
        %1487 = vmatprep.subr.bf16.mxu0 0
        %1488 = vmatpush1.bf16.msra.mxu0 %v1464
        %1489 = vmatprep.subr.bf16.mxu0 0
        %1490 = vmatpush1.bf16.msra.mxu0 0
        %1491 = vmatprep.subr.bf16.mxu0 0
        %1492 = vmatpush1.bf16.msra.mxu0 0
        %1493 = vmatprep.subr.bf16.mxu0 0
        %1494 = vmatpush1.bf16.msra.mxu0 0
        %1495 = vmatprep.subr.bf16.mxu0 0
        %1496 = vmatpush1.bf16.msra.mxu0 0
        %1497 = vmatprep.subr.bf16.mxu0 0
        %1498 = vmatpush1.bf16.msra.mxu0 0
        %1499 = vmatprep.subr.bf16.mxu0 0
        %1500 = vmatpush1.bf16.msra.mxu0 0
        %1501 = vmatprep.subr.bf16.mxu0 0
        %1502 = vmatpush1.bf16.msra.mxu0 0
        %1503 = vmatprep.subr.bf16.mxu0 0
        %1504 = vmatpush1.bf16.msra.mxu0 0
        %1505 = vmatprep.mubr.bf16.mxu0 0
        %1506 = vmatmul.mubr.bf16.gmra.mrb[0].mxu0 %v1417
        %v1507 = vpop.f32.mrb[0].mxu0
        %v1508 = vadd.f32 0.0, %v1507
        %v1509 = vpop.f32.mrb[0].mxu0
        %v1510 = vpop.f32.mrb[0].mxu0
        %v1511 = vadd.f32 0.0, %v1510
        %v1512 = vpop.f32.mrb[0].mxu0
        %1513 = vmatprep.mubr.bf16.mxu0 0
        %1514 = vmatmul.mubr.bf16.gmra.mrb[0].mxu0 %v1418
        %v1515 = vpop.f32.mrb[0].mxu0
        %v1516 = vadd.f32 0.0, %v1515
        %v1517 = vpop.f32.mrb[0].mxu0
        %v1518 = vpop.f32.mrb[0].mxu0
        %v1519 = vadd.f32 0.0, %v1518
        %v1520 = vpop.f32.mrb[0].mxu0
        %1521 = vmatprep.mubr.bf16.mxu0 0
        %1522 = vmatmul.mubr.bf16.gmra.mrb[0].mxu0 %v1419
        %v1523 = vpop.f32.mrb[0].mxu0
        %v1524 = vadd.f32 0.0, %v1523
        %v1525 = vpop.f32.mrb[0].mxu0
        %v1526 = vpop.f32.mrb[0].mxu0
        %v1527 = vadd.f32 0.0, %v1526
        %v1528 = vpop.f32.mrb[0].mxu0
        %1529 = vmatprep.mubr.bf16.mxu0 0
        %1530 = vmatmul.mubr.bf16.gmra.mrb[0].mxu0 %v1420
        %v1531 = vpop.f32.mrb[0].mxu0
        %v1532 = vadd.f32 0.0, %v1531
        %v1533 = vpop.f32.mrb[0].mxu0
        %v1534 = vpop.f32.mrb[0].mxu0
        %v1535 = vadd.f32 0.0, %v1534
        %v1536 = vpop.f32.mrb[0].mxu0
        %1537 = vdwg.mxu0
        %v1538 = vadd.f32 %v1367, %v1508
        %v1539 = vadd.f32 %v1368, %v1511
        %v1540 = vadd.f32 %v1369, %v1516
        %v1541 = vadd.f32 %v1370, %v1519
        %v1542 = vadd.f32 %v1371, %v1524
        %v1543 = vadd.f32 %v1372, %v1527
        %v1544 = vadd.f32 %v1373, %v1532
        %v1545 = vadd.f32 %v1374, %v1535
        %s1546 = scalar_lea.vmem [#allocation2], 80
        %v1547 = vld [vmem:[%s1546] sm:$0xf]
        %v1548 = vld [vmem:[%s1546 + $0x4] sm:$0xf]
        %v1549 = vld [vmem:[%s1546 + $0x8] sm:$0xf]
        %v1550 = vld [vmem:[%s1546 + $0xc] sm:$0xf]
        %v1551 = vld [vmem:[%s1546 + $0x10] sm:$0xf]
        %v1552 = vld [vmem:[%s1546 + $0x14] sm:$0xf]
        %v1553 = vld [vmem:[%s1546 + $0x18] sm:$0xf]
        %v1554 = vld [vmem:[%s1546 + $0x1c] sm:$0xf]
        %s1555 = scalar_lea.vmem [#allocation5], 128
        %v1556 = vld [vmem:[%s1555] sm:$0xf]
        %v1557 = vld [vmem:[%s1555 + $0x4] sm:$0xf]
        %v1558 = vld [vmem:[%s1555 + $0x8] sm:$0xf]
        %v1559 = vld [vmem:[%s1555 + $0xc] sm:$0xf]
        %v1560 = vld [vmem:[%s1555 + $0x10] sm:$0xf]
        %v1561 = vld [vmem:[%s1555 + $0x14] sm:$0xf]
        %v1562 = vld [vmem:[%s1555 + $0x18] sm:$0xf]
        %v1563 = vld [vmem:[%s1555 + $0x1c] sm:$0xf]
        %v1564 = vld [vmem:[%s1555 + $0x20] sm:$0xf]
        %v1565 = vld [vmem:[%s1555 + $0x24] sm:$0xf]
        %v1566 = vld [vmem:[%s1555 + $0x28] sm:$0xf]
        %v1567 = vld [vmem:[%s1555 + $0x2c] sm:$0xf]
        %v1568 = vld [vmem:[%s1555 + $0x30] sm:$0xf]
        %v1569 = vld [vmem:[%s1555 + $0x34] sm:$0xf]
        %v1570 = vld [vmem:[%s1555 + $0x38] sm:$0xf]
        %v1571 = vld [vmem:[%s1555 + $0x3c] sm:$0xf]
        %v1580 = vunpack.c.l.b16 %v1547
        %v1581 = vunpack.c.l.b16 %v1548
        %v1582 = vunpack.c.l.b16 %v1549
        %v1583 = vunpack.c.l.b16 %v1550
        %v1584 = vunpack.c.l.b16 %v1551
        %v1585 = vunpack.c.l.b16 %v1552
        %v1586 = vunpack.c.l.b16 %v1553
        %v1587 = vunpack.c.l.b16 %v1554
        %v1588 = vpack.c.b16 %v1581, %v1580
        %v1589 = vpack.c.b16 %v1583, %v1582
        %v1590 = vpack.c.b16 %v1585, %v1584
        %v1591 = vpack.c.b16 %v1587, %v1586
        %v1612 = vunpack.c.l.b16 %v1556
        %v1613 = vunpack.c.l.b16 %v1557
        %v1614 = vunpack.c.l.b16 %v1558
        %v1615 = vunpack.c.l.b16 %v1559
        %v1616 = vunpack.c.l.b16 %v1560
        %v1617 = vunpack.c.l.b16 %v1561
        %v1618 = vunpack.c.l.b16 %v1562
        %v1619 = vunpack.c.l.b16 %v1563
        %v1620 = vunpack.c.l.b16 %v1564
        %v1621 = vunpack.c.l.b16 %v1565
        %v1622 = vunpack.c.l.b16 %v1566
        %v1623 = vunpack.c.l.b16 %v1567
        %v1624 = vunpack.c.l.b16 %v1568
        %v1625 = vunpack.c.l.b16 %v1569
        %v1626 = vunpack.c.l.b16 %v1570
        %v1627 = vunpack.c.l.b16 %v1571
        %v1628 = vpack.c.b16 %v1613, %v1612
        %v1629 = vpack.c.b16 %v1615, %v1614
        %v1630 = vpack.c.b16 %v1617, %v1616
        %v1631 = vpack.c.b16 %v1619, %v1618
        %v1632 = vpack.c.b16 %v1621, %v1620
        %v1633 = vpack.c.b16 %v1623, %v1622
        %v1634 = vpack.c.b16 %v1625, %v1624
        %v1635 = vpack.c.b16 %v1627, %v1626
        %1644 = vmatprep.subr.bf16.mxu0 0
        %1645 = vmatpush1.bf16.msra.mxu0 %v1628
        %1646 = vmatprep.subr.bf16.mxu0 0
        %1647 = vmatpush1.bf16.msra.mxu0 %v1629
        %1648 = vmatprep.subr.bf16.mxu0 0
        %1649 = vmatpush1.bf16.msra.mxu0 %v1630
        %1650 = vmatprep.subr.bf16.mxu0 0
        %1651 = vmatpush1.bf16.msra.mxu0 %v1631
        %1652 = vmatprep.subr.bf16.mxu0 0
        %1653 = vmatpush1.bf16.msra.mxu0 %v1632
        %1654 = vmatprep.subr.bf16.mxu0 0
        %1655 = vmatpush1.bf16.msra.mxu0 %v1633
        %1656 = vmatprep.subr.bf16.mxu0 0
        %1657 = vmatpush1.bf16.msra.mxu0 %v1634
        %1658 = vmatprep.subr.bf16.mxu0 0
        %1659 = vmatpush1.bf16.msra.mxu0 %v1635
        %1660 = vmatprep.subr.bf16.mxu0 0
        %1661 = vmatpush1.bf16.msra.mxu0 0
        %1662 = vmatprep.subr.bf16.mxu0 0
        %1663 = vmatpush1.bf16.msra.mxu0 0
        %1664 = vmatprep.subr.bf16.mxu0 0
        %1665 = vmatpush1.bf16.msra.mxu0 0
        %1666 = vmatprep.subr.bf16.mxu0 0
        %1667 = vmatpush1.bf16.msra.mxu0 0
        %1668 = vmatprep.subr.bf16.mxu0 0
        %1669 = vmatpush1.bf16.msra.mxu0 0
        %1670 = vmatprep.subr.bf16.mxu0 0
        %1671 = vmatpush1.bf16.msra.mxu0 0
        %1672 = vmatprep.subr.bf16.mxu0 0
        %1673 = vmatpush1.bf16.msra.mxu0 0
        %1674 = vmatprep.subr.bf16.mxu0 0
        %1675 = vmatpush1.bf16.msra.mxu0 0
        %1676 = vmatprep.mubr.bf16.mxu0 0
        %1677 = vmatmul.mubr.bf16.gmra.mrb[0].mxu0 %v1588
        %v1678 = vpop.f32.mrb[0].mxu0
        %v1679 = vadd.f32 0.0, %v1678
        %v1680 = vpop.f32.mrb[0].mxu0
        %v1681 = vpop.f32.mrb[0].mxu0
        %v1682 = vadd.f32 0.0, %v1681
        %v1683 = vpop.f32.mrb[0].mxu0
        %1684 = vmatprep.mubr.bf16.mxu0 0
        %1685 = vmatmul.mubr.bf16.gmra.mrb[0].mxu0 %v1589
        %v1686 = vpop.f32.mrb[0].mxu0
        %v1687 = vadd.f32 0.0, %v1686
        %v1688 = vpop.f32.mrb[0].mxu0
        %v1689 = vpop.f32.mrb[0].mxu0
        %v1690 = vadd.f32 0.0, %v1689
        %v1691 = vpop.f32.mrb[0].mxu0
        %1692 = vmatprep.mubr.bf16.mxu0 0
        %1693 = vmatmul.mubr.bf16.gmra.mrb[0].mxu0 %v1590
        %v1694 = vpop.f32.mrb[0].mxu0
        %v1695 = vadd.f32 0.0, %v1694
        %v1696 = vpop.f32.mrb[0].mxu0
        %v1697 = vpop.f32.mrb[0].mxu0
        %v1698 = vadd.f32 0.0, %v1697
        %v1699 = vpop.f32.mrb[0].mxu0
        %1700 = vmatprep.mubr.bf16.mxu0 0
        %1701 = vmatmul.mubr.bf16.gmra.mrb[0].mxu0 %v1591
        %v1702 = vpop.f32.mrb[0].mxu0
        %v1703 = vadd.f32 0.0, %v1702
        %v1704 = vpop.f32.mrb[0].mxu0
        %v1705 = vpop.f32.mrb[0].mxu0
        %v1706 = vadd.f32 0.0, %v1705
        %v1707 = vpop.f32.mrb[0].mxu0
        %1708 = vdwg.mxu0
        %v1709 = vadd.f32 %v1538, %v1679
        %v1710 = vadd.f32 %v1539, %v1682
        %v1711 = vadd.f32 %v1540, %v1687
        %v1712 = vadd.f32 %v1541, %v1690
        %v1713 = vadd.f32 %v1542, %v1695
        %v1714 = vadd.f32 %v1543, %v1698
        %v1715 = vadd.f32 %v1544, %v1703
        %v1716 = vadd.f32 %v1545, %v1706
        %v1717 = vld [vmem:[%s513] sm:$0xf]
        %v1718 = vld [vmem:[%s513 + $0x4] sm:$0xf]
        %v1719 = vld [vmem:[%s513 + $0x8] sm:$0xf]
        %v1720 = vld [vmem:[%s513 + $0xc] sm:$0xf]
        %v1721 = vld [vmem:[%s513 + $0x10] sm:$0xf]
        %v1722 = vld [vmem:[%s513 + $0x14] sm:$0xf]
        %v1723 = vld [vmem:[%s513 + $0x18] sm:$0xf]
        %v1724 = vld [vmem:[%s513 + $0x1c] sm:$0xf]
        %s1725 = scalar_lea.vmem [#allocation5], 320
        %v1726 = vld [vmem:[%s1725] sm:$0xf]
        %v1727 = vld [vmem:[%s1725 + $0x4] sm:$0xf]
        %v1728 = vld [vmem:[%s1725 + $0x8] sm:$0xf]
        %v1729 = vld [vmem:[%s1725 + $0xc] sm:$0xf]
        %v1730 = vld [vmem:[%s1725 + $0x10] sm:$0xf]
        %v1731 = vld [vmem:[%s1725 + $0x14] sm:$0xf]
        %v1732 = vld [vmem:[%s1725 + $0x18] sm:$0xf]
        %v1733 = vld [vmem:[%s1725 + $0x1c] sm:$0xf]
        %v1734 = vld [vmem:[%s1725 + $0x20] sm:$0xf]
        %v1735 = vld [vmem:[%s1725 + $0x24] sm:$0xf]
        %v1736 = vld [vmem:[%s1725 + $0x28] sm:$0xf]
        %v1737 = vld [vmem:[%s1725 + $0x2c] sm:$0xf]
        %v1738 = vld [vmem:[%s1725 + $0x30] sm:$0xf]
        %v1739 = vld [vmem:[%s1725 + $0x34] sm:$0xf]
        %v1740 = vld [vmem:[%s1725 + $0x38] sm:$0xf]
        %v1741 = vld [vmem:[%s1725 + $0x3c] sm:$0xf]
        %v1750 = vunpack.c.l.b16 %v1717
        %v1751 = vunpack.c.l.b16 %v1718
        %v1752 = vunpack.c.l.b16 %v1719
        %v1753 = vunpack.c.l.b16 %v1720
        %v1754 = vunpack.c.l.b16 %v1721
        %v1755 = vunpack.c.l.b16 %v1722
        %v1756 = vunpack.c.l.b16 %v1723
        %v1757 = vunpack.c.l.b16 %v1724
        %v1758 = vpack.c.b16 %v1751, %v1750
        %v1759 = vpack.c.b16 %v1753, %v1752
        %v1760 = vpack.c.b16 %v1755, %v1754
        %v1761 = vpack.c.b16 %v1757, %v1756
        %v1782 = vunpack.c.l.b16 %v1726
        %v1783 = vunpack.c.l.b16 %v1727
        %v1784 = vunpack.c.l.b16 %v1728
        %v1785 = vunpack.c.l.b16 %v1729
        %v1786 = vunpack.c.l.b16 %v1730
        %v1787 = vunpack.c.l.b16 %v1731
        %v1788 = vunpack.c.l.b16 %v1732
        %v1789 = vunpack.c.l.b16 %v1733
        %v1790 = vunpack.c.l.b16 %v1734
        %v1791 = vunpack.c.l.b16 %v1735
        %v1792 = vunpack.c.l.b16 %v1736
        %v1793 = vunpack.c.l.b16 %v1737
        %v1794 = vunpack.c.l.b16 %v1738
        %v1795 = vunpack.c.l.b16 %v1739
        %v1796 = vunpack.c.l.b16 %v1740
        %v1797 = vunpack.c.l.b16 %v1741
        %v1798 = vpack.c.b16 %v1783, %v1782
        %v1799 = vpack.c.b16 %v1785, %v1784
        %v1800 = vpack.c.b16 %v1787, %v1786
        %v1801 = vpack.c.b16 %v1789, %v1788
        %v1802 = vpack.c.b16 %v1791, %v1790
        %v1803 = vpack.c.b16 %v1793, %v1792
        %v1804 = vpack.c.b16 %v1795, %v1794
        %v1805 = vpack.c.b16 %v1797, %v1796
        %1814 = vmatprep.subr.bf16.mxu0 0
        %1815 = vmatpush1.bf16.msra.mxu0 %v1798
        %1816 = vmatprep.subr.bf16.mxu0 0
        %1817 = vmatpush1.bf16.msra.mxu0 %v1799
        %1818 = vmatprep.subr.bf16.mxu0 0
        %1819 = vmatpush1.bf16.msra.mxu0 %v1800
        %1820 = vmatprep.subr.bf16.mxu0 0
        %1821 = vmatpush1.bf16.msra.mxu0 %v1801
        %1822 = vmatprep.subr.bf16.mxu0 0
        %1823 = vmatpush1.bf16.msra.mxu0 %v1802
        %1824 = vmatprep.subr.bf16.mxu0 0
        %1825 = vmatpush1.bf16.msra.mxu0 %v1803
        %1826 = vmatprep.subr.bf16.mxu0 0
        %1827 = vmatpush1.bf16.msra.mxu0 %v1804
        %1828 = vmatprep.subr.bf16.mxu0 0
        %1829 = vmatpush1.bf16.msra.mxu0 %v1805
        %1830 = vmatprep.subr.bf16.mxu0 0
        %1831 = vmatpush1.bf16.msra.mxu0 0
        %1832 = vmatprep.subr.bf16.mxu0 0
        %1833 = vmatpush1.bf16.msra.mxu0 0
        %1834 = vmatprep.subr.bf16.mxu0 0
        %1835 = vmatpush1.bf16.msra.mxu0 0
        %1836 = vmatprep.subr.bf16.mxu0 0
        %1837 = vmatpush1.bf16.msra.mxu0 0
        %1838 = vmatprep.subr.bf16.mxu0 0
        %1839 = vmatpush1.bf16.msra.mxu0 0
        %1840 = vmatprep.subr.bf16.mxu0 0
        %1841 = vmatpush1.bf16.msra.mxu0 0
        %1842 = vmatprep.subr.bf16.mxu0 0
        %1843 = vmatpush1.bf16.msra.mxu0 0
        %1844 = vmatprep.subr.bf16.mxu0 0
        %1845 = vmatpush1.bf16.msra.mxu0 0
        %1846 = vmatprep.mubr.bf16.mxu0 0
        %1847 = vmatmul.mubr.bf16.gmra.mrb[0].mxu0 %v1758
        %v1848 = vpop.f32.mrb[0].mxu0
        %v1849 = vadd.f32 0.0, %v1848
        %v1850 = vpop.f32.mrb[0].mxu0
        %v1851 = vpop.f32.mrb[0].mxu0
        %v1852 = vadd.f32 0.0, %v1851
        %v1853 = vpop.f32.mrb[0].mxu0
        %1854 = vmatprep.mubr.bf16.mxu0 0
        %1855 = vmatmul.mubr.bf16.gmra.mrb[0].mxu0 %v1759
        %v1856 = vpop.f32.mrb[0].mxu0
        %v1857 = vadd.f32 0.0, %v1856
        %v1858 = vpop.f32.mrb[0].mxu0
        %v1859 = vpop.f32.mrb[0].mxu0
        %v1860 = vadd.f32 0.0, %v1859
        %v1861 = vpop.f32.mrb[0].mxu0
        %1862 = vmatprep.mubr.bf16.mxu0 0
        %1863 = vmatmul.mubr.bf16.gmra.mrb[0].mxu0 %v1760
        %v1864 = vpop.f32.mrb[0].mxu0
        %v1865 = vadd.f32 0.0, %v1864
        %v1866 = vpop.f32.mrb[0].mxu0
        %v1867 = vpop.f32.mrb[0].mxu0
        %v1868 = vadd.f32 0.0, %v1867
        %v1869 = vpop.f32.mrb[0].mxu0
        %1870 = vmatprep.mubr.bf16.mxu0 0
        %1871 = vmatmul.mubr.bf16.gmra.mrb[0].mxu0 %v1761
        %v1872 = vpop.f32.mrb[0].mxu0
        %v1873 = vadd.f32 0.0, %v1872
        %v1874 = vpop.f32.mrb[0].mxu0
        %v1875 = vpop.f32.mrb[0].mxu0
        %v1876 = vadd.f32 0.0, %v1875
        %v1877 = vpop.f32.mrb[0].mxu0
        %1878 = vdwg.mxu0
        %v1879 = vadd.f32 %v1709, %v1849
        %v1880 = vadd.f32 %v1710, %v1852
        %v1881 = vadd.f32 %v1711, %v1857
        %v1882 = vadd.f32 %v1712, %v1860
        %v1883 = vadd.f32 %v1713, %v1865
        %v1884 = vadd.f32 %v1714, %v1868
        %v1885 = vadd.f32 %v1715, %v1873
        %v1886 = vadd.f32 %v1716, %v1876
        %s1887 = scalar_lea.vmem [#allocation2], 88
        %v1888 = vld [vmem:[%s1887] sm:$0xf]
        %v1889 = vld [vmem:[%s1887 + $0x4] sm:$0xf]
        %v1890 = vld [vmem:[%s1887 + $0x8] sm:$0xf]
        %v1891 = vld [vmem:[%s1887 + $0xc] sm:$0xf]
        %v1892 = vld [vmem:[%s1887 + $0x10] sm:$0xf]
        %v1893 = vld [vmem:[%s1887 + $0x14] sm:$0xf]
        %v1894 = vld [vmem:[%s1887 + $0x18] sm:$0xf]
        %v1895 = vld [vmem:[%s1887 + $0x1c] sm:$0xf]
        %s1896 = scalar_lea.vmem [#allocation5], 512
        %v1897 = vld [vmem:[%s1896] sm:$0xf]
        %v1898 = vld [vmem:[%s1896 + $0x4] sm:$0xf]
        %v1899 = vld [vmem:[%s1896 + $0x8] sm:$0xf]
        %v1900 = vld [vmem:[%s1896 + $0xc] sm:$0xf]
        %v1901 = vld [vmem:[%s1896 + $0x10] sm:$0xf]
        %v1902 = vld [vmem:[%s1896 + $0x14] sm:$0xf]
        %v1903 = vld [vmem:[%s1896 + $0x18] sm:$0xf]
        %v1904 = vld [vmem:[%s1896 + $0x1c] sm:$0xf]
        %v1905 = vld [vmem:[%s1896 + $0x20] sm:$0xf]
        %v1906 = vld [vmem:[%s1896 + $0x24] sm:$0xf]
        %v1907 = vld [vmem:[%s1896 + $0x28] sm:$0xf]
        %v1908 = vld [vmem:[%s1896 + $0x2c] sm:$0xf]
        %v1909 = vld [vmem:[%s1896 + $0x30] sm:$0xf]
        %v1910 = vld [vmem:[%s1896 + $0x34] sm:$0xf]
        %v1911 = vld [vmem:[%s1896 + $0x38] sm:$0xf]
        %v1912 = vld [vmem:[%s1896 + $0x3c] sm:$0xf]
        %v1921 = vunpack.c.l.b16 %v1888
        %v1922 = vunpack.c.l.b16 %v1889
        %v1923 = vunpack.c.l.b16 %v1890
        %v1924 = vunpack.c.l.b16 %v1891
        %v1925 = vunpack.c.l.b16 %v1892
        %v1926 = vunpack.c.l.b16 %v1893
        %v1927 = vunpack.c.l.b16 %v1894
        %v1928 = vunpack.c.l.b16 %v1895
        %v1929 = vpack.c.b16 %v1922, %v1921
        %v1930 = vpack.c.b16 %v1924, %v1923
        %v1931 = vpack.c.b16 %v1926, %v1925
        %v1932 = vpack.c.b16 %v1928, %v1927
        %v1953 = vunpack.c.l.b16 %v1897
        %v1954 = vunpack.c.l.b16 %v1898
        %v1955 = vunpack.c.l.b16 %v1899
        %v1956 = vunpack.c.l.b16 %v1900
        %v1957 = vunpack.c.l.b16 %v1901
        %v1958 = vunpack.c.l.b16 %v1902
        %v1959 = vunpack.c.l.b16 %v1903
        %v1960 = vunpack.c.l.b16 %v1904
        %v1961 = vunpack.c.l.b16 %v1905
        %v1962 = vunpack.c.l.b16 %v1906
        %v1963 = vunpack.c.l.b16 %v1907
        %v1964 = vunpack.c.l.b16 %v1908
        %v1965 = vunpack.c.l.b16 %v1909
        %v1966 = vunpack.c.l.b16 %v1910
        %v1967 = vunpack.c.l.b16 %v1911
        %v1968 = vunpack.c.l.b16 %v1912
        %v1969 = vpack.c.b16 %v1954, %v1953
        %v1970 = vpack.c.b16 %v1956, %v1955
        %v1971 = vpack.c.b16 %v1958, %v1957
        %v1972 = vpack.c.b16 %v1960, %v1959
        %v1973 = vpack.c.b16 %v1962, %v1961
        %v1974 = vpack.c.b16 %v1964, %v1963
        %v1975 = vpack.c.b16 %v1966, %v1965
        %v1976 = vpack.c.b16 %v1968, %v1967
        %1985 = vmatprep.subr.bf16.mxu0 0
        %1986 = vmatpush1.bf16.msra.mxu0 %v1969
        %1987 = vmatprep.subr.bf16.mxu0 0
        %1988 = vmatpush1.bf16.msra.mxu0 %v1970
        %1989 = vmatprep.subr.bf16.mxu0 0
        %1990 = vmatpush1.bf16.msra.mxu0 %v1971
        %1991 = vmatprep.subr.bf16.mxu0 0
        %1992 = vmatpush1.bf16.msra.mxu0 %v1972
        %1993 = vmatprep.subr.bf16.mxu0 0
        %1994 = vmatpush1.bf16.msra.mxu0 %v1973
        %1995 = vmatprep.subr.bf16.mxu0 0
        %1996 = vmatpush1.bf16.msra.mxu0 %v1974
        %1997 = vmatprep.subr.bf16.mxu0 0
        %1998 = vmatpush1.bf16.msra.mxu0 %v1975
        %1999 = vmatprep.subr.bf16.mxu0 0
        %2000 = vmatpush1.bf16.msra.mxu0 %v1976
        %2001 = vmatprep.subr.bf16.mxu0 0
        %2002 = vmatpush1.bf16.msra.mxu0 0
        %2003 = vmatprep.subr.bf16.mxu0 0
        %2004 = vmatpush1.bf16.msra.mxu0 0
        %2005 = vmatprep.subr.bf16.mxu0 0
        %2006 = vmatpush1.bf16.msra.mxu0 0
        %2007 = vmatprep.subr.bf16.mxu0 0
        %2008 = vmatpush1.bf16.msra.mxu0 0
        %2009 = vmatprep.subr.bf16.mxu0 0
        %2010 = vmatpush1.bf16.msra.mxu0 0
        %2011 = vmatprep.subr.bf16.mxu0 0
        %2012 = vmatpush1.bf16.msra.mxu0 0
        %2013 = vmatprep.subr.bf16.mxu0 0
        %2014 = vmatpush1.bf16.msra.mxu0 0
        %2015 = vmatprep.subr.bf16.mxu0 0
        %2016 = vmatpush1.bf16.msra.mxu0 0
        %2017 = vmatprep.mubr.bf16.mxu0 0
        %2018 = vmatmul.mubr.bf16.gmra.mrb[0].mxu0 %v1929
        %v2019 = vpop.f32.mrb[0].mxu0
        %v2020 = vadd.f32 0.0, %v2019
        %v2021 = vpop.f32.mrb[0].mxu0
        %v2022 = vpop.f32.mrb[0].mxu0
        %v2023 = vadd.f32 0.0, %v2022
        %v2024 = vpop.f32.mrb[0].mxu0
        %2025 = vmatprep.mubr.bf16.mxu0 0
        %2026 = vmatmul.mubr.bf16.gmra.mrb[0].mxu0 %v1930
        %v2027 = vpop.f32.mrb[0].mxu0
        %v2028 = vadd.f32 0.0, %v2027
        %v2029 = vpop.f32.mrb[0].mxu0
        %v2030 = vpop.f32.mrb[0].mxu0
        %v2031 = vadd.f32 0.0, %v2030
        %v2032 = vpop.f32.mrb[0].mxu0
        %2033 = vmatprep.mubr.bf16.mxu0 0
        %2034 = vmatmul.mubr.bf16.gmra.mrb[0].mxu0 %v1931
        %v2035 = vpop.f32.mrb[0].mxu0
        %v2036 = vadd.f32 0.0, %v2035
        %v2037 = vpop.f32.mrb[0].mxu0
        %v2038 = vpop.f32.mrb[0].mxu0
        %v2039 = vadd.f32 0.0, %v2038
        %v2040 = vpop.f32.mrb[0].mxu0
        %2041 = vmatprep.mubr.bf16.mxu0 0
        %2042 = vmatmul.mubr.bf16.gmra.mrb[0].mxu0 %v1932
        %v2043 = vpop.f32.mrb[0].mxu0
        %v2044 = vadd.f32 0.0, %v2043
        %v2045 = vpop.f32.mrb[0].mxu0
        %v2046 = vpop.f32.mrb[0].mxu0
        %v2047 = vadd.f32 0.0, %v2046
        %v2048 = vpop.f32.mrb[0].mxu0
        %2049 = vdwg.mxu0
        %v2050 = vadd.f32 %v1879, %v2020
        %v2051 = vadd.f32 %v1880, %v2023
        %v2052 = vadd.f32 %v1881, %v2028
        %v2053 = vadd.f32 %v1882, %v2031
        %v2054 = vadd.f32 %v1883, %v2036
        %v2055 = vadd.f32 %v1884, %v2039
        %v2056 = vadd.f32 %v1885, %v2044
        %v2057 = vadd.f32 %v1886, %v2047
        %v2058 = vld [vmem:[#allocation7] sm:$0x1]
        %v2060 = vlaneseq
        %v2061 = vshrl.u32 %v2060, 7
        %v2062 = vsub.s32 0, %v2061
        %v2063 = vrot.slane %v2058, %v2062
        %v2065 = vadd.f32 %v2050, %v2063
        %v2066 = vadd.f32 %v2051, %v2063
        %v2067 = vadd.f32 %v2052, %v2063
        %v2068 = vadd.f32 %v2053, %v2063
        %v2069 = vadd.f32 %v2054, %v2063
        %v2070 = vadd.f32 %v2055, %v2063
        %v2071 = vadd.f32 %v2056, %v2063
        %v2072 = vadd.f32 %v2057, %v2063
        %v2073 = vmax.f32 %v2065, 0.0
        %v2074 = vmax.f32 %v2066, 0.0
        %v2075 = vmax.f32 %v2067, 0.0
        %v2076 = vmax.f32 %v2068, 0.0
        %v2077 = vmax.f32 %v2069, 0.0
        %v2078 = vmax.f32 %v2070, 0.0
        %v2079 = vmax.f32 %v2071, 0.0
        %v2080 = vmax.f32 %v2072, 0.0
        %v2081 = vpack.c.bf16 %v2074, %v2073
        %v2082 = vpack.c.bf16 %v2076, %v2075
        %v2083 = vpack.c.bf16 %v2078, %v2077
        %v2084 = vpack.c.bf16 %v2080, %v2079
        %v2085 = vld [vmem:[#allocation8] sm:$0xf]
        %v2086 = vld [vmem:[#allocation8 + $0x4] sm:$0xf]
        %v2087 = vld [vmem:[#allocation8 + $0x8] sm:$0xf]
        %v2088 = vld [vmem:[#allocation8 + $0xc] sm:$0xf]
        %v2089 = vld [vmem:[#allocation8 + $0x10] sm:$0xf]
        %v2090 = vld [vmem:[#allocation8 + $0x14] sm:$0xf]
        %v2091 = vld [vmem:[#allocation8 + $0x18] sm:$0xf]
        %v2092 = vld [vmem:[#allocation8 + $0x1c] sm:$0xf]
        %v2093 = vld [vmem:[#allocation8 + $0x20] sm:$0xf]
        %v2094 = vld [vmem:[#allocation8 + $0x24] sm:$0xf]
        %v2095 = vld [vmem:[#allocation8 + $0x28] sm:$0xf]
        %v2096 = vld [vmem:[#allocation8 + $0x2c] sm:$0xf]
        %v2097 = vld [vmem:[#allocation8 + $0x30] sm:$0xf]
        %v2098 = vld [vmem:[#allocation8 + $0x34] sm:$0xf]
        %v2099 = vld [vmem:[#allocation8 + $0x38] sm:$0xf]
        %v2100 = vld [vmem:[#allocation8 + $0x3c] sm:$0xf]
        %s2101 = scalar_lea.vmem [#allocation5], 576
        %v2102 = vld [vmem:[%s2101] sm:$0xf]
        %v2103 = vld [vmem:[%s2101 + $0x4] sm:$0xf]
        %v2104 = vld [vmem:[%s2101 + $0x8] sm:$0xf]
        %v2105 = vld [vmem:[%s2101 + $0xc] sm:$0xf]
        %v2106 = vld [vmem:[%s2101 + $0x10] sm:$0xf]
        %v2107 = vld [vmem:[%s2101 + $0x14] sm:$0xf]
        %v2108 = vld [vmem:[%s2101 + $0x18] sm:$0xf]
        %v2109 = vld [vmem:[%s2101 + $0x1c] sm:$0xf]
        %v2110 = vld [vmem:[%s2101 + $0x20] sm:$0xf]
        %v2111 = vld [vmem:[%s2101 + $0x24] sm:$0xf]
        %v2112 = vld [vmem:[%s2101 + $0x28] sm:$0xf]
        %v2113 = vld [vmem:[%s2101 + $0x2c] sm:$0xf]
        %v2114 = vld [vmem:[%s2101 + $0x30] sm:$0xf]
        %v2115 = vld [vmem:[%s2101 + $0x34] sm:$0xf]
        %v2116 = vld [vmem:[%s2101 + $0x38] sm:$0xf]
        %v2117 = vld [vmem:[%s2101 + $0x3c] sm:$0xf]
        %s2118 = scalar_lea.vmem [#allocation5], 768
        %v2119 = vld [vmem:[%s2118] sm:$0xf]
        %v2120 = vld [vmem:[%s2118 + $0x4] sm:$0xf]
        %v2121 = vld [vmem:[%s2118 + $0x8] sm:$0xf]
        %v2122 = vld [vmem:[%s2118 + $0xc] sm:$0xf]
        %v2123 = vld [vmem:[%s2118 + $0x10] sm:$0xf]
        %v2124 = vld [vmem:[%s2118 + $0x14] sm:$0xf]
        %v2125 = vld [vmem:[%s2118 + $0x18] sm:$0xf]
        %v2126 = vld [vmem:[%s2118 + $0x1c] sm:$0xf]
        %v2127 = vld [vmem:[%s2118 + $0x20] sm:$0xf]
        %v2128 = vld [vmem:[%s2118 + $0x24] sm:$0xf]
        %v2129 = vld [vmem:[%s2118 + $0x28] sm:$0xf]
        %v2130 = vld [vmem:[%s2118 + $0x2c] sm:$0xf]
        %v2131 = vld [vmem:[%s2118 + $0x30] sm:$0xf]
        %v2132 = vld [vmem:[%s2118 + $0x34] sm:$0xf]
        %v2133 = vld [vmem:[%s2118 + $0x38] sm:$0xf]
        %v2134 = vld [vmem:[%s2118 + $0x3c] sm:$0xf]
        %v2151 = vunpack.c.l.b16 %v2119
        %v2152 = vunpack.c.l.b16 %v2120
        %v2153 = vunpack.c.l.b16 %v2121
        %v2154 = vunpack.c.l.b16 %v2122
        %v2155 = vunpack.c.l.b16 %v2123
        %v2156 = vunpack.c.l.b16 %v2124
        %v2157 = vunpack.c.l.b16 %v2125
        %v2158 = vunpack.c.l.b16 %v2126
        %v2159 = vunpack.c.l.b16 %v2127
        %v2160 = vunpack.c.l.b16 %v2128
        %v2161 = vunpack.c.l.b16 %v2129
        %v2162 = vunpack.c.l.b16 %v2130
        %v2163 = vunpack.c.l.b16 %v2131
        %v2164 = vunpack.c.l.b16 %v2132
        %v2165 = vunpack.c.l.b16 %v2133
        %v2166 = vunpack.c.l.b16 %v2134
        %v2167 = vpack.c.b16 %v2152, %v2151
        %v2168 = vpack.c.b16 %v2154, %v2153
        %v2169 = vpack.c.b16 %v2156, %v2155
        %v2170 = vpack.c.b16 %v2158, %v2157
        %v2171 = vpack.c.b16 %v2160, %v2159
        %v2172 = vpack.c.b16 %v2162, %v2161
        %v2173 = vpack.c.b16 %v2164, %v2163
        %v2174 = vpack.c.b16 %v2166, %v2165
        %2183 = vmatprep.subr.bf16.mxu0 0
        %2184 = vmatpush1.bf16.msra.mxu0 %v2167
        %2185 = vmatprep.subr.bf16.mxu0 0
        %2186 = vmatpush1.bf16.msra.mxu0 %v2168
        %2187 = vmatprep.subr.bf16.mxu0 0
        %2188 = vmatpush1.bf16.msra.mxu0 %v2169
        %2189 = vmatprep.subr.bf16.mxu0 0
        %2190 = vmatpush1.bf16.msra.mxu0 %v2170
        %2191 = vmatprep.subr.bf16.mxu0 0
        %2192 = vmatpush1.bf16.msra.mxu0 %v2171
        %2193 = vmatprep.subr.bf16.mxu0 0
        %2194 = vmatpush1.bf16.msra.mxu0 %v2172
        %2195 = vmatprep.subr.bf16.mxu0 0
        %2196 = vmatpush1.bf16.msra.mxu0 %v2173
        %2197 = vmatprep.subr.bf16.mxu0 0
        %2198 = vmatpush1.bf16.msra.mxu0 %v2174
        %2199 = vmatprep.subr.bf16.mxu0 0
        %2200 = vmatpush1.bf16.msra.mxu0 0
        %2201 = vmatprep.subr.bf16.mxu0 0
        %2202 = vmatpush1.bf16.msra.mxu0 0
        %2203 = vmatprep.subr.bf16.mxu0 0
        %2204 = vmatpush1.bf16.msra.mxu0 0
        %2205 = vmatprep.subr.bf16.mxu0 0
        %2206 = vmatpush1.bf16.msra.mxu0 0
        %2207 = vmatprep.subr.bf16.mxu0 0
        %2208 = vmatpush1.bf16.msra.mxu0 0
        %2209 = vmatprep.subr.bf16.mxu0 0
        %2210 = vmatpush1.bf16.msra.mxu0 0
        %2211 = vmatprep.subr.bf16.mxu0 0
        %2212 = vmatpush1.bf16.msra.mxu0 0
        %2213 = vmatprep.subr.bf16.mxu0 0
        %2214 = vmatpush1.bf16.msra.mxu0 0
        %2215 = vmatprep.mubr.bf16.mxu0 0
        %2216 = vmatmul.mubr.bf16.gmra.mrb[0].mxu0 %v605
        %v2217 = vpop.f32.mrb[0].mxu0
        %v2218 = vadd.f32 0.0, %v2217
        %v2219 = vpop.f32.mrb[0].mxu0
        %v2220 = vpop.f32.mrb[0].mxu0
        %v2221 = vadd.f32 0.0, %v2220
        %v2222 = vpop.f32.mrb[0].mxu0
        %2223 = vmatprep.mubr.bf16.mxu0 0
        %2224 = vmatmul.mubr.bf16.gmra.mrb[0].mxu0 %v606
        %v2225 = vpop.f32.mrb[0].mxu0
        %v2226 = vadd.f32 0.0, %v2225
        %v2227 = vpop.f32.mrb[0].mxu0
        %v2228 = vpop.f32.mrb[0].mxu0
        %v2229 = vadd.f32 0.0, %v2228
        %v2230 = vpop.f32.mrb[0].mxu0
        %2231 = vmatprep.mubr.bf16.mxu0 0
        %2232 = vmatmul.mubr.bf16.gmra.mrb[0].mxu0 %v607
        %v2233 = vpop.f32.mrb[0].mxu0
        %v2234 = vadd.f32 0.0, %v2233
        %v2235 = vpop.f32.mrb[0].mxu0
        %v2236 = vpop.f32.mrb[0].mxu0
        %v2237 = vadd.f32 0.0, %v2236
        %v2238 = vpop.f32.mrb[0].mxu0
        %2239 = vmatprep.mubr.bf16.mxu0 0
        %2240 = vmatmul.mubr.bf16.gmra.mrb[0].mxu0 %v608
        %v2241 = vpop.f32.mrb[0].mxu0
        %v2242 = vadd.f32 0.0, %v2241
        %v2243 = vpop.f32.mrb[0].mxu0
        %v2244 = vpop.f32.mrb[0].mxu0
        %v2245 = vadd.f32 0.0, %v2244
        %v2246 = vpop.f32.mrb[0].mxu0
        %2247 = vdwg.mxu0
        %v2264 = vunpack.c.l.b16 %v2102
        %v2265 = vunpack.c.l.b16 %v2103
        %v2266 = vunpack.c.l.b16 %v2104
        %v2267 = vunpack.c.l.b16 %v2105
        %v2268 = vunpack.c.l.b16 %v2106
        %v2269 = vunpack.c.l.b16 %v2107
        %v2270 = vunpack.c.l.b16 %v2108
        %v2271 = vunpack.c.l.b16 %v2109
        %v2272 = vunpack.c.l.b16 %v2110
        %v2273 = vunpack.c.l.b16 %v2111
        %v2274 = vunpack.c.l.b16 %v2112
        %v2275 = vunpack.c.l.b16 %v2113
        %v2276 = vunpack.c.l.b16 %v2114
        %v2277 = vunpack.c.l.b16 %v2115
        %v2278 = vunpack.c.l.b16 %v2116
        %v2279 = vunpack.c.l.b16 %v2117
        %v2280 = vpack.c.b16 %v2265, %v2264
        %v2281 = vpack.c.b16 %v2267, %v2266
        %v2282 = vpack.c.b16 %v2269, %v2268
        %v2283 = vpack.c.b16 %v2271, %v2270
        %v2284 = vpack.c.b16 %v2273, %v2272
        %v2285 = vpack.c.b16 %v2275, %v2274
        %v2286 = vpack.c.b16 %v2277, %v2276
        %v2287 = vpack.c.b16 %v2279, %v2278
        %2296 = vmatprep.subr.bf16.mxu0 0
        %2297 = vmatpush1.bf16.msra.mxu0 %v2280
        %2298 = vmatprep.subr.bf16.mxu0 0
        %2299 = vmatpush1.bf16.msra.mxu0 %v2281
        %2300 = vmatprep.subr.bf16.mxu0 0
        %2301 = vmatpush1.bf16.msra.mxu0 %v2282
        %2302 = vmatprep.subr.bf16.mxu0 0
        %2303 = vmatpush1.bf16.msra.mxu0 %v2283
        %2304 = vmatprep.subr.bf16.mxu0 0
        %2305 = vmatpush1.bf16.msra.mxu0 %v2284
        %2306 = vmatprep.subr.bf16.mxu0 0
        %2307 = vmatpush1.bf16.msra.mxu0 %v2285
        %2308 = vmatprep.subr.bf16.mxu0 0
        %2309 = vmatpush1.bf16.msra.mxu0 %v2286
        %2310 = vmatprep.subr.bf16.mxu0 0
        %2311 = vmatpush1.bf16.msra.mxu0 %v2287
        %2312 = vmatprep.subr.bf16.mxu0 0
        %2313 = vmatpush1.bf16.msra.mxu0 0
        %2314 = vmatprep.subr.bf16.mxu0 0
        %2315 = vmatpush1.bf16.msra.mxu0 0
        %2316 = vmatprep.subr.bf16.mxu0 0
        %2317 = vmatpush1.bf16.msra.mxu0 0
        %2318 = vmatprep.subr.bf16.mxu0 0
        %2319 = vmatpush1.bf16.msra.mxu0 0
        %2320 = vmatprep.subr.bf16.mxu0 0
        %2321 = vmatpush1.bf16.msra.mxu0 0
        %2322 = vmatprep.subr.bf16.mxu0 0
        %2323 = vmatpush1.bf16.msra.mxu0 0
        %2324 = vmatprep.subr.bf16.mxu0 0
        %2325 = vmatpush1.bf16.msra.mxu0 0
        %2326 = vmatprep.subr.bf16.mxu0 0
        %2327 = vmatpush1.bf16.msra.mxu0 0
        %2328 = vmatprep.mubr.bf16.mxu0 0
        %2329 = vmatmul.mubr.bf16.gmra.mrb[0].mxu0 %v742
        %v2330 = vpop.f32.mrb[0].mxu0
        %v2331 = vadd.f32 %v2218, %v2330
        %v2332 = vpop.f32.mrb[0].mxu0
        %v2333 = vpop.f32.mrb[0].mxu0
        %v2334 = vadd.f32 %v2221, %v2333
        %v2335 = vpop.f32.mrb[0].mxu0
        %2336 = vmatprep.mubr.bf16.mxu0 0
        %2337 = vmatmul.mubr.bf16.gmra.mrb[0].mxu0 %v743
        %v2338 = vpop.f32.mrb[0].mxu0
        %v2339 = vadd.f32 %v2226, %v2338
        %v2340 = vpop.f32.mrb[0].mxu0
        %v2341 = vpop.f32.mrb[0].mxu0
        %v2342 = vadd.f32 %v2229, %v2341
        %v2343 = vpop.f32.mrb[0].mxu0
        %2344 = vmatprep.mubr.bf16.mxu0 0
        %2345 = vmatmul.mubr.bf16.gmra.mrb[0].mxu0 %v744
        %v2346 = vpop.f32.mrb[0].mxu0
        %v2347 = vadd.f32 %v2234, %v2346
        %v2348 = vpop.f32.mrb[0].mxu0
        %v2349 = vpop.f32.mrb[0].mxu0
        %v2350 = vadd.f32 %v2237, %v2349
        %v2351 = vpop.f32.mrb[0].mxu0
        %2352 = vmatprep.mubr.bf16.mxu0 0
        %2353 = vmatmul.mubr.bf16.gmra.mrb[0].mxu0 %v745
        %v2354 = vpop.f32.mrb[0].mxu0
        %v2355 = vadd.f32 %v2242, %v2354
        %v2356 = vpop.f32.mrb[0].mxu0
        %v2357 = vpop.f32.mrb[0].mxu0
        %v2358 = vadd.f32 %v2245, %v2357
        %v2359 = vpop.f32.mrb[0].mxu0
        %2360 = vdwg.mxu0
        %s2361 = scalar_lea.vmem [#allocation5], 960
        %v2362 = vld [vmem:[%s2361] sm:$0xf]
        %v2363 = vld [vmem:[%s2361 + $0x4] sm:$0xf]
        %v2364 = vld [vmem:[%s2361 + $0x8] sm:$0xf]
        %v2365 = vld [vmem:[%s2361 + $0xc] sm:$0xf]
        %v2366 = vld [vmem:[%s2361 + $0x10] sm:$0xf]
        %v2367 = vld [vmem:[%s2361 + $0x14] sm:$0xf]
        %v2368 = vld [vmem:[%s2361 + $0x18] sm:$0xf]
        %v2369 = vld [vmem:[%s2361 + $0x1c] sm:$0xf]
        %v2370 = vld [vmem:[%s2361 + $0x20] sm:$0xf]
        %v2371 = vld [vmem:[%s2361 + $0x24] sm:$0xf]
        %v2372 = vld [vmem:[%s2361 + $0x28] sm:$0xf]
        %v2373 = vld [vmem:[%s2361 + $0x2c] sm:$0xf]
        %v2374 = vld [vmem:[%s2361 + $0x30] sm:$0xf]
        %v2375 = vld [vmem:[%s2361 + $0x34] sm:$0xf]
        %v2376 = vld [vmem:[%s2361 + $0x38] sm:$0xf]
        %v2377 = vld [vmem:[%s2361 + $0x3c] sm:$0xf]
        %v2394 = vunpack.c.l.b16 %v2362
        %v2395 = vunpack.c.l.b16 %v2363
        %v2396 = vunpack.c.l.b16 %v2364
        %v2397 = vunpack.c.l.b16 %v2365
        %v2398 = vunpack.c.l.b16 %v2366
        %v2399 = vunpack.c.l.b16 %v2367
        %v2400 = vunpack.c.l.b16 %v2368
        %v2401 = vunpack.c.l.b16 %v2369
        %v2402 = vunpack.c.l.b16 %v2370
        %v2403 = vunpack.c.l.b16 %v2371
        %v2404 = vunpack.c.l.b16 %v2372
        %v2405 = vunpack.c.l.b16 %v2373
        %v2406 = vunpack.c.l.b16 %v2374
        %v2407 = vunpack.c.l.b16 %v2375
        %v2408 = vunpack.c.l.b16 %v2376
        %v2409 = vunpack.c.l.b16 %v2377
        %v2410 = vpack.c.b16 %v2395, %v2394
        %v2411 = vpack.c.b16 %v2397, %v2396
        %v2412 = vpack.c.b16 %v2399, %v2398
        %v2413 = vpack.c.b16 %v2401, %v2400
        %v2414 = vpack.c.b16 %v2403, %v2402
        %v2415 = vpack.c.b16 %v2405, %v2404
        %v2416 = vpack.c.b16 %v2407, %v2406
        %v2417 = vpack.c.b16 %v2409, %v2408
        %2426 = vmatprep.subr.bf16.mxu0 0
        %2427 = vmatpush1.bf16.msra.mxu0 %v2410
        %2428 = vmatprep.subr.bf16.mxu0 0
        %2429 = vmatpush1.bf16.msra.mxu0 %v2411
        %2430 = vmatprep.subr.bf16.mxu0 0
        %2431 = vmatpush1.bf16.msra.mxu0 %v2412
        %2432 = vmatprep.subr.bf16.mxu0 0
        %2433 = vmatpush1.bf16.msra.mxu0 %v2413
        %2434 = vmatprep.subr.bf16.mxu0 0
        %2435 = vmatpush1.bf16.msra.mxu0 %v2414
        %2436 = vmatprep.subr.bf16.mxu0 0
        %2437 = vmatpush1.bf16.msra.mxu0 %v2415
        %2438 = vmatprep.subr.bf16.mxu0 0
        %2439 = vmatpush1.bf16.msra.mxu0 %v2416
        %2440 = vmatprep.subr.bf16.mxu0 0
        %2441 = vmatpush1.bf16.msra.mxu0 %v2417
        %2442 = vmatprep.subr.bf16.mxu0 0
        %2443 = vmatpush1.bf16.msra.mxu0 0
        %2444 = vmatprep.subr.bf16.mxu0 0
        %2445 = vmatpush1.bf16.msra.mxu0 0
        %2446 = vmatprep.subr.bf16.mxu0 0
        %2447 = vmatpush1.bf16.msra.mxu0 0
        %2448 = vmatprep.subr.bf16.mxu0 0
        %2449 = vmatpush1.bf16.msra.mxu0 0
        %2450 = vmatprep.subr.bf16.mxu0 0
        %2451 = vmatpush1.bf16.msra.mxu0 0
        %2452 = vmatprep.subr.bf16.mxu0 0
        %2453 = vmatpush1.bf16.msra.mxu0 0
        %2454 = vmatprep.subr.bf16.mxu0 0
        %2455 = vmatpush1.bf16.msra.mxu0 0
        %2456 = vmatprep.subr.bf16.mxu0 0
        %2457 = vmatpush1.bf16.msra.mxu0 0
        %2458 = vmatprep.mubr.bf16.mxu0 0
        %2459 = vmatmul.mubr.bf16.gmra.mrb[0].mxu0 %v905
        %v2460 = vpop.f32.mrb[0].mxu0
        %v2461 = vadd.f32 0.0, %v2460
        %v2462 = vpop.f32.mrb[0].mxu0
        %v2463 = vpop.f32.mrb[0].mxu0
        %v2464 = vadd.f32 0.0, %v2463
        %v2465 = vpop.f32.mrb[0].mxu0
        %2466 = vmatprep.mubr.bf16.mxu0 0
        %2467 = vmatmul.mubr.bf16.gmra.mrb[0].mxu0 %v906
        %v2468 = vpop.f32.mrb[0].mxu0
        %v2469 = vadd.f32 0.0, %v2468
        %v2470 = vpop.f32.mrb[0].mxu0
        %v2471 = vpop.f32.mrb[0].mxu0
        %v2472 = vadd.f32 0.0, %v2471
        %v2473 = vpop.f32.mrb[0].mxu0
        %2474 = vmatprep.mubr.bf16.mxu0 0
        %2475 = vmatmul.mubr.bf16.gmra.mrb[0].mxu0 %v907
        %v2476 = vpop.f32.mrb[0].mxu0
        %v2477 = vadd.f32 0.0, %v2476
        %v2478 = vpop.f32.mrb[0].mxu0
        %v2479 = vpop.f32.mrb[0].mxu0
        %v2480 = vadd.f32 0.0, %v2479
        %v2481 = vpop.f32.mrb[0].mxu0
        %2482 = vmatprep.mubr.bf16.mxu0 0
        %2483 = vmatmul.mubr.bf16.gmra.mrb[0].mxu0 %v908
        %v2484 = vpop.f32.mrb[0].mxu0
        %v2485 = vadd.f32 0.0, %v2484
        %v2486 = vpop.f32.mrb[0].mxu0
        %v2487 = vpop.f32.mrb[0].mxu0
        %v2488 = vadd.f32 0.0, %v2487
        %v2489 = vpop.f32.mrb[0].mxu0
        %2490 = vdwg.mxu0
        %v2491 = vadd.f32 %v2331, %v2461
        %v2492 = vadd.f32 %v2334, %v2464
        %v2493 = vadd.f32 %v2339, %v2469
        %v2494 = vadd.f32 %v2342, %v2472
        %v2495 = vadd.f32 %v2347, %v2477
        %v2496 = vadd.f32 %v2350, %v2480
        %v2497 = vadd.f32 %v2355, %v2485
        %v2498 = vadd.f32 %v2358, %v2488
        %s2499 = scalar_lea.vmem [#allocation5], 640
        %v2500 = vld [vmem:[%s2499] sm:$0xf]
        %v2501 = vld [vmem:[%s2499 + $0x4] sm:$0xf]
        %v2502 = vld [vmem:[%s2499 + $0x8] sm:$0xf]
        %v2503 = vld [vmem:[%s2499 + $0xc] sm:$0xf]
        %v2504 = vld [vmem:[%s2499 + $0x10] sm:$0xf]
        %v2505 = vld [vmem:[%s2499 + $0x14] sm:$0xf]
        %v2506 = vld [vmem:[%s2499 + $0x18] sm:$0xf]
        %v2507 = vld [vmem:[%s2499 + $0x1c] sm:$0xf]
        %v2508 = vld [vmem:[%s2499 + $0x20] sm:$0xf]
        %v2509 = vld [vmem:[%s2499 + $0x24] sm:$0xf]
        %v2510 = vld [vmem:[%s2499 + $0x28] sm:$0xf]
        %v2511 = vld [vmem:[%s2499 + $0x2c] sm:$0xf]
        %v2512 = vld [vmem:[%s2499 + $0x30] sm:$0xf]
        %v2513 = vld [vmem:[%s2499 + $0x34] sm:$0xf]
        %v2514 = vld [vmem:[%s2499 + $0x38] sm:$0xf]
        %v2515 = vld [vmem:[%s2499 + $0x3c] sm:$0xf]
        %v2532 = vunpack.c.l.b16 %v2500
        %v2533 = vunpack.c.l.b16 %v2501
        %v2534 = vunpack.c.l.b16 %v2502
        %v2535 = vunpack.c.l.b16 %v2503
        %v2536 = vunpack.c.l.b16 %v2504
        %v2537 = vunpack.c.l.b16 %v2505
        %v2538 = vunpack.c.l.b16 %v2506
        %v2539 = vunpack.c.l.b16 %v2507
        %v2540 = vunpack.c.l.b16 %v2508
        %v2541 = vunpack.c.l.b16 %v2509
        %v2542 = vunpack.c.l.b16 %v2510
        %v2543 = vunpack.c.l.b16 %v2511
        %v2544 = vunpack.c.l.b16 %v2512
        %v2545 = vunpack.c.l.b16 %v2513
        %v2546 = vunpack.c.l.b16 %v2514
        %v2547 = vunpack.c.l.b16 %v2515
        %v2548 = vpack.c.b16 %v2533, %v2532
        %v2549 = vpack.c.b16 %v2535, %v2534
        %v2550 = vpack.c.b16 %v2537, %v2536
        %v2551 = vpack.c.b16 %v2539, %v2538
        %v2552 = vpack.c.b16 %v2541, %v2540
        %v2553 = vpack.c.b16 %v2543, %v2542
        %v2554 = vpack.c.b16 %v2545, %v2544
        %v2555 = vpack.c.b16 %v2547, %v2546
        %2564 = vmatprep.subr.bf16.mxu0 0
        %2565 = vmatpush1.bf16.msra.mxu0 %v2548
        %2566 = vmatprep.subr.bf16.mxu0 0
        %2567 = vmatpush1.bf16.msra.mxu0 %v2549
        %2568 = vmatprep.subr.bf16.mxu0 0
        %2569 = vmatpush1.bf16.msra.mxu0 %v2550
        %2570 = vmatprep.subr.bf16.mxu0 0
        %2571 = vmatpush1.bf16.msra.mxu0 %v2551
        %2572 = vmatprep.subr.bf16.mxu0 0
        %2573 = vmatpush1.bf16.msra.mxu0 %v2552
        %2574 = vmatprep.subr.bf16.mxu0 0
        %2575 = vmatpush1.bf16.msra.mxu0 %v2553
        %2576 = vmatprep.subr.bf16.mxu0 0
        %2577 = vmatpush1.bf16.msra.mxu0 %v2554
        %2578 = vmatprep.subr.bf16.mxu0 0
        %2579 = vmatpush1.bf16.msra.mxu0 %v2555
        %2580 = vmatprep.subr.bf16.mxu0 0
        %2581 = vmatpush1.bf16.msra.mxu0 0
        %2582 = vmatprep.subr.bf16.mxu0 0
        %2583 = vmatpush1.bf16.msra.mxu0 0
        %2584 = vmatprep.subr.bf16.mxu0 0
        %2585 = vmatpush1.bf16.msra.mxu0 0
        %2586 = vmatprep.subr.bf16.mxu0 0
        %2587 = vmatpush1.bf16.msra.mxu0 0
        %2588 = vmatprep.subr.bf16.mxu0 0
        %2589 = vmatpush1.bf16.msra.mxu0 0
        %2590 = vmatprep.subr.bf16.mxu0 0
        %2591 = vmatpush1.bf16.msra.mxu0 0
        %2592 = vmatprep.subr.bf16.mxu0 0
        %2593 = vmatpush1.bf16.msra.mxu0 0
        %2594 = vmatprep.subr.bf16.mxu0 0
        %2595 = vmatpush1.bf16.msra.mxu0 0
        %2596 = vmatprep.mubr.bf16.mxu0 0
        %2597 = vmatmul.mubr.bf16.gmra.mrb[0].mxu0 %v1076
        %v2598 = vpop.f32.mrb[0].mxu0
        %v2599 = vadd.f32 0.0, %v2598
        %v2600 = vpop.f32.mrb[0].mxu0
        %v2601 = vpop.f32.mrb[0].mxu0
        %v2602 = vadd.f32 0.0, %v2601
        %v2603 = vpop.f32.mrb[0].mxu0
        %2604 = vmatprep.mubr.bf16.mxu0 0
        %2605 = vmatmul.mubr.bf16.gmra.mrb[0].mxu0 %v1077
        %v2606 = vpop.f32.mrb[0].mxu0
        %v2607 = vadd.f32 0.0, %v2606
        %v2608 = vpop.f32.mrb[0].mxu0
        %v2609 = vpop.f32.mrb[0].mxu0
        %v2610 = vadd.f32 0.0, %v2609
        %v2611 = vpop.f32.mrb[0].mxu0
        %2612 = vmatprep.mubr.bf16.mxu0 0
        %2613 = vmatmul.mubr.bf16.gmra.mrb[0].mxu0 %v1078
        %v2614 = vpop.f32.mrb[0].mxu0
        %v2615 = vadd.f32 0.0, %v2614
        %v2616 = vpop.f32.mrb[0].mxu0
        %v2617 = vpop.f32.mrb[0].mxu0
        %v2618 = vadd.f32 0.0, %v2617
        %v2619 = vpop.f32.mrb[0].mxu0
        %2620 = vmatprep.mubr.bf16.mxu0 0
        %2621 = vmatmul.mubr.bf16.gmra.mrb[0].mxu0 %v1079
        %v2622 = vpop.f32.mrb[0].mxu0
        %v2623 = vadd.f32 0.0, %v2622
        %v2624 = vpop.f32.mrb[0].mxu0
        %v2625 = vpop.f32.mrb[0].mxu0
        %v2626 = vadd.f32 0.0, %v2625
        %v2627 = vpop.f32.mrb[0].mxu0
        %2628 = vdwg.mxu0
        %v2629 = vadd.f32 %v2491, %v2599
        %v2630 = vadd.f32 %v2492, %v2602
        %v2631 = vadd.f32 %v2493, %v2607
        %v2632 = vadd.f32 %v2494, %v2610
        %v2633 = vadd.f32 %v2495, %v2615
        %v2634 = vadd.f32 %v2496, %v2618
        %v2635 = vadd.f32 %v2497, %v2623
        %v2636 = vadd.f32 %v2498, %v2626
        %s2637 = scalar_lea.vmem [#allocation5], 832
        %v2638 = vld [vmem:[%s2637] sm:$0xf]
        %v2639 = vld [vmem:[%s2637 + $0x4] sm:$0xf]
        %v2640 = vld [vmem:[%s2637 + $0x8] sm:$0xf]
        %v2641 = vld [vmem:[%s2637 + $0xc] sm:$0xf]
        %v2642 = vld [vmem:[%s2637 + $0x10] sm:$0xf]
        %v2643 = vld [vmem:[%s2637 + $0x14] sm:$0xf]
        %v2644 = vld [vmem:[%s2637 + $0x18] sm:$0xf]
        %v2645 = vld [vmem:[%s2637 + $0x1c] sm:$0xf]
        %v2646 = vld [vmem:[%s2637 + $0x20] sm:$0xf]
        %v2647 = vld [vmem:[%s2637 + $0x24] sm:$0xf]
        %v2648 = vld [vmem:[%s2637 + $0x28] sm:$0xf]
        %v2649 = vld [vmem:[%s2637 + $0x2c] sm:$0xf]
        %v2650 = vld [vmem:[%s2637 + $0x30] sm:$0xf]
        %v2651 = vld [vmem:[%s2637 + $0x34] sm:$0xf]
        %v2652 = vld [vmem:[%s2637 + $0x38] sm:$0xf]
        %v2653 = vld [vmem:[%s2637 + $0x3c] sm:$0xf]
        %v2670 = vunpack.c.l.b16 %v2638
        %v2671 = vunpack.c.l.b16 %v2639
        %v2672 = vunpack.c.l.b16 %v2640
        %v2673 = vunpack.c.l.b16 %v2641
        %v2674 = vunpack.c.l.b16 %v2642
        %v2675 = vunpack.c.l.b16 %v2643
        %v2676 = vunpack.c.l.b16 %v2644
        %v2677 = vunpack.c.l.b16 %v2645
        %v2678 = vunpack.c.l.b16 %v2646
        %v2679 = vunpack.c.l.b16 %v2647
        %v2680 = vunpack.c.l.b16 %v2648
        %v2681 = vunpack.c.l.b16 %v2649
        %v2682 = vunpack.c.l.b16 %v2650
        %v2683 = vunpack.c.l.b16 %v2651
        %v2684 = vunpack.c.l.b16 %v2652
        %v2685 = vunpack.c.l.b16 %v2653
        %v2686 = vpack.c.b16 %v2671, %v2670
        %v2687 = vpack.c.b16 %v2673, %v2672
        %v2688 = vpack.c.b16 %v2675, %v2674
        %v2689 = vpack.c.b16 %v2677, %v2676
        %v2690 = vpack.c.b16 %v2679, %v2678
        %v2691 = vpack.c.b16 %v2681, %v2680
        %v2692 = vpack.c.b16 %v2683, %v2682
        %v2693 = vpack.c.b16 %v2685, %v2684
        %2702 = vmatprep.subr.bf16.mxu0 0
        %2703 = vmatpush1.bf16.msra.mxu0 %v2686
        %2704 = vmatprep.subr.bf16.mxu0 0
        %2705 = vmatpush1.bf16.msra.mxu0 %v2687
        %2706 = vmatprep.subr.bf16.mxu0 0
        %2707 = vmatpush1.bf16.msra.mxu0 %v2688
        %2708 = vmatprep.subr.bf16.mxu0 0
        %2709 = vmatpush1.bf16.msra.mxu0 %v2689
        %2710 = vmatprep.subr.bf16.mxu0 0
        %2711 = vmatpush1.bf16.msra.mxu0 %v2690
        %2712 = vmatprep.subr.bf16.mxu0 0
        %2713 = vmatpush1.bf16.msra.mxu0 %v2691
        %2714 = vmatprep.subr.bf16.mxu0 0
        %2715 = vmatpush1.bf16.msra.mxu0 %v2692
        %2716 = vmatprep.subr.bf16.mxu0 0
        %2717 = vmatpush1.bf16.msra.mxu0 %v2693
        %2718 = vmatprep.subr.bf16.mxu0 0
        %2719 = vmatpush1.bf16.msra.mxu0 0
        %2720 = vmatprep.subr.bf16.mxu0 0
        %2721 = vmatpush1.bf16.msra.mxu0 0
        %2722 = vmatprep.subr.bf16.mxu0 0
        %2723 = vmatpush1.bf16.msra.mxu0 0
        %2724 = vmatprep.subr.bf16.mxu0 0
        %2725 = vmatpush1.bf16.msra.mxu0 0
        %2726 = vmatprep.subr.bf16.mxu0 0
        %2727 = vmatpush1.bf16.msra.mxu0 0
        %2728 = vmatprep.subr.bf16.mxu0 0
        %2729 = vmatpush1.bf16.msra.mxu0 0
        %2730 = vmatprep.subr.bf16.mxu0 0
        %2731 = vmatpush1.bf16.msra.mxu0 0
        %2732 = vmatprep.subr.bf16.mxu0 0
        %2733 = vmatpush1.bf16.msra.mxu0 0
        %2734 = vmatprep.mubr.bf16.mxu0 0
        %2735 = vmatmul.mubr.bf16.gmra.mrb[0].mxu0 %v1246
        %v2736 = vpop.f32.mrb[0].mxu0
        %v2737 = vadd.f32 0.0, %v2736
        %v2738 = vpop.f32.mrb[0].mxu0
        %v2739 = vpop.f32.mrb[0].mxu0
        %v2740 = vadd.f32 0.0, %v2739
        %v2741 = vpop.f32.mrb[0].mxu0
        %2742 = vmatprep.mubr.bf16.mxu0 0
        %2743 = vmatmul.mubr.bf16.gmra.mrb[0].mxu0 %v1247
        %v2744 = vpop.f32.mrb[0].mxu0
        %v2745 = vadd.f32 0.0, %v2744
        %v2746 = vpop.f32.mrb[0].mxu0
        %v2747 = vpop.f32.mrb[0].mxu0
        %v2748 = vadd.f32 0.0, %v2747
        %v2749 = vpop.f32.mrb[0].mxu0
        %2750 = vmatprep.mubr.bf16.mxu0 0
        %2751 = vmatmul.mubr.bf16.gmra.mrb[0].mxu0 %v1248
        %v2752 = vpop.f32.mrb[0].mxu0
        %v2753 = vadd.f32 0.0, %v2752
        %v2754 = vpop.f32.mrb[0].mxu0
        %v2755 = vpop.f32.mrb[0].mxu0
        %v2756 = vadd.f32 0.0, %v2755
        %v2757 = vpop.f32.mrb[0].mxu0
        %2758 = vmatprep.mubr.bf16.mxu0 0
        %2759 = vmatmul.mubr.bf16.gmra.mrb[0].mxu0 %v1249
        %v2760 = vpop.f32.mrb[0].mxu0
        %v2761 = vadd.f32 0.0, %v2760
        %v2762 = vpop.f32.mrb[0].mxu0
        %v2763 = vpop.f32.mrb[0].mxu0
        %v2764 = vadd.f32 0.0, %v2763
        %v2765 = vpop.f32.mrb[0].mxu0
        %2766 = vdwg.mxu0
        %v2767 = vadd.f32 %v2629, %v2737
        %v2768 = vadd.f32 %v2630, %v2740
        %v2769 = vadd.f32 %v2631, %v2745
        %v2770 = vadd.f32 %v2632, %v2748
        %v2771 = vadd.f32 %v2633, %v2753
        %v2772 = vadd.f32 %v2634, %v2756
        %v2773 = vadd.f32 %v2635, %v2761
        %v2774 = vadd.f32 %v2636, %v2764
        %s2775 = scalar_lea.vmem [#allocation5], 1024
        %v2776 = vld [vmem:[%s2775] sm:$0xf]
        %v2777 = vld [vmem:[%s2775 + $0x4] sm:$0xf]
        %v2778 = vld [vmem:[%s2775 + $0x8] sm:$0xf]
        %v2779 = vld [vmem:[%s2775 + $0xc] sm:$0xf]
        %v2780 = vld [vmem:[%s2775 + $0x10] sm:$0xf]
        %v2781 = vld [vmem:[%s2775 + $0x14] sm:$0xf]
        %v2782 = vld [vmem:[%s2775 + $0x18] sm:$0xf]
        %v2783 = vld [vmem:[%s2775 + $0x1c] sm:$0xf]
        %v2784 = vld [vmem:[%s2775 + $0x20] sm:$0xf]
        %v2785 = vld [vmem:[%s2775 + $0x24] sm:$0xf]
        %v2786 = vld [vmem:[%s2775 + $0x28] sm:$0xf]
        %v2787 = vld [vmem:[%s2775 + $0x2c] sm:$0xf]
        %v2788 = vld [vmem:[%s2775 + $0x30] sm:$0xf]
        %v2789 = vld [vmem:[%s2775 + $0x34] sm:$0xf]
        %v2790 = vld [vmem:[%s2775 + $0x38] sm:$0xf]
        %v2791 = vld [vmem:[%s2775 + $0x3c] sm:$0xf]
        %v2808 = vunpack.c.l.b16 %v2776
        %v2809 = vunpack.c.l.b16 %v2777
        %v2810 = vunpack.c.l.b16 %v2778
        %v2811 = vunpack.c.l.b16 %v2779
        %v2812 = vunpack.c.l.b16 %v2780
        %v2813 = vunpack.c.l.b16 %v2781
        %v2814 = vunpack.c.l.b16 %v2782
        %v2815 = vunpack.c.l.b16 %v2783
        %v2816 = vunpack.c.l.b16 %v2784
        %v2817 = vunpack.c.l.b16 %v2785
        %v2818 = vunpack.c.l.b16 %v2786
        %v2819 = vunpack.c.l.b16 %v2787
        %v2820 = vunpack.c.l.b16 %v2788
        %v2821 = vunpack.c.l.b16 %v2789
        %v2822 = vunpack.c.l.b16 %v2790
        %v2823 = vunpack.c.l.b16 %v2791
        %v2824 = vpack.c.b16 %v2809, %v2808
        %v2825 = vpack.c.b16 %v2811, %v2810
        %v2826 = vpack.c.b16 %v2813, %v2812
        %v2827 = vpack.c.b16 %v2815, %v2814
        %v2828 = vpack.c.b16 %v2817, %v2816
        %v2829 = vpack.c.b16 %v2819, %v2818
        %v2830 = vpack.c.b16 %v2821, %v2820
        %v2831 = vpack.c.b16 %v2823, %v2822
        %2840 = vmatprep.subr.bf16.mxu0 0
        %2841 = vmatpush1.bf16.msra.mxu0 %v2824
        %2842 = vmatprep.subr.bf16.mxu0 0
        %2843 = vmatpush1.bf16.msra.mxu0 %v2825
        %2844 = vmatprep.subr.bf16.mxu0 0
        %2845 = vmatpush1.bf16.msra.mxu0 %v2826
        %2846 = vmatprep.subr.bf16.mxu0 0
        %2847 = vmatpush1.bf16.msra.mxu0 %v2827
        %2848 = vmatprep.subr.bf16.mxu0 0
        %2849 = vmatpush1.bf16.msra.mxu0 %v2828
        %2850 = vmatprep.subr.bf16.mxu0 0
        %2851 = vmatpush1.bf16.msra.mxu0 %v2829
        %2852 = vmatprep.subr.bf16.mxu0 0
        %2853 = vmatpush1.bf16.msra.mxu0 %v2830
        %2854 = vmatprep.subr.bf16.mxu0 0
        %2855 = vmatpush1.bf16.msra.mxu0 %v2831
        %2856 = vmatprep.subr.bf16.mxu0 0
        %2857 = vmatpush1.bf16.msra.mxu0 0
        %2858 = vmatprep.subr.bf16.mxu0 0
        %2859 = vmatpush1.bf16.msra.mxu0 0
        %2860 = vmatprep.subr.bf16.mxu0 0
        %2861 = vmatpush1.bf16.msra.mxu0 0
        %2862 = vmatprep.subr.bf16.mxu0 0
        %2863 = vmatpush1.bf16.msra.mxu0 0
        %2864 = vmatprep.subr.bf16.mxu0 0
        %2865 = vmatpush1.bf16.msra.mxu0 0
        %2866 = vmatprep.subr.bf16.mxu0 0
        %2867 = vmatpush1.bf16.msra.mxu0 0
        %2868 = vmatprep.subr.bf16.mxu0 0
        %2869 = vmatpush1.bf16.msra.mxu0 0
        %2870 = vmatprep.subr.bf16.mxu0 0
        %2871 = vmatpush1.bf16.msra.mxu0 0
        %2872 = vmatprep.mubr.bf16.mxu0 0
        %2873 = vmatmul.mubr.bf16.gmra.mrb[0].mxu0 %v1417
        %v2874 = vpop.f32.mrb[0].mxu0
        %v2875 = vadd.f32 0.0, %v2874
        %v2876 = vpop.f32.mrb[0].mxu0
        %v2877 = vpop.f32.mrb[0].mxu0
        %v2878 = vadd.f32 0.0, %v2877
        %v2879 = vpop.f32.mrb[0].mxu0
        %2880 = vmatprep.mubr.bf16.mxu0 0
        %2881 = vmatmul.mubr.bf16.gmra.mrb[0].mxu0 %v1418
        %v2882 = vpop.f32.mrb[0].mxu0
        %v2883 = vadd.f32 0.0, %v2882
        %v2884 = vpop.f32.mrb[0].mxu0
        %v2885 = vpop.f32.mrb[0].mxu0
        %v2886 = vadd.f32 0.0, %v2885
        %v2887 = vpop.f32.mrb[0].mxu0
        %2888 = vmatprep.mubr.bf16.mxu0 0
        %2889 = vmatmul.mubr.bf16.gmra.mrb[0].mxu0 %v1419
        %v2890 = vpop.f32.mrb[0].mxu0
        %v2891 = vadd.f32 0.0, %v2890
        %v2892 = vpop.f32.mrb[0].mxu0
        %v2893 = vpop.f32.mrb[0].mxu0
        %v2894 = vadd.f32 0.0, %v2893
        %v2895 = vpop.f32.mrb[0].mxu0
        %2896 = vmatprep.mubr.bf16.mxu0 0
        %2897 = vmatmul.mubr.bf16.gmra.mrb[0].mxu0 %v1420
        %v2898 = vpop.f32.mrb[0].mxu0
        %v2899 = vadd.f32 0.0, %v2898
        %v2900 = vpop.f32.mrb[0].mxu0
        %v2901 = vpop.f32.mrb[0].mxu0
        %v2902 = vadd.f32 0.0, %v2901
        %v2903 = vpop.f32.mrb[0].mxu0
        %2904 = vdwg.mxu0
        %v2905 = vadd.f32 %v2767, %v2875
        %v2906 = vadd.f32 %v2768, %v2878
        %v2907 = vadd.f32 %v2769, %v2883
        %v2908 = vadd.f32 %v2770, %v2886
        %v2909 = vadd.f32 %v2771, %v2891
        %v2910 = vadd.f32 %v2772, %v2894
        %v2911 = vadd.f32 %v2773, %v2899
        %v2912 = vadd.f32 %v2774, %v2902
        %s2913 = scalar_lea.vmem [#allocation5], 704
        %v2914 = vld [vmem:[%s2913] sm:$0xf]
        %v2915 = vld [vmem:[%s2913 + $0x4] sm:$0xf]
        %v2916 = vld [vmem:[%s2913 + $0x8] sm:$0xf]
        %v2917 = vld [vmem:[%s2913 + $0xc] sm:$0xf]
        %v2918 = vld [vmem:[%s2913 + $0x10] sm:$0xf]
        %v2919 = vld [vmem:[%s2913 + $0x14] sm:$0xf]
        %v2920 = vld [vmem:[%s2913 + $0x18] sm:$0xf]
        %v2921 = vld [vmem:[%s2913 + $0x1c] sm:$0xf]
        %v2922 = vld [vmem:[%s2913 + $0x20] sm:$0xf]
        %v2923 = vld [vmem:[%s2913 + $0x24] sm:$0xf]
        %v2924 = vld [vmem:[%s2913 + $0x28] sm:$0xf]
        %v2925 = vld [vmem:[%s2913 + $0x2c] sm:$0xf]
        %v2926 = vld [vmem:[%s2913 + $0x30] sm:$0xf]
        %v2927 = vld [vmem:[%s2913 + $0x34] sm:$0xf]
        %v2928 = vld [vmem:[%s2913 + $0x38] sm:$0xf]
        %v2929 = vld [vmem:[%s2913 + $0x3c] sm:$0xf]
        %v2946 = vunpack.c.l.b16 %v2914
        %v2947 = vunpack.c.l.b16 %v2915
        %v2948 = vunpack.c.l.b16 %v2916
        %v2949 = vunpack.c.l.b16 %v2917
        %v2950 = vunpack.c.l.b16 %v2918
        %v2951 = vunpack.c.l.b16 %v2919
        %v2952 = vunpack.c.l.b16 %v2920
        %v2953 = vunpack.c.l.b16 %v2921
        %v2954 = vunpack.c.l.b16 %v2922
        %v2955 = vunpack.c.l.b16 %v2923
        %v2956 = vunpack.c.l.b16 %v2924
        %v2957 = vunpack.c.l.b16 %v2925
        %v2958 = vunpack.c.l.b16 %v2926
        %v2959 = vunpack.c.l.b16 %v2927
        %v2960 = vunpack.c.l.b16 %v2928
        %v2961 = vunpack.c.l.b16 %v2929
        %v2962 = vpack.c.b16 %v2947, %v2946
        %v2963 = vpack.c.b16 %v2949, %v2948
        %v2964 = vpack.c.b16 %v2951, %v2950
        %v2965 = vpack.c.b16 %v2953, %v2952
        %v2966 = vpack.c.b16 %v2955, %v2954
        %v2967 = vpack.c.b16 %v2957, %v2956
        %v2968 = vpack.c.b16 %v2959, %v2958
        %v2969 = vpack.c.b16 %v2961, %v2960
        %2978 = vmatprep.subr.bf16.mxu0 0
        %2979 = vmatpush1.bf16.msra.mxu0 %v2962
        %2980 = vmatprep.subr.bf16.mxu0 0
        %2981 = vmatpush1.bf16.msra.mxu0 %v2963
        %2982 = vmatprep.subr.bf16.mxu0 0
        %2983 = vmatpush1.bf16.msra.mxu0 %v2964
        %2984 = vmatprep.subr.bf16.mxu0 0
        %2985 = vmatpush1.bf16.msra.mxu0 %v2965
        %2986 = vmatprep.subr.bf16.mxu0 0
        %2987 = vmatpush1.bf16.msra.mxu0 %v2966
        %2988 = vmatprep.subr.bf16.mxu0 0
        %2989 = vmatpush1.bf16.msra.mxu0 %v2967
        %2990 = vmatprep.subr.bf16.mxu0 0
        %2991 = vmatpush1.bf16.msra.mxu0 %v2968
        %2992 = vmatprep.subr.bf16.mxu0 0
        %2993 = vmatpush1.bf16.msra.mxu0 %v2969
        %2994 = vmatprep.subr.bf16.mxu0 0
        %2995 = vmatpush1.bf16.msra.mxu0 0
        %2996 = vmatprep.subr.bf16.mxu0 0
        %2997 = vmatpush1.bf16.msra.mxu0 0
        %2998 = vmatprep.subr.bf16.mxu0 0
        %2999 = vmatpush1.bf16.msra.mxu0 0
        %3000 = vmatprep.subr.bf16.mxu0 0
        %3001 = vmatpush1.bf16.msra.mxu0 0
        %3002 = vmatprep.subr.bf16.mxu0 0
        %3003 = vmatpush1.bf16.msra.mxu0 0
        %3004 = vmatprep.subr.bf16.mxu0 0
        %3005 = vmatpush1.bf16.msra.mxu0 0
        %3006 = vmatprep.subr.bf16.mxu0 0
        %3007 = vmatpush1.bf16.msra.mxu0 0
        %3008 = vmatprep.subr.bf16.mxu0 0
        %3009 = vmatpush1.bf16.msra.mxu0 0
        %3010 = vmatprep.mubr.bf16.mxu0 0
        %3011 = vmatmul.mubr.bf16.gmra.mrb[0].mxu0 %v1588
        %v3012 = vpop.f32.mrb[0].mxu0
        %v3013 = vadd.f32 0.0, %v3012
        %v3014 = vpop.f32.mrb[0].mxu0
        %v3015 = vpop.f32.mrb[0].mxu0
        %v3016 = vadd.f32 0.0, %v3015
        %v3017 = vpop.f32.mrb[0].mxu0
        %3018 = vmatprep.mubr.bf16.mxu0 0
        %3019 = vmatmul.mubr.bf16.gmra.mrb[0].mxu0 %v1589
        %v3020 = vpop.f32.mrb[0].mxu0
        %v3021 = vadd.f32 0.0, %v3020
        %v3022 = vpop.f32.mrb[0].mxu0
        %v3023 = vpop.f32.mrb[0].mxu0
        %v3024 = vadd.f32 0.0, %v3023
        %v3025 = vpop.f32.mrb[0].mxu0
        %3026 = vmatprep.mubr.bf16.mxu0 0
        %3027 = vmatmul.mubr.bf16.gmra.mrb[0].mxu0 %v1590
        %v3028 = vpop.f32.mrb[0].mxu0
        %v3029 = vadd.f32 0.0, %v3028
        %v3030 = vpop.f32.mrb[0].mxu0
        %v3031 = vpop.f32.mrb[0].mxu0
        %v3032 = vadd.f32 0.0, %v3031
        %v3033 = vpop.f32.mrb[0].mxu0
        %3034 = vmatprep.mubr.bf16.mxu0 0
        %3035 = vmatmul.mubr.bf16.gmra.mrb[0].mxu0 %v1591
        %v3036 = vpop.f32.mrb[0].mxu0
        %v3037 = vadd.f32 0.0, %v3036
        %v3038 = vpop.f32.mrb[0].mxu0
        %v3039 = vpop.f32.mrb[0].mxu0
        %v3040 = vadd.f32 0.0, %v3039
        %v3041 = vpop.f32.mrb[0].mxu0
        %3042 = vdwg.mxu0
        %v3043 = vadd.f32 %v2905, %v3013
        %v3044 = vadd.f32 %v2906, %v3016
        %v3045 = vadd.f32 %v2907, %v3021
        %v3046 = vadd.f32 %v2908, %v3024
        %v3047 = vadd.f32 %v2909, %v3029
        %v3048 = vadd.f32 %v2910, %v3032
        %v3049 = vadd.f32 %v2911, %v3037
        %v3050 = vadd.f32 %v2912, %v3040
        %s3051 = scalar_lea.vmem [#allocation5], 896
        %v3052 = vld [vmem:[%s3051] sm:$0xf]
        %v3053 = vld [vmem:[%s3051 + $0x4] sm:$0xf]
        %v3054 = vld [vmem:[%s3051 + $0x8] sm:$0xf]
        %v3055 = vld [vmem:[%s3051 + $0xc] sm:$0xf]
        %v3056 = vld [vmem:[%s3051 + $0x10] sm:$0xf]
        %v3057 = vld [vmem:[%s3051 + $0x14] sm:$0xf]
        %v3058 = vld [vmem:[%s3051 + $0x18] sm:$0xf]
        %v3059 = vld [vmem:[%s3051 + $0x1c] sm:$0xf]
        %v3060 = vld [vmem:[%s3051 + $0x20] sm:$0xf]
        %v3061 = vld [vmem:[%s3051 + $0x24] sm:$0xf]
        %v3062 = vld [vmem:[%s3051 + $0x28] sm:$0xf]
        %v3063 = vld [vmem:[%s3051 + $0x2c] sm:$0xf]
        %v3064 = vld [vmem:[%s3051 + $0x30] sm:$0xf]
        %v3065 = vld [vmem:[%s3051 + $0x34] sm:$0xf]
        %v3066 = vld [vmem:[%s3051 + $0x38] sm:$0xf]
        %v3067 = vld [vmem:[%s3051 + $0x3c] sm:$0xf]
        %v3084 = vunpack.c.l.b16 %v3052
        %v3085 = vunpack.c.l.b16 %v3053
        %v3086 = vunpack.c.l.b16 %v3054
        %v3087 = vunpack.c.l.b16 %v3055
        %v3088 = vunpack.c.l.b16 %v3056
        %v3089 = vunpack.c.l.b16 %v3057
        %v3090 = vunpack.c.l.b16 %v3058
        %v3091 = vunpack.c.l.b16 %v3059
        %v3092 = vunpack.c.l.b16 %v3060
        %v3093 = vunpack.c.l.b16 %v3061
        %v3094 = vunpack.c.l.b16 %v3062
        %v3095 = vunpack.c.l.b16 %v3063
        %v3096 = vunpack.c.l.b16 %v3064
        %v3097 = vunpack.c.l.b16 %v3065
        %v3098 = vunpack.c.l.b16 %v3066
        %v3099 = vunpack.c.l.b16 %v3067
        %v3100 = vpack.c.b16 %v3085, %v3084
        %v3101 = vpack.c.b16 %v3087, %v3086
        %v3102 = vpack.c.b16 %v3089, %v3088
        %v3103 = vpack.c.b16 %v3091, %v3090
        %v3104 = vpack.c.b16 %v3093, %v3092
        %v3105 = vpack.c.b16 %v3095, %v3094
        %v3106 = vpack.c.b16 %v3097, %v3096
        %v3107 = vpack.c.b16 %v3099, %v3098
        %3116 = vmatprep.subr.bf16.mxu0 0
        %3117 = vmatpush1.bf16.msra.mxu0 %v3100
        %3118 = vmatprep.subr.bf16.mxu0 0
        %3119 = vmatpush1.bf16.msra.mxu0 %v3101
        %3120 = vmatprep.subr.bf16.mxu0 0
        %3121 = vmatpush1.bf16.msra.mxu0 %v3102
        %3122 = vmatprep.subr.bf16.mxu0 0
        %3123 = vmatpush1.bf16.msra.mxu0 %v3103
        %3124 = vmatprep.subr.bf16.mxu0 0
        %3125 = vmatpush1.bf16.msra.mxu0 %v3104
        %3126 = vmatprep.subr.bf16.mxu0 0
        %3127 = vmatpush1.bf16.msra.mxu0 %v3105
        %3128 = vmatprep.subr.bf16.mxu0 0
        %3129 = vmatpush1.bf16.msra.mxu0 %v3106
        %3130 = vmatprep.subr.bf16.mxu0 0
        %3131 = vmatpush1.bf16.msra.mxu0 %v3107
        %3132 = vmatprep.subr.bf16.mxu0 0
        %3133 = vmatpush1.bf16.msra.mxu0 0
        %3134 = vmatprep.subr.bf16.mxu0 0
        %3135 = vmatpush1.bf16.msra.mxu0 0
        %3136 = vmatprep.subr.bf16.mxu0 0
        %3137 = vmatpush1.bf16.msra.mxu0 0
        %3138 = vmatprep.subr.bf16.mxu0 0
        %3139 = vmatpush1.bf16.msra.mxu0 0
        %3140 = vmatprep.subr.bf16.mxu0 0
        %3141 = vmatpush1.bf16.msra.mxu0 0
        %3142 = vmatprep.subr.bf16.mxu0 0
        %3143 = vmatpush1.bf16.msra.mxu0 0
        %3144 = vmatprep.subr.bf16.mxu0 0
        %3145 = vmatpush1.bf16.msra.mxu0 0
        %3146 = vmatprep.subr.bf16.mxu0 0
        %3147 = vmatpush1.bf16.msra.mxu0 0
        %3148 = vmatprep.mubr.bf16.mxu0 0
        %3149 = vmatmul.mubr.bf16.gmra.mrb[0].mxu0 %v1758
        %v3150 = vpop.f32.mrb[0].mxu0
        %v3151 = vadd.f32 0.0, %v3150
        %v3152 = vpop.f32.mrb[0].mxu0
        %v3153 = vpop.f32.mrb[0].mxu0
        %v3154 = vadd.f32 0.0, %v3153
        %v3155 = vpop.f32.mrb[0].mxu0
        %3156 = vmatprep.mubr.bf16.mxu0 0
        %3157 = vmatmul.mubr.bf16.gmra.mrb[0].mxu0 %v1759
        %v3158 = vpop.f32.mrb[0].mxu0
        %v3159 = vadd.f32 0.0, %v3158
        %v3160 = vpop.f32.mrb[0].mxu0
        %v3161 = vpop.f32.mrb[0].mxu0
        %v3162 = vadd.f32 0.0, %v3161
        %v3163 = vpop.f32.mrb[0].mxu0
        %3164 = vmatprep.mubr.bf16.mxu0 0
        %3165 = vmatmul.mubr.bf16.gmra.mrb[0].mxu0 %v1760
        %v3166 = vpop.f32.mrb[0].mxu0
        %v3167 = vadd.f32 0.0, %v3166
        %v3168 = vpop.f32.mrb[0].mxu0
        %v3169 = vpop.f32.mrb[0].mxu0
        %v3170 = vadd.f32 0.0, %v3169
        %v3171 = vpop.f32.mrb[0].mxu0
        %3172 = vmatprep.mubr.bf16.mxu0 0
        %3173 = vmatmul.mubr.bf16.gmra.mrb[0].mxu0 %v1761
        %v3174 = vpop.f32.mrb[0].mxu0
        %v3175 = vadd.f32 0.0, %v3174
        %v3176 = vpop.f32.mrb[0].mxu0
        %v3177 = vpop.f32.mrb[0].mxu0
        %v3178 = vadd.f32 0.0, %v3177
        %v3179 = vpop.f32.mrb[0].mxu0
        %3180 = vdwg.mxu0
        %v3181 = vadd.f32 %v3043, %v3151
        %v3182 = vadd.f32 %v3044, %v3154
        %v3183 = vadd.f32 %v3045, %v3159
        %v3184 = vadd.f32 %v3046, %v3162
        %v3185 = vadd.f32 %v3047, %v3167
        %v3186 = vadd.f32 %v3048, %v3170
        %v3187 = vadd.f32 %v3049, %v3175
        %v3188 = vadd.f32 %v3050, %v3178
        %s3189 = scalar_lea.vmem [#allocation5], 1088
        %v3190 = vld [vmem:[%s3189] sm:$0xf]
        %v3191 = vld [vmem:[%s3189 + $0x4] sm:$0xf]
        %v3192 = vld [vmem:[%s3189 + $0x8] sm:$0xf]
        %v3193 = vld [vmem:[%s3189 + $0xc] sm:$0xf]
        %v3194 = vld [vmem:[%s3189 + $0x10] sm:$0xf]
        %v3195 = vld [vmem:[%s3189 + $0x14] sm:$0xf]
        %v3196 = vld [vmem:[%s3189 + $0x18] sm:$0xf]
        %v3197 = vld [vmem:[%s3189 + $0x1c] sm:$0xf]
        %v3198 = vld [vmem:[%s3189 + $0x20] sm:$0xf]
        %v3199 = vld [vmem:[%s3189 + $0x24] sm:$0xf]
        %v3200 = vld [vmem:[%s3189 + $0x28] sm:$0xf]
        %v3201 = vld [vmem:[%s3189 + $0x2c] sm:$0xf]
        %v3202 = vld [vmem:[%s3189 + $0x30] sm:$0xf]
        %v3203 = vld [vmem:[%s3189 + $0x34] sm:$0xf]
        %v3204 = vld [vmem:[%s3189 + $0x38] sm:$0xf]
        %v3205 = vld [vmem:[%s3189 + $0x3c] sm:$0xf]
        %v3222 = vunpack.c.l.b16 %v3190
        %v3223 = vunpack.c.l.b16 %v3191
        %v3224 = vunpack.c.l.b16 %v3192
        %v3225 = vunpack.c.l.b16 %v3193
        %v3226 = vunpack.c.l.b16 %v3194
        %v3227 = vunpack.c.l.b16 %v3195
        %v3228 = vunpack.c.l.b16 %v3196
        %v3229 = vunpack.c.l.b16 %v3197
        %v3230 = vunpack.c.l.b16 %v3198
        %v3231 = vunpack.c.l.b16 %v3199
        %v3232 = vunpack.c.l.b16 %v3200
        %v3233 = vunpack.c.l.b16 %v3201
        %v3234 = vunpack.c.l.b16 %v3202
        %v3235 = vunpack.c.l.b16 %v3203
        %v3236 = vunpack.c.l.b16 %v3204
        %v3237 = vunpack.c.l.b16 %v3205
        %v3238 = vpack.c.b16 %v3223, %v3222
        %v3239 = vpack.c.b16 %v3225, %v3224
        %v3240 = vpack.c.b16 %v3227, %v3226
        %v3241 = vpack.c.b16 %v3229, %v3228
        %v3242 = vpack.c.b16 %v3231, %v3230
        %v3243 = vpack.c.b16 %v3233, %v3232
        %v3244 = vpack.c.b16 %v3235, %v3234
        %v3245 = vpack.c.b16 %v3237, %v3236
        %3254 = vmatprep.subr.bf16.mxu0 0
        %3255 = vmatpush1.bf16.msra.mxu0 %v3238
        %3256 = vmatprep.subr.bf16.mxu0 0
        %3257 = vmatpush1.bf16.msra.mxu0 %v3239
        %3258 = vmatprep.subr.bf16.mxu0 0
        %3259 = vmatpush1.bf16.msra.mxu0 %v3240
        %3260 = vmatprep.subr.bf16.mxu0 0
        %3261 = vmatpush1.bf16.msra.mxu0 %v3241
        %3262 = vmatprep.subr.bf16.mxu0 0
        %3263 = vmatpush1.bf16.msra.mxu0 %v3242
        %3264 = vmatprep.subr.bf16.mxu0 0
        %3265 = vmatpush1.bf16.msra.mxu0 %v3243
        %3266 = vmatprep.subr.bf16.mxu0 0
        %3267 = vmatpush1.bf16.msra.mxu0 %v3244
        %3268 = vmatprep.subr.bf16.mxu0 0
        %3269 = vmatpush1.bf16.msra.mxu0 %v3245
        %3270 = vmatprep.subr.bf16.mxu0 0
        %3271 = vmatpush1.bf16.msra.mxu0 0
        %3272 = vmatprep.subr.bf16.mxu0 0
        %3273 = vmatpush1.bf16.msra.mxu0 0
        %3274 = vmatprep.subr.bf16.mxu0 0
        %3275 = vmatpush1.bf16.msra.mxu0 0
        %3276 = vmatprep.subr.bf16.mxu0 0
        %3277 = vmatpush1.bf16.msra.mxu0 0
        %3278 = vmatprep.subr.bf16.mxu0 0
        %3279 = vmatpush1.bf16.msra.mxu0 0
        %3280 = vmatprep.subr.bf16.mxu0 0
        %3281 = vmatpush1.bf16.msra.mxu0 0
        %3282 = vmatprep.subr.bf16.mxu0 0
        %3283 = vmatpush1.bf16.msra.mxu0 0
        %3284 = vmatprep.subr.bf16.mxu0 0
        %3285 = vmatpush1.bf16.msra.mxu0 0
        %3286 = vmatprep.mubr.bf16.mxu0 0
        %3287 = vmatmul.mubr.bf16.gmra.mrb[0].mxu0 %v1929
        %v3288 = vpop.f32.mrb[0].mxu0
        %v3289 = vadd.f32 0.0, %v3288
        %v3290 = vpop.f32.mrb[0].mxu0
        %v3291 = vpop.f32.mrb[0].mxu0
        %v3292 = vadd.f32 0.0, %v3291
        %v3293 = vpop.f32.mrb[0].mxu0
        %3294 = vmatprep.mubr.bf16.mxu0 0
        %3295 = vmatmul.mubr.bf16.gmra.mrb[0].mxu0 %v1930
        %v3296 = vpop.f32.mrb[0].mxu0
        %v3297 = vadd.f32 0.0, %v3296
        %v3298 = vpop.f32.mrb[0].mxu0
        %v3299 = vpop.f32.mrb[0].mxu0
        %v3300 = vadd.f32 0.0, %v3299
        %v3301 = vpop.f32.mrb[0].mxu0
        %3302 = vmatprep.mubr.bf16.mxu0 0
        %3303 = vmatmul.mubr.bf16.gmra.mrb[0].mxu0 %v1931
        %v3304 = vpop.f32.mrb[0].mxu0
        %v3305 = vadd.f32 0.0, %v3304
        %v3306 = vpop.f32.mrb[0].mxu0
        %v3307 = vpop.f32.mrb[0].mxu0
        %v3308 = vadd.f32 0.0, %v3307
        %v3309 = vpop.f32.mrb[0].mxu0
        %3310 = vmatprep.mubr.bf16.mxu0 0
        %3311 = vmatmul.mubr.bf16.gmra.mrb[0].mxu0 %v1932
        %v3312 = vpop.f32.mrb[0].mxu0
        %v3313 = vadd.f32 0.0, %v3312
        %v3314 = vpop.f32.mrb[0].mxu0
        %v3315 = vpop.f32.mrb[0].mxu0
        %v3316 = vadd.f32 0.0, %v3315
        %v3317 = vpop.f32.mrb[0].mxu0
        %3318 = vdwg.mxu0
        %v3319 = vadd.f32 %v3181, %v3289
        %v3320 = vadd.f32 %v3182, %v3292
        %v3321 = vadd.f32 %v3183, %v3297
        %v3322 = vadd.f32 %v3184, %v3300
        %v3323 = vadd.f32 %v3185, %v3305
        %v3324 = vadd.f32 %v3186, %v3308
        %v3325 = vadd.f32 %v3187, %v3313
        %v3326 = vadd.f32 %v3188, %v3316
        %s3327 = scalar_lea.vmem [#allocation7], 1
        %v3328 = vld [vmem:[%s3327] sm:$0x1]
        %v3330 = vlaneseq
        %v3331 = vshrl.u32 %v3330, 7
        %v3332 = vsub.s32 0, %v3331
        %v3333 = vrot.slane %v3328, %v3332
        %v3335 = vadd.f32 %v3319, %v3333
        %v3336 = vadd.f32 %v3320, %v3333
        %v3337 = vadd.f32 %v3321, %v3333
        %v3338 = vadd.f32 %v3322, %v3333
        %v3339 = vadd.f32 %v3323, %v3333
        %v3340 = vadd.f32 %v3324, %v3333
        %v3341 = vadd.f32 %v3325, %v3333
        %v3342 = vadd.f32 %v3326, %v3333
        %v3343 = vmax.f32 %v3335, 0.0
        %v3344 = vmax.f32 %v3336, 0.0
        %v3345 = vmax.f32 %v3337, 0.0
        %v3346 = vmax.f32 %v3338, 0.0
        %v3347 = vmax.f32 %v3339, 0.0
        %v3348 = vmax.f32 %v3340, 0.0
        %v3349 = vmax.f32 %v3341, 0.0
        %v3350 = vmax.f32 %v3342, 0.0
        %v3351 = vpack.c.bf16 %v3344, %v3343
        %v3352 = vpack.c.bf16 %v3346, %v3345
        %v3353 = vpack.c.bf16 %v3348, %v3347
        %v3354 = vpack.c.bf16 %v3350, %v3349
        %s3355 = scalar_lea.vmem [#allocation8], 64
        %v3356 = vld [vmem:[%s3355] sm:$0xf]
        %v3357 = vld [vmem:[%s3355 + $0x4] sm:$0xf]
        %v3358 = vld [vmem:[%s3355 + $0x8] sm:$0xf]
        %v3359 = vld [vmem:[%s3355 + $0xc] sm:$0xf]
        %v3360 = vld [vmem:[%s3355 + $0x10] sm:$0xf]
        %v3361 = vld [vmem:[%s3355 + $0x14] sm:$0xf]
        %v3362 = vld [vmem:[%s3355 + $0x18] sm:$0xf]
        %v3363 = vld [vmem:[%s3355 + $0x1c] sm:$0xf]
        %v3364 = vld [vmem:[%s3355 + $0x20] sm:$0xf]
        %v3365 = vld [vmem:[%s3355 + $0x24] sm:$0xf]
        %v3366 = vld [vmem:[%s3355 + $0x28] sm:$0xf]
        %v3367 = vld [vmem:[%s3355 + $0x2c] sm:$0xf]
        %v3368 = vld [vmem:[%s3355 + $0x30] sm:$0xf]
        %v3369 = vld [vmem:[%s3355 + $0x34] sm:$0xf]
        %v3370 = vld [vmem:[%s3355 + $0x38] sm:$0xf]
        %v3371 = vld [vmem:[%s3355 + $0x3c] sm:$0xf]
        %v3388 = vunpack.c.l.b16 %v3356
        %v3389 = vunpack.c.l.b16 %v3357
        %v3390 = vunpack.c.l.b16 %v3358
        %v3391 = vunpack.c.l.b16 %v3359
        %v3392 = vunpack.c.l.b16 %v3360
        %v3393 = vunpack.c.l.b16 %v3361
        %v3394 = vunpack.c.l.b16 %v3362
        %v3395 = vunpack.c.l.b16 %v3363
        %v3396 = vunpack.c.l.b16 %v3364
        %v3397 = vunpack.c.l.b16 %v3365
        %v3398 = vunpack.c.l.b16 %v3366
        %v3399 = vunpack.c.l.b16 %v3367
        %v3400 = vunpack.c.l.b16 %v3368
        %v3401 = vunpack.c.l.b16 %v3369
        %v3402 = vunpack.c.l.b16 %v3370
        %v3403 = vunpack.c.l.b16 %v3371
        %v3404 = vpack.c.b16 %v3389, %v3388
        %v3405 = vpack.c.b16 %v3391, %v3390
        %v3406 = vpack.c.b16 %v3393, %v3392
        %v3407 = vpack.c.b16 %v3395, %v3394
        %v3408 = vpack.c.b16 %v3397, %v3396
        %v3409 = vpack.c.b16 %v3399, %v3398
        %v3410 = vpack.c.b16 %v3401, %v3400
        %v3411 = vpack.c.b16 %v3403, %v3402
        %3420 = vmatprep.subr.bf16.mxu0 0
        %3421 = vmatpush1.bf16.msra.mxu0 %v3404
        %3422 = vmatprep.subr.bf16.mxu0 0
        %3423 = vmatpush1.bf16.msra.mxu0 %v3405
        %3424 = vmatprep.subr.bf16.mxu0 0
        %3425 = vmatpush1.bf16.msra.mxu0 %v3406
        %3426 = vmatprep.subr.bf16.mxu0 0
        %3427 = vmatpush1.bf16.msra.mxu0 %v3407
        %3428 = vmatprep.subr.bf16.mxu0 0
        %3429 = vmatpush1.bf16.msra.mxu0 %v3408
        %3430 = vmatprep.subr.bf16.mxu0 0
        %3431 = vmatpush1.bf16.msra.mxu0 %v3409
        %3432 = vmatprep.subr.bf16.mxu0 0
        %3433 = vmatpush1.bf16.msra.mxu0 %v3410
        %3434 = vmatprep.subr.bf16.mxu0 0
        %3435 = vmatpush1.bf16.msra.mxu0 %v3411
        %3436 = vmatprep.subr.bf16.mxu0 0
        %3437 = vmatpush1.bf16.msra.mxu0 0
        %3438 = vmatprep.subr.bf16.mxu0 0
        %3439 = vmatpush1.bf16.msra.mxu0 0
        %3440 = vmatprep.subr.bf16.mxu0 0
        %3441 = vmatpush1.bf16.msra.mxu0 0
        %3442 = vmatprep.subr.bf16.mxu0 0
        %3443 = vmatpush1.bf16.msra.mxu0 0
        %3444 = vmatprep.subr.bf16.mxu0 0
        %3445 = vmatpush1.bf16.msra.mxu0 0
        %3446 = vmatprep.subr.bf16.mxu0 0
        %3447 = vmatpush1.bf16.msra.mxu0 0
        %3448 = vmatprep.subr.bf16.mxu0 0
        %3449 = vmatpush1.bf16.msra.mxu0 0
        %3450 = vmatprep.subr.bf16.mxu0 0
        %3451 = vmatpush1.bf16.msra.mxu0 0
        %3452 = vmatprep.mubr.bf16.mxu0 0
        %3453 = vmatmul.mubr.bf16.gmra.mrb[0].mxu0 %v3351
        %v3454 = vpop.f32.mrb[0].mxu0
        %v3455 = vadd.f32 0.0, %v3454
        %v3456 = vpop.f32.mrb[0].mxu0
        %v3457 = vpop.f32.mrb[0].mxu0
        %v3458 = vadd.f32 0.0, %v3457
        %v3459 = vpop.f32.mrb[0].mxu0
        %3460 = vmatprep.mubr.bf16.mxu0 0
        %3461 = vmatmul.mubr.bf16.gmra.mrb[0].mxu0 %v3352
        %v3462 = vpop.f32.mrb[0].mxu0
        %v3463 = vadd.f32 0.0, %v3462
        %v3464 = vpop.f32.mrb[0].mxu0
        %v3465 = vpop.f32.mrb[0].mxu0
        %v3466 = vadd.f32 0.0, %v3465
        %v3467 = vpop.f32.mrb[0].mxu0
        %3468 = vmatprep.mubr.bf16.mxu0 0
        %3469 = vmatmul.mubr.bf16.gmra.mrb[0].mxu0 %v3353
        %v3470 = vpop.f32.mrb[0].mxu0
        %v3471 = vadd.f32 0.0, %v3470
        %v3472 = vpop.f32.mrb[0].mxu0
        %v3473 = vpop.f32.mrb[0].mxu0
        %v3474 = vadd.f32 0.0, %v3473
        %v3475 = vpop.f32.mrb[0].mxu0
        %3476 = vmatprep.mubr.bf16.mxu0 0
        %3477 = vmatmul.mubr.bf16.gmra.mrb[0].mxu0 %v3354
        %v3478 = vpop.f32.mrb[0].mxu0
        %v3479 = vadd.f32 0.0, %v3478
        %v3480 = vpop.f32.mrb[0].mxu0
        %v3481 = vpop.f32.mrb[0].mxu0
        %v3482 = vadd.f32 0.0, %v3481
        %v3483 = vpop.f32.mrb[0].mxu0
        %3484 = vdwg.mxu0
        %v3501 = vunpack.c.l.b16 %v2085
        %v3502 = vunpack.c.l.b16 %v2086
        %v3503 = vunpack.c.l.b16 %v2087
        %v3504 = vunpack.c.l.b16 %v2088
        %v3505 = vunpack.c.l.b16 %v2089
        %v3506 = vunpack.c.l.b16 %v2090
        %v3507 = vunpack.c.l.b16 %v2091
        %v3508 = vunpack.c.l.b16 %v2092
        %v3509 = vunpack.c.l.b16 %v2093
        %v3510 = vunpack.c.l.b16 %v2094
        %v3511 = vunpack.c.l.b16 %v2095
        %v3512 = vunpack.c.l.b16 %v2096
        %v3513 = vunpack.c.l.b16 %v2097
        %v3514 = vunpack.c.l.b16 %v2098
        %v3515 = vunpack.c.l.b16 %v2099
        %v3516 = vunpack.c.l.b16 %v2100
        %v3517 = vpack.c.b16 %v3502, %v3501
        %v3518 = vpack.c.b16 %v3504, %v3503
        %v3519 = vpack.c.b16 %v3506, %v3505
        %v3520 = vpack.c.b16 %v3508, %v3507
        %v3521 = vpack.c.b16 %v3510, %v3509
        %v3522 = vpack.c.b16 %v3512, %v3511
        %v3523 = vpack.c.b16 %v3514, %v3513
        %v3524 = vpack.c.b16 %v3516, %v3515
        %3533 = vmatprep.subr.bf16.mxu0 0
        %3534 = vmatpush1.bf16.msra.mxu0 %v3517
        %3535 = vmatprep.subr.bf16.mxu0 0
        %3536 = vmatpush1.bf16.msra.mxu0 %v3518
        %3537 = vmatprep.subr.bf16.mxu0 0
        %3538 = vmatpush1.bf16.msra.mxu0 %v3519
        %3539 = vmatprep.subr.bf16.mxu0 0
        %3540 = vmatpush1.bf16.msra.mxu0 %v3520
        %3541 = vmatprep.subr.bf16.mxu0 0
        %3542 = vmatpush1.bf16.msra.mxu0 %v3521
        %3543 = vmatprep.subr.bf16.mxu0 0
        %3544 = vmatpush1.bf16.msra.mxu0 %v3522
        %3545 = vmatprep.subr.bf16.mxu0 0
        %3546 = vmatpush1.bf16.msra.mxu0 %v3523
        %3547 = vmatprep.subr.bf16.mxu0 0
        %3548 = vmatpush1.bf16.msra.mxu0 %v3524
        %3549 = vmatprep.subr.bf16.mxu0 0
        %3550 = vmatpush1.bf16.msra.mxu0 0
        %3551 = vmatprep.subr.bf16.mxu0 0
        %3552 = vmatpush1.bf16.msra.mxu0 0
        %3553 = vmatprep.subr.bf16.mxu0 0
        %3554 = vmatpush1.bf16.msra.mxu0 0
        %3555 = vmatprep.subr.bf16.mxu0 0
        %3556 = vmatpush1.bf16.msra.mxu0 0
        %3557 = vmatprep.subr.bf16.mxu0 0
        %3558 = vmatpush1.bf16.msra.mxu0 0
        %3559 = vmatprep.subr.bf16.mxu0 0
        %3560 = vmatpush1.bf16.msra.mxu0 0
        %3561 = vmatprep.subr.bf16.mxu0 0
        %3562 = vmatpush1.bf16.msra.mxu0 0
        %3563 = vmatprep.subr.bf16.mxu0 0
        %3564 = vmatpush1.bf16.msra.mxu0 0
        %3565 = vmatprep.mubr.bf16.mxu0 0
        %3566 = vmatmul.mubr.bf16.gmra.mrb[0].mxu0 %v2081
        %v3567 = vpop.f32.mrb[0].mxu0
        %v3568 = vadd.f32 %v3455, %v3567
        %v3569 = vpop.f32.mrb[0].mxu0
        %v3570 = vpop.f32.mrb[0].mxu0
        %v3571 = vadd.f32 %v3458, %v3570
        %v3572 = vpop.f32.mrb[0].mxu0
        %3573 = vmatprep.mubr.bf16.mxu0 0
        %3574 = vmatmul.mubr.bf16.gmra.mrb[0].mxu0 %v2082
        %v3575 = vpop.f32.mrb[0].mxu0
        %v3576 = vadd.f32 %v3463, %v3575
        %v3577 = vpop.f32.mrb[0].mxu0
        %v3578 = vpop.f32.mrb[0].mxu0
        %v3579 = vadd.f32 %v3466, %v3578
        %v3580 = vpop.f32.mrb[0].mxu0
        %3581 = vmatprep.mubr.bf16.mxu0 0
        %3582 = vmatmul.mubr.bf16.gmra.mrb[0].mxu0 %v2083
        %v3583 = vpop.f32.mrb[0].mxu0
        %v3584 = vadd.f32 %v3471, %v3583
        %v3585 = vpop.f32.mrb[0].mxu0
        %v3586 = vpop.f32.mrb[0].mxu0
        %v3587 = vadd.f32 %v3474, %v3586
        %v3588 = vpop.f32.mrb[0].mxu0
        %3589 = vmatprep.mubr.bf16.mxu0 0
        %3590 = vmatmul.mubr.bf16.gmra.mrb[0].mxu0 %v2084
        %v3591 = vpop.f32.mrb[0].mxu0
        %v3592 = vadd.f32 %v3479, %v3591
        %v3593 = vpop.f32.mrb[0].mxu0
        %v3594 = vpop.f32.mrb[0].mxu0
        %v3595 = vadd.f32 %v3482, %v3594
        %v3596 = vpop.f32.mrb[0].mxu0
        %3597 = vdwg.mxu0
        %s3598 = scalar_lea.vmem [#allocation5], 1152
        %v3599 = vld [vmem:[%s3598] sm:$0xf]
        %v3600 = vld [vmem:[%s3598 + $0x4] sm:$0xf]
        %v3601 = vld [vmem:[%s3598 + $0x8] sm:$0xf]
        %v3602 = vld [vmem:[%s3598 + $0xc] sm:$0xf]
        %v3603 = vld [vmem:[%s3598 + $0x10] sm:$0xf]
        %v3604 = vld [vmem:[%s3598 + $0x14] sm:$0xf]
        %v3605 = vld [vmem:[%s3598 + $0x18] sm:$0xf]
        %v3606 = vld [vmem:[%s3598 + $0x1c] sm:$0xf]
        %v3607 = vld [vmem:[%s3598 + $0x20] sm:$0xf]
        %v3608 = vld [vmem:[%s3598 + $0x24] sm:$0xf]
        %v3609 = vld [vmem:[%s3598 + $0x28] sm:$0xf]
        %v3610 = vld [vmem:[%s3598 + $0x2c] sm:$0xf]
        %v3611 = vld [vmem:[%s3598 + $0x30] sm:$0xf]
        %v3612 = vld [vmem:[%s3598 + $0x34] sm:$0xf]
        %v3613 = vld [vmem:[%s3598 + $0x38] sm:$0xf]
        %v3614 = vld [vmem:[%s3598 + $0x3c] sm:$0xf]
        %s3615 = scalar_lea.vmem [#allocation5], 1344
        %v3616 = vld [vmem:[%s3615] sm:$0xf]
        %v3617 = vld [vmem:[%s3615 + $0x4] sm:$0xf]
        %v3618 = vld [vmem:[%s3615 + $0x8] sm:$0xf]
        %v3619 = vld [vmem:[%s3615 + $0xc] sm:$0xf]
        %v3620 = vld [vmem:[%s3615 + $0x10] sm:$0xf]
        %v3621 = vld [vmem:[%s3615 + $0x14] sm:$0xf]
        %v3622 = vld [vmem:[%s3615 + $0x18] sm:$0xf]
        %v3623 = vld [vmem:[%s3615 + $0x1c] sm:$0xf]
        %v3624 = vld [vmem:[%s3615 + $0x20] sm:$0xf]
        %v3625 = vld [vmem:[%s3615 + $0x24] sm:$0xf]
        %v3626 = vld [vmem:[%s3615 + $0x28] sm:$0xf]
        %v3627 = vld [vmem:[%s3615 + $0x2c] sm:$0xf]
        %v3628 = vld [vmem:[%s3615 + $0x30] sm:$0xf]
        %v3629 = vld [vmem:[%s3615 + $0x34] sm:$0xf]
        %v3630 = vld [vmem:[%s3615 + $0x38] sm:$0xf]
        %v3631 = vld [vmem:[%s3615 + $0x3c] sm:$0xf]
        %v3648 = vunpack.c.l.b16 %v3616
        %v3649 = vunpack.c.l.b16 %v3617
        %v3650 = vunpack.c.l.b16 %v3618
        %v3651 = vunpack.c.l.b16 %v3619
        %v3652 = vunpack.c.l.b16 %v3620
        %v3653 = vunpack.c.l.b16 %v3621
        %v3654 = vunpack.c.l.b16 %v3622
        %v3655 = vunpack.c.l.b16 %v3623
        %v3656 = vunpack.c.l.b16 %v3624
        %v3657 = vunpack.c.l.b16 %v3625
        %v3658 = vunpack.c.l.b16 %v3626
        %v3659 = vunpack.c.l.b16 %v3627
        %v3660 = vunpack.c.l.b16 %v3628
        %v3661 = vunpack.c.l.b16 %v3629
        %v3662 = vunpack.c.l.b16 %v3630
        %v3663 = vunpack.c.l.b16 %v3631
        %v3664 = vpack.c.b16 %v3649, %v3648
        %v3665 = vpack.c.b16 %v3651, %v3650
        %v3666 = vpack.c.b16 %v3653, %v3652
        %v3667 = vpack.c.b16 %v3655, %v3654
        %v3668 = vpack.c.b16 %v3657, %v3656
        %v3669 = vpack.c.b16 %v3659, %v3658
        %v3670 = vpack.c.b16 %v3661, %v3660
        %v3671 = vpack.c.b16 %v3663, %v3662
        %3680 = vmatprep.subr.bf16.mxu0 0
        %3681 = vmatpush1.bf16.msra.mxu0 %v3664
        %3682 = vmatprep.subr.bf16.mxu0 0
        %3683 = vmatpush1.bf16.msra.mxu0 %v3665
        %3684 = vmatprep.subr.bf16.mxu0 0
        %3685 = vmatpush1.bf16.msra.mxu0 %v3666
        %3686 = vmatprep.subr.bf16.mxu0 0
        %3687 = vmatpush1.bf16.msra.mxu0 %v3667
        %3688 = vmatprep.subr.bf16.mxu0 0
        %3689 = vmatpush1.bf16.msra.mxu0 %v3668
        %3690 = vmatprep.subr.bf16.mxu0 0
        %3691 = vmatpush1.bf16.msra.mxu0 %v3669
        %3692 = vmatprep.subr.bf16.mxu0 0
        %3693 = vmatpush1.bf16.msra.mxu0 %v3670
        %3694 = vmatprep.subr.bf16.mxu0 0
        %3695 = vmatpush1.bf16.msra.mxu0 %v3671
        %3696 = vmatprep.subr.bf16.mxu0 0
        %3697 = vmatpush1.bf16.msra.mxu0 0
        %3698 = vmatprep.subr.bf16.mxu0 0
        %3699 = vmatpush1.bf16.msra.mxu0 0
        %3700 = vmatprep.subr.bf16.mxu0 0
        %3701 = vmatpush1.bf16.msra.mxu0 0
        %3702 = vmatprep.subr.bf16.mxu0 0
        %3703 = vmatpush1.bf16.msra.mxu0 0
        %3704 = vmatprep.subr.bf16.mxu0 0
        %3705 = vmatpush1.bf16.msra.mxu0 0
        %3706 = vmatprep.subr.bf16.mxu0 0
        %3707 = vmatpush1.bf16.msra.mxu0 0
        %3708 = vmatprep.subr.bf16.mxu0 0
        %3709 = vmatpush1.bf16.msra.mxu0 0
        %3710 = vmatprep.subr.bf16.mxu0 0
        %3711 = vmatpush1.bf16.msra.mxu0 0
        %3712 = vmatprep.mubr.bf16.mxu0 0
        %3713 = vmatmul.mubr.bf16.gmra.mrb[0].mxu0 %v605
        %v3714 = vpop.f32.mrb[0].mxu0
        %v3715 = vadd.f32 0.0, %v3714
        %v3716 = vpop.f32.mrb[0].mxu0
        %v3717 = vpop.f32.mrb[0].mxu0
        %v3718 = vadd.f32 0.0, %v3717
        %v3719 = vpop.f32.mrb[0].mxu0
        %3720 = vmatprep.mubr.bf16.mxu0 0
        %3721 = vmatmul.mubr.bf16.gmra.mrb[0].mxu0 %v606
        %v3722 = vpop.f32.mrb[0].mxu0
        %v3723 = vadd.f32 0.0, %v3722
        %v3724 = vpop.f32.mrb[0].mxu0
        %v3725 = vpop.f32.mrb[0].mxu0
        %v3726 = vadd.f32 0.0, %v3725
        %v3727 = vpop.f32.mrb[0].mxu0
        %3728 = vmatprep.mubr.bf16.mxu0 0
        %3729 = vmatmul.mubr.bf16.gmra.mrb[0].mxu0 %v607
        %v3730 = vpop.f32.mrb[0].mxu0
        %v3731 = vadd.f32 0.0, %v3730
        %v3732 = vpop.f32.mrb[0].mxu0
        %v3733 = vpop.f32.mrb[0].mxu0
        %v3734 = vadd.f32 0.0, %v3733
        %v3735 = vpop.f32.mrb[0].mxu0
        %3736 = vmatprep.mubr.bf16.mxu0 0
        %3737 = vmatmul.mubr.bf16.gmra.mrb[0].mxu0 %v608
        %v3738 = vpop.f32.mrb[0].mxu0
        %v3739 = vadd.f32 0.0, %v3738
        %v3740 = vpop.f32.mrb[0].mxu0
        %v3741 = vpop.f32.mrb[0].mxu0
        %v3742 = vadd.f32 0.0, %v3741
        %v3743 = vpop.f32.mrb[0].mxu0
        %3744 = vdwg.mxu0
        %v3761 = vunpack.c.l.b16 %v3599
        %v3762 = vunpack.c.l.b16 %v3600
        %v3763 = vunpack.c.l.b16 %v3601
        %v3764 = vunpack.c.l.b16 %v3602
        %v3765 = vunpack.c.l.b16 %v3603
        %v3766 = vunpack.c.l.b16 %v3604
        %v3767 = vunpack.c.l.b16 %v3605
        %v3768 = vunpack.c.l.b16 %v3606
        %v3769 = vunpack.c.l.b16 %v3607
        %v3770 = vunpack.c.l.b16 %v3608
        %v3771 = vunpack.c.l.b16 %v3609
        %v3772 = vunpack.c.l.b16 %v3610
        %v3773 = vunpack.c.l.b16 %v3611
        %v3774 = vunpack.c.l.b16 %v3612
        %v3775 = vunpack.c.l.b16 %v3613
        %v3776 = vunpack.c.l.b16 %v3614
        %v3777 = vpack.c.b16 %v3762, %v3761
        %v3778 = vpack.c.b16 %v3764, %v3763
        %v3779 = vpack.c.b16 %v3766, %v3765
        %v3780 = vpack.c.b16 %v3768, %v3767
        %v3781 = vpack.c.b16 %v3770, %v3769
        %v3782 = vpack.c.b16 %v3772, %v3771
        %v3783 = vpack.c.b16 %v3774, %v3773
        %v3784 = vpack.c.b16 %v3776, %v3775
        %3793 = vmatprep.subr.bf16.mxu0 0
        %3794 = vmatpush1.bf16.msra.mxu0 %v3777
        %3795 = vmatprep.subr.bf16.mxu0 0
        %3796 = vmatpush1.bf16.msra.mxu0 %v3778
        %3797 = vmatprep.subr.bf16.mxu0 0
        %3798 = vmatpush1.bf16.msra.mxu0 %v3779
        %3799 = vmatprep.subr.bf16.mxu0 0
        %3800 = vmatpush1.bf16.msra.mxu0 %v3780
        %3801 = vmatprep.subr.bf16.mxu0 0
        %3802 = vmatpush1.bf16.msra.mxu0 %v3781
        %3803 = vmatprep.subr.bf16.mxu0 0
        %3804 = vmatpush1.bf16.msra.mxu0 %v3782
        %3805 = vmatprep.subr.bf16.mxu0 0
        %3806 = vmatpush1.bf16.msra.mxu0 %v3783
        %3807 = vmatprep.subr.bf16.mxu0 0
        %3808 = vmatpush1.bf16.msra.mxu0 %v3784
        %3809 = vmatprep.subr.bf16.mxu0 0
        %3810 = vmatpush1.bf16.msra.mxu0 0
        %3811 = vmatprep.subr.bf16.mxu0 0
        %3812 = vmatpush1.bf16.msra.mxu0 0
        %3813 = vmatprep.subr.bf16.mxu0 0
        %3814 = vmatpush1.bf16.msra.mxu0 0
        %3815 = vmatprep.subr.bf16.mxu0 0
        %3816 = vmatpush1.bf16.msra.mxu0 0
        %3817 = vmatprep.subr.bf16.mxu0 0
        %3818 = vmatpush1.bf16.msra.mxu0 0
        %3819 = vmatprep.subr.bf16.mxu0 0
        %3820 = vmatpush1.bf16.msra.mxu0 0
        %3821 = vmatprep.subr.bf16.mxu0 0
        %3822 = vmatpush1.bf16.msra.mxu0 0
        %3823 = vmatprep.subr.bf16.mxu0 0
        %3824 = vmatpush1.bf16.msra.mxu0 0
        %3825 = vmatprep.mubr.bf16.mxu0 0
        %3826 = vmatmul.mubr.bf16.gmra.mrb[0].mxu0 %v742
        %v3827 = vpop.f32.mrb[0].mxu0
        %v3828 = vadd.f32 %v3715, %v3827
        %v3829 = vpop.f32.mrb[0].mxu0
        %v3830 = vpop.f32.mrb[0].mxu0
        %v3831 = vadd.f32 %v3718, %v3830
        %v3832 = vpop.f32.mrb[0].mxu0
        %3833 = vmatprep.mubr.bf16.mxu0 0
        %3834 = vmatmul.mubr.bf16.gmra.mrb[0].mxu0 %v743
        %v3835 = vpop.f32.mrb[0].mxu0
        %v3836 = vadd.f32 %v3723, %v3835
        %v3837 = vpop.f32.mrb[0].mxu0
        %v3838 = vpop.f32.mrb[0].mxu0
        %v3839 = vadd.f32 %v3726, %v3838
        %v3840 = vpop.f32.mrb[0].mxu0
        %3841 = vmatprep.mubr.bf16.mxu0 0
        %3842 = vmatmul.mubr.bf16.gmra.mrb[0].mxu0 %v744
        %v3843 = vpop.f32.mrb[0].mxu0
        %v3844 = vadd.f32 %v3731, %v3843
        %v3845 = vpop.f32.mrb[0].mxu0
        %v3846 = vpop.f32.mrb[0].mxu0
        %v3847 = vadd.f32 %v3734, %v3846
        %v3848 = vpop.f32.mrb[0].mxu0
        %3849 = vmatprep.mubr.bf16.mxu0 0
        %3850 = vmatmul.mubr.bf16.gmra.mrb[0].mxu0 %v745
        %v3851 = vpop.f32.mrb[0].mxu0
        %v3852 = vadd.f32 %v3739, %v3851
        %v3853 = vpop.f32.mrb[0].mxu0
        %v3854 = vpop.f32.mrb[0].mxu0
        %v3855 = vadd.f32 %v3742, %v3854
        %v3856 = vpop.f32.mrb[0].mxu0
        %3857 = vdwg.mxu0
        %s3858 = scalar_lea.vmem [#allocation5], 1536
        %v3859 = vld [vmem:[%s3858] sm:$0xf]
        %v3860 = vld [vmem:[%s3858 + $0x4] sm:$0xf]
        %v3861 = vld [vmem:[%s3858 + $0x8] sm:$0xf]
        %v3862 = vld [vmem:[%s3858 + $0xc] sm:$0xf]
        %v3863 = vld [vmem:[%s3858 + $0x10] sm:$0xf]
        %v3864 = vld [vmem:[%s3858 + $0x14] sm:$0xf]
        %v3865 = vld [vmem:[%s3858 + $0x18] sm:$0xf]
        %v3866 = vld [vmem:[%s3858 + $0x1c] sm:$0xf]
        %v3867 = vld [vmem:[%s3858 + $0x20] sm:$0xf]
        %v3868 = vld [vmem:[%s3858 + $0x24] sm:$0xf]
        %v3869 = vld [vmem:[%s3858 + $0x28] sm:$0xf]
        %v3870 = vld [vmem:[%s3858 + $0x2c] sm:$0xf]
        %v3871 = vld [vmem:[%s3858 + $0x30] sm:$0xf]
        %v3872 = vld [vmem:[%s3858 + $0x34] sm:$0xf]
        %v3873 = vld [vmem:[%s3858 + $0x38] sm:$0xf]
        %v3874 = vld [vmem:[%s3858 + $0x3c] sm:$0xf]
        %v3891 = vunpack.c.l.b16 %v3859
        %v3892 = vunpack.c.l.b16 %v3860
        %v3893 = vunpack.c.l.b16 %v3861
        %v3894 = vunpack.c.l.b16 %v3862
        %v3895 = vunpack.c.l.b16 %v3863
        %v3896 = vunpack.c.l.b16 %v3864
        %v3897 = vunpack.c.l.b16 %v3865
        %v3898 = vunpack.c.l.b16 %v3866
        %v3899 = vunpack.c.l.b16 %v3867
        %v3900 = vunpack.c.l.b16 %v3868
        %v3901 = vunpack.c.l.b16 %v3869
        %v3902 = vunpack.c.l.b16 %v3870
        %v3903 = vunpack.c.l.b16 %v3871
        %v3904 = vunpack.c.l.b16 %v3872
        %v3905 = vunpack.c.l.b16 %v3873
        %v3906 = vunpack.c.l.b16 %v3874
        %v3907 = vpack.c.b16 %v3892, %v3891
        %v3908 = vpack.c.b16 %v3894, %v3893
        %v3909 = vpack.c.b16 %v3896, %v3895
        %v3910 = vpack.c.b16 %v3898, %v3897
        %v3911 = vpack.c.b16 %v3900, %v3899
        %v3912 = vpack.c.b16 %v3902, %v3901
        %v3913 = vpack.c.b16 %v3904, %v3903
        %v3914 = vpack.c.b16 %v3906, %v3905
        %3923 = vmatprep.subr.bf16.mxu0 0
        %3924 = vmatpush1.bf16.msra.mxu0 %v3907
        %3925 = vmatprep.subr.bf16.mxu0 0
        %3926 = vmatpush1.bf16.msra.mxu0 %v3908
        %3927 = vmatprep.subr.bf16.mxu0 0
        %3928 = vmatpush1.bf16.msra.mxu0 %v3909
        %3929 = vmatprep.subr.bf16.mxu0 0
        %3930 = vmatpush1.bf16.msra.mxu0 %v3910
        %3931 = vmatprep.subr.bf16.mxu0 0
        %3932 = vmatpush1.bf16.msra.mxu0 %v3911
        %3933 = vmatprep.subr.bf16.mxu0 0
        %3934 = vmatpush1.bf16.msra.mxu0 %v3912
        %3935 = vmatprep.subr.bf16.mxu0 0
        %3936 = vmatpush1.bf16.msra.mxu0 %v3913
        %3937 = vmatprep.subr.bf16.mxu0 0
        %3938 = vmatpush1.bf16.msra.mxu0 %v3914
        %3939 = vmatprep.subr.bf16.mxu0 0
        %3940 = vmatpush1.bf16.msra.mxu0 0
        %3941 = vmatprep.subr.bf16.mxu0 0
        %3942 = vmatpush1.bf16.msra.mxu0 0
        %3943 = vmatprep.subr.bf16.mxu0 0
        %3944 = vmatpush1.bf16.msra.mxu0 0
        %3945 = vmatprep.subr.bf16.mxu0 0
        %3946 = vmatpush1.bf16.msra.mxu0 0
        %3947 = vmatprep.subr.bf16.mxu0 0
        %3948 = vmatpush1.bf16.msra.mxu0 0
        %3949 = vmatprep.subr.bf16.mxu0 0
        %3950 = vmatpush1.bf16.msra.mxu0 0
        %3951 = vmatprep.subr.bf16.mxu0 0
        %3952 = vmatpush1.bf16.msra.mxu0 0
        %3953 = vmatprep.subr.bf16.mxu0 0
        %3954 = vmatpush1.bf16.msra.mxu0 0
        %3955 = vmatprep.mubr.bf16.mxu0 0
        %3956 = vmatmul.mubr.bf16.gmra.mrb[0].mxu0 %v905
        %v3957 = vpop.f32.mrb[0].mxu0
        %v3958 = vadd.f32 0.0, %v3957
        %v3959 = vpop.f32.mrb[0].mxu0
        %v3960 = vpop.f32.mrb[0].mxu0
        %v3961 = vadd.f32 0.0, %v3960
        %v3962 = vpop.f32.mrb[0].mxu0
        %3963 = vmatprep.mubr.bf16.mxu0 0
        %3964 = vmatmul.mubr.bf16.gmra.mrb[0].mxu0 %v906
        %v3965 = vpop.f32.mrb[0].mxu0
        %v3966 = vadd.f32 0.0, %v3965
        %v3967 = vpop.f32.mrb[0].mxu0
        %v3968 = vpop.f32.mrb[0].mxu0
        %v3969 = vadd.f32 0.0, %v3968
        %v3970 = vpop.f32.mrb[0].mxu0
        %3971 = vmatprep.mubr.bf16.mxu0 0
        %3972 = vmatmul.mubr.bf16.gmra.mrb[0].mxu0 %v907
        %v3973 = vpop.f32.mrb[0].mxu0
        %v3974 = vadd.f32 0.0, %v3973
        %v3975 = vpop.f32.mrb[0].mxu0
        %v3976 = vpop.f32.mrb[0].mxu0
        %v3977 = vadd.f32 0.0, %v3976
        %v3978 = vpop.f32.mrb[0].mxu0
        %3979 = vmatprep.mubr.bf16.mxu0 0
        %3980 = vmatmul.mubr.bf16.gmra.mrb[0].mxu0 %v908
        %v3981 = vpop.f32.mrb[0].mxu0
        %v3982 = vadd.f32 0.0, %v3981
        %v3983 = vpop.f32.mrb[0].mxu0
        %v3984 = vpop.f32.mrb[0].mxu0
        %v3985 = vadd.f32 0.0, %v3984
        %v3986 = vpop.f32.mrb[0].mxu0
        %3987 = vdwg.mxu0
        %v3988 = vadd.f32 %v3828, %v3958
        %v3989 = vadd.f32 %v3831, %v3961
        %v3990 = vadd.f32 %v3836, %v3966
        %v3991 = vadd.f32 %v3839, %v3969
        %v3992 = vadd.f32 %v3844, %v3974
        %v3993 = vadd.f32 %v3847, %v3977
        %v3994 = vadd.f32 %v3852, %v3982
        %v3995 = vadd.f32 %v3855, %v3985
        %s3996 = scalar_lea.vmem [#allocation5], 1216
        %v3997 = vld [vmem:[%s3996] sm:$0xf]
        %v3998 = vld [vmem:[%s3996 + $0x4] sm:$0xf]
        %v3999 = vld [vmem:[%s3996 + $0x8] sm:$0xf]
        %v4000 = vld [vmem:[%s3996 + $0xc] sm:$0xf]
        %v4001 = vld [vmem:[%s3996 + $0x10] sm:$0xf]
        %v4002 = vld [vmem:[%s3996 + $0x14] sm:$0xf]
        %v4003 = vld [vmem:[%s3996 + $0x18] sm:$0xf]
        %v4004 = vld [vmem:[%s3996 + $0x1c] sm:$0xf]
        %v4005 = vld [vmem:[%s3996 + $0x20] sm:$0xf]
        %v4006 = vld [vmem:[%s3996 + $0x24] sm:$0xf]
        %v4007 = vld [vmem:[%s3996 + $0x28] sm:$0xf]
        %v4008 = vld [vmem:[%s3996 + $0x2c] sm:$0xf]
        %v4009 = vld [vmem:[%s3996 + $0x30] sm:$0xf]
        %v4010 = vld [vmem:[%s3996 + $0x34] sm:$0xf]
        %v4011 = vld [vmem:[%s3996 + $0x38] sm:$0xf]
        %v4012 = vld [vmem:[%s3996 + $0x3c] sm:$0xf]
        %v4029 = vunpack.c.l.b16 %v3997
        %v4030 = vunpack.c.l.b16 %v3998
        %v4031 = vunpack.c.l.b16 %v3999
        %v4032 = vunpack.c.l.b16 %v4000
        %v4033 = vunpack.c.l.b16 %v4001
        %v4034 = vunpack.c.l.b16 %v4002
        %v4035 = vunpack.c.l.b16 %v4003
        %v4036 = vunpack.c.l.b16 %v4004
        %v4037 = vunpack.c.l.b16 %v4005
        %v4038 = vunpack.c.l.b16 %v4006
        %v4039 = vunpack.c.l.b16 %v4007
        %v4040 = vunpack.c.l.b16 %v4008
        %v4041 = vunpack.c.l.b16 %v4009
        %v4042 = vunpack.c.l.b16 %v4010
        %v4043 = vunpack.c.l.b16 %v4011
        %v4044 = vunpack.c.l.b16 %v4012
        %v4045 = vpack.c.b16 %v4030, %v4029
        %v4046 = vpack.c.b16 %v4032, %v4031
        %v4047 = vpack.c.b16 %v4034, %v4033
        %v4048 = vpack.c.b16 %v4036, %v4035
        %v4049 = vpack.c.b16 %v4038, %v4037
        %v4050 = vpack.c.b16 %v4040, %v4039
        %v4051 = vpack.c.b16 %v4042, %v4041
        %v4052 = vpack.c.b16 %v4044, %v4043
        %4061 = vmatprep.subr.bf16.mxu0 0
        %4062 = vmatpush1.bf16.msra.mxu0 %v4045
        %4063 = vmatprep.subr.bf16.mxu0 0
        %4064 = vmatpush1.bf16.msra.mxu0 %v4046
        %4065 = vmatprep.subr.bf16.mxu0 0
        %4066 = vmatpush1.bf16.msra.mxu0 %v4047
        %4067 = vmatprep.subr.bf16.mxu0 0
        %4068 = vmatpush1.bf16.msra.mxu0 %v4048
        %4069 = vmatprep.subr.bf16.mxu0 0
        %4070 = vmatpush1.bf16.msra.mxu0 %v4049
        %4071 = vmatprep.subr.bf16.mxu0 0
        %4072 = vmatpush1.bf16.msra.mxu0 %v4050
        %4073 = vmatprep.subr.bf16.mxu0 0
        %4074 = vmatpush1.bf16.msra.mxu0 %v4051
        %4075 = vmatprep.subr.bf16.mxu0 0
        %4076 = vmatpush1.bf16.msra.mxu0 %v4052
        %4077 = vmatprep.subr.bf16.mxu0 0
        %4078 = vmatpush1.bf16.msra.mxu0 0
        %4079 = vmatprep.subr.bf16.mxu0 0
        %4080 = vmatpush1.bf16.msra.mxu0 0
        %4081 = vmatprep.subr.bf16.mxu0 0
        %4082 = vmatpush1.bf16.msra.mxu0 0
        %4083 = vmatprep.subr.bf16.mxu0 0
        %4084 = vmatpush1.bf16.msra.mxu0 0
        %4085 = vmatprep.subr.bf16.mxu0 0
        %4086 = vmatpush1.bf16.msra.mxu0 0
        %4087 = vmatprep.subr.bf16.mxu0 0
        %4088 = vmatpush1.bf16.msra.mxu0 0
        %4089 = vmatprep.subr.bf16.mxu0 0
        %4090 = vmatpush1.bf16.msra.mxu0 0
        %4091 = vmatprep.subr.bf16.mxu0 0
        %4092 = vmatpush1.bf16.msra.mxu0 0
        %4093 = vmatprep.mubr.bf16.mxu0 0
        %4094 = vmatmul.mubr.bf16.gmra.mrb[0].mxu0 %v1076
        %v4095 = vpop.f32.mrb[0].mxu0
        %v4096 = vadd.f32 0.0, %v4095
        %v4097 = vpop.f32.mrb[0].mxu0
        %v4098 = vpop.f32.mrb[0].mxu0
        %v4099 = vadd.f32 0.0, %v4098
        %v4100 = vpop.f32.mrb[0].mxu0
        %4101 = vmatprep.mubr.bf16.mxu0 0
        %4102 = vmatmul.mubr.bf16.gmra.mrb[0].mxu0 %v1077
        %v4103 = vpop.f32.mrb[0].mxu0
        %v4104 = vadd.f32 0.0, %v4103
        %v4105 = vpop.f32.mrb[0].mxu0
        %v4106 = vpop.f32.mrb[0].mxu0
        %v4107 = vadd.f32 0.0, %v4106
        %v4108 = vpop.f32.mrb[0].mxu0
        %4109 = vmatprep.mubr.bf16.mxu0 0
        %4110 = vmatmul.mubr.bf16.gmra.mrb[0].mxu0 %v1078
        %v4111 = vpop.f32.mrb[0].mxu0
        %v4112 = vadd.f32 0.0, %v4111
        %v4113 = vpop.f32.mrb[0].mxu0
        %v4114 = vpop.f32.mrb[0].mxu0
        %v4115 = vadd.f32 0.0, %v4114
        %v4116 = vpop.f32.mrb[0].mxu0
        %4117 = vmatprep.mubr.bf16.mxu0 0
        %4118 = vmatmul.mubr.bf16.gmra.mrb[0].mxu0 %v1079
        %v4119 = vpop.f32.mrb[0].mxu0
        %v4120 = vadd.f32 0.0, %v4119
        %v4121 = vpop.f32.mrb[0].mxu0
        %v4122 = vpop.f32.mrb[0].mxu0
        %v4123 = vadd.f32 0.0, %v4122
        %v4124 = vpop.f32.mrb[0].mxu0
        %4125 = vdwg.mxu0
        %v4126 = vadd.f32 %v3988, %v4096
        %v4127 = vadd.f32 %v3989, %v4099
        %v4128 = vadd.f32 %v3990, %v4104
        %v4129 = vadd.f32 %v3991, %v4107
        %v4130 = vadd.f32 %v3992, %v4112
        %v4131 = vadd.f32 %v3993, %v4115
        %v4132 = vadd.f32 %v3994, %v4120
        %v4133 = vadd.f32 %v3995, %v4123
        %s4134 = scalar_lea.vmem [#allocation5], 1408
        %v4135 = vld [vmem:[%s4134] sm:$0xf]
        %v4136 = vld [vmem:[%s4134 + $0x4] sm:$0xf]
        %v4137 = vld [vmem:[%s4134 + $0x8] sm:$0xf]
        %v4138 = vld [vmem:[%s4134 + $0xc] sm:$0xf]
        %v4139 = vld [vmem:[%s4134 + $0x10] sm:$0xf]
        %v4140 = vld [vmem:[%s4134 + $0x14] sm:$0xf]
        %v4141 = vld [vmem:[%s4134 + $0x18] sm:$0xf]
        %v4142 = vld [vmem:[%s4134 + $0x1c] sm:$0xf]
        %v4143 = vld [vmem:[%s4134 + $0x20] sm:$0xf]
        %v4144 = vld [vmem:[%s4134 + $0x24] sm:$0xf]
        %v4145 = vld [vmem:[%s4134 + $0x28] sm:$0xf]
        %v4146 = vld [vmem:[%s4134 + $0x2c] sm:$0xf]
        %v4147 = vld [vmem:[%s4134 + $0x30] sm:$0xf]
        %v4148 = vld [vmem:[%s4134 + $0x34] sm:$0xf]
        %v4149 = vld [vmem:[%s4134 + $0x38] sm:$0xf]
        %v4150 = vld [vmem:[%s4134 + $0x3c] sm:$0xf]
        %v4167 = vunpack.c.l.b16 %v4135
        %v4168 = vunpack.c.l.b16 %v4136
        %v4169 = vunpack.c.l.b16 %v4137
        %v4170 = vunpack.c.l.b16 %v4138
        %v4171 = vunpack.c.l.b16 %v4139
        %v4172 = vunpack.c.l.b16 %v4140
        %v4173 = vunpack.c.l.b16 %v4141
        %v4174 = vunpack.c.l.b16 %v4142
        %v4175 = vunpack.c.l.b16 %v4143
        %v4176 = vunpack.c.l.b16 %v4144
        %v4177 = vunpack.c.l.b16 %v4145
        %v4178 = vunpack.c.l.b16 %v4146
        %v4179 = vunpack.c.l.b16 %v4147
        %v4180 = vunpack.c.l.b16 %v4148
        %v4181 = vunpack.c.l.b16 %v4149
        %v4182 = vunpack.c.l.b16 %v4150
        %v4183 = vpack.c.b16 %v4168, %v4167
        %v4184 = vpack.c.b16 %v4170, %v4169
        %v4185 = vpack.c.b16 %v4172, %v4171
        %v4186 = vpack.c.b16 %v4174, %v4173
        %v4187 = vpack.c.b16 %v4176, %v4175
        %v4188 = vpack.c.b16 %v4178, %v4177
        %v4189 = vpack.c.b16 %v4180, %v4179
        %v4190 = vpack.c.b16 %v4182, %v4181
        %4199 = vmatprep.subr.bf16.mxu0 0
        %4200 = vmatpush1.bf16.msra.mxu0 %v4183
        %4201 = vmatprep.subr.bf16.mxu0 0
        %4202 = vmatpush1.bf16.msra.mxu0 %v4184
        %4203 = vmatprep.subr.bf16.mxu0 0
        %4204 = vmatpush1.bf16.msra.mxu0 %v4185
        %4205 = vmatprep.subr.bf16.mxu0 0
        %4206 = vmatpush1.bf16.msra.mxu0 %v4186
        %4207 = vmatprep.subr.bf16.mxu0 0
        %4208 = vmatpush1.bf16.msra.mxu0 %v4187
        %4209 = vmatprep.subr.bf16.mxu0 0
        %4210 = vmatpush1.bf16.msra.mxu0 %v4188
        %4211 = vmatprep.subr.bf16.mxu0 0
        %4212 = vmatpush1.bf16.msra.mxu0 %v4189
        %4213 = vmatprep.subr.bf16.mxu0 0
        %4214 = vmatpush1.bf16.msra.mxu0 %v4190
        %4215 = vmatprep.subr.bf16.mxu0 0
        %4216 = vmatpush1.bf16.msra.mxu0 0
        %4217 = vmatprep.subr.bf16.mxu0 0
        %4218 = vmatpush1.bf16.msra.mxu0 0
        %4219 = vmatprep.subr.bf16.mxu0 0
        %4220 = vmatpush1.bf16.msra.mxu0 0
        %4221 = vmatprep.subr.bf16.mxu0 0
        %4222 = vmatpush1.bf16.msra.mxu0 0
        %4223 = vmatprep.subr.bf16.mxu0 0
        %4224 = vmatpush1.bf16.msra.mxu0 0
        %4225 = vmatprep.subr.bf16.mxu0 0
        %4226 = vmatpush1.bf16.msra.mxu0 0
        %4227 = vmatprep.subr.bf16.mxu0 0
        %4228 = vmatpush1.bf16.msra.mxu0 0
        %4229 = vmatprep.subr.bf16.mxu0 0
        %4230 = vmatpush1.bf16.msra.mxu0 0
        %4231 = vmatprep.mubr.bf16.mxu0 0
        %4232 = vmatmul.mubr.bf16.gmra.mrb[0].mxu0 %v1246
        %v4233 = vpop.f32.mrb[0].mxu0
        %v4234 = vadd.f32 0.0, %v4233
        %v4235 = vpop.f32.mrb[0].mxu0
        %v4236 = vpop.f32.mrb[0].mxu0
        %v4237 = vadd.f32 0.0, %v4236
        %v4238 = vpop.f32.mrb[0].mxu0
        %4239 = vmatprep.mubr.bf16.mxu0 0
        %4240 = vmatmul.mubr.bf16.gmra.mrb[0].mxu0 %v1247
        %v4241 = vpop.f32.mrb[0].mxu0
        %v4242 = vadd.f32 0.0, %v4241
        %v4243 = vpop.f32.mrb[0].mxu0
        %v4244 = vpop.f32.mrb[0].mxu0
        %v4245 = vadd.f32 0.0, %v4244
        %v4246 = vpop.f32.mrb[0].mxu0
        %4247 = vmatprep.mubr.bf16.mxu0 0
        %4248 = vmatmul.mubr.bf16.gmra.mrb[0].mxu0 %v1248
        %v4249 = vpop.f32.mrb[0].mxu0
        %v4250 = vadd.f32 0.0, %v4249
        %v4251 = vpop.f32.mrb[0].mxu0
        %v4252 = vpop.f32.mrb[0].mxu0
        %v4253 = vadd.f32 0.0, %v4252
        %v4254 = vpop.f32.mrb[0].mxu0
        %4255 = vmatprep.mubr.bf16.mxu0 0
        %4256 = vmatmul.mubr.bf16.gmra.mrb[0].mxu0 %v1249
        %v4257 = vpop.f32.mrb[0].mxu0
        %v4258 = vadd.f32 0.0, %v4257
        %v4259 = vpop.f32.mrb[0].mxu0
        %v4260 = vpop.f32.mrb[0].mxu0
        %v4261 = vadd.f32 0.0, %v4260
        %v4262 = vpop.f32.mrb[0].mxu0
        %4263 = vdwg.mxu0
        %v4264 = vadd.f32 %v4126, %v4234
        %v4265 = vadd.f32 %v4127, %v4237
        %v4266 = vadd.f32 %v4128, %v4242
        %v4267 = vadd.f32 %v4129, %v4245
        %v4268 = vadd.f32 %v4130, %v4250
        %v4269 = vadd.f32 %v4131, %v4253
        %v4270 = vadd.f32 %v4132, %v4258
        %v4271 = vadd.f32 %v4133, %v4261
        %s4272 = scalar_lea.vmem [#allocation5], 1600
        %v4273 = vld [vmem:[%s4272] sm:$0xf]
        %v4274 = vld [vmem:[%s4272 + $0x4] sm:$0xf]
        %v4275 = vld [vmem:[%s4272 + $0x8] sm:$0xf]
        %v4276 = vld [vmem:[%s4272 + $0xc] sm:$0xf]
        %v4277 = vld [vmem:[%s4272 + $0x10] sm:$0xf]
        %v4278 = vld [vmem:[%s4272 + $0x14] sm:$0xf]
        %v4279 = vld [vmem:[%s4272 + $0x18] sm:$0xf]
        %v4280 = vld [vmem:[%s4272 + $0x1c] sm:$0xf]
        %v4281 = vld [vmem:[%s4272 + $0x20] sm:$0xf]
        %v4282 = vld [vmem:[%s4272 + $0x24] sm:$0xf]
        %v4283 = vld [vmem:[%s4272 + $0x28] sm:$0xf]
        %v4284 = vld [vmem:[%s4272 + $0x2c] sm:$0xf]
        %v4285 = vld [vmem:[%s4272 + $0x30] sm:$0xf]
        %v4286 = vld [vmem:[%s4272 + $0x34] sm:$0xf]
        %v4287 = vld [vmem:[%s4272 + $0x38] sm:$0xf]
        %v4288 = vld [vmem:[%s4272 + $0x3c] sm:$0xf]
        %v4305 = vunpack.c.l.b16 %v4273
        %v4306 = vunpack.c.l.b16 %v4274
        %v4307 = vunpack.c.l.b16 %v4275
        %v4308 = vunpack.c.l.b16 %v4276
        %v4309 = vunpack.c.l.b16 %v4277
        %v4310 = vunpack.c.l.b16 %v4278
        %v4311 = vunpack.c.l.b16 %v4279
        %v4312 = vunpack.c.l.b16 %v4280
        %v4313 = vunpack.c.l.b16 %v4281
        %v4314 = vunpack.c.l.b16 %v4282
        %v4315 = vunpack.c.l.b16 %v4283
        %v4316 = vunpack.c.l.b16 %v4284
        %v4317 = vunpack.c.l.b16 %v4285
        %v4318 = vunpack.c.l.b16 %v4286
        %v4319 = vunpack.c.l.b16 %v4287
        %v4320 = vunpack.c.l.b16 %v4288
        %v4321 = vpack.c.b16 %v4306, %v4305
        %v4322 = vpack.c.b16 %v4308, %v4307
        %v4323 = vpack.c.b16 %v4310, %v4309
        %v4324 = vpack.c.b16 %v4312, %v4311
        %v4325 = vpack.c.b16 %v4314, %v4313
        %v4326 = vpack.c.b16 %v4316, %v4315
        %v4327 = vpack.c.b16 %v4318, %v4317
        %v4328 = vpack.c.b16 %v4320, %v4319
        %4337 = vmatprep.subr.bf16.mxu0 0
        %4338 = vmatpush1.bf16.msra.mxu0 %v4321
        %4339 = vmatprep.subr.bf16.mxu0 0
        %4340 = vmatpush1.bf16.msra.mxu0 %v4322
        %4341 = vmatprep.subr.bf16.mxu0 0
        %4342 = vmatpush1.bf16.msra.mxu0 %v4323
        %4343 = vmatprep.subr.bf16.mxu0 0
        %4344 = vmatpush1.bf16.msra.mxu0 %v4324
        %4345 = vmatprep.subr.bf16.mxu0 0
        %4346 = vmatpush1.bf16.msra.mxu0 %v4325
        %4347 = vmatprep.subr.bf16.mxu0 0
        %4348 = vmatpush1.bf16.msra.mxu0 %v4326
        %4349 = vmatprep.subr.bf16.mxu0 0
        %4350 = vmatpush1.bf16.msra.mxu0 %v4327
        %4351 = vmatprep.subr.bf16.mxu0 0
        %4352 = vmatpush1.bf16.msra.mxu0 %v4328
        %4353 = vmatprep.subr.bf16.mxu0 0
        %4354 = vmatpush1.bf16.msra.mxu0 0
        %4355 = vmatprep.subr.bf16.mxu0 0
        %4356 = vmatpush1.bf16.msra.mxu0 0
        %4357 = vmatprep.subr.bf16.mxu0 0
        %4358 = vmatpush1.bf16.msra.mxu0 0
        %4359 = vmatprep.subr.bf16.mxu0 0
        %4360 = vmatpush1.bf16.msra.mxu0 0
        %4361 = vmatprep.subr.bf16.mxu0 0
        %4362 = vmatpush1.bf16.msra.mxu0 0
        %4363 = vmatprep.subr.bf16.mxu0 0
        %4364 = vmatpush1.bf16.msra.mxu0 0
        %4365 = vmatprep.subr.bf16.mxu0 0
        %4366 = vmatpush1.bf16.msra.mxu0 0
        %4367 = vmatprep.subr.bf16.mxu0 0
        %4368 = vmatpush1.bf16.msra.mxu0 0
        %4369 = vmatprep.mubr.bf16.mxu0 0
        %4370 = vmatmul.mubr.bf16.gmra.mrb[0].mxu0 %v1417
        %v4371 = vpop.f32.mrb[0].mxu0
        %v4372 = vadd.f32 0.0, %v4371
        %v4373 = vpop.f32.mrb[0].mxu0
        %v4374 = vpop.f32.mrb[0].mxu0
        %v4375 = vadd.f32 0.0, %v4374
        %v4376 = vpop.f32.mrb[0].mxu0
        %4377 = vmatprep.mubr.bf16.mxu0 0
        %4378 = vmatmul.mubr.bf16.gmra.mrb[0].mxu0 %v1418
        %v4379 = vpop.f32.mrb[0].mxu0
        %v4380 = vadd.f32 0.0, %v4379
        %v4381 = vpop.f32.mrb[0].mxu0
        %v4382 = vpop.f32.mrb[0].mxu0
        %v4383 = vadd.f32 0.0, %v4382
        %v4384 = vpop.f32.mrb[0].mxu0
        %4385 = vmatprep.mubr.bf16.mxu0 0
        %4386 = vmatmul.mubr.bf16.gmra.mrb[0].mxu0 %v1419
        %v4387 = vpop.f32.mrb[0].mxu0
        %v4388 = vadd.f32 0.0, %v4387
        %v4389 = vpop.f32.mrb[0].mxu0
        %v4390 = vpop.f32.mrb[0].mxu0
        %v4391 = vadd.f32 0.0, %v4390
        %v4392 = vpop.f32.mrb[0].mxu0
        %4393 = vmatprep.mubr.bf16.mxu0 0
        %4394 = vmatmul.mubr.bf16.gmra.mrb[0].mxu0 %v1420
        %v4395 = vpop.f32.mrb[0].mxu0
        %v4396 = vadd.f32 0.0, %v4395
        %v4397 = vpop.f32.mrb[0].mxu0
        %v4398 = vpop.f32.mrb[0].mxu0
        %v4399 = vadd.f32 0.0, %v4398
        %v4400 = vpop.f32.mrb[0].mxu0
        %4401 = vdwg.mxu0
        %v4402 = vadd.f32 %v4264, %v4372
        %v4403 = vadd.f32 %v4265, %v4375
        %v4404 = vadd.f32 %v4266, %v4380
        %v4405 = vadd.f32 %v4267, %v4383
        %v4406 = vadd.f32 %v4268, %v4388
        %v4407 = vadd.f32 %v4269, %v4391
        %v4408 = vadd.f32 %v4270, %v4396
        %v4409 = vadd.f32 %v4271, %v4399
        %s4410 = scalar_lea.vmem [#allocation5], 1280
        %v4411 = vld [vmem:[%s4410] sm:$0xf]
        %v4412 = vld [vmem:[%s4410 + $0x4] sm:$0xf]
        %v4413 = vld [vmem:[%s4410 + $0x8] sm:$0xf]
        %v4414 = vld [vmem:[%s4410 + $0xc] sm:$0xf]
        %v4415 = vld [vmem:[%s4410 + $0x10] sm:$0xf]
        %v4416 = vld [vmem:[%s4410 + $0x14] sm:$0xf]
        %v4417 = vld [vmem:[%s4410 + $0x18] sm:$0xf]
        %v4418 = vld [vmem:[%s4410 + $0x1c] sm:$0xf]
        %v4419 = vld [vmem:[%s4410 + $0x20] sm:$0xf]
        %v4420 = vld [vmem:[%s4410 + $0x24] sm:$0xf]
        %v4421 = vld [vmem:[%s4410 + $0x28] sm:$0xf]
        %v4422 = vld [vmem:[%s4410 + $0x2c] sm:$0xf]
        %v4423 = vld [vmem:[%s4410 + $0x30] sm:$0xf]
        %v4424 = vld [vmem:[%s4410 + $0x34] sm:$0xf]
        %v4425 = vld [vmem:[%s4410 + $0x38] sm:$0xf]
        %v4426 = vld [vmem:[%s4410 + $0x3c] sm:$0xf]
        %v4443 = vunpack.c.l.b16 %v4411
        %v4444 = vunpack.c.l.b16 %v4412
        %v4445 = vunpack.c.l.b16 %v4413
        %v4446 = vunpack.c.l.b16 %v4414
        %v4447 = vunpack.c.l.b16 %v4415
        %v4448 = vunpack.c.l.b16 %v4416
        %v4449 = vunpack.c.l.b16 %v4417
        %v4450 = vunpack.c.l.b16 %v4418
        %v4451 = vunpack.c.l.b16 %v4419
        %v4452 = vunpack.c.l.b16 %v4420
        %v4453 = vunpack.c.l.b16 %v4421
        %v4454 = vunpack.c.l.b16 %v4422
        %v4455 = vunpack.c.l.b16 %v4423
        %v4456 = vunpack.c.l.b16 %v4424
        %v4457 = vunpack.c.l.b16 %v4425
        %v4458 = vunpack.c.l.b16 %v4426
        %v4459 = vpack.c.b16 %v4444, %v4443
        %v4460 = vpack.c.b16 %v4446, %v4445
        %v4461 = vpack.c.b16 %v4448, %v4447
        %v4462 = vpack.c.b16 %v4450, %v4449
        %v4463 = vpack.c.b16 %v4452, %v4451
        %v4464 = vpack.c.b16 %v4454, %v4453
        %v4465 = vpack.c.b16 %v4456, %v4455
        %v4466 = vpack.c.b16 %v4458, %v4457
        %4475 = vmatprep.subr.bf16.mxu0 0
        %4476 = vmatpush1.bf16.msra.mxu0 %v4459
        %4477 = vmatprep.subr.bf16.mxu0 0
        %4478 = vmatpush1.bf16.msra.mxu0 %v4460
        %4479 = vmatprep.subr.bf16.mxu0 0
        %4480 = vmatpush1.bf16.msra.mxu0 %v4461
        %4481 = vmatprep.subr.bf16.mxu0 0
        %4482 = vmatpush1.bf16.msra.mxu0 %v4462
        %4483 = vmatprep.subr.bf16.mxu0 0
        %4484 = vmatpush1.bf16.msra.mxu0 %v4463
        %4485 = vmatprep.subr.bf16.mxu0 0
        %4486 = vmatpush1.bf16.msra.mxu0 %v4464
        %4487 = vmatprep.subr.bf16.mxu0 0
        %4488 = vmatpush1.bf16.msra.mxu0 %v4465
        %4489 = vmatprep.subr.bf16.mxu0 0
        %4490 = vmatpush1.bf16.msra.mxu0 %v4466
        %4491 = vmatprep.subr.bf16.mxu0 0
        %4492 = vmatpush1.bf16.msra.mxu0 0
        %4493 = vmatprep.subr.bf16.mxu0 0
        %4494 = vmatpush1.bf16.msra.mxu0 0
        %4495 = vmatprep.subr.bf16.mxu0 0
        %4496 = vmatpush1.bf16.msra.mxu0 0
        %4497 = vmatprep.subr.bf16.mxu0 0
        %4498 = vmatpush1.bf16.msra.mxu0 0
        %4499 = vmatprep.subr.bf16.mxu0 0
        %4500 = vmatpush1.bf16.msra.mxu0 0
        %4501 = vmatprep.subr.bf16.mxu0 0
        %4502 = vmatpush1.bf16.msra.mxu0 0
        %4503 = vmatprep.subr.bf16.mxu0 0
        %4504 = vmatpush1.bf16.msra.mxu0 0
        %4505 = vmatprep.subr.bf16.mxu0 0
        %4506 = vmatpush1.bf16.msra.mxu0 0
        %4507 = vmatprep.mubr.bf16.mxu0 0
        %4508 = vmatmul.mubr.bf16.gmra.mrb[0].mxu0 %v1588
        %v4509 = vpop.f32.mrb[0].mxu0
        %v4510 = vadd.f32 0.0, %v4509
        %v4511 = vpop.f32.mrb[0].mxu0
        %v4512 = vpop.f32.mrb[0].mxu0
        %v4513 = vadd.f32 0.0, %v4512
        %v4514 = vpop.f32.mrb[0].mxu0
        %4515 = vmatprep.mubr.bf16.mxu0 0
        %4516 = vmatmul.mubr.bf16.gmra.mrb[0].mxu0 %v1589
        %v4517 = vpop.f32.mrb[0].mxu0
        %v4518 = vadd.f32 0.0, %v4517
        %v4519 = vpop.f32.mrb[0].mxu0
        %v4520 = vpop.f32.mrb[0].mxu0
        %v4521 = vadd.f32 0.0, %v4520
        %v4522 = vpop.f32.mrb[0].mxu0
        %4523 = vmatprep.mubr.bf16.mxu0 0
        %4524 = vmatmul.mubr.bf16.gmra.mrb[0].mxu0 %v1590
        %v4525 = vpop.f32.mrb[0].mxu0
        %v4526 = vadd.f32 0.0, %v4525
        %v4527 = vpop.f32.mrb[0].mxu0
        %v4528 = vpop.f32.mrb[0].mxu0
        %v4529 = vadd.f32 0.0, %v4528
        %v4530 = vpop.f32.mrb[0].mxu0
        %4531 = vmatprep.mubr.bf16.mxu0 0
        %4532 = vmatmul.mubr.bf16.gmra.mrb[0].mxu0 %v1591
        %v4533 = vpop.f32.mrb[0].mxu0
        %v4534 = vadd.f32 0.0, %v4533
        %v4535 = vpop.f32.mrb[0].mxu0
        %v4536 = vpop.f32.mrb[0].mxu0
        %v4537 = vadd.f32 0.0, %v4536
        %v4538 = vpop.f32.mrb[0].mxu0
        %4539 = vdwg.mxu0
        %v4540 = vadd.f32 %v4402, %v4510
        %v4541 = vadd.f32 %v4403, %v4513
        %v4542 = vadd.f32 %v4404, %v4518
        %v4543 = vadd.f32 %v4405, %v4521
        %v4544 = vadd.f32 %v4406, %v4526
        %v4545 = vadd.f32 %v4407, %v4529
        %v4546 = vadd.f32 %v4408, %v4534
        %v4547 = vadd.f32 %v4409, %v4537
        %s4548 = scalar_lea.vmem [#allocation5], 1472
        %v4549 = vld [vmem:[%s4548] sm:$0xf]
        %v4550 = vld [vmem:[%s4548 + $0x4] sm:$0xf]
        %v4551 = vld [vmem:[%s4548 + $0x8] sm:$0xf]
        %v4552 = vld [vmem:[%s4548 + $0xc] sm:$0xf]
        %v4553 = vld [vmem:[%s4548 + $0x10] sm:$0xf]
        %v4554 = vld [vmem:[%s4548 + $0x14] sm:$0xf]
        %v4555 = vld [vmem:[%s4548 + $0x18] sm:$0xf]
        %v4556 = vld [vmem:[%s4548 + $0x1c] sm:$0xf]
        %v4557 = vld [vmem:[%s4548 + $0x20] sm:$0xf]
        %v4558 = vld [vmem:[%s4548 + $0x24] sm:$0xf]
        %v4559 = vld [vmem:[%s4548 + $0x28] sm:$0xf]
        %v4560 = vld [vmem:[%s4548 + $0x2c] sm:$0xf]
        %v4561 = vld [vmem:[%s4548 + $0x30] sm:$0xf]
        %v4562 = vld [vmem:[%s4548 + $0x34] sm:$0xf]
        %v4563 = vld [vmem:[%s4548 + $0x38] sm:$0xf]
        %v4564 = vld [vmem:[%s4548 + $0x3c] sm:$0xf]
        %v4581 = vunpack.c.l.b16 %v4549
        %v4582 = vunpack.c.l.b16 %v4550
        %v4583 = vunpack.c.l.b16 %v4551
        %v4584 = vunpack.c.l.b16 %v4552
        %v4585 = vunpack.c.l.b16 %v4553
        %v4586 = vunpack.c.l.b16 %v4554
        %v4587 = vunpack.c.l.b16 %v4555
        %v4588 = vunpack.c.l.b16 %v4556
        %v4589 = vunpack.c.l.b16 %v4557
        %v4590 = vunpack.c.l.b16 %v4558
        %v4591 = vunpack.c.l.b16 %v4559
        %v4592 = vunpack.c.l.b16 %v4560
        %v4593 = vunpack.c.l.b16 %v4561
        %v4594 = vunpack.c.l.b16 %v4562
        %v4595 = vunpack.c.l.b16 %v4563
        %v4596 = vunpack.c.l.b16 %v4564
        %v4597 = vpack.c.b16 %v4582, %v4581
        %v4598 = vpack.c.b16 %v4584, %v4583
        %v4599 = vpack.c.b16 %v4586, %v4585
        %v4600 = vpack.c.b16 %v4588, %v4587
        %v4601 = vpack.c.b16 %v4590, %v4589
        %v4602 = vpack.c.b16 %v4592, %v4591
        %v4603 = vpack.c.b16 %v4594, %v4593
        %v4604 = vpack.c.b16 %v4596, %v4595
        %4613 = vmatprep.subr.bf16.mxu0 0
        %4614 = vmatpush1.bf16.msra.mxu0 %v4597
        %4615 = vmatprep.subr.bf16.mxu0 0
        %4616 = vmatpush1.bf16.msra.mxu0 %v4598
        %4617 = vmatprep.subr.bf16.mxu0 0
        %4618 = vmatpush1.bf16.msra.mxu0 %v4599
        %4619 = vmatprep.subr.bf16.mxu0 0
        %4620 = vmatpush1.bf16.msra.mxu0 %v4600
        %4621 = vmatprep.subr.bf16.mxu0 0
        %4622 = vmatpush1.bf16.msra.mxu0 %v4601
        %4623 = vmatprep.subr.bf16.mxu0 0
        %4624 = vmatpush1.bf16.msra.mxu0 %v4602
        %4625 = vmatprep.subr.bf16.mxu0 0
        %4626 = vmatpush1.bf16.msra.mxu0 %v4603
        %4627 = vmatprep.subr.bf16.mxu0 0
        %4628 = vmatpush1.bf16.msra.mxu0 %v4604
        %4629 = vmatprep.subr.bf16.mxu0 0
        %4630 = vmatpush1.bf16.msra.mxu0 0
        %4631 = vmatprep.subr.bf16.mxu0 0
        %4632 = vmatpush1.bf16.msra.mxu0 0
        %4633 = vmatprep.subr.bf16.mxu0 0
        %4634 = vmatpush1.bf16.msra.mxu0 0
        %4635 = vmatprep.subr.bf16.mxu0 0
        %4636 = vmatpush1.bf16.msra.mxu0 0
        %4637 = vmatprep.subr.bf16.mxu0 0
        %4638 = vmatpush1.bf16.msra.mxu0 0
        %4639 = vmatprep.subr.bf16.mxu0 0
        %4640 = vmatpush1.bf16.msra.mxu0 0
        %4641 = vmatprep.subr.bf16.mxu0 0
        %4642 = vmatpush1.bf16.msra.mxu0 0
        %4643 = vmatprep.subr.bf16.mxu0 0
        %4644 = vmatpush1.bf16.msra.mxu0 0
        %4645 = vmatprep.mubr.bf16.mxu0 0
        %4646 = vmatmul.mubr.bf16.gmra.mrb[0].mxu0 %v1758
        %v4647 = vpop.f32.mrb[0].mxu0
        %v4648 = vadd.f32 0.0, %v4647
        %v4649 = vpop.f32.mrb[0].mxu0
        %v4650 = vpop.f32.mrb[0].mxu0
        %v4651 = vadd.f32 0.0, %v4650
        %v4652 = vpop.f32.mrb[0].mxu0
        %4653 = vmatprep.mubr.bf16.mxu0 0
        %4654 = vmatmul.mubr.bf16.gmra.mrb[0].mxu0 %v1759
        %v4655 = vpop.f32.mrb[0].mxu0
        %v4656 = vadd.f32 0.0, %v4655
        %v4657 = vpop.f32.mrb[0].mxu0
        %v4658 = vpop.f32.mrb[0].mxu0
        %v4659 = vadd.f32 0.0, %v4658
        %v4660 = vpop.f32.mrb[0].mxu0
        %4661 = vmatprep.mubr.bf16.mxu0 0
        %4662 = vmatmul.mubr.bf16.gmra.mrb[0].mxu0 %v1760
        %v4663 = vpop.f32.mrb[0].mxu0
        %v4664 = vadd.f32 0.0, %v4663
        %v4665 = vpop.f32.mrb[0].mxu0
        %v4666 = vpop.f32.mrb[0].mxu0
        %v4667 = vadd.f32 0.0, %v4666
        %v4668 = vpop.f32.mrb[0].mxu0
        %4669 = vmatprep.mubr.bf16.mxu0 0
        %4670 = vmatmul.mubr.bf16.gmra.mrb[0].mxu0 %v1761
        %v4671 = vpop.f32.mrb[0].mxu0
        %v4672 = vadd.f32 0.0, %v4671
        %v4673 = vpop.f32.mrb[0].mxu0
        %v4674 = vpop.f32.mrb[0].mxu0
        %v4675 = vadd.f32 0.0, %v4674
        %v4676 = vpop.f32.mrb[0].mxu0
        %4677 = vdwg.mxu0
        %v4678 = vadd.f32 %v4540, %v4648
        %v4679 = vadd.f32 %v4541, %v4651
        %v4680 = vadd.f32 %v4542, %v4656
        %v4681 = vadd.f32 %v4543, %v4659
        %v4682 = vadd.f32 %v4544, %v4664
        %v4683 = vadd.f32 %v4545, %v4667
        %v4684 = vadd.f32 %v4546, %v4672
        %v4685 = vadd.f32 %v4547, %v4675
        %s4686 = scalar_lea.vmem [#allocation5], 1664
        %v4687 = vld [vmem:[%s4686] sm:$0xf]
        %v4688 = vld [vmem:[%s4686 + $0x4] sm:$0xf]
        %v4689 = vld [vmem:[%s4686 + $0x8] sm:$0xf]
        %v4690 = vld [vmem:[%s4686 + $0xc] sm:$0xf]
        %v4691 = vld [vmem:[%s4686 + $0x10] sm:$0xf]
        %v4692 = vld [vmem:[%s4686 + $0x14] sm:$0xf]
        %v4693 = vld [vmem:[%s4686 + $0x18] sm:$0xf]
        %v4694 = vld [vmem:[%s4686 + $0x1c] sm:$0xf]
        %v4695 = vld [vmem:[%s4686 + $0x20] sm:$0xf]
        %v4696 = vld [vmem:[%s4686 + $0x24] sm:$0xf]
        %v4697 = vld [vmem:[%s4686 + $0x28] sm:$0xf]
        %v4698 = vld [vmem:[%s4686 + $0x2c] sm:$0xf]
        %v4699 = vld [vmem:[%s4686 + $0x30] sm:$0xf]
        %v4700 = vld [vmem:[%s4686 + $0x34] sm:$0xf]
        %v4701 = vld [vmem:[%s4686 + $0x38] sm:$0xf]
        %v4702 = vld [vmem:[%s4686 + $0x3c] sm:$0xf]
        %v4719 = vunpack.c.l.b16 %v4687
        %v4720 = vunpack.c.l.b16 %v4688
        %v4721 = vunpack.c.l.b16 %v4689
        %v4722 = vunpack.c.l.b16 %v4690
        %v4723 = vunpack.c.l.b16 %v4691
        %v4724 = vunpack.c.l.b16 %v4692
        %v4725 = vunpack.c.l.b16 %v4693
        %v4726 = vunpack.c.l.b16 %v4694
        %v4727 = vunpack.c.l.b16 %v4695
        %v4728 = vunpack.c.l.b16 %v4696
        %v4729 = vunpack.c.l.b16 %v4697
        %v4730 = vunpack.c.l.b16 %v4698
        %v4731 = vunpack.c.l.b16 %v4699
        %v4732 = vunpack.c.l.b16 %v4700
        %v4733 = vunpack.c.l.b16 %v4701
        %v4734 = vunpack.c.l.b16 %v4702
        %v4735 = vpack.c.b16 %v4720, %v4719
        %v4736 = vpack.c.b16 %v4722, %v4721
        %v4737 = vpack.c.b16 %v4724, %v4723
        %v4738 = vpack.c.b16 %v4726, %v4725
        %v4739 = vpack.c.b16 %v4728, %v4727
        %v4740 = vpack.c.b16 %v4730, %v4729
        %v4741 = vpack.c.b16 %v4732, %v4731
        %v4742 = vpack.c.b16 %v4734, %v4733
        %4751 = vmatprep.subr.bf16.mxu0 0
        %4752 = vmatpush1.bf16.msra.mxu0 %v4735
        %4753 = vmatprep.subr.bf16.mxu0 0
        %4754 = vmatpush1.bf16.msra.mxu0 %v4736
        %4755 = vmatprep.subr.bf16.mxu0 0
        %4756 = vmatpush1.bf16.msra.mxu0 %v4737
        %4757 = vmatprep.subr.bf16.mxu0 0
        %4758 = vmatpush1.bf16.msra.mxu0 %v4738
        %4759 = vmatprep.subr.bf16.mxu0 0
        %4760 = vmatpush1.bf16.msra.mxu0 %v4739
        %4761 = vmatprep.subr.bf16.mxu0 0
        %4762 = vmatpush1.bf16.msra.mxu0 %v4740
        %4763 = vmatprep.subr.bf16.mxu0 0
        %4764 = vmatpush1.bf16.msra.mxu0 %v4741
        %4765 = vmatprep.subr.bf16.mxu0 0
        %4766 = vmatpush1.bf16.msra.mxu0 %v4742
        %4767 = vmatprep.subr.bf16.mxu0 0
        %4768 = vmatpush1.bf16.msra.mxu0 0
        %4769 = vmatprep.subr.bf16.mxu0 0
        %4770 = vmatpush1.bf16.msra.mxu0 0
        %4771 = vmatprep.subr.bf16.mxu0 0
        %4772 = vmatpush1.bf16.msra.mxu0 0
        %4773 = vmatprep.subr.bf16.mxu0 0
        %4774 = vmatpush1.bf16.msra.mxu0 0
        %4775 = vmatprep.subr.bf16.mxu0 0
        %4776 = vmatpush1.bf16.msra.mxu0 0
        %4777 = vmatprep.subr.bf16.mxu0 0
        %4778 = vmatpush1.bf16.msra.mxu0 0
        %4779 = vmatprep.subr.bf16.mxu0 0
        %4780 = vmatpush1.bf16.msra.mxu0 0
        %4781 = vmatprep.subr.bf16.mxu0 0
        %4782 = vmatpush1.bf16.msra.mxu0 0
        %4783 = vmatprep.mubr.bf16.mxu0 0
        %4784 = vmatmul.mubr.bf16.gmra.mrb[0].mxu0 %v1929
        %v4785 = vpop.f32.mrb[0].mxu0
        %v4786 = vadd.f32 0.0, %v4785
        %v4787 = vpop.f32.mrb[0].mxu0
        %v4788 = vpop.f32.mrb[0].mxu0
        %v4789 = vadd.f32 0.0, %v4788
        %v4790 = vpop.f32.mrb[0].mxu0
        %4791 = vmatprep.mubr.bf16.mxu0 0
        %4792 = vmatmul.mubr.bf16.gmra.mrb[0].mxu0 %v1930
        %v4793 = vpop.f32.mrb[0].mxu0
        %v4794 = vadd.f32 0.0, %v4793
        %v4795 = vpop.f32.mrb[0].mxu0
        %v4796 = vpop.f32.mrb[0].mxu0
        %v4797 = vadd.f32 0.0, %v4796
        %v4798 = vpop.f32.mrb[0].mxu0
        %4799 = vmatprep.mubr.bf16.mxu0 0
        %4800 = vmatmul.mubr.bf16.gmra.mrb[0].mxu0 %v1931
        %v4801 = vpop.f32.mrb[0].mxu0
        %v4802 = vadd.f32 0.0, %v4801
        %v4803 = vpop.f32.mrb[0].mxu0
        %v4804 = vpop.f32.mrb[0].mxu0
        %v4805 = vadd.f32 0.0, %v4804
        %v4806 = vpop.f32.mrb[0].mxu0
        %4807 = vmatprep.mubr.bf16.mxu0 0
        %4808 = vmatmul.mubr.bf16.gmra.mrb[0].mxu0 %v1932
        %v4809 = vpop.f32.mrb[0].mxu0
        %v4810 = vadd.f32 0.0, %v4809
        %v4811 = vpop.f32.mrb[0].mxu0
        %v4812 = vpop.f32.mrb[0].mxu0
        %v4813 = vadd.f32 0.0, %v4812
        %v4814 = vpop.f32.mrb[0].mxu0
        %4815 = vdwg.mxu0
        %v4816 = vadd.f32 %v4678, %v4786
        %v4817 = vadd.f32 %v4679, %v4789
        %v4818 = vadd.f32 %v4680, %v4794
        %v4819 = vadd.f32 %v4681, %v4797
        %v4820 = vadd.f32 %v4682, %v4802
        %v4821 = vadd.f32 %v4683, %v4805
        %v4822 = vadd.f32 %v4684, %v4810
        %v4823 = vadd.f32 %v4685, %v4813
        %s4824 = scalar_lea.vmem [#allocation7], 2
        %v4825 = vld [vmem:[%s4824] sm:$0x1]
        %v4827 = vlaneseq
        %v4828 = vshrl.u32 %v4827, 7
        %v4829 = vsub.s32 0, %v4828
        %v4830 = vrot.slane %v4825, %v4829
        %v4832 = vadd.f32 %v4816, %v4830
        %v4833 = vadd.f32 %v4817, %v4830
        %v4834 = vadd.f32 %v4818, %v4830
        %v4835 = vadd.f32 %v4819, %v4830
        %v4836 = vadd.f32 %v4820, %v4830
        %v4837 = vadd.f32 %v4821, %v4830
        %v4838 = vadd.f32 %v4822, %v4830
        %v4839 = vadd.f32 %v4823, %v4830
        %v4840 = vmax.f32 %v4832, 0.0
        %v4841 = vmax.f32 %v4833, 0.0
        %v4842 = vmax.f32 %v4834, 0.0
        %v4843 = vmax.f32 %v4835, 0.0
        %v4844 = vmax.f32 %v4836, 0.0
        %v4845 = vmax.f32 %v4837, 0.0
        %v4846 = vmax.f32 %v4838, 0.0
        %v4847 = vmax.f32 %v4839, 0.0
        %v4848 = vpack.c.bf16 %v4841, %v4840
        %v4849 = vpack.c.bf16 %v4843, %v4842
        %v4850 = vpack.c.bf16 %v4845, %v4844
        %v4851 = vpack.c.bf16 %v4847, %v4846
        %s4852 = scalar_lea.vmem [#allocation8], 128
        %v4853 = vld [vmem:[%s4852] sm:$0xf]
        %v4854 = vld [vmem:[%s4852 + $0x4] sm:$0xf]
        %v4855 = vld [vmem:[%s4852 + $0x8] sm:$0xf]
        %v4856 = vld [vmem:[%s4852 + $0xc] sm:$0xf]
        %v4857 = vld [vmem:[%s4852 + $0x10] sm:$0xf]
        %v4858 = vld [vmem:[%s4852 + $0x14] sm:$0xf]
        %v4859 = vld [vmem:[%s4852 + $0x18] sm:$0xf]
        %v4860 = vld [vmem:[%s4852 + $0x1c] sm:$0xf]
        %v4861 = vld [vmem:[%s4852 + $0x20] sm:$0xf]
        %v4862 = vld [vmem:[%s4852 + $0x24] sm:$0xf]
        %v4863 = vld [vmem:[%s4852 + $0x28] sm:$0xf]
        %v4864 = vld [vmem:[%s4852 + $0x2c] sm:$0xf]
        %v4865 = vld [vmem:[%s4852 + $0x30] sm:$0xf]
        %v4866 = vld [vmem:[%s4852 + $0x34] sm:$0xf]
        %v4867 = vld [vmem:[%s4852 + $0x38] sm:$0xf]
        %v4868 = vld [vmem:[%s4852 + $0x3c] sm:$0xf]
        %v4885 = vunpack.c.l.b16 %v4853
        %v4886 = vunpack.c.l.b16 %v4854
        %v4887 = vunpack.c.l.b16 %v4855
        %v4888 = vunpack.c.l.b16 %v4856
        %v4889 = vunpack.c.l.b16 %v4857
        %v4890 = vunpack.c.l.b16 %v4858
        %v4891 = vunpack.c.l.b16 %v4859
        %v4892 = vunpack.c.l.b16 %v4860
        %v4893 = vunpack.c.l.b16 %v4861
        %v4894 = vunpack.c.l.b16 %v4862
        %v4895 = vunpack.c.l.b16 %v4863
        %v4896 = vunpack.c.l.b16 %v4864
        %v4897 = vunpack.c.l.b16 %v4865
        %v4898 = vunpack.c.l.b16 %v4866
        %v4899 = vunpack.c.l.b16 %v4867
        %v4900 = vunpack.c.l.b16 %v4868
        %v4901 = vpack.c.b16 %v4886, %v4885
        %v4902 = vpack.c.b16 %v4888, %v4887
        %v4903 = vpack.c.b16 %v4890, %v4889
        %v4904 = vpack.c.b16 %v4892, %v4891
        %v4905 = vpack.c.b16 %v4894, %v4893
        %v4906 = vpack.c.b16 %v4896, %v4895
        %v4907 = vpack.c.b16 %v4898, %v4897
        %v4908 = vpack.c.b16 %v4900, %v4899
        %4917 = vmatprep.subr.bf16.mxu0 0
        %4918 = vmatpush1.bf16.msra.mxu0 %v4901
        %4919 = vmatprep.subr.bf16.mxu0 0
        %4920 = vmatpush1.bf16.msra.mxu0 %v4902
        %4921 = vmatprep.subr.bf16.mxu0 0
        %4922 = vmatpush1.bf16.msra.mxu0 %v4903
        %4923 = vmatprep.subr.bf16.mxu0 0
        %4924 = vmatpush1.bf16.msra.mxu0 %v4904
        %4925 = vmatprep.subr.bf16.mxu0 0
        %4926 = vmatpush1.bf16.msra.mxu0 %v4905
        %4927 = vmatprep.subr.bf16.mxu0 0
        %4928 = vmatpush1.bf16.msra.mxu0 %v4906
        %4929 = vmatprep.subr.bf16.mxu0 0
        %4930 = vmatpush1.bf16.msra.mxu0 %v4907
        %4931 = vmatprep.subr.bf16.mxu0 0
        %4932 = vmatpush1.bf16.msra.mxu0 %v4908
        %4933 = vmatprep.subr.bf16.mxu0 0
        %4934 = vmatpush1.bf16.msra.mxu0 0
        %4935 = vmatprep.subr.bf16.mxu0 0
        %4936 = vmatpush1.bf16.msra.mxu0 0
        %4937 = vmatprep.subr.bf16.mxu0 0
        %4938 = vmatpush1.bf16.msra.mxu0 0
        %4939 = vmatprep.subr.bf16.mxu0 0
        %4940 = vmatpush1.bf16.msra.mxu0 0
        %4941 = vmatprep.subr.bf16.mxu0 0
        %4942 = vmatpush1.bf16.msra.mxu0 0
        %4943 = vmatprep.subr.bf16.mxu0 0
        %4944 = vmatpush1.bf16.msra.mxu0 0
        %4945 = vmatprep.subr.bf16.mxu0 0
        %4946 = vmatpush1.bf16.msra.mxu0 0
        %4947 = vmatprep.subr.bf16.mxu0 0
        %4948 = vmatpush1.bf16.msra.mxu0 0
        %4949 = vmatprep.mubr.bf16.mxu0 0
        %4950 = vmatmul.mubr.bf16.gmra.mrb[0].mxu0 %v4848
        %v4951 = vpop.f32.mrb[0].mxu0
        %v4952 = vadd.f32 0.0, %v4951
        %v4953 = vpop.f32.mrb[0].mxu0
        %v4954 = vpop.f32.mrb[0].mxu0
        %v4955 = vadd.f32 0.0, %v4954
        %v4956 = vpop.f32.mrb[0].mxu0
        %4957 = vmatprep.mubr.bf16.mxu0 0
        %4958 = vmatmul.mubr.bf16.gmra.mrb[0].mxu0 %v4849
        %v4959 = vpop.f32.mrb[0].mxu0
        %v4960 = vadd.f32 0.0, %v4959
        %v4961 = vpop.f32.mrb[0].mxu0
        %v4962 = vpop.f32.mrb[0].mxu0
        %v4963 = vadd.f32 0.0, %v4962
        %v4964 = vpop.f32.mrb[0].mxu0
        %4965 = vmatprep.mubr.bf16.mxu0 0
        %4966 = vmatmul.mubr.bf16.gmra.mrb[0].mxu0 %v4850
        %v4967 = vpop.f32.mrb[0].mxu0
        %v4968 = vadd.f32 0.0, %v4967
        %v4969 = vpop.f32.mrb[0].mxu0
        %v4970 = vpop.f32.mrb[0].mxu0
        %v4971 = vadd.f32 0.0, %v4970
        %v4972 = vpop.f32.mrb[0].mxu0
        %4973 = vmatprep.mubr.bf16.mxu0 0
        %4974 = vmatmul.mubr.bf16.gmra.mrb[0].mxu0 %v4851
        %v4975 = vpop.f32.mrb[0].mxu0
        %v4976 = vadd.f32 0.0, %v4975
        %v4977 = vpop.f32.mrb[0].mxu0
        %v4978 = vpop.f32.mrb[0].mxu0
        %v4979 = vadd.f32 0.0, %v4978
        %v4980 = vpop.f32.mrb[0].mxu0
        %4981 = vdwg.mxu0
        %v4982 = vadd.f32 %v3568, %v4952
        %v4983 = vadd.f32 %v3571, %v4955
        %v4984 = vadd.f32 %v3576, %v4960
        %v4985 = vadd.f32 %v3579, %v4963
        %v4986 = vadd.f32 %v3584, %v4968
        %v4987 = vadd.f32 %v3587, %v4971
        %v4988 = vadd.f32 %v3592, %v4976
        %v4989 = vadd.f32 %v3595, %v4979
        %s4990 = scalar_lea.vmem [#allocation5], 1728
        %v4991 = vld [vmem:[%s4990] sm:$0xf]
        %v4992 = vld [vmem:[%s4990 + $0x4] sm:$0xf]
        %v4993 = vld [vmem:[%s4990 + $0x8] sm:$0xf]
        %v4994 = vld [vmem:[%s4990 + $0xc] sm:$0xf]
        %v4995 = vld [vmem:[%s4990 + $0x10] sm:$0xf]
        %v4996 = vld [vmem:[%s4990 + $0x14] sm:$0xf]
        %v4997 = vld [vmem:[%s4990 + $0x18] sm:$0xf]
        %v4998 = vld [vmem:[%s4990 + $0x1c] sm:$0xf]
        %v4999 = vld [vmem:[%s4990 + $0x20] sm:$0xf]
        %v5000 = vld [vmem:[%s4990 + $0x24] sm:$0xf]
        %v5001 = vld [vmem:[%s4990 + $0x28] sm:$0xf]
        %v5002 = vld [vmem:[%s4990 + $0x2c] sm:$0xf]
        %v5003 = vld [vmem:[%s4990 + $0x30] sm:$0xf]
        %v5004 = vld [vmem:[%s4990 + $0x34] sm:$0xf]
        %v5005 = vld [vmem:[%s4990 + $0x38] sm:$0xf]
        %v5006 = vld [vmem:[%s4990 + $0x3c] sm:$0xf]
        %s5007 = scalar_lea.vmem [#allocation5], 1920
        %v5008 = vld [vmem:[%s5007] sm:$0xf]
        %v5009 = vld [vmem:[%s5007 + $0x4] sm:$0xf]
        %v5010 = vld [vmem:[%s5007 + $0x8] sm:$0xf]
        %v5011 = vld [vmem:[%s5007 + $0xc] sm:$0xf]
        %v5012 = vld [vmem:[%s5007 + $0x10] sm:$0xf]
        %v5013 = vld [vmem:[%s5007 + $0x14] sm:$0xf]
        %v5014 = vld [vmem:[%s5007 + $0x18] sm:$0xf]
        %v5015 = vld [vmem:[%s5007 + $0x1c] sm:$0xf]
        %v5016 = vld [vmem:[%s5007 + $0x20] sm:$0xf]
        %v5017 = vld [vmem:[%s5007 + $0x24] sm:$0xf]
        %v5018 = vld [vmem:[%s5007 + $0x28] sm:$0xf]
        %v5019 = vld [vmem:[%s5007 + $0x2c] sm:$0xf]
        %v5020 = vld [vmem:[%s5007 + $0x30] sm:$0xf]
        %v5021 = vld [vmem:[%s5007 + $0x34] sm:$0xf]
        %v5022 = vld [vmem:[%s5007 + $0x38] sm:$0xf]
        %v5023 = vld [vmem:[%s5007 + $0x3c] sm:$0xf]
        %v5040 = vunpack.c.l.b16 %v5008
        %v5041 = vunpack.c.l.b16 %v5009
        %v5042 = vunpack.c.l.b16 %v5010
        %v5043 = vunpack.c.l.b16 %v5011
        %v5044 = vunpack.c.l.b16 %v5012
        %v5045 = vunpack.c.l.b16 %v5013
        %v5046 = vunpack.c.l.b16 %v5014
        %v5047 = vunpack.c.l.b16 %v5015
        %v5048 = vunpack.c.l.b16 %v5016
        %v5049 = vunpack.c.l.b16 %v5017
        %v5050 = vunpack.c.l.b16 %v5018
        %v5051 = vunpack.c.l.b16 %v5019
        %v5052 = vunpack.c.l.b16 %v5020
        %v5053 = vunpack.c.l.b16 %v5021
        %v5054 = vunpack.c.l.b16 %v5022
        %v5055 = vunpack.c.l.b16 %v5023
        %v5056 = vpack.c.b16 %v5041, %v5040
        %v5057 = vpack.c.b16 %v5043, %v5042
        %v5058 = vpack.c.b16 %v5045, %v5044
        %v5059 = vpack.c.b16 %v5047, %v5046
        %v5060 = vpack.c.b16 %v5049, %v5048
        %v5061 = vpack.c.b16 %v5051, %v5050
        %v5062 = vpack.c.b16 %v5053, %v5052
        %v5063 = vpack.c.b16 %v5055, %v5054
        %5072 = vmatprep.subr.bf16.mxu0 0
        %5073 = vmatpush1.bf16.msra.mxu0 %v5056
        %5074 = vmatprep.subr.bf16.mxu0 0
        %5075 = vmatpush1.bf16.msra.mxu0 %v5057
        %5076 = vmatprep.subr.bf16.mxu0 0
        %5077 = vmatpush1.bf16.msra.mxu0 %v5058
        %5078 = vmatprep.subr.bf16.mxu0 0
        %5079 = vmatpush1.bf16.msra.mxu0 %v5059
        %5080 = vmatprep.subr.bf16.mxu0 0
        %5081 = vmatpush1.bf16.msra.mxu0 %v5060
        %5082 = vmatprep.subr.bf16.mxu0 0
        %5083 = vmatpush1.bf16.msra.mxu0 %v5061
        %5084 = vmatprep.subr.bf16.mxu0 0
        %5085 = vmatpush1.bf16.msra.mxu0 %v5062
        %5086 = vmatprep.subr.bf16.mxu0 0
        %5087 = vmatpush1.bf16.msra.mxu0 %v5063
        %5088 = vmatprep.subr.bf16.mxu0 0
        %5089 = vmatpush1.bf16.msra.mxu0 0
        %5090 = vmatprep.subr.bf16.mxu0 0
        %5091 = vmatpush1.bf16.msra.mxu0 0
        %5092 = vmatprep.subr.bf16.mxu0 0
        %5093 = vmatpush1.bf16.msra.mxu0 0
        %5094 = vmatprep.subr.bf16.mxu0 0
        %5095 = vmatpush1.bf16.msra.mxu0 0
        %5096 = vmatprep.subr.bf16.mxu0 0
        %5097 = vmatpush1.bf16.msra.mxu0 0
        %5098 = vmatprep.subr.bf16.mxu0 0
        %5099 = vmatpush1.bf16.msra.mxu0 0
        %5100 = vmatprep.subr.bf16.mxu0 0
        %5101 = vmatpush1.bf16.msra.mxu0 0
        %5102 = vmatprep.subr.bf16.mxu0 0
        %5103 = vmatpush1.bf16.msra.mxu0 0
        %5104 = vmatprep.mubr.bf16.mxu0 0
        %5105 = vmatmul.mubr.bf16.gmra.mrb[0].mxu0 %v605
        %v5106 = vpop.f32.mrb[0].mxu0
        %v5107 = vadd.f32 0.0, %v5106
        %v5108 = vpop.f32.mrb[0].mxu0
        %v5109 = vpop.f32.mrb[0].mxu0
        %v5110 = vadd.f32 0.0, %v5109
        %v5111 = vpop.f32.mrb[0].mxu0
        %5112 = vmatprep.mubr.bf16.mxu0 0
        %5113 = vmatmul.mubr.bf16.gmra.mrb[0].mxu0 %v606
        %v5114 = vpop.f32.mrb[0].mxu0
        %v5115 = vadd.f32 0.0, %v5114
        %v5116 = vpop.f32.mrb[0].mxu0
        %v5117 = vpop.f32.mrb[0].mxu0
        %v5118 = vadd.f32 0.0, %v5117
        %v5119 = vpop.f32.mrb[0].mxu0
        %5120 = vmatprep.mubr.bf16.mxu0 0
        %5121 = vmatmul.mubr.bf16.gmra.mrb[0].mxu0 %v607
        %v5122 = vpop.f32.mrb[0].mxu0
        %v5123 = vadd.f32 0.0, %v5122
        %v5124 = vpop.f32.mrb[0].mxu0
        %v5125 = vpop.f32.mrb[0].mxu0
        %v5126 = vadd.f32 0.0, %v5125
        %v5127 = vpop.f32.mrb[0].mxu0
        %5128 = vmatprep.mubr.bf16.mxu0 0
        %5129 = vmatmul.mubr.bf16.gmra.mrb[0].mxu0 %v608
        %v5130 = vpop.f32.mrb[0].mxu0
        %v5131 = vadd.f32 0.0, %v5130
        %v5132 = vpop.f32.mrb[0].mxu0
        %v5133 = vpop.f32.mrb[0].mxu0
        %v5134 = vadd.f32 0.0, %v5133
        %v5135 = vpop.f32.mrb[0].mxu0
        %5136 = vdwg.mxu0
        %v5153 = vunpack.c.l.b16 %v4991
        %v5154 = vunpack.c.l.b16 %v4992
        %v5155 = vunpack.c.l.b16 %v4993
        %v5156 = vunpack.c.l.b16 %v4994
        %v5157 = vunpack.c.l.b16 %v4995
        %v5158 = vunpack.c.l.b16 %v4996
        %v5159 = vunpack.c.l.b16 %v4997
        %v5160 = vunpack.c.l.b16 %v4998
        %v5161 = vunpack.c.l.b16 %v4999
        %v5162 = vunpack.c.l.b16 %v5000
        %v5163 = vunpack.c.l.b16 %v5001
        %v5164 = vunpack.c.l.b16 %v5002
        %v5165 = vunpack.c.l.b16 %v5003
        %v5166 = vunpack.c.l.b16 %v5004
        %v5167 = vunpack.c.l.b16 %v5005
        %v5168 = vunpack.c.l.b16 %v5006
        %v5169 = vpack.c.b16 %v5154, %v5153
        %v5170 = vpack.c.b16 %v5156, %v5155
        %v5171 = vpack.c.b16 %v5158, %v5157
        %v5172 = vpack.c.b16 %v5160, %v5159
        %v5173 = vpack.c.b16 %v5162, %v5161
        %v5174 = vpack.c.b16 %v5164, %v5163
        %v5175 = vpack.c.b16 %v5166, %v5165
        %v5176 = vpack.c.b16 %v5168, %v5167
        %5185 = vmatprep.subr.bf16.mxu0 0
        %5186 = vmatpush1.bf16.msra.mxu0 %v5169
        %5187 = vmatprep.subr.bf16.mxu0 0
        %5188 = vmatpush1.bf16.msra.mxu0 %v5170
        %5189 = vmatprep.subr.bf16.mxu0 0
        %5190 = vmatpush1.bf16.msra.mxu0 %v5171
        %5191 = vmatprep.subr.bf16.mxu0 0
        %5192 = vmatpush1.bf16.msra.mxu0 %v5172
        %5193 = vmatprep.subr.bf16.mxu0 0
        %5194 = vmatpush1.bf16.msra.mxu0 %v5173
        %5195 = vmatprep.subr.bf16.mxu0 0
        %5196 = vmatpush1.bf16.msra.mxu0 %v5174
        %5197 = vmatprep.subr.bf16.mxu0 0
        %5198 = vmatpush1.bf16.msra.mxu0 %v5175
        %5199 = vmatprep.subr.bf16.mxu0 0
        %5200 = vmatpush1.bf16.msra.mxu0 %v5176
        %5201 = vmatprep.subr.bf16.mxu0 0
        %5202 = vmatpush1.bf16.msra.mxu0 0
        %5203 = vmatprep.subr.bf16.mxu0 0
        %5204 = vmatpush1.bf16.msra.mxu0 0
        %5205 = vmatprep.subr.bf16.mxu0 0
        %5206 = vmatpush1.bf16.msra.mxu0 0
        %5207 = vmatprep.subr.bf16.mxu0 0
        %5208 = vmatpush1.bf16.msra.mxu0 0
        %5209 = vmatprep.subr.bf16.mxu0 0
        %5210 = vmatpush1.bf16.msra.mxu0 0
        %5211 = vmatprep.subr.bf16.mxu0 0
        %5212 = vmatpush1.bf16.msra.mxu0 0
        %5213 = vmatprep.subr.bf16.mxu0 0
        %5214 = vmatpush1.bf16.msra.mxu0 0
        %5215 = vmatprep.subr.bf16.mxu0 0
        %5216 = vmatpush1.bf16.msra.mxu0 0
        %5217 = vmatprep.mubr.bf16.mxu0 0
        %5218 = vmatmul.mubr.bf16.gmra.mrb[0].mxu0 %v742
        %v5219 = vpop.f32.mrb[0].mxu0
        %v5220 = vadd.f32 %v5107, %v5219
        %v5221 = vpop.f32.mrb[0].mxu0
        %v5222 = vpop.f32.mrb[0].mxu0
        %v5223 = vadd.f32 %v5110, %v5222
        %v5224 = vpop.f32.mrb[0].mxu0
        %5225 = vmatprep.mubr.bf16.mxu0 0
        %5226 = vmatmul.mubr.bf16.gmra.mrb[0].mxu0 %v743
        %v5227 = vpop.f32.mrb[0].mxu0
        %v5228 = vadd.f32 %v5115, %v5227
        %v5229 = vpop.f32.mrb[0].mxu0
        %v5230 = vpop.f32.mrb[0].mxu0
        %v5231 = vadd.f32 %v5118, %v5230
        %v5232 = vpop.f32.mrb[0].mxu0
        %5233 = vmatprep.mubr.bf16.mxu0 0
        %5234 = vmatmul.mubr.bf16.gmra.mrb[0].mxu0 %v744
        %v5235 = vpop.f32.mrb[0].mxu0
        %v5236 = vadd.f32 %v5123, %v5235
        %v5237 = vpop.f32.mrb[0].mxu0
        %v5238 = vpop.f32.mrb[0].mxu0
        %v5239 = vadd.f32 %v5126, %v5238
        %v5240 = vpop.f32.mrb[0].mxu0
        %5241 = vmatprep.mubr.bf16.mxu0 0
        %5242 = vmatmul.mubr.bf16.gmra.mrb[0].mxu0 %v745
        %v5243 = vpop.f32.mrb[0].mxu0
        %v5244 = vadd.f32 %v5131, %v5243
        %v5245 = vpop.f32.mrb[0].mxu0
        %v5246 = vpop.f32.mrb[0].mxu0
        %v5247 = vadd.f32 %v5134, %v5246
        %v5248 = vpop.f32.mrb[0].mxu0
        %5249 = vdwg.mxu0
        %s5250 = scalar_lea.vmem [#allocation5], 2112
        %v5251 = vld [vmem:[%s5250] sm:$0xf]
        %v5252 = vld [vmem:[%s5250 + $0x4] sm:$0xf]
        %v5253 = vld [vmem:[%s5250 + $0x8] sm:$0xf]
        %v5254 = vld [vmem:[%s5250 + $0xc] sm:$0xf]
        %v5255 = vld [vmem:[%s5250 + $0x10] sm:$0xf]
        %v5256 = vld [vmem:[%s5250 + $0x14] sm:$0xf]
        %v5257 = vld [vmem:[%s5250 + $0x18] sm:$0xf]
        %v5258 = vld [vmem:[%s5250 + $0x1c] sm:$0xf]
        %v5259 = vld [vmem:[%s5250 + $0x20] sm:$0xf]
        %v5260 = vld [vmem:[%s5250 + $0x24] sm:$0xf]
        %v5261 = vld [vmem:[%s5250 + $0x28] sm:$0xf]
        %v5262 = vld [vmem:[%s5250 + $0x2c] sm:$0xf]
        %v5263 = vld [vmem:[%s5250 + $0x30] sm:$0xf]
        %v5264 = vld [vmem:[%s5250 + $0x34] sm:$0xf]
        %v5265 = vld [vmem:[%s5250 + $0x38] sm:$0xf]
        %v5266 = vld [vmem:[%s5250 + $0x3c] sm:$0xf]
        %v5283 = vunpack.c.l.b16 %v5251
        %v5284 = vunpack.c.l.b16 %v5252
        %v5285 = vunpack.c.l.b16 %v5253
        %v5286 = vunpack.c.l.b16 %v5254
        %v5287 = vunpack.c.l.b16 %v5255
        %v5288 = vunpack.c.l.b16 %v5256
        %v5289 = vunpack.c.l.b16 %v5257
        %v5290 = vunpack.c.l.b16 %v5258
        %v5291 = vunpack.c.l.b16 %v5259
        %v5292 = vunpack.c.l.b16 %v5260
        %v5293 = vunpack.c.l.b16 %v5261
        %v5294 = vunpack.c.l.b16 %v5262
        %v5295 = vunpack.c.l.b16 %v5263
        %v5296 = vunpack.c.l.b16 %v5264
        %v5297 = vunpack.c.l.b16 %v5265
        %v5298 = vunpack.c.l.b16 %v5266
        %v5299 = vpack.c.b16 %v5284, %v5283
        %v5300 = vpack.c.b16 %v5286, %v5285
        %v5301 = vpack.c.b16 %v5288, %v5287
        %v5302 = vpack.c.b16 %v5290, %v5289
        %v5303 = vpack.c.b16 %v5292, %v5291
        %v5304 = vpack.c.b16 %v5294, %v5293
        %v5305 = vpack.c.b16 %v5296, %v5295
        %v5306 = vpack.c.b16 %v5298, %v5297
        %5315 = vmatprep.subr.bf16.mxu0 0
        %5316 = vmatpush1.bf16.msra.mxu0 %v5299
        %5317 = vmatprep.subr.bf16.mxu0 0
        %5318 = vmatpush1.bf16.msra.mxu0 %v5300
        %5319 = vmatprep.subr.bf16.mxu0 0
        %5320 = vmatpush1.bf16.msra.mxu0 %v5301
        %5321 = vmatprep.subr.bf16.mxu0 0
        %5322 = vmatpush1.bf16.msra.mxu0 %v5302
        %5323 = vmatprep.subr.bf16.mxu0 0
        %5324 = vmatpush1.bf16.msra.mxu0 %v5303
        %5325 = vmatprep.subr.bf16.mxu0 0
        %5326 = vmatpush1.bf16.msra.mxu0 %v5304
        %5327 = vmatprep.subr.bf16.mxu0 0
        %5328 = vmatpush1.bf16.msra.mxu0 %v5305
        %5329 = vmatprep.subr.bf16.mxu0 0
        %5330 = vmatpush1.bf16.msra.mxu0 %v5306
        %5331 = vmatprep.subr.bf16.mxu0 0
        %5332 = vmatpush1.bf16.msra.mxu0 0
        %5333 = vmatprep.subr.bf16.mxu0 0
        %5334 = vmatpush1.bf16.msra.mxu0 0
        %5335 = vmatprep.subr.bf16.mxu0 0
        %5336 = vmatpush1.bf16.msra.mxu0 0
        %5337 = vmatprep.subr.bf16.mxu0 0
        %5338 = vmatpush1.bf16.msra.mxu0 0
        %5339 = vmatprep.subr.bf16.mxu0 0
        %5340 = vmatpush1.bf16.msra.mxu0 0
        %5341 = vmatprep.subr.bf16.mxu0 0
        %5342 = vmatpush1.bf16.msra.mxu0 0
        %5343 = vmatprep.subr.bf16.mxu0 0
        %5344 = vmatpush1.bf16.msra.mxu0 0
        %5345 = vmatprep.subr.bf16.mxu0 0
        %5346 = vmatpush1.bf16.msra.mxu0 0
        %5347 = vmatprep.mubr.bf16.mxu0 0
        %5348 = vmatmul.mubr.bf16.gmra.mrb[0].mxu0 %v905
        %v5349 = vpop.f32.mrb[0].mxu0
        %v5350 = vadd.f32 0.0, %v5349
        %v5351 = vpop.f32.mrb[0].mxu0
        %v5352 = vpop.f32.mrb[0].mxu0
        %v5353 = vadd.f32 0.0, %v5352
        %v5354 = vpop.f32.mrb[0].mxu0
        %5355 = vmatprep.mubr.bf16.mxu0 0
        %5356 = vmatmul.mubr.bf16.gmra.mrb[0].mxu0 %v906
        %v5357 = vpop.f32.mrb[0].mxu0
        %v5358 = vadd.f32 0.0, %v5357
        %v5359 = vpop.f32.mrb[0].mxu0
        %v5360 = vpop.f32.mrb[0].mxu0
        %v5361 = vadd.f32 0.0, %v5360
        %v5362 = vpop.f32.mrb[0].mxu0
        %5363 = vmatprep.mubr.bf16.mxu0 0
        %5364 = vmatmul.mubr.bf16.gmra.mrb[0].mxu0 %v907
        %v5365 = vpop.f32.mrb[0].mxu0
        %v5366 = vadd.f32 0.0, %v5365
        %v5367 = vpop.f32.mrb[0].mxu0
        %v5368 = vpop.f32.mrb[0].mxu0
        %v5369 = vadd.f32 0.0, %v5368
        %v5370 = vpop.f32.mrb[0].mxu0
        %5371 = vmatprep.mubr.bf16.mxu0 0
        %5372 = vmatmul.mubr.bf16.gmra.mrb[0].mxu0 %v908
        %v5373 = vpop.f32.mrb[0].mxu0
        %v5374 = vadd.f32 0.0, %v5373
        %v5375 = vpop.f32.mrb[0].mxu0
        %v5376 = vpop.f32.mrb[0].mxu0
        %v5377 = vadd.f32 0.0, %v5376
        %v5378 = vpop.f32.mrb[0].mxu0
        %5379 = vdwg.mxu0
        %v5380 = vadd.f32 %v5220, %v5350
        %v5381 = vadd.f32 %v5223, %v5353
        %v5382 = vadd.f32 %v5228, %v5358
        %v5383 = vadd.f32 %v5231, %v5361
        %v5384 = vadd.f32 %v5236, %v5366
        %v5385 = vadd.f32 %v5239, %v5369
        %v5386 = vadd.f32 %v5244, %v5374
        %v5387 = vadd.f32 %v5247, %v5377
        %s5388 = scalar_lea.vmem [#allocation5], 1792
        %v5389 = vld [vmem:[%s5388] sm:$0xf]
        %v5390 = vld [vmem:[%s5388 + $0x4] sm:$0xf]
        %v5391 = vld [vmem:[%s5388 + $0x8] sm:$0xf]
        %v5392 = vld [vmem:[%s5388 + $0xc] sm:$0xf]
        %v5393 = vld [vmem:[%s5388 + $0x10] sm:$0xf]
        %v5394 = vld [vmem:[%s5388 + $0x14] sm:$0xf]
        %v5395 = vld [vmem:[%s5388 + $0x18] sm:$0xf]
        %v5396 = vld [vmem:[%s5388 + $0x1c] sm:$0xf]
        %v5397 = vld [vmem:[%s5388 + $0x20] sm:$0xf]
        %v5398 = vld [vmem:[%s5388 + $0x24] sm:$0xf]
        %v5399 = vld [vmem:[%s5388 + $0x28] sm:$0xf]
        %v5400 = vld [vmem:[%s5388 + $0x2c] sm:$0xf]
        %v5401 = vld [vmem:[%s5388 + $0x30] sm:$0xf]
        %v5402 = vld [vmem:[%s5388 + $0x34] sm:$0xf]
        %v5403 = vld [vmem:[%s5388 + $0x38] sm:$0xf]
        %v5404 = vld [vmem:[%s5388 + $0x3c] sm:$0xf]
        %v5421 = vunpack.c.l.b16 %v5389
        %v5422 = vunpack.c.l.b16 %v5390
        %v5423 = vunpack.c.l.b16 %v5391
        %v5424 = vunpack.c.l.b16 %v5392
        %v5425 = vunpack.c.l.b16 %v5393
        %v5426 = vunpack.c.l.b16 %v5394
        %v5427 = vunpack.c.l.b16 %v5395
        %v5428 = vunpack.c.l.b16 %v5396
        %v5429 = vunpack.c.l.b16 %v5397
        %v5430 = vunpack.c.l.b16 %v5398
        %v5431 = vunpack.c.l.b16 %v5399
        %v5432 = vunpack.c.l.b16 %v5400
        %v5433 = vunpack.c.l.b16 %v5401
        %v5434 = vunpack.c.l.b16 %v5402
        %v5435 = vunpack.c.l.b16 %v5403
        %v5436 = vunpack.c.l.b16 %v5404
        %v5437 = vpack.c.b16 %v5422, %v5421
        %v5438 = vpack.c.b16 %v5424, %v5423
        %v5439 = vpack.c.b16 %v5426, %v5425
        %v5440 = vpack.c.b16 %v5428, %v5427
        %v5441 = vpack.c.b16 %v5430, %v5429
        %v5442 = vpack.c.b16 %v5432, %v5431
        %v5443 = vpack.c.b16 %v5434, %v5433
        %v5444 = vpack.c.b16 %v5436, %v5435
        %5453 = vmatprep.subr.bf16.mxu0 0
        %5454 = vmatpush1.bf16.msra.mxu0 %v5437
        %5455 = vmatprep.subr.bf16.mxu0 0
        %5456 = vmatpush1.bf16.msra.mxu0 %v5438
        %5457 = vmatprep.subr.bf16.mxu0 0
        %5458 = vmatpush1.bf16.msra.mxu0 %v5439
        %5459 = vmatprep.subr.bf16.mxu0 0
        %5460 = vmatpush1.bf16.msra.mxu0 %v5440
        %5461 = vmatprep.subr.bf16.mxu0 0
        %5462 = vmatpush1.bf16.msra.mxu0 %v5441
        %5463 = vmatprep.subr.bf16.mxu0 0
        %5464 = vmatpush1.bf16.msra.mxu0 %v5442
        %5465 = vmatprep.subr.bf16.mxu0 0
        %5466 = vmatpush1.bf16.msra.mxu0 %v5443
        %5467 = vmatprep.subr.bf16.mxu0 0
        %5468 = vmatpush1.bf16.msra.mxu0 %v5444
        %5469 = vmatprep.subr.bf16.mxu0 0
        %5470 = vmatpush1.bf16.msra.mxu0 0
        %5471 = vmatprep.subr.bf16.mxu0 0
        %5472 = vmatpush1.bf16.msra.mxu0 0
        %5473 = vmatprep.subr.bf16.mxu0 0
        %5474 = vmatpush1.bf16.msra.mxu0 0
        %5475 = vmatprep.subr.bf16.mxu0 0
        %5476 = vmatpush1.bf16.msra.mxu0 0
        %5477 = vmatprep.subr.bf16.mxu0 0
        %5478 = vmatpush1.bf16.msra.mxu0 0
        %5479 = vmatprep.subr.bf16.mxu0 0
        %5480 = vmatpush1.bf16.msra.mxu0 0
        %5481 = vmatprep.subr.bf16.mxu0 0
        %5482 = vmatpush1.bf16.msra.mxu0 0
        %5483 = vmatprep.subr.bf16.mxu0 0
        %5484 = vmatpush1.bf16.msra.mxu0 0
        %5485 = vmatprep.mubr.bf16.mxu0 0
        %5486 = vmatmul.mubr.bf16.gmra.mrb[0].mxu0 %v1076
        %v5487 = vpop.f32.mrb[0].mxu0
        %v5488 = vadd.f32 0.0, %v5487
        %v5489 = vpop.f32.mrb[0].mxu0
        %v5490 = vpop.f32.mrb[0].mxu0
        %v5491 = vadd.f32 0.0, %v5490
        %v5492 = vpop.f32.mrb[0].mxu0
        %5493 = vmatprep.mubr.bf16.mxu0 0
        %5494 = vmatmul.mubr.bf16.gmra.mrb[0].mxu0 %v1077
        %v5495 = vpop.f32.mrb[0].mxu0
        %v5496 = vadd.f32 0.0, %v5495
        %v5497 = vpop.f32.mrb[0].mxu0
        %v5498 = vpop.f32.mrb[0].mxu0
        %v5499 = vadd.f32 0.0, %v5498
        %v5500 = vpop.f32.mrb[0].mxu0
        %5501 = vmatprep.mubr.bf16.mxu0 0
        %5502 = vmatmul.mubr.bf16.gmra.mrb[0].mxu0 %v1078
        %v5503 = vpop.f32.mrb[0].mxu0
        %v5504 = vadd.f32 0.0, %v5503
        %v5505 = vpop.f32.mrb[0].mxu0
        %v5506 = vpop.f32.mrb[0].mxu0
        %v5507 = vadd.f32 0.0, %v5506
        %v5508 = vpop.f32.mrb[0].mxu0
        %5509 = vmatprep.mubr.bf16.mxu0 0
        %5510 = vmatmul.mubr.bf16.gmra.mrb[0].mxu0 %v1079
        %v5511 = vpop.f32.mrb[0].mxu0
        %v5512 = vadd.f32 0.0, %v5511
        %v5513 = vpop.f32.mrb[0].mxu0
        %v5514 = vpop.f32.mrb[0].mxu0
        %v5515 = vadd.f32 0.0, %v5514
        %v5516 = vpop.f32.mrb[0].mxu0
        %5517 = vdwg.mxu0
        %v5518 = vadd.f32 %v5380, %v5488
        %v5519 = vadd.f32 %v5381, %v5491
        %v5520 = vadd.f32 %v5382, %v5496
        %v5521 = vadd.f32 %v5383, %v5499
        %v5522 = vadd.f32 %v5384, %v5504
        %v5523 = vadd.f32 %v5385, %v5507
        %v5524 = vadd.f32 %v5386, %v5512
        %v5525 = vadd.f32 %v5387, %v5515
        %s5526 = scalar_lea.vmem [#allocation5], 1984
        %v5527 = vld [vmem:[%s5526] sm:$0xf]
        %v5528 = vld [vmem:[%s5526 + $0x4] sm:$0xf]
        %v5529 = vld [vmem:[%s5526 + $0x8] sm:$0xf]
        %v5530 = vld [vmem:[%s5526 + $0xc] sm:$0xf]
        %v5531 = vld [vmem:[%s5526 + $0x10] sm:$0xf]
        %v5532 = vld [vmem:[%s5526 + $0x14] sm:$0xf]
        %v5533 = vld [vmem:[%s5526 + $0x18] sm:$0xf]
        %v5534 = vld [vmem:[%s5526 + $0x1c] sm:$0xf]
        %v5535 = vld [vmem:[%s5526 + $0x20] sm:$0xf]
        %v5536 = vld [vmem:[%s5526 + $0x24] sm:$0xf]
        %v5537 = vld [vmem:[%s5526 + $0x28] sm:$0xf]
        %v5538 = vld [vmem:[%s5526 + $0x2c] sm:$0xf]
        %v5539 = vld [vmem:[%s5526 + $0x30] sm:$0xf]
        %v5540 = vld [vmem:[%s5526 + $0x34] sm:$0xf]
        %v5541 = vld [vmem:[%s5526 + $0x38] sm:$0xf]
        %v5542 = vld [vmem:[%s5526 + $0x3c] sm:$0xf]
        %v5559 = vunpack.c.l.b16 %v5527
        %v5560 = vunpack.c.l.b16 %v5528
        %v5561 = vunpack.c.l.b16 %v5529
        %v5562 = vunpack.c.l.b16 %v5530
        %v5563 = vunpack.c.l.b16 %v5531
        %v5564 = vunpack.c.l.b16 %v5532
        %v5565 = vunpack.c.l.b16 %v5533
        %v5566 = vunpack.c.l.b16 %v5534
        %v5567 = vunpack.c.l.b16 %v5535
        %v5568 = vunpack.c.l.b16 %v5536
        %v5569 = vunpack.c.l.b16 %v5537
        %v5570 = vunpack.c.l.b16 %v5538
        %v5571 = vunpack.c.l.b16 %v5539
        %v5572 = vunpack.c.l.b16 %v5540
        %v5573 = vunpack.c.l.b16 %v5541
        %v5574 = vunpack.c.l.b16 %v5542
        %v5575 = vpack.c.b16 %v5560, %v5559
        %v5576 = vpack.c.b16 %v5562, %v5561
        %v5577 = vpack.c.b16 %v5564, %v5563
        %v5578 = vpack.c.b16 %v5566, %v5565
        %v5579 = vpack.c.b16 %v5568, %v5567
        %v5580 = vpack.c.b16 %v5570, %v5569
        %v5581 = vpack.c.b16 %v5572, %v5571
        %v5582 = vpack.c.b16 %v5574, %v5573
        %5591 = vmatprep.subr.bf16.mxu0 0
        %5592 = vmatpush1.bf16.msra.mxu0 %v5575
        %5593 = vmatprep.subr.bf16.mxu0 0
        %5594 = vmatpush1.bf16.msra.mxu0 %v5576
        %5595 = vmatprep.subr.bf16.mxu0 0
        %5596 = vmatpush1.bf16.msra.mxu0 %v5577
        %5597 = vmatprep.subr.bf16.mxu0 0
        %5598 = vmatpush1.bf16.msra.mxu0 %v5578
        %5599 = vmatprep.subr.bf16.mxu0 0
        %5600 = vmatpush1.bf16.msra.mxu0 %v5579
        %5601 = vmatprep.subr.bf16.mxu0 0
        %5602 = vmatpush1.bf16.msra.mxu0 %v5580
        %5603 = vmatprep.subr.bf16.mxu0 0
        %5604 = vmatpush1.bf16.msra.mxu0 %v5581
        %5605 = vmatprep.subr.bf16.mxu0 0
        %5606 = vmatpush1.bf16.msra.mxu0 %v5582
        %5607 = vmatprep.subr.bf16.mxu0 0
        %5608 = vmatpush1.bf16.msra.mxu0 0
        %5609 = vmatprep.subr.bf16.mxu0 0
        %5610 = vmatpush1.bf16.msra.mxu0 0
        %5611 = vmatprep.subr.bf16.mxu0 0
        %5612 = vmatpush1.bf16.msra.mxu0 0
        %5613 = vmatprep.subr.bf16.mxu0 0
        %5614 = vmatpush1.bf16.msra.mxu0 0
        %5615 = vmatprep.subr.bf16.mxu0 0
        %5616 = vmatpush1.bf16.msra.mxu0 0
        %5617 = vmatprep.subr.bf16.mxu0 0
        %5618 = vmatpush1.bf16.msra.mxu0 0
        %5619 = vmatprep.subr.bf16.mxu0 0
        %5620 = vmatpush1.bf16.msra.mxu0 0
        %5621 = vmatprep.subr.bf16.mxu0 0
        %5622 = vmatpush1.bf16.msra.mxu0 0
        %5623 = vmatprep.mubr.bf16.mxu0 0
        %5624 = vmatmul.mubr.bf16.gmra.mrb[0].mxu0 %v1246
        %v5625 = vpop.f32.mrb[0].mxu0
        %v5626 = vadd.f32 0.0, %v5625
        %v5627 = vpop.f32.mrb[0].mxu0
        %v5628 = vpop.f32.mrb[0].mxu0
        %v5629 = vadd.f32 0.0, %v5628
        %v5630 = vpop.f32.mrb[0].mxu0
        %5631 = vmatprep.mubr.bf16.mxu0 0
        %5632 = vmatmul.mubr.bf16.gmra.mrb[0].mxu0 %v1247
        %v5633 = vpop.f32.mrb[0].mxu0
        %v5634 = vadd.f32 0.0, %v5633
        %v5635 = vpop.f32.mrb[0].mxu0
        %v5636 = vpop.f32.mrb[0].mxu0
        %v5637 = vadd.f32 0.0, %v5636
        %v5638 = vpop.f32.mrb[0].mxu0
        %5639 = vmatprep.mubr.bf16.mxu0 0
        %5640 = vmatmul.mubr.bf16.gmra.mrb[0].mxu0 %v1248
        %v5641 = vpop.f32.mrb[0].mxu0
        %v5642 = vadd.f32 0.0, %v5641
        %v5643 = vpop.f32.mrb[0].mxu0
        %v5644 = vpop.f32.mrb[0].mxu0
        %v5645 = vadd.f32 0.0, %v5644
        %v5646 = vpop.f32.mrb[0].mxu0
        %5647 = vmatprep.mubr.bf16.mxu0 0
        %5648 = vmatmul.mubr.bf16.gmra.mrb[0].mxu0 %v1249
        %v5649 = vpop.f32.mrb[0].mxu0
        %v5650 = vadd.f32 0.0, %v5649
        %v5651 = vpop.f32.mrb[0].mxu0
        %v5652 = vpop.f32.mrb[0].mxu0
        %v5653 = vadd.f32 0.0, %v5652
        %v5654 = vpop.f32.mrb[0].mxu0
        %5655 = vdwg.mxu0
        %v5656 = vadd.f32 %v5518, %v5626
        %v5657 = vadd.f32 %v5519, %v5629
        %v5658 = vadd.f32 %v5520, %v5634
        %v5659 = vadd.f32 %v5521, %v5637
        %v5660 = vadd.f32 %v5522, %v5642
        %v5661 = vadd.f32 %v5523, %v5645
        %v5662 = vadd.f32 %v5524, %v5650
        %v5663 = vadd.f32 %v5525, %v5653
        %s5664 = scalar_lea.vmem [#allocation5], 2176
        %v5665 = vld [vmem:[%s5664] sm:$0xf]
        %v5666 = vld [vmem:[%s5664 + $0x4] sm:$0xf]
        %v5667 = vld [vmem:[%s5664 + $0x8] sm:$0xf]
        %v5668 = vld [vmem:[%s5664 + $0xc] sm:$0xf]
        %v5669 = vld [vmem:[%s5664 + $0x10] sm:$0xf]
        %v5670 = vld [vmem:[%s5664 + $0x14] sm:$0xf]
        %v5671 = vld [vmem:[%s5664 + $0x18] sm:$0xf]
        %v5672 = vld [vmem:[%s5664 + $0x1c] sm:$0xf]
        %v5673 = vld [vmem:[%s5664 + $0x20] sm:$0xf]
        %v5674 = vld [vmem:[%s5664 + $0x24] sm:$0xf]
        %v5675 = vld [vmem:[%s5664 + $0x28] sm:$0xf]
        %v5676 = vld [vmem:[%s5664 + $0x2c] sm:$0xf]
        %v5677 = vld [vmem:[%s5664 + $0x30] sm:$0xf]
        %v5678 = vld [vmem:[%s5664 + $0x34] sm:$0xf]
        %v5679 = vld [vmem:[%s5664 + $0x38] sm:$0xf]
        %v5680 = vld [vmem:[%s5664 + $0x3c] sm:$0xf]
        %v5697 = vunpack.c.l.b16 %v5665
        %v5698 = vunpack.c.l.b16 %v5666
        %v5699 = vunpack.c.l.b16 %v5667
        %v5700 = vunpack.c.l.b16 %v5668
        %v5701 = vunpack.c.l.b16 %v5669
        %v5702 = vunpack.c.l.b16 %v5670
        %v5703 = vunpack.c.l.b16 %v5671
        %v5704 = vunpack.c.l.b16 %v5672
        %v5705 = vunpack.c.l.b16 %v5673
        %v5706 = vunpack.c.l.b16 %v5674
        %v5707 = vunpack.c.l.b16 %v5675
        %v5708 = vunpack.c.l.b16 %v5676
        %v5709 = vunpack.c.l.b16 %v5677
        %v5710 = vunpack.c.l.b16 %v5678
        %v5711 = vunpack.c.l.b16 %v5679
        %v5712 = vunpack.c.l.b16 %v5680
        %v5713 = vpack.c.b16 %v5698, %v5697
        %v5714 = vpack.c.b16 %v5700, %v5699
        %v5715 = vpack.c.b16 %v5702, %v5701
        %v5716 = vpack.c.b16 %v5704, %v5703
        %v5717 = vpack.c.b16 %v5706, %v5705
        %v5718 = vpack.c.b16 %v5708, %v5707
        %v5719 = vpack.c.b16 %v5710, %v5709
        %v5720 = vpack.c.b16 %v5712, %v5711
        %5729 = vmatprep.subr.bf16.mxu0 0
        %5730 = vmatpush1.bf16.msra.mxu0 %v5713
        %5731 = vmatprep.subr.bf16.mxu0 0
        %5732 = vmatpush1.bf16.msra.mxu0 %v5714
        %5733 = vmatprep.subr.bf16.mxu0 0
        %5734 = vmatpush1.bf16.msra.mxu0 %v5715
        %5735 = vmatprep.subr.bf16.mxu0 0
        %5736 = vmatpush1.bf16.msra.mxu0 %v5716
        %5737 = vmatprep.subr.bf16.mxu0 0
        %5738 = vmatpush1.bf16.msra.mxu0 %v5717
        %5739 = vmatprep.subr.bf16.mxu0 0
        %5740 = vmatpush1.bf16.msra.mxu0 %v5718
        %5741 = vmatprep.subr.bf16.mxu0 0
        %5742 = vmatpush1.bf16.msra.mxu0 %v5719
        %5743 = vmatprep.subr.bf16.mxu0 0
        %5744 = vmatpush1.bf16.msra.mxu0 %v5720
        %5745 = vmatprep.subr.bf16.mxu0 0
        %5746 = vmatpush1.bf16.msra.mxu0 0
        %5747 = vmatprep.subr.bf16.mxu0 0
        %5748 = vmatpush1.bf16.msra.mxu0 0
        %5749 = vmatprep.subr.bf16.mxu0 0
        %5750 = vmatpush1.bf16.msra.mxu0 0
        %5751 = vmatprep.subr.bf16.mxu0 0
        %5752 = vmatpush1.bf16.msra.mxu0 0
        %5753 = vmatprep.subr.bf16.mxu0 0
        %5754 = vmatpush1.bf16.msra.mxu0 0
        %5755 = vmatprep.subr.bf16.mxu0 0
        %5756 = vmatpush1.bf16.msra.mxu0 0
        %5757 = vmatprep.subr.bf16.mxu0 0
        %5758 = vmatpush1.bf16.msra.mxu0 0
        %5759 = vmatprep.subr.bf16.mxu0 0
        %5760 = vmatpush1.bf16.msra.mxu0 0
        %5761 = vmatprep.mubr.bf16.mxu0 0
        %5762 = vmatmul.mubr.bf16.gmra.mrb[0].mxu0 %v1417
        %v5763 = vpop.f32.mrb[0].mxu0
        %v5764 = vadd.f32 0.0, %v5763
        %v5765 = vpop.f32.mrb[0].mxu0
        %v5766 = vpop.f32.mrb[0].mxu0
        %v5767 = vadd.f32 0.0, %v5766
        %v5768 = vpop.f32.mrb[0].mxu0
        %5769 = vmatprep.mubr.bf16.mxu0 0
        %5770 = vmatmul.mubr.bf16.gmra.mrb[0].mxu0 %v1418
        %v5771 = vpop.f32.mrb[0].mxu0
        %v5772 = vadd.f32 0.0, %v5771
        %v5773 = vpop.f32.mrb[0].mxu0
        %v5774 = vpop.f32.mrb[0].mxu0
        %v5775 = vadd.f32 0.0, %v5774
        %v5776 = vpop.f32.mrb[0].mxu0
        %5777 = vmatprep.mubr.bf16.mxu0 0
        %5778 = vmatmul.mubr.bf16.gmra.mrb[0].mxu0 %v1419
        %v5779 = vpop.f32.mrb[0].mxu0
        %v5780 = vadd.f32 0.0, %v5779
        %v5781 = vpop.f32.mrb[0].mxu0
        %v5782 = vpop.f32.mrb[0].mxu0
        %v5783 = vadd.f32 0.0, %v5782
        %v5784 = vpop.f32.mrb[0].mxu0
        %5785 = vmatprep.mubr.bf16.mxu0 0
        %5786 = vmatmul.mubr.bf16.gmra.mrb[0].mxu0 %v1420
        %v5787 = vpop.f32.mrb[0].mxu0
        %v5788 = vadd.f32 0.0, %v5787
        %v5789 = vpop.f32.mrb[0].mxu0
        %v5790 = vpop.f32.mrb[0].mxu0
        %v5791 = vadd.f32 0.0, %v5790
        %v5792 = vpop.f32.mrb[0].mxu0
        %5793 = vdwg.mxu0
        %v5794 = vadd.f32 %v5656, %v5764
        %v5795 = vadd.f32 %v5657, %v5767
        %v5796 = vadd.f32 %v5658, %v5772
        %v5797 = vadd.f32 %v5659, %v5775
        %v5798 = vadd.f32 %v5660, %v5780
        %v5799 = vadd.f32 %v5661, %v5783
        %v5800 = vadd.f32 %v5662, %v5788
        %v5801 = vadd.f32 %v5663, %v5791
        %s5802 = scalar_lea.vmem [#allocation5], 1856
        %v5803 = vld [vmem:[%s5802] sm:$0xf]
        %v5804 = vld [vmem:[%s5802 + $0x4] sm:$0xf]
        %v5805 = vld [vmem:[%s5802 + $0x8] sm:$0xf]
        %v5806 = vld [vmem:[%s5802 + $0xc] sm:$0xf]
        %v5807 = vld [vmem:[%s5802 + $0x10] sm:$0xf]
        %v5808 = vld [vmem:[%s5802 + $0x14] sm:$0xf]
        %v5809 = vld [vmem:[%s5802 + $0x18] sm:$0xf]
        %v5810 = vld [vmem:[%s5802 + $0x1c] sm:$0xf]
        %v5811 = vld [vmem:[%s5802 + $0x20] sm:$0xf]
        %v5812 = vld [vmem:[%s5802 + $0x24] sm:$0xf]
        %v5813 = vld [vmem:[%s5802 + $0x28] sm:$0xf]
        %v5814 = vld [vmem:[%s5802 + $0x2c] sm:$0xf]
        %v5815 = vld [vmem:[%s5802 + $0x30] sm:$0xf]
        %v5816 = vld [vmem:[%s5802 + $0x34] sm:$0xf]
        %v5817 = vld [vmem:[%s5802 + $0x38] sm:$0xf]
        %v5818 = vld [vmem:[%s5802 + $0x3c] sm:$0xf]
        %v5835 = vunpack.c.l.b16 %v5803
        %v5836 = vunpack.c.l.b16 %v5804
        %v5837 = vunpack.c.l.b16 %v5805
        %v5838 = vunpack.c.l.b16 %v5806
        %v5839 = vunpack.c.l.b16 %v5807
        %v5840 = vunpack.c.l.b16 %v5808
        %v5841 = vunpack.c.l.b16 %v5809
        %v5842 = vunpack.c.l.b16 %v5810
        %v5843 = vunpack.c.l.b16 %v5811
        %v5844 = vunpack.c.l.b16 %v5812
        %v5845 = vunpack.c.l.b16 %v5813
        %v5846 = vunpack.c.l.b16 %v5814
        %v5847 = vunpack.c.l.b16 %v5815
        %v5848 = vunpack.c.l.b16 %v5816
        %v5849 = vunpack.c.l.b16 %v5817
        %v5850 = vunpack.c.l.b16 %v5818
        %v5851 = vpack.c.b16 %v5836, %v5835
        %v5852 = vpack.c.b16 %v5838, %v5837
        %v5853 = vpack.c.b16 %v5840, %v5839
        %v5854 = vpack.c.b16 %v5842, %v5841
        %v5855 = vpack.c.b16 %v5844, %v5843
        %v5856 = vpack.c.b16 %v5846, %v5845
        %v5857 = vpack.c.b16 %v5848, %v5847
        %v5858 = vpack.c.b16 %v5850, %v5849
        %5867 = vmatprep.subr.bf16.mxu0 0
        %5868 = vmatpush1.bf16.msra.mxu0 %v5851
        %5869 = vmatprep.subr.bf16.mxu0 0
        %5870 = vmatpush1.bf16.msra.mxu0 %v5852
        %5871 = vmatprep.subr.bf16.mxu0 0
        %5872 = vmatpush1.bf16.msra.mxu0 %v5853
        %5873 = vmatprep.subr.bf16.mxu0 0
        %5874 = vmatpush1.bf16.msra.mxu0 %v5854
        %5875 = vmatprep.subr.bf16.mxu0 0
        %5876 = vmatpush1.bf16.msra.mxu0 %v5855
        %5877 = vmatprep.subr.bf16.mxu0 0
        %5878 = vmatpush1.bf16.msra.mxu0 %v5856
        %5879 = vmatprep.subr.bf16.mxu0 0
        %5880 = vmatpush1.bf16.msra.mxu0 %v5857
        %5881 = vmatprep.subr.bf16.mxu0 0
        %5882 = vmatpush1.bf16.msra.mxu0 %v5858
        %5883 = vmatprep.subr.bf16.mxu0 0
        %5884 = vmatpush1.bf16.msra.mxu0 0
        %5885 = vmatprep.subr.bf16.mxu0 0
        %5886 = vmatpush1.bf16.msra.mxu0 0
        %5887 = vmatprep.subr.bf16.mxu0 0
        %5888 = vmatpush1.bf16.msra.mxu0 0
        %5889 = vmatprep.subr.bf16.mxu0 0
        %5890 = vmatpush1.bf16.msra.mxu0 0
        %5891 = vmatprep.subr.bf16.mxu0 0
        %5892 = vmatpush1.bf16.msra.mxu0 0
        %5893 = vmatprep.subr.bf16.mxu0 0
        %5894 = vmatpush1.bf16.msra.mxu0 0
        %5895 = vmatprep.subr.bf16.mxu0 0
        %5896 = vmatpush1.bf16.msra.mxu0 0
        %5897 = vmatprep.subr.bf16.mxu0 0
        %5898 = vmatpush1.bf16.msra.mxu0 0
        %5899 = vmatprep.mubr.bf16.mxu0 0
        %5900 = vmatmul.mubr.bf16.gmra.mrb[0].mxu0 %v1588
        %v5901 = vpop.f32.mrb[0].mxu0
        %v5902 = vadd.f32 0.0, %v5901
        %v5903 = vpop.f32.mrb[0].mxu0
        %v5904 = vpop.f32.mrb[0].mxu0
        %v5905 = vadd.f32 0.0, %v5904
        %v5906 = vpop.f32.mrb[0].mxu0
        %5907 = vmatprep.mubr.bf16.mxu0 0
        %5908 = vmatmul.mubr.bf16.gmra.mrb[0].mxu0 %v1589
        %v5909 = vpop.f32.mrb[0].mxu0
        %v5910 = vadd.f32 0.0, %v5909
        %v5911 = vpop.f32.mrb[0].mxu0
        %v5912 = vpop.f32.mrb[0].mxu0
        %v5913 = vadd.f32 0.0, %v5912
        %v5914 = vpop.f32.mrb[0].mxu0
        %5915 = vmatprep.mubr.bf16.mxu0 0
        %5916 = vmatmul.mubr.bf16.gmra.mrb[0].mxu0 %v1590
        %v5917 = vpop.f32.mrb[0].mxu0
        %v5918 = vadd.f32 0.0, %v5917
        %v5919 = vpop.f32.mrb[0].mxu0
        %v5920 = vpop.f32.mrb[0].mxu0
        %v5921 = vadd.f32 0.0, %v5920
        %v5922 = vpop.f32.mrb[0].mxu0
        %5923 = vmatprep.mubr.bf16.mxu0 0
        %5924 = vmatmul.mubr.bf16.gmra.mrb[0].mxu0 %v1591
        %v5925 = vpop.f32.mrb[0].mxu0
        %v5926 = vadd.f32 0.0, %v5925
        %v5927 = vpop.f32.mrb[0].mxu0
        %v5928 = vpop.f32.mrb[0].mxu0
        %v5929 = vadd.f32 0.0, %v5928
        %v5930 = vpop.f32.mrb[0].mxu0
        %5931 = vdwg.mxu0
        %v5932 = vadd.f32 %v5794, %v5902
        %v5933 = vadd.f32 %v5795, %v5905
        %v5934 = vadd.f32 %v5796, %v5910
        %v5935 = vadd.f32 %v5797, %v5913
        %v5936 = vadd.f32 %v5798, %v5918
        %v5937 = vadd.f32 %v5799, %v5921
        %v5938 = vadd.f32 %v5800, %v5926
        %v5939 = vadd.f32 %v5801, %v5929
        %s5940 = scalar_lea.vmem [#allocation5], 2048
        %v5941 = vld [vmem:[%s5940] sm:$0xf]
        %v5942 = vld [vmem:[%s5940 + $0x4] sm:$0xf]
        %v5943 = vld [vmem:[%s5940 + $0x8] sm:$0xf]
        %v5944 = vld [vmem:[%s5940 + $0xc] sm:$0xf]
        %v5945 = vld [vmem:[%s5940 + $0x10] sm:$0xf]
        %v5946 = vld [vmem:[%s5940 + $0x14] sm:$0xf]
        %v5947 = vld [vmem:[%s5940 + $0x18] sm:$0xf]
        %v5948 = vld [vmem:[%s5940 + $0x1c] sm:$0xf]
        %v5949 = vld [vmem:[%s5940 + $0x20] sm:$0xf]
        %v5950 = vld [vmem:[%s5940 + $0x24] sm:$0xf]
        %v5951 = vld [vmem:[%s5940 + $0x28] sm:$0xf]
        %v5952 = vld [vmem:[%s5940 + $0x2c] sm:$0xf]
        %v5953 = vld [vmem:[%s5940 + $0x30] sm:$0xf]
        %v5954 = vld [vmem:[%s5940 + $0x34] sm:$0xf]
        %v5955 = vld [vmem:[%s5940 + $0x38] sm:$0xf]
        %v5956 = vld [vmem:[%s5940 + $0x3c] sm:$0xf]
        %v5973 = vunpack.c.l.b16 %v5941
        %v5974 = vunpack.c.l.b16 %v5942
        %v5975 = vunpack.c.l.b16 %v5943
        %v5976 = vunpack.c.l.b16 %v5944
        %v5977 = vunpack.c.l.b16 %v5945
        %v5978 = vunpack.c.l.b16 %v5946
        %v5979 = vunpack.c.l.b16 %v5947
        %v5980 = vunpack.c.l.b16 %v5948
        %v5981 = vunpack.c.l.b16 %v5949
        %v5982 = vunpack.c.l.b16 %v5950
        %v5983 = vunpack.c.l.b16 %v5951
        %v5984 = vunpack.c.l.b16 %v5952
        %v5985 = vunpack.c.l.b16 %v5953
        %v5986 = vunpack.c.l.b16 %v5954
        %v5987 = vunpack.c.l.b16 %v5955
        %v5988 = vunpack.c.l.b16 %v5956
        %v5989 = vpack.c.b16 %v5974, %v5973
        %v5990 = vpack.c.b16 %v5976, %v5975
        %v5991 = vpack.c.b16 %v5978, %v5977
        %v5992 = vpack.c.b16 %v5980, %v5979
        %v5993 = vpack.c.b16 %v5982, %v5981
        %v5994 = vpack.c.b16 %v5984, %v5983
        %v5995 = vpack.c.b16 %v5986, %v5985
        %v5996 = vpack.c.b16 %v5988, %v5987
        %6005 = vmatprep.subr.bf16.mxu0 0
        %6006 = vmatpush1.bf16.msra.mxu0 %v5989
        %6007 = vmatprep.subr.bf16.mxu0 0
        %6008 = vmatpush1.bf16.msra.mxu0 %v5990
        %6009 = vmatprep.subr.bf16.mxu0 0
        %6010 = vmatpush1.bf16.msra.mxu0 %v5991
        %6011 = vmatprep.subr.bf16.mxu0 0
        %6012 = vmatpush1.bf16.msra.mxu0 %v5992
        %6013 = vmatprep.subr.bf16.mxu0 0
        %6014 = vmatpush1.bf16.msra.mxu0 %v5993
        %6015 = vmatprep.subr.bf16.mxu0 0
        %6016 = vmatpush1.bf16.msra.mxu0 %v5994
        %6017 = vmatprep.subr.bf16.mxu0 0
        %6018 = vmatpush1.bf16.msra.mxu0 %v5995
        %6019 = vmatprep.subr.bf16.mxu0 0
        %6020 = vmatpush1.bf16.msra.mxu0 %v5996
        %6021 = vmatprep.subr.bf16.mxu0 0
        %6022 = vmatpush1.bf16.msra.mxu0 0
        %6023 = vmatprep.subr.bf16.mxu0 0
        %6024 = vmatpush1.bf16.msra.mxu0 0
        %6025 = vmatprep.subr.bf16.mxu0 0
        %6026 = vmatpush1.bf16.msra.mxu0 0
        %6027 = vmatprep.subr.bf16.mxu0 0
        %6028 = vmatpush1.bf16.msra.mxu0 0
        %6029 = vmatprep.subr.bf16.mxu0 0
        %6030 = vmatpush1.bf16.msra.mxu0 0
        %6031 = vmatprep.subr.bf16.mxu0 0
        %6032 = vmatpush1.bf16.msra.mxu0 0
        %6033 = vmatprep.subr.bf16.mxu0 0
        %6034 = vmatpush1.bf16.msra.mxu0 0
        %6035 = vmatprep.subr.bf16.mxu0 0
        %6036 = vmatpush1.bf16.msra.mxu0 0
        %6037 = vmatprep.mubr.bf16.mxu0 0
        %6038 = vmatmul.mubr.bf16.gmra.mrb[0].mxu0 %v1758
        %v6039 = vpop.f32.mrb[0].mxu0
        %v6040 = vadd.f32 0.0, %v6039
        %v6041 = vpop.f32.mrb[0].mxu0
        %v6042 = vpop.f32.mrb[0].mxu0
        %v6043 = vadd.f32 0.0, %v6042
        %v6044 = vpop.f32.mrb[0].mxu0
        %6045 = vmatprep.mubr.bf16.mxu0 0
        %6046 = vmatmul.mubr.bf16.gmra.mrb[0].mxu0 %v1759
        %v6047 = vpop.f32.mrb[0].mxu0
        %v6048 = vadd.f32 0.0, %v6047
        %v6049 = vpop.f32.mrb[0].mxu0
        %v6050 = vpop.f32.mrb[0].mxu0
        %v6051 = vadd.f32 0.0, %v6050
        %v6052 = vpop.f32.mrb[0].mxu0
        %6053 = vmatprep.mubr.bf16.mxu0 0
        %6054 = vmatmul.mubr.bf16.gmra.mrb[0].mxu0 %v1760
        %v6055 = vpop.f32.mrb[0].mxu0
        %v6056 = vadd.f32 0.0, %v6055
        %v6057 = vpop.f32.mrb[0].mxu0
        %v6058 = vpop.f32.mrb[0].mxu0
        %v6059 = vadd.f32 0.0, %v6058
        %v6060 = vpop.f32.mrb[0].mxu0
        %6061 = vmatprep.mubr.bf16.mxu0 0
        %6062 = vmatmul.mubr.bf16.gmra.mrb[0].mxu0 %v1761
        %v6063 = vpop.f32.mrb[0].mxu0
        %v6064 = vadd.f32 0.0, %v6063
        %v6065 = vpop.f32.mrb[0].mxu0
        %v6066 = vpop.f32.mrb[0].mxu0
        %v6067 = vadd.f32 0.0, %v6066
        %v6068 = vpop.f32.mrb[0].mxu0
        %6069 = vdwg.mxu0
        %v6070 = vadd.f32 %v5932, %v6040
        %v6071 = vadd.f32 %v5933, %v6043
        %v6072 = vadd.f32 %v5934, %v6048
        %v6073 = vadd.f32 %v5935, %v6051
        %v6074 = vadd.f32 %v5936, %v6056
        %v6075 = vadd.f32 %v5937, %v6059
        %v6076 = vadd.f32 %v5938, %v6064
        %v6077 = vadd.f32 %v5939, %v6067
        %s6078 = scalar_lea.vmem [#allocation5], 2240
        %v6079 = vld [vmem:[%s6078] sm:$0xf]
        %v6080 = vld [vmem:[%s6078 + $0x4] sm:$0xf]
        %v6081 = vld [vmem:[%s6078 + $0x8] sm:$0xf]
        %v6082 = vld [vmem:[%s6078 + $0xc] sm:$0xf]
        %v6083 = vld [vmem:[%s6078 + $0x10] sm:$0xf]
        %v6084 = vld [vmem:[%s6078 + $0x14] sm:$0xf]
        %v6085 = vld [vmem:[%s6078 + $0x18] sm:$0xf]
        %v6086 = vld [vmem:[%s6078 + $0x1c] sm:$0xf]
        %v6087 = vld [vmem:[%s6078 + $0x20] sm:$0xf]
        %v6088 = vld [vmem:[%s6078 + $0x24] sm:$0xf]
        %v6089 = vld [vmem:[%s6078 + $0x28] sm:$0xf]
        %v6090 = vld [vmem:[%s6078 + $0x2c] sm:$0xf]
        %v6091 = vld [vmem:[%s6078 + $0x30] sm:$0xf]
        %v6092 = vld [vmem:[%s6078 + $0x34] sm:$0xf]
        %v6093 = vld [vmem:[%s6078 + $0x38] sm:$0xf]
        %v6094 = vld [vmem:[%s6078 + $0x3c] sm:$0xf]
        %v6111 = vunpack.c.l.b16 %v6079
        %v6112 = vunpack.c.l.b16 %v6080
        %v6113 = vunpack.c.l.b16 %v6081
        %v6114 = vunpack.c.l.b16 %v6082
        %v6115 = vunpack.c.l.b16 %v6083
        %v6116 = vunpack.c.l.b16 %v6084
        %v6117 = vunpack.c.l.b16 %v6085
        %v6118 = vunpack.c.l.b16 %v6086
        %v6119 = vunpack.c.l.b16 %v6087
        %v6120 = vunpack.c.l.b16 %v6088
        %v6121 = vunpack.c.l.b16 %v6089
        %v6122 = vunpack.c.l.b16 %v6090
        %v6123 = vunpack.c.l.b16 %v6091
        %v6124 = vunpack.c.l.b16 %v6092
        %v6125 = vunpack.c.l.b16 %v6093
        %v6126 = vunpack.c.l.b16 %v6094
        %v6127 = vpack.c.b16 %v6112, %v6111
        %v6128 = vpack.c.b16 %v6114, %v6113
        %v6129 = vpack.c.b16 %v6116, %v6115
        %v6130 = vpack.c.b16 %v6118, %v6117
        %v6131 = vpack.c.b16 %v6120, %v6119
        %v6132 = vpack.c.b16 %v6122, %v6121
        %v6133 = vpack.c.b16 %v6124, %v6123
        %v6134 = vpack.c.b16 %v6126, %v6125
        %6143 = vmatprep.subr.bf16.mxu0 0
        %6144 = vmatpush1.bf16.msra.mxu0 %v6127
        %6145 = vmatprep.subr.bf16.mxu0 0
        %6146 = vmatpush1.bf16.msra.mxu0 %v6128
        %6147 = vmatprep.subr.bf16.mxu0 0
        %6148 = vmatpush1.bf16.msra.mxu0 %v6129
        %6149 = vmatprep.subr.bf16.mxu0 0
        %6150 = vmatpush1.bf16.msra.mxu0 %v6130
        %6151 = vmatprep.subr.bf16.mxu0 0
        %6152 = vmatpush1.bf16.msra.mxu0 %v6131
        %6153 = vmatprep.subr.bf16.mxu0 0
        %6154 = vmatpush1.bf16.msra.mxu0 %v6132
        %6155 = vmatprep.subr.bf16.mxu0 0
        %6156 = vmatpush1.bf16.msra.mxu0 %v6133
        %6157 = vmatprep.subr.bf16.mxu0 0
        %6158 = vmatpush1.bf16.msra.mxu0 %v6134
        %6159 = vmatprep.subr.bf16.mxu0 0
        %6160 = vmatpush1.bf16.msra.mxu0 0
        %6161 = vmatprep.subr.bf16.mxu0 0
        %6162 = vmatpush1.bf16.msra.mxu0 0
        %6163 = vmatprep.subr.bf16.mxu0 0
        %6164 = vmatpush1.bf16.msra.mxu0 0
        %6165 = vmatprep.subr.bf16.mxu0 0
        %6166 = vmatpush1.bf16.msra.mxu0 0
        %6167 = vmatprep.subr.bf16.mxu0 0
        %6168 = vmatpush1.bf16.msra.mxu0 0
        %6169 = vmatprep.subr.bf16.mxu0 0
        %6170 = vmatpush1.bf16.msra.mxu0 0
        %6171 = vmatprep.subr.bf16.mxu0 0
        %6172 = vmatpush1.bf16.msra.mxu0 0
        %6173 = vmatprep.subr.bf16.mxu0 0
        %6174 = vmatpush1.bf16.msra.mxu0 0
        %6175 = vmatprep.mubr.bf16.mxu0 0
        %6176 = vmatmul.mubr.bf16.gmra.mrb[0].mxu0 %v1929
        %v6177 = vpop.f32.mrb[0].mxu0
        %v6178 = vadd.f32 0.0, %v6177
        %v6179 = vpop.f32.mrb[0].mxu0
        %v6180 = vpop.f32.mrb[0].mxu0
        %v6181 = vadd.f32 0.0, %v6180
        %v6182 = vpop.f32.mrb[0].mxu0
        %6183 = vmatprep.mubr.bf16.mxu0 0
        %6184 = vmatmul.mubr.bf16.gmra.mrb[0].mxu0 %v1930
        %v6185 = vpop.f32.mrb[0].mxu0
        %v6186 = vadd.f32 0.0, %v6185
        %v6187 = vpop.f32.mrb[0].mxu0
        %v6188 = vpop.f32.mrb[0].mxu0
        %v6189 = vadd.f32 0.0, %v6188
        %v6190 = vpop.f32.mrb[0].mxu0
        %6191 = vmatprep.mubr.bf16.mxu0 0
        %6192 = vmatmul.mubr.bf16.gmra.mrb[0].mxu0 %v1931
        %v6193 = vpop.f32.mrb[0].mxu0
        %v6194 = vadd.f32 0.0, %v6193
        %v6195 = vpop.f32.mrb[0].mxu0
        %v6196 = vpop.f32.mrb[0].mxu0
        %v6197 = vadd.f32 0.0, %v6196
        %v6198 = vpop.f32.mrb[0].mxu0
        %6199 = vmatprep.mubr.bf16.mxu0 0
        %6200 = vmatmul.mubr.bf16.gmra.mrb[0].mxu0 %v1932
        %v6201 = vpop.f32.mrb[0].mxu0
        %v6202 = vadd.f32 0.0, %v6201
        %v6203 = vpop.f32.mrb[0].mxu0
        %v6204 = vpop.f32.mrb[0].mxu0
        %v6205 = vadd.f32 0.0, %v6204
        %v6206 = vpop.f32.mrb[0].mxu0
        %6207 = vdwg.mxu0
        %v6208 = vadd.f32 %v6070, %v6178
        %v6209 = vadd.f32 %v6071, %v6181
        %v6210 = vadd.f32 %v6072, %v6186
        %v6211 = vadd.f32 %v6073, %v6189
        %v6212 = vadd.f32 %v6074, %v6194
        %v6213 = vadd.f32 %v6075, %v6197
        %v6214 = vadd.f32 %v6076, %v6202
        %v6215 = vadd.f32 %v6077, %v6205
        %s6216 = scalar_lea.vmem [#allocation7], 3
        %v6217 = vld [vmem:[%s6216] sm:$0x1]
        %v6219 = vlaneseq
        %v6220 = vshrl.u32 %v6219, 7
        %v6221 = vsub.s32 0, %v6220
        %v6222 = vrot.slane %v6217, %v6221
        %v6224 = vadd.f32 %v6208, %v6222
        %v6225 = vadd.f32 %v6209, %v6222
        %v6226 = vadd.f32 %v6210, %v6222
        %v6227 = vadd.f32 %v6211, %v6222
        %v6228 = vadd.f32 %v6212, %v6222
        %v6229 = vadd.f32 %v6213, %v6222
        %v6230 = vadd.f32 %v6214, %v6222
        %v6231 = vadd.f32 %v6215, %v6222
        %v6232 = vmax.f32 %v6224, 0.0
        %v6233 = vmax.f32 %v6225, 0.0
        %v6234 = vmax.f32 %v6226, 0.0
        %v6235 = vmax.f32 %v6227, 0.0
        %v6236 = vmax.f32 %v6228, 0.0
        %v6237 = vmax.f32 %v6229, 0.0
        %v6238 = vmax.f32 %v6230, 0.0
        %v6239 = vmax.f32 %v6231, 0.0
        %v6240 = vpack.c.bf16 %v6233, %v6232
        %v6241 = vpack.c.bf16 %v6235, %v6234
        %v6242 = vpack.c.bf16 %v6237, %v6236
        %v6243 = vpack.c.bf16 %v6239, %v6238
        %s6244 = scalar_lea.vmem [#allocation8], 192
        %v6245 = vld [vmem:[%s6244] sm:$0xf]
        %v6246 = vld [vmem:[%s6244 + $0x4] sm:$0xf]
        %v6247 = vld [vmem:[%s6244 + $0x8] sm:$0xf]
        %v6248 = vld [vmem:[%s6244 + $0xc] sm:$0xf]
        %v6249 = vld [vmem:[%s6244 + $0x10] sm:$0xf]
        %v6250 = vld [vmem:[%s6244 + $0x14] sm:$0xf]
        %v6251 = vld [vmem:[%s6244 + $0x18] sm:$0xf]
        %v6252 = vld [vmem:[%s6244 + $0x1c] sm:$0xf]
        %v6253 = vld [vmem:[%s6244 + $0x20] sm:$0xf]
        %v6254 = vld [vmem:[%s6244 + $0x24] sm:$0xf]
        %v6255 = vld [vmem:[%s6244 + $0x28] sm:$0xf]
        %v6256 = vld [vmem:[%s6244 + $0x2c] sm:$0xf]
        %v6257 = vld [vmem:[%s6244 + $0x30] sm:$0xf]
        %v6258 = vld [vmem:[%s6244 + $0x34] sm:$0xf]
        %v6259 = vld [vmem:[%s6244 + $0x38] sm:$0xf]
        %v6260 = vld [vmem:[%s6244 + $0x3c] sm:$0xf]
        %v6277 = vunpack.c.l.b16 %v6245
        %v6278 = vunpack.c.l.b16 %v6246
        %v6279 = vunpack.c.l.b16 %v6247
        %v6280 = vunpack.c.l.b16 %v6248
        %v6281 = vunpack.c.l.b16 %v6249
        %v6282 = vunpack.c.l.b16 %v6250
        %v6283 = vunpack.c.l.b16 %v6251
        %v6284 = vunpack.c.l.b16 %v6252
        %v6285 = vunpack.c.l.b16 %v6253
        %v6286 = vunpack.c.l.b16 %v6254
        %v6287 = vunpack.c.l.b16 %v6255
        %v6288 = vunpack.c.l.b16 %v6256
        %v6289 = vunpack.c.l.b16 %v6257
        %v6290 = vunpack.c.l.b16 %v6258
        %v6291 = vunpack.c.l.b16 %v6259
        %v6292 = vunpack.c.l.b16 %v6260
        %v6293 = vpack.c.b16 %v6278, %v6277
        %v6294 = vpack.c.b16 %v6280, %v6279
        %v6295 = vpack.c.b16 %v6282, %v6281
        %v6296 = vpack.c.b16 %v6284, %v6283
        %v6297 = vpack.c.b16 %v6286, %v6285
        %v6298 = vpack.c.b16 %v6288, %v6287
        %v6299 = vpack.c.b16 %v6290, %v6289
        %v6300 = vpack.c.b16 %v6292, %v6291
        %6309 = vmatprep.subr.bf16.mxu0 0
        %6310 = vmatpush1.bf16.msra.mxu0 %v6293
        %6311 = vmatprep.subr.bf16.mxu0 0
        %6312 = vmatpush1.bf16.msra.mxu0 %v6294
        %6313 = vmatprep.subr.bf16.mxu0 0
        %6314 = vmatpush1.bf16.msra.mxu0 %v6295
        %6315 = vmatprep.subr.bf16.mxu0 0
        %6316 = vmatpush1.bf16.msra.mxu0 %v6296
        %6317 = vmatprep.subr.bf16.mxu0 0
        %6318 = vmatpush1.bf16.msra.mxu0 %v6297
        %6319 = vmatprep.subr.bf16.mxu0 0
        %6320 = vmatpush1.bf16.msra.mxu0 %v6298
        %6321 = vmatprep.subr.bf16.mxu0 0
        %6322 = vmatpush1.bf16.msra.mxu0 %v6299
        %6323 = vmatprep.subr.bf16.mxu0 0
        %6324 = vmatpush1.bf16.msra.mxu0 %v6300
        %6325 = vmatprep.subr.bf16.mxu0 0
        %6326 = vmatpush1.bf16.msra.mxu0 0
        %6327 = vmatprep.subr.bf16.mxu0 0
        %6328 = vmatpush1.bf16.msra.mxu0 0
        %6329 = vmatprep.subr.bf16.mxu0 0
        %6330 = vmatpush1.bf16.msra.mxu0 0
        %6331 = vmatprep.subr.bf16.mxu0 0
        %6332 = vmatpush1.bf16.msra.mxu0 0
        %6333 = vmatprep.subr.bf16.mxu0 0
        %6334 = vmatpush1.bf16.msra.mxu0 0
        %6335 = vmatprep.subr.bf16.mxu0 0
        %6336 = vmatpush1.bf16.msra.mxu0 0
        %6337 = vmatprep.subr.bf16.mxu0 0
        %6338 = vmatpush1.bf16.msra.mxu0 0
        %6339 = vmatprep.subr.bf16.mxu0 0
        %6340 = vmatpush1.bf16.msra.mxu0 0
        %6341 = vmatprep.mubr.bf16.mxu0 0
        %6342 = vmatmul.mubr.bf16.gmra.mrb[0].mxu0 %v6240
        %v6343 = vpop.f32.mrb[0].mxu0
        %v6344 = vadd.f32 0.0, %v6343
        %v6345 = vpop.f32.mrb[0].mxu0
        %v6346 = vpop.f32.mrb[0].mxu0
        %v6347 = vadd.f32 0.0, %v6346
        %v6348 = vpop.f32.mrb[0].mxu0
        %6349 = vmatprep.mubr.bf16.mxu0 0
        %6350 = vmatmul.mubr.bf16.gmra.mrb[0].mxu0 %v6241
        %v6351 = vpop.f32.mrb[0].mxu0
        %v6352 = vadd.f32 0.0, %v6351
        %v6353 = vpop.f32.mrb[0].mxu0
        %v6354 = vpop.f32.mrb[0].mxu0
        %v6355 = vadd.f32 0.0, %v6354
        %v6356 = vpop.f32.mrb[0].mxu0
        %6357 = vmatprep.mubr.bf16.mxu0 0
        %6358 = vmatmul.mubr.bf16.gmra.mrb[0].mxu0 %v6242
        %v6359 = vpop.f32.mrb[0].mxu0
        %v6360 = vadd.f32 0.0, %v6359
        %v6361 = vpop.f32.mrb[0].mxu0
        %v6362 = vpop.f32.mrb[0].mxu0
        %v6363 = vadd.f32 0.0, %v6362
        %v6364 = vpop.f32.mrb[0].mxu0
        %6365 = vmatprep.mubr.bf16.mxu0 0
        %6366 = vmatmul.mubr.bf16.gmra.mrb[0].mxu0 %v6243
        %v6367 = vpop.f32.mrb[0].mxu0
        %v6368 = vadd.f32 0.0, %v6367
        %v6369 = vpop.f32.mrb[0].mxu0
        %v6370 = vpop.f32.mrb[0].mxu0
        %v6371 = vadd.f32 0.0, %v6370
        %v6372 = vpop.f32.mrb[0].mxu0
        %6373 = vdwg.mxu0
        %v6374 = vadd.f32 %v4982, %v6344
        %v6375 = vadd.f32 %v4983, %v6347
        %v6376 = vadd.f32 %v4984, %v6352
        %v6377 = vadd.f32 %v4985, %v6355
        %v6378 = vadd.f32 %v4986, %v6360
        %v6379 = vadd.f32 %v4987, %v6363
        %v6380 = vadd.f32 %v4988, %v6368
        %v6381 = vadd.f32 %v4989, %v6371
        %s6382 = scalar_lea.vmem [#allocation5], 2304
        %v6383 = vld [vmem:[%s6382] sm:$0xf]
        %v6384 = vld [vmem:[%s6382 + $0x4] sm:$0xf]
        %v6385 = vld [vmem:[%s6382 + $0x8] sm:$0xf]
        %v6386 = vld [vmem:[%s6382 + $0xc] sm:$0xf]
        %v6387 = vld [vmem:[%s6382 + $0x10] sm:$0xf]
        %v6388 = vld [vmem:[%s6382 + $0x14] sm:$0xf]
        %v6389 = vld [vmem:[%s6382 + $0x18] sm:$0xf]
        %v6390 = vld [vmem:[%s6382 + $0x1c] sm:$0xf]
        %v6391 = vld [vmem:[%s6382 + $0x20] sm:$0xf]
        %v6392 = vld [vmem:[%s6382 + $0x24] sm:$0xf]
        %v6393 = vld [vmem:[%s6382 + $0x28] sm:$0xf]
        %v6394 = vld [vmem:[%s6382 + $0x2c] sm:$0xf]
        %v6395 = vld [vmem:[%s6382 + $0x30] sm:$0xf]
        %v6396 = vld [vmem:[%s6382 + $0x34] sm:$0xf]
        %v6397 = vld [vmem:[%s6382 + $0x38] sm:$0xf]
        %v6398 = vld [vmem:[%s6382 + $0x3c] sm:$0xf]
        %s6399 = scalar_lea.vmem [#allocation5], 2496
        %v6400 = vld [vmem:[%s6399] sm:$0xf]
        %v6401 = vld [vmem:[%s6399 + $0x4] sm:$0xf]
        %v6402 = vld [vmem:[%s6399 + $0x8] sm:$0xf]
        %v6403 = vld [vmem:[%s6399 + $0xc] sm:$0xf]
        %v6404 = vld [vmem:[%s6399 + $0x10] sm:$0xf]
        %v6405 = vld [vmem:[%s6399 + $0x14] sm:$0xf]
        %v6406 = vld [vmem:[%s6399 + $0x18] sm:$0xf]
        %v6407 = vld [vmem:[%s6399 + $0x1c] sm:$0xf]
        %v6408 = vld [vmem:[%s6399 + $0x20] sm:$0xf]
        %v6409 = vld [vmem:[%s6399 + $0x24] sm:$0xf]
        %v6410 = vld [vmem:[%s6399 + $0x28] sm:$0xf]
        %v6411 = vld [vmem:[%s6399 + $0x2c] sm:$0xf]
        %v6412 = vld [vmem:[%s6399 + $0x30] sm:$0xf]
        %v6413 = vld [vmem:[%s6399 + $0x34] sm:$0xf]
        %v6414 = vld [vmem:[%s6399 + $0x38] sm:$0xf]
        %v6415 = vld [vmem:[%s6399 + $0x3c] sm:$0xf]
        %v6432 = vunpack.c.l.b16 %v6400
        %v6433 = vunpack.c.l.b16 %v6401
        %v6434 = vunpack.c.l.b16 %v6402
        %v6435 = vunpack.c.l.b16 %v6403
        %v6436 = vunpack.c.l.b16 %v6404
        %v6437 = vunpack.c.l.b16 %v6405
        %v6438 = vunpack.c.l.b16 %v6406
        %v6439 = vunpack.c.l.b16 %v6407
        %v6440 = vunpack.c.l.b16 %v6408
        %v6441 = vunpack.c.l.b16 %v6409
        %v6442 = vunpack.c.l.b16 %v6410
        %v6443 = vunpack.c.l.b16 %v6411
        %v6444 = vunpack.c.l.b16 %v6412
        %v6445 = vunpack.c.l.b16 %v6413
        %v6446 = vunpack.c.l.b16 %v6414
        %v6447 = vunpack.c.l.b16 %v6415
        %v6448 = vpack.c.b16 %v6433, %v6432
        %v6449 = vpack.c.b16 %v6435, %v6434
        %v6450 = vpack.c.b16 %v6437, %v6436
        %v6451 = vpack.c.b16 %v6439, %v6438
        %v6452 = vpack.c.b16 %v6441, %v6440
        %v6453 = vpack.c.b16 %v6443, %v6442
        %v6454 = vpack.c.b16 %v6445, %v6444
        %v6455 = vpack.c.b16 %v6447, %v6446
        %6464 = vmatprep.subr.bf16.mxu0 0
        %6465 = vmatpush1.bf16.msra.mxu0 %v6448
        %6466 = vmatprep.subr.bf16.mxu0 0
        %6467 = vmatpush1.bf16.msra.mxu0 %v6449
        %6468 = vmatprep.subr.bf16.mxu0 0
        %6469 = vmatpush1.bf16.msra.mxu0 %v6450
        %6470 = vmatprep.subr.bf16.mxu0 0
        %6471 = vmatpush1.bf16.msra.mxu0 %v6451
        %6472 = vmatprep.subr.bf16.mxu0 0
        %6473 = vmatpush1.bf16.msra.mxu0 %v6452
        %6474 = vmatprep.subr.bf16.mxu0 0
        %6475 = vmatpush1.bf16.msra.mxu0 %v6453
        %6476 = vmatprep.subr.bf16.mxu0 0
        %6477 = vmatpush1.bf16.msra.mxu0 %v6454
        %6478 = vmatprep.subr.bf16.mxu0 0
        %6479 = vmatpush1.bf16.msra.mxu0 %v6455
        %6480 = vmatprep.subr.bf16.mxu0 0
        %6481 = vmatpush1.bf16.msra.mxu0 0
        %6482 = vmatprep.subr.bf16.mxu0 0
        %6483 = vmatpush1.bf16.msra.mxu0 0
        %6484 = vmatprep.subr.bf16.mxu0 0
        %6485 = vmatpush1.bf16.msra.mxu0 0
        %6486 = vmatprep.subr.bf16.mxu0 0
        %6487 = vmatpush1.bf16.msra.mxu0 0
        %6488 = vmatprep.subr.bf16.mxu0 0
        %6489 = vmatpush1.bf16.msra.mxu0 0
        %6490 = vmatprep.subr.bf16.mxu0 0
        %6491 = vmatpush1.bf16.msra.mxu0 0
        %6492 = vmatprep.subr.bf16.mxu0 0
        %6493 = vmatpush1.bf16.msra.mxu0 0
        %6494 = vmatprep.subr.bf16.mxu0 0
        %6495 = vmatpush1.bf16.msra.mxu0 0
        %6496 = vmatprep.mubr.bf16.mxu0 0
        %6497 = vmatmul.mubr.bf16.gmra.mrb[0].mxu0 %v605
        %v6498 = vpop.f32.mrb[0].mxu0
        %v6499 = vadd.f32 0.0, %v6498
        %v6500 = vpop.f32.mrb[0].mxu0
        %v6501 = vpop.f32.mrb[0].mxu0
        %v6502 = vadd.f32 0.0, %v6501
        %v6503 = vpop.f32.mrb[0].mxu0
        %6504 = vmatprep.mubr.bf16.mxu0 0
        %6505 = vmatmul.mubr.bf16.gmra.mrb[0].mxu0 %v606
        %v6506 = vpop.f32.mrb[0].mxu0
        %v6507 = vadd.f32 0.0, %v6506
        %v6508 = vpop.f32.mrb[0].mxu0
        %v6509 = vpop.f32.mrb[0].mxu0
        %v6510 = vadd.f32 0.0, %v6509
        %v6511 = vpop.f32.mrb[0].mxu0
        %6512 = vmatprep.mubr.bf16.mxu0 0
        %6513 = vmatmul.mubr.bf16.gmra.mrb[0].mxu0 %v607
        %v6514 = vpop.f32.mrb[0].mxu0
        %v6515 = vadd.f32 0.0, %v6514
        %v6516 = vpop.f32.mrb[0].mxu0
        %v6517 = vpop.f32.mrb[0].mxu0
        %v6518 = vadd.f32 0.0, %v6517
        %v6519 = vpop.f32.mrb[0].mxu0
        %6520 = vmatprep.mubr.bf16.mxu0 0
        %6521 = vmatmul.mubr.bf16.gmra.mrb[0].mxu0 %v608
        %v6522 = vpop.f32.mrb[0].mxu0
        %v6523 = vadd.f32 0.0, %v6522
        %v6524 = vpop.f32.mrb[0].mxu0
        %v6525 = vpop.f32.mrb[0].mxu0
        %v6526 = vadd.f32 0.0, %v6525
        %v6527 = vpop.f32.mrb[0].mxu0
        %6528 = vdwg.mxu0
        %v6545 = vunpack.c.l.b16 %v6383
        %v6546 = vunpack.c.l.b16 %v6384
        %v6547 = vunpack.c.l.b16 %v6385
        %v6548 = vunpack.c.l.b16 %v6386
        %v6549 = vunpack.c.l.b16 %v6387
        %v6550 = vunpack.c.l.b16 %v6388
        %v6551 = vunpack.c.l.b16 %v6389
        %v6552 = vunpack.c.l.b16 %v6390
        %v6553 = vunpack.c.l.b16 %v6391
        %v6554 = vunpack.c.l.b16 %v6392
        %v6555 = vunpack.c.l.b16 %v6393
        %v6556 = vunpack.c.l.b16 %v6394
        %v6557 = vunpack.c.l.b16 %v6395
        %v6558 = vunpack.c.l.b16 %v6396
        %v6559 = vunpack.c.l.b16 %v6397
        %v6560 = vunpack.c.l.b16 %v6398
        %v6561 = vpack.c.b16 %v6546, %v6545
        %v6562 = vpack.c.b16 %v6548, %v6547
        %v6563 = vpack.c.b16 %v6550, %v6549
        %v6564 = vpack.c.b16 %v6552, %v6551
        %v6565 = vpack.c.b16 %v6554, %v6553
        %v6566 = vpack.c.b16 %v6556, %v6555
        %v6567 = vpack.c.b16 %v6558, %v6557
        %v6568 = vpack.c.b16 %v6560, %v6559
        %6577 = vmatprep.subr.bf16.mxu0 0
        %6578 = vmatpush1.bf16.msra.mxu0 %v6561
        %6579 = vmatprep.subr.bf16.mxu0 0
        %6580 = vmatpush1.bf16.msra.mxu0 %v6562
        %6581 = vmatprep.subr.bf16.mxu0 0
        %6582 = vmatpush1.bf16.msra.mxu0 %v6563
        %6583 = vmatprep.subr.bf16.mxu0 0
        %6584 = vmatpush1.bf16.msra.mxu0 %v6564
        %6585 = vmatprep.subr.bf16.mxu0 0
        %6586 = vmatpush1.bf16.msra.mxu0 %v6565
        %6587 = vmatprep.subr.bf16.mxu0 0
        %6588 = vmatpush1.bf16.msra.mxu0 %v6566
        %6589 = vmatprep.subr.bf16.mxu0 0
        %6590 = vmatpush1.bf16.msra.mxu0 %v6567
        %6591 = vmatprep.subr.bf16.mxu0 0
        %6592 = vmatpush1.bf16.msra.mxu0 %v6568
        %6593 = vmatprep.subr.bf16.mxu0 0
        %6594 = vmatpush1.bf16.msra.mxu0 0
        %6595 = vmatprep.subr.bf16.mxu0 0
        %6596 = vmatpush1.bf16.msra.mxu0 0
        %6597 = vmatprep.subr.bf16.mxu0 0
        %6598 = vmatpush1.bf16.msra.mxu0 0
        %6599 = vmatprep.subr.bf16.mxu0 0
        %6600 = vmatpush1.bf16.msra.mxu0 0
        %6601 = vmatprep.subr.bf16.mxu0 0
        %6602 = vmatpush1.bf16.msra.mxu0 0
        %6603 = vmatprep.subr.bf16.mxu0 0
        %6604 = vmatpush1.bf16.msra.mxu0 0
        %6605 = vmatprep.subr.bf16.mxu0 0
        %6606 = vmatpush1.bf16.msra.mxu0 0
        %6607 = vmatprep.subr.bf16.mxu0 0
        %6608 = vmatpush1.bf16.msra.mxu0 0
        %6609 = vmatprep.mubr.bf16.mxu0 0
        %6610 = vmatmul.mubr.bf16.gmra.mrb[0].mxu0 %v742
        %v6611 = vpop.f32.mrb[0].mxu0
        %v6612 = vadd.f32 %v6499, %v6611
        %v6613 = vpop.f32.mrb[0].mxu0
        %v6614 = vpop.f32.mrb[0].mxu0
        %v6615 = vadd.f32 %v6502, %v6614
        %v6616 = vpop.f32.mrb[0].mxu0
        %6617 = vmatprep.mubr.bf16.mxu0 0
        %6618 = vmatmul.mubr.bf16.gmra.mrb[0].mxu0 %v743
        %v6619 = vpop.f32.mrb[0].mxu0
        %v6620 = vadd.f32 %v6507, %v6619
        %v6621 = vpop.f32.mrb[0].mxu0
        %v6622 = vpop.f32.mrb[0].mxu0
        %v6623 = vadd.f32 %v6510, %v6622
        %v6624 = vpop.f32.mrb[0].mxu0
        %6625 = vmatprep.mubr.bf16.mxu0 0
        %6626 = vmatmul.mubr.bf16.gmra.mrb[0].mxu0 %v744
        %v6627 = vpop.f32.mrb[0].mxu0
        %v6628 = vadd.f32 %v6515, %v6627
        %v6629 = vpop.f32.mrb[0].mxu0
        %v6630 = vpop.f32.mrb[0].mxu0
        %v6631 = vadd.f32 %v6518, %v6630
        %v6632 = vpop.f32.mrb[0].mxu0
        %6633 = vmatprep.mubr.bf16.mxu0 0
        %6634 = vmatmul.mubr.bf16.gmra.mrb[0].mxu0 %v745
        %v6635 = vpop.f32.mrb[0].mxu0
        %v6636 = vadd.f32 %v6523, %v6635
        %v6637 = vpop.f32.mrb[0].mxu0
        %v6638 = vpop.f32.mrb[0].mxu0
        %v6639 = vadd.f32 %v6526, %v6638
        %v6640 = vpop.f32.mrb[0].mxu0
        %6641 = vdwg.mxu0
        %s6642 = scalar_lea.vmem [#allocation5], 2688
        %v6643 = vld [vmem:[%s6642] sm:$0xf]
        %v6644 = vld [vmem:[%s6642 + $0x4] sm:$0xf]
        %v6645 = vld [vmem:[%s6642 + $0x8] sm:$0xf]
        %v6646 = vld [vmem:[%s6642 + $0xc] sm:$0xf]
        %v6647 = vld [vmem:[%s6642 + $0x10] sm:$0xf]
        %v6648 = vld [vmem:[%s6642 + $0x14] sm:$0xf]
        %v6649 = vld [vmem:[%s6642 + $0x18] sm:$0xf]
        %v6650 = vld [vmem:[%s6642 + $0x1c] sm:$0xf]
        %v6651 = vld [vmem:[%s6642 + $0x20] sm:$0xf]
        %v6652 = vld [vmem:[%s6642 + $0x24] sm:$0xf]
        %v6653 = vld [vmem:[%s6642 + $0x28] sm:$0xf]
        %v6654 = vld [vmem:[%s6642 + $0x2c] sm:$0xf]
        %v6655 = vld [vmem:[%s6642 + $0x30] sm:$0xf]
        %v6656 = vld [vmem:[%s6642 + $0x34] sm:$0xf]
        %v6657 = vld [vmem:[%s6642 + $0x38] sm:$0xf]
        %v6658 = vld [vmem:[%s6642 + $0x3c] sm:$0xf]
        %v6675 = vunpack.c.l.b16 %v6643
        %v6676 = vunpack.c.l.b16 %v6644
        %v6677 = vunpack.c.l.b16 %v6645
        %v6678 = vunpack.c.l.b16 %v6646
        %v6679 = vunpack.c.l.b16 %v6647
        %v6680 = vunpack.c.l.b16 %v6648
        %v6681 = vunpack.c.l.b16 %v6649
        %v6682 = vunpack.c.l.b16 %v6650
        %v6683 = vunpack.c.l.b16 %v6651
        %v6684 = vunpack.c.l.b16 %v6652
        %v6685 = vunpack.c.l.b16 %v6653
        %v6686 = vunpack.c.l.b16 %v6654
        %v6687 = vunpack.c.l.b16 %v6655
        %v6688 = vunpack.c.l.b16 %v6656
        %v6689 = vunpack.c.l.b16 %v6657
        %v6690 = vunpack.c.l.b16 %v6658
        %v6691 = vpack.c.b16 %v6676, %v6675
        %v6692 = vpack.c.b16 %v6678, %v6677
        %v6693 = vpack.c.b16 %v6680, %v6679
        %v6694 = vpack.c.b16 %v6682, %v6681
        %v6695 = vpack.c.b16 %v6684, %v6683
        %v6696 = vpack.c.b16 %v6686, %v6685
        %v6697 = vpack.c.b16 %v6688, %v6687
        %v6698 = vpack.c.b16 %v6690, %v6689
        %6707 = vmatprep.subr.bf16.mxu0 0
        %6708 = vmatpush1.bf16.msra.mxu0 %v6691
        %6709 = vmatprep.subr.bf16.mxu0 0
        %6710 = vmatpush1.bf16.msra.mxu0 %v6692
        %6711 = vmatprep.subr.bf16.mxu0 0
        %6712 = vmatpush1.bf16.msra.mxu0 %v6693
        %6713 = vmatprep.subr.bf16.mxu0 0
        %6714 = vmatpush1.bf16.msra.mxu0 %v6694
        %6715 = vmatprep.subr.bf16.mxu0 0
        %6716 = vmatpush1.bf16.msra.mxu0 %v6695
        %6717 = vmatprep.subr.bf16.mxu0 0
        %6718 = vmatpush1.bf16.msra.mxu0 %v6696
        %6719 = vmatprep.subr.bf16.mxu0 0
        %6720 = vmatpush1.bf16.msra.mxu0 %v6697
        %6721 = vmatprep.subr.bf16.mxu0 0
        %6722 = vmatpush1.bf16.msra.mxu0 %v6698
        %6723 = vmatprep.subr.bf16.mxu0 0
        %6724 = vmatpush1.bf16.msra.mxu0 0
        %6725 = vmatprep.subr.bf16.mxu0 0
        %6726 = vmatpush1.bf16.msra.mxu0 0
        %6727 = vmatprep.subr.bf16.mxu0 0
        %6728 = vmatpush1.bf16.msra.mxu0 0
        %6729 = vmatprep.subr.bf16.mxu0 0
        %6730 = vmatpush1.bf16.msra.mxu0 0
        %6731 = vmatprep.subr.bf16.mxu0 0
        %6732 = vmatpush1.bf16.msra.mxu0 0
        %6733 = vmatprep.subr.bf16.mxu0 0
        %6734 = vmatpush1.bf16.msra.mxu0 0
        %6735 = vmatprep.subr.bf16.mxu0 0
        %6736 = vmatpush1.bf16.msra.mxu0 0
        %6737 = vmatprep.subr.bf16.mxu0 0
        %6738 = vmatpush1.bf16.msra.mxu0 0
        %6739 = vmatprep.mubr.bf16.mxu0 0
        %6740 = vmatmul.mubr.bf16.gmra.mrb[0].mxu0 %v905
        %v6741 = vpop.f32.mrb[0].mxu0
        %v6742 = vadd.f32 0.0, %v6741
        %v6743 = vpop.f32.mrb[0].mxu0
        %v6744 = vpop.f32.mrb[0].mxu0
        %v6745 = vadd.f32 0.0, %v6744
        %v6746 = vpop.f32.mrb[0].mxu0
        %6747 = vmatprep.mubr.bf16.mxu0 0
        %6748 = vmatmul.mubr.bf16.gmra.mrb[0].mxu0 %v906
        %v6749 = vpop.f32.mrb[0].mxu0
        %v6750 = vadd.f32 0.0, %v6749
        %v6751 = vpop.f32.mrb[0].mxu0
        %v6752 = vpop.f32.mrb[0].mxu0
        %v6753 = vadd.f32 0.0, %v6752
        %v6754 = vpop.f32.mrb[0].mxu0
        %6755 = vmatprep.mubr.bf16.mxu0 0
        %6756 = vmatmul.mubr.bf16.gmra.mrb[0].mxu0 %v907
        %v6757 = vpop.f32.mrb[0].mxu0
        %v6758 = vadd.f32 0.0, %v6757
        %v6759 = vpop.f32.mrb[0].mxu0
        %v6760 = vpop.f32.mrb[0].mxu0
        %v6761 = vadd.f32 0.0, %v6760
        %v6762 = vpop.f32.mrb[0].mxu0
        %6763 = vmatprep.mubr.bf16.mxu0 0
        %6764 = vmatmul.mubr.bf16.gmra.mrb[0].mxu0 %v908
        %v6765 = vpop.f32.mrb[0].mxu0
        %v6766 = vadd.f32 0.0, %v6765
        %v6767 = vpop.f32.mrb[0].mxu0
        %v6768 = vpop.f32.mrb[0].mxu0
        %v6769 = vadd.f32 0.0, %v6768
        %v6770 = vpop.f32.mrb[0].mxu0
        %6771 = vdwg.mxu0
        %v6772 = vadd.f32 %v6612, %v6742
        %v6773 = vadd.f32 %v6615, %v6745
        %v6774 = vadd.f32 %v6620, %v6750
        %v6775 = vadd.f32 %v6623, %v6753
        %v6776 = vadd.f32 %v6628, %v6758
        %v6777 = vadd.f32 %v6631, %v6761
        %v6778 = vadd.f32 %v6636, %v6766
        %v6779 = vadd.f32 %v6639, %v6769
        %s6780 = scalar_lea.vmem [#allocation5], 2368
        %v6781 = vld [vmem:[%s6780] sm:$0xf]
        %v6782 = vld [vmem:[%s6780 + $0x4] sm:$0xf]
        %v6783 = vld [vmem:[%s6780 + $0x8] sm:$0xf]
        %v6784 = vld [vmem:[%s6780 + $0xc] sm:$0xf]
        %v6785 = vld [vmem:[%s6780 + $0x10] sm:$0xf]
        %v6786 = vld [vmem:[%s6780 + $0x14] sm:$0xf]
        %v6787 = vld [vmem:[%s6780 + $0x18] sm:$0xf]
        %v6788 = vld [vmem:[%s6780 + $0x1c] sm:$0xf]
        %v6789 = vld [vmem:[%s6780 + $0x20] sm:$0xf]
        %v6790 = vld [vmem:[%s6780 + $0x24] sm:$0xf]
        %v6791 = vld [vmem:[%s6780 + $0x28] sm:$0xf]
        %v6792 = vld [vmem:[%s6780 + $0x2c] sm:$0xf]
        %v6793 = vld [vmem:[%s6780 + $0x30] sm:$0xf]
        %v6794 = vld [vmem:[%s6780 + $0x34] sm:$0xf]
        %v6795 = vld [vmem:[%s6780 + $0x38] sm:$0xf]
        %v6796 = vld [vmem:[%s6780 + $0x3c] sm:$0xf]
        %v6813 = vunpack.c.l.b16 %v6781
        %v6814 = vunpack.c.l.b16 %v6782
        %v6815 = vunpack.c.l.b16 %v6783
        %v6816 = vunpack.c.l.b16 %v6784
        %v6817 = vunpack.c.l.b16 %v6785
        %v6818 = vunpack.c.l.b16 %v6786
        %v6819 = vunpack.c.l.b16 %v6787
        %v6820 = vunpack.c.l.b16 %v6788
        %v6821 = vunpack.c.l.b16 %v6789
        %v6822 = vunpack.c.l.b16 %v6790
        %v6823 = vunpack.c.l.b16 %v6791
        %v6824 = vunpack.c.l.b16 %v6792
        %v6825 = vunpack.c.l.b16 %v6793
        %v6826 = vunpack.c.l.b16 %v6794
        %v6827 = vunpack.c.l.b16 %v6795
        %v6828 = vunpack.c.l.b16 %v6796
        %v6829 = vpack.c.b16 %v6814, %v6813
        %v6830 = vpack.c.b16 %v6816, %v6815
        %v6831 = vpack.c.b16 %v6818, %v6817
        %v6832 = vpack.c.b16 %v6820, %v6819
        %v6833 = vpack.c.b16 %v6822, %v6821
        %v6834 = vpack.c.b16 %v6824, %v6823
        %v6835 = vpack.c.b16 %v6826, %v6825
        %v6836 = vpack.c.b16 %v6828, %v6827
        %6845 = vmatprep.subr.bf16.mxu0 0
        %6846 = vmatpush1.bf16.msra.mxu0 %v6829
        %6847 = vmatprep.subr.bf16.mxu0 0
        %6848 = vmatpush1.bf16.msra.mxu0 %v6830
        %6849 = vmatprep.subr.bf16.mxu0 0
        %6850 = vmatpush1.bf16.msra.mxu0 %v6831
        %6851 = vmatprep.subr.bf16.mxu0 0
        %6852 = vmatpush1.bf16.msra.mxu0 %v6832
        %6853 = vmatprep.subr.bf16.mxu0 0
        %6854 = vmatpush1.bf16.msra.mxu0 %v6833
        %6855 = vmatprep.subr.bf16.mxu0 0
        %6856 = vmatpush1.bf16.msra.mxu0 %v6834
        %6857 = vmatprep.subr.bf16.mxu0 0
        %6858 = vmatpush1.bf16.msra.mxu0 %v6835
        %6859 = vmatprep.subr.bf16.mxu0 0
        %6860 = vmatpush1.bf16.msra.mxu0 %v6836
        %6861 = vmatprep.subr.bf16.mxu0 0
        %6862 = vmatpush1.bf16.msra.mxu0 0
        %6863 = vmatprep.subr.bf16.mxu0 0
        %6864 = vmatpush1.bf16.msra.mxu0 0
        %6865 = vmatprep.subr.bf16.mxu0 0
        %6866 = vmatpush1.bf16.msra.mxu0 0
        %6867 = vmatprep.subr.bf16.mxu0 0
        %6868 = vmatpush1.bf16.msra.mxu0 0
        %6869 = vmatprep.subr.bf16.mxu0 0
        %6870 = vmatpush1.bf16.msra.mxu0 0
        %6871 = vmatprep.subr.bf16.mxu0 0
        %6872 = vmatpush1.bf16.msra.mxu0 0
        %6873 = vmatprep.subr.bf16.mxu0 0
        %6874 = vmatpush1.bf16.msra.mxu0 0
        %6875 = vmatprep.subr.bf16.mxu0 0
        %6876 = vmatpush1.bf16.msra.mxu0 0
        %6877 = vmatprep.mubr.bf16.mxu0 0
        %6878 = vmatmul.mubr.bf16.gmra.mrb[0].mxu0 %v1076
        %v6879 = vpop.f32.mrb[0].mxu0
        %v6880 = vadd.f32 0.0, %v6879
        %v6881 = vpop.f32.mrb[0].mxu0
        %v6882 = vpop.f32.mrb[0].mxu0
        %v6883 = vadd.f32 0.0, %v6882
        %v6884 = vpop.f32.mrb[0].mxu0
        %6885 = vmatprep.mubr.bf16.mxu0 0
        %6886 = vmatmul.mubr.bf16.gmra.mrb[0].mxu0 %v1077
        %v6887 = vpop.f32.mrb[0].mxu0
        %v6888 = vadd.f32 0.0, %v6887
        %v6889 = vpop.f32.mrb[0].mxu0
        %v6890 = vpop.f32.mrb[0].mxu0
        %v6891 = vadd.f32 0.0, %v6890
        %v6892 = vpop.f32.mrb[0].mxu0
        %6893 = vmatprep.mubr.bf16.mxu0 0
        %6894 = vmatmul.mubr.bf16.gmra.mrb[0].mxu0 %v1078
        %v6895 = vpop.f32.mrb[0].mxu0
        %v6896 = vadd.f32 0.0, %v6895
        %v6897 = vpop.f32.mrb[0].mxu0
        %v6898 = vpop.f32.mrb[0].mxu0
        %v6899 = vadd.f32 0.0, %v6898
        %v6900 = vpop.f32.mrb[0].mxu0
        %6901 = vmatprep.mubr.bf16.mxu0 0
        %6902 = vmatmul.mubr.bf16.gmra.mrb[0].mxu0 %v1079
        %v6903 = vpop.f32.mrb[0].mxu0
        %v6904 = vadd.f32 0.0, %v6903
        %v6905 = vpop.f32.mrb[0].mxu0
        %v6906 = vpop.f32.mrb[0].mxu0
        %v6907 = vadd.f32 0.0, %v6906
        %v6908 = vpop.f32.mrb[0].mxu0
        %6909 = vdwg.mxu0
        %v6910 = vadd.f32 %v6772, %v6880
        %v6911 = vadd.f32 %v6773, %v6883
        %v6912 = vadd.f32 %v6774, %v6888
        %v6913 = vadd.f32 %v6775, %v6891
        %v6914 = vadd.f32 %v6776, %v6896
        %v6915 = vadd.f32 %v6777, %v6899
        %v6916 = vadd.f32 %v6778, %v6904
        %v6917 = vadd.f32 %v6779, %v6907
        %s6918 = scalar_lea.vmem [#allocation5], 2560
        %v6919 = vld [vmem:[%s6918] sm:$0xf]
        %v6920 = vld [vmem:[%s6918 + $0x4] sm:$0xf]
        %v6921 = vld [vmem:[%s6918 + $0x8] sm:$0xf]
        %v6922 = vld [vmem:[%s6918 + $0xc] sm:$0xf]
        %v6923 = vld [vmem:[%s6918 + $0x10] sm:$0xf]
        %v6924 = vld [vmem:[%s6918 + $0x14] sm:$0xf]
        %v6925 = vld [vmem:[%s6918 + $0x18] sm:$0xf]
        %v6926 = vld [vmem:[%s6918 + $0x1c] sm:$0xf]
        %v6927 = vld [vmem:[%s6918 + $0x20] sm:$0xf]
        %v6928 = vld [vmem:[%s6918 + $0x24] sm:$0xf]
        %v6929 = vld [vmem:[%s6918 + $0x28] sm:$0xf]
        %v6930 = vld [vmem:[%s6918 + $0x2c] sm:$0xf]
        %v6931 = vld [vmem:[%s6918 + $0x30] sm:$0xf]
        %v6932 = vld [vmem:[%s6918 + $0x34] sm:$0xf]
        %v6933 = vld [vmem:[%s6918 + $0x38] sm:$0xf]
        %v6934 = vld [vmem:[%s6918 + $0x3c] sm:$0xf]
        %v6951 = vunpack.c.l.b16 %v6919
        %v6952 = vunpack.c.l.b16 %v6920
        %v6953 = vunpack.c.l.b16 %v6921
        %v6954 = vunpack.c.l.b16 %v6922
        %v6955 = vunpack.c.l.b16 %v6923
        %v6956 = vunpack.c.l.b16 %v6924
        %v6957 = vunpack.c.l.b16 %v6925
        %v6958 = vunpack.c.l.b16 %v6926
        %v6959 = vunpack.c.l.b16 %v6927
        %v6960 = vunpack.c.l.b16 %v6928
        %v6961 = vunpack.c.l.b16 %v6929
        %v6962 = vunpack.c.l.b16 %v6930
        %v6963 = vunpack.c.l.b16 %v6931
        %v6964 = vunpack.c.l.b16 %v6932
        %v6965 = vunpack.c.l.b16 %v6933
        %v6966 = vunpack.c.l.b16 %v6934
        %v6967 = vpack.c.b16 %v6952, %v6951
        %v6968 = vpack.c.b16 %v6954, %v6953
        %v6969 = vpack.c.b16 %v6956, %v6955
        %v6970 = vpack.c.b16 %v6958, %v6957
        %v6971 = vpack.c.b16 %v6960, %v6959
        %v6972 = vpack.c.b16 %v6962, %v6961
        %v6973 = vpack.c.b16 %v6964, %v6963
        %v6974 = vpack.c.b16 %v6966, %v6965
        %6983 = vmatprep.subr.bf16.mxu0 0
        %6984 = vmatpush1.bf16.msra.mxu0 %v6967
        %6985 = vmatprep.subr.bf16.mxu0 0
        %6986 = vmatpush1.bf16.msra.mxu0 %v6968
        %6987 = vmatprep.subr.bf16.mxu0 0
        %6988 = vmatpush1.bf16.msra.mxu0 %v6969
        %6989 = vmatprep.subr.bf16.mxu0 0
        %6990 = vmatpush1.bf16.msra.mxu0 %v6970
        %6991 = vmatprep.subr.bf16.mxu0 0
        %6992 = vmatpush1.bf16.msra.mxu0 %v6971
        %6993 = vmatprep.subr.bf16.mxu0 0
        %6994 = vmatpush1.bf16.msra.mxu0 %v6972
        %6995 = vmatprep.subr.bf16.mxu0 0
        %6996 = vmatpush1.bf16.msra.mxu0 %v6973
        %6997 = vmatprep.subr.bf16.mxu0 0
        %6998 = vmatpush1.bf16.msra.mxu0 %v6974
        %6999 = vmatprep.subr.bf16.mxu0 0
        %7000 = vmatpush1.bf16.msra.mxu0 0
        %7001 = vmatprep.subr.bf16.mxu0 0
        %7002 = vmatpush1.bf16.msra.mxu0 0
        %7003 = vmatprep.subr.bf16.mxu0 0
        %7004 = vmatpush1.bf16.msra.mxu0 0
        %7005 = vmatprep.subr.bf16.mxu0 0
        %7006 = vmatpush1.bf16.msra.mxu0 0
        %7007 = vmatprep.subr.bf16.mxu0 0
        %7008 = vmatpush1.bf16.msra.mxu0 0
        %7009 = vmatprep.subr.bf16.mxu0 0
        %7010 = vmatpush1.bf16.msra.mxu0 0
        %7011 = vmatprep.subr.bf16.mxu0 0
        %7012 = vmatpush1.bf16.msra.mxu0 0
        %7013 = vmatprep.subr.bf16.mxu0 0
        %7014 = vmatpush1.bf16.msra.mxu0 0
        %7015 = vmatprep.mubr.bf16.mxu0 0
        %7016 = vmatmul.mubr.bf16.gmra.mrb[0].mxu0 %v1246
        %v7017 = vpop.f32.mrb[0].mxu0
        %v7018 = vadd.f32 0.0, %v7017
        %v7019 = vpop.f32.mrb[0].mxu0
        %v7020 = vpop.f32.mrb[0].mxu0
        %v7021 = vadd.f32 0.0, %v7020
        %v7022 = vpop.f32.mrb[0].mxu0
        %7023 = vmatprep.mubr.bf16.mxu0 0
        %7024 = vmatmul.mubr.bf16.gmra.mrb[0].mxu0 %v1247
        %v7025 = vpop.f32.mrb[0].mxu0
        %v7026 = vadd.f32 0.0, %v7025
        %v7027 = vpop.f32.mrb[0].mxu0
        %v7028 = vpop.f32.mrb[0].mxu0
        %v7029 = vadd.f32 0.0, %v7028
        %v7030 = vpop.f32.mrb[0].mxu0
        %7031 = vmatprep.mubr.bf16.mxu0 0
        %7032 = vmatmul.mubr.bf16.gmra.mrb[0].mxu0 %v1248
        %v7033 = vpop.f32.mrb[0].mxu0
        %v7034 = vadd.f32 0.0, %v7033
        %v7035 = vpop.f32.mrb[0].mxu0
        %v7036 = vpop.f32.mrb[0].mxu0
        %v7037 = vadd.f32 0.0, %v7036
        %v7038 = vpop.f32.mrb[0].mxu0
        %7039 = vmatprep.mubr.bf16.mxu0 0
        %7040 = vmatmul.mubr.bf16.gmra.mrb[0].mxu0 %v1249
        %v7041 = vpop.f32.mrb[0].mxu0
        %v7042 = vadd.f32 0.0, %v7041
        %v7043 = vpop.f32.mrb[0].mxu0
        %v7044 = vpop.f32.mrb[0].mxu0
        %v7045 = vadd.f32 0.0, %v7044
        %v7046 = vpop.f32.mrb[0].mxu0
        %7047 = vdwg.mxu0
        %v7048 = vadd.f32 %v6910, %v7018
        %v7049 = vadd.f32 %v6911, %v7021
        %v7050 = vadd.f32 %v6912, %v7026
        %v7051 = vadd.f32 %v6913, %v7029
        %v7052 = vadd.f32 %v6914, %v7034
        %v7053 = vadd.f32 %v6915, %v7037
        %v7054 = vadd.f32 %v6916, %v7042
        %v7055 = vadd.f32 %v6917, %v7045
        %s7056 = scalar_lea.vmem [#allocation5], 2752
        %v7057 = vld [vmem:[%s7056] sm:$0xf]
        %v7058 = vld [vmem:[%s7056 + $0x4] sm:$0xf]
        %v7059 = vld [vmem:[%s7056 + $0x8] sm:$0xf]
        %v7060 = vld [vmem:[%s7056 + $0xc] sm:$0xf]
        %v7061 = vld [vmem:[%s7056 + $0x10] sm:$0xf]
        %v7062 = vld [vmem:[%s7056 + $0x14] sm:$0xf]
        %v7063 = vld [vmem:[%s7056 + $0x18] sm:$0xf]
        %v7064 = vld [vmem:[%s7056 + $0x1c] sm:$0xf]
        %v7065 = vld [vmem:[%s7056 + $0x20] sm:$0xf]
        %v7066 = vld [vmem:[%s7056 + $0x24] sm:$0xf]
        %v7067 = vld [vmem:[%s7056 + $0x28] sm:$0xf]
        %v7068 = vld [vmem:[%s7056 + $0x2c] sm:$0xf]
        %v7069 = vld [vmem:[%s7056 + $0x30] sm:$0xf]
        %v7070 = vld [vmem:[%s7056 + $0x34] sm:$0xf]
        %v7071 = vld [vmem:[%s7056 + $0x38] sm:$0xf]
        %v7072 = vld [vmem:[%s7056 + $0x3c] sm:$0xf]
        %v7089 = vunpack.c.l.b16 %v7057
        %v7090 = vunpack.c.l.b16 %v7058
        %v7091 = vunpack.c.l.b16 %v7059
        %v7092 = vunpack.c.l.b16 %v7060
        %v7093 = vunpack.c.l.b16 %v7061
        %v7094 = vunpack.c.l.b16 %v7062
        %v7095 = vunpack.c.l.b16 %v7063
        %v7096 = vunpack.c.l.b16 %v7064
        %v7097 = vunpack.c.l.b16 %v7065
        %v7098 = vunpack.c.l.b16 %v7066
        %v7099 = vunpack.c.l.b16 %v7067
        %v7100 = vunpack.c.l.b16 %v7068
        %v7101 = vunpack.c.l.b16 %v7069
        %v7102 = vunpack.c.l.b16 %v7070
        %v7103 = vunpack.c.l.b16 %v7071
        %v7104 = vunpack.c.l.b16 %v7072
        %v7105 = vpack.c.b16 %v7090, %v7089
        %v7106 = vpack.c.b16 %v7092, %v7091
        %v7107 = vpack.c.b16 %v7094, %v7093
        %v7108 = vpack.c.b16 %v7096, %v7095
        %v7109 = vpack.c.b16 %v7098, %v7097
        %v7110 = vpack.c.b16 %v7100, %v7099
        %v7111 = vpack.c.b16 %v7102, %v7101
        %v7112 = vpack.c.b16 %v7104, %v7103
        %7121 = vmatprep.subr.bf16.mxu0 0
        %7122 = vmatpush1.bf16.msra.mxu0 %v7105
        %7123 = vmatprep.subr.bf16.mxu0 0
        %7124 = vmatpush1.bf16.msra.mxu0 %v7106
        %7125 = vmatprep.subr.bf16.mxu0 0
        %7126 = vmatpush1.bf16.msra.mxu0 %v7107
        %7127 = vmatprep.subr.bf16.mxu0 0
        %7128 = vmatpush1.bf16.msra.mxu0 %v7108
        %7129 = vmatprep.subr.bf16.mxu0 0
        %7130 = vmatpush1.bf16.msra.mxu0 %v7109
        %7131 = vmatprep.subr.bf16.mxu0 0
        %7132 = vmatpush1.bf16.msra.mxu0 %v7110
        %7133 = vmatprep.subr.bf16.mxu0 0
        %7134 = vmatpush1.bf16.msra.mxu0 %v7111
        %7135 = vmatprep.subr.bf16.mxu0 0
        %7136 = vmatpush1.bf16.msra.mxu0 %v7112
        %7137 = vmatprep.subr.bf16.mxu0 0
        %7138 = vmatpush1.bf16.msra.mxu0 0
        %7139 = vmatprep.subr.bf16.mxu0 0
        %7140 = vmatpush1.bf16.msra.mxu0 0
        %7141 = vmatprep.subr.bf16.mxu0 0
        %7142 = vmatpush1.bf16.msra.mxu0 0
        %7143 = vmatprep.subr.bf16.mxu0 0
        %7144 = vmatpush1.bf16.msra.mxu0 0
        %7145 = vmatprep.subr.bf16.mxu0 0
        %7146 = vmatpush1.bf16.msra.mxu0 0
        %7147 = vmatprep.subr.bf16.mxu0 0
        %7148 = vmatpush1.bf16.msra.mxu0 0
        %7149 = vmatprep.subr.bf16.mxu0 0
        %7150 = vmatpush1.bf16.msra.mxu0 0
        %7151 = vmatprep.subr.bf16.mxu0 0
        %7152 = vmatpush1.bf16.msra.mxu0 0
        %7153 = vmatprep.mubr.bf16.mxu0 0
        %7154 = vmatmul.mubr.bf16.gmra.mrb[0].mxu0 %v1417
        %v7155 = vpop.f32.mrb[0].mxu0
        %v7156 = vadd.f32 0.0, %v7155
        %v7157 = vpop.f32.mrb[0].mxu0
        %v7158 = vpop.f32.mrb[0].mxu0
        %v7159 = vadd.f32 0.0, %v7158
        %v7160 = vpop.f32.mrb[0].mxu0
        %7161 = vmatprep.mubr.bf16.mxu0 0
        %7162 = vmatmul.mubr.bf16.gmra.mrb[0].mxu0 %v1418
        %v7163 = vpop.f32.mrb[0].mxu0
        %v7164 = vadd.f32 0.0, %v7163
        %v7165 = vpop.f32.mrb[0].mxu0
        %v7166 = vpop.f32.mrb[0].mxu0
        %v7167 = vadd.f32 0.0, %v7166
        %v7168 = vpop.f32.mrb[0].mxu0
        %7169 = vmatprep.mubr.bf16.mxu0 0
        %7170 = vmatmul.mubr.bf16.gmra.mrb[0].mxu0 %v1419
        %v7171 = vpop.f32.mrb[0].mxu0
        %v7172 = vadd.f32 0.0, %v7171
        %v7173 = vpop.f32.mrb[0].mxu0
        %v7174 = vpop.f32.mrb[0].mxu0
        %v7175 = vadd.f32 0.0, %v7174
        %v7176 = vpop.f32.mrb[0].mxu0
        %7177 = vmatprep.mubr.bf16.mxu0 0
        %7178 = vmatmul.mubr.bf16.gmra.mrb[0].mxu0 %v1420
        %v7179 = vpop.f32.mrb[0].mxu0
        %v7180 = vadd.f32 0.0, %v7179
        %v7181 = vpop.f32.mrb[0].mxu0
        %v7182 = vpop.f32.mrb[0].mxu0
        %v7183 = vadd.f32 0.0, %v7182
        %v7184 = vpop.f32.mrb[0].mxu0
        %7185 = vdwg.mxu0
        %v7186 = vadd.f32 %v7048, %v7156
        %v7187 = vadd.f32 %v7049, %v7159
        %v7188 = vadd.f32 %v7050, %v7164
        %v7189 = vadd.f32 %v7051, %v7167
        %v7190 = vadd.f32 %v7052, %v7172
        %v7191 = vadd.f32 %v7053, %v7175
        %v7192 = vadd.f32 %v7054, %v7180
        %v7193 = vadd.f32 %v7055, %v7183
        %s7194 = scalar_lea.vmem [#allocation5], 2432
        %v7195 = vld [vmem:[%s7194] sm:$0xf]
        %v7196 = vld [vmem:[%s7194 + $0x4] sm:$0xf]
        %v7197 = vld [vmem:[%s7194 + $0x8] sm:$0xf]
        %v7198 = vld [vmem:[%s7194 + $0xc] sm:$0xf]
        %v7199 = vld [vmem:[%s7194 + $0x10] sm:$0xf]
        %v7200 = vld [vmem:[%s7194 + $0x14] sm:$0xf]
        %v7201 = vld [vmem:[%s7194 + $0x18] sm:$0xf]
        %v7202 = vld [vmem:[%s7194 + $0x1c] sm:$0xf]
        %v7203 = vld [vmem:[%s7194 + $0x20] sm:$0xf]
        %v7204 = vld [vmem:[%s7194 + $0x24] sm:$0xf]
        %v7205 = vld [vmem:[%s7194 + $0x28] sm:$0xf]
        %v7206 = vld [vmem:[%s7194 + $0x2c] sm:$0xf]
        %v7207 = vld [vmem:[%s7194 + $0x30] sm:$0xf]
        %v7208 = vld [vmem:[%s7194 + $0x34] sm:$0xf]
        %v7209 = vld [vmem:[%s7194 + $0x38] sm:$0xf]
        %v7210 = vld [vmem:[%s7194 + $0x3c] sm:$0xf]
        %v7227 = vunpack.c.l.b16 %v7195
        %v7228 = vunpack.c.l.b16 %v7196
        %v7229 = vunpack.c.l.b16 %v7197
        %v7230 = vunpack.c.l.b16 %v7198
        %v7231 = vunpack.c.l.b16 %v7199
        %v7232 = vunpack.c.l.b16 %v7200
        %v7233 = vunpack.c.l.b16 %v7201
        %v7234 = vunpack.c.l.b16 %v7202
        %v7235 = vunpack.c.l.b16 %v7203
        %v7236 = vunpack.c.l.b16 %v7204
        %v7237 = vunpack.c.l.b16 %v7205
        %v7238 = vunpack.c.l.b16 %v7206
        %v7239 = vunpack.c.l.b16 %v7207
        %v7240 = vunpack.c.l.b16 %v7208
        %v7241 = vunpack.c.l.b16 %v7209
        %v7242 = vunpack.c.l.b16 %v7210
        %v7243 = vpack.c.b16 %v7228, %v7227
        %v7244 = vpack.c.b16 %v7230, %v7229
        %v7245 = vpack.c.b16 %v7232, %v7231
        %v7246 = vpack.c.b16 %v7234, %v7233
        %v7247 = vpack.c.b16 %v7236, %v7235
        %v7248 = vpack.c.b16 %v7238, %v7237
        %v7249 = vpack.c.b16 %v7240, %v7239
        %v7250 = vpack.c.b16 %v7242, %v7241
        %7259 = vmatprep.subr.bf16.mxu0 0
        %7260 = vmatpush1.bf16.msra.mxu0 %v7243
        %7261 = vmatprep.subr.bf16.mxu0 0
        %7262 = vmatpush1.bf16.msra.mxu0 %v7244
        %7263 = vmatprep.subr.bf16.mxu0 0
        %7264 = vmatpush1.bf16.msra.mxu0 %v7245
        %7265 = vmatprep.subr.bf16.mxu0 0
        %7266 = vmatpush1.bf16.msra.mxu0 %v7246
        %7267 = vmatprep.subr.bf16.mxu0 0
        %7268 = vmatpush1.bf16.msra.mxu0 %v7247
        %7269 = vmatprep.subr.bf16.mxu0 0
        %7270 = vmatpush1.bf16.msra.mxu0 %v7248
        %7271 = vmatprep.subr.bf16.mxu0 0
        %7272 = vmatpush1.bf16.msra.mxu0 %v7249
        %7273 = vmatprep.subr.bf16.mxu0 0
        %7274 = vmatpush1.bf16.msra.mxu0 %v7250
        %7275 = vmatprep.subr.bf16.mxu0 0
        %7276 = vmatpush1.bf16.msra.mxu0 0
        %7277 = vmatprep.subr.bf16.mxu0 0
        %7278 = vmatpush1.bf16.msra.mxu0 0
        %7279 = vmatprep.subr.bf16.mxu0 0
        %7280 = vmatpush1.bf16.msra.mxu0 0
        %7281 = vmatprep.subr.bf16.mxu0 0
        %7282 = vmatpush1.bf16.msra.mxu0 0
        %7283 = vmatprep.subr.bf16.mxu0 0
        %7284 = vmatpush1.bf16.msra.mxu0 0
        %7285 = vmatprep.subr.bf16.mxu0 0
        %7286 = vmatpush1.bf16.msra.mxu0 0
        %7287 = vmatprep.subr.bf16.mxu0 0
        %7288 = vmatpush1.bf16.msra.mxu0 0
        %7289 = vmatprep.subr.bf16.mxu0 0
        %7290 = vmatpush1.bf16.msra.mxu0 0
        %7291 = vmatprep.mubr.bf16.mxu0 0
        %7292 = vmatmul.mubr.bf16.gmra.mrb[0].mxu0 %v1588
        %v7293 = vpop.f32.mrb[0].mxu0
        %v7294 = vadd.f32 0.0, %v7293
        %v7295 = vpop.f32.mrb[0].mxu0
        %v7296 = vpop.f32.mrb[0].mxu0
        %v7297 = vadd.f32 0.0, %v7296
        %v7298 = vpop.f32.mrb[0].mxu0
        %7299 = vmatprep.mubr.bf16.mxu0 0
        %7300 = vmatmul.mubr.bf16.gmra.mrb[0].mxu0 %v1589
        %v7301 = vpop.f32.mrb[0].mxu0
        %v7302 = vadd.f32 0.0, %v7301
        %v7303 = vpop.f32.mrb[0].mxu0
        %v7304 = vpop.f32.mrb[0].mxu0
        %v7305 = vadd.f32 0.0, %v7304
        %v7306 = vpop.f32.mrb[0].mxu0
        %7307 = vmatprep.mubr.bf16.mxu0 0
        %7308 = vmatmul.mubr.bf16.gmra.mrb[0].mxu0 %v1590
        %v7309 = vpop.f32.mrb[0].mxu0
        %v7310 = vadd.f32 0.0, %v7309
        %v7311 = vpop.f32.mrb[0].mxu0
        %v7312 = vpop.f32.mrb[0].mxu0
        %v7313 = vadd.f32 0.0, %v7312
        %v7314 = vpop.f32.mrb[0].mxu0
        %7315 = vmatprep.mubr.bf16.mxu0 0
        %7316 = vmatmul.mubr.bf16.gmra.mrb[0].mxu0 %v1591
        %v7317 = vpop.f32.mrb[0].mxu0
        %v7318 = vadd.f32 0.0, %v7317
        %v7319 = vpop.f32.mrb[0].mxu0
        %v7320 = vpop.f32.mrb[0].mxu0
        %v7321 = vadd.f32 0.0, %v7320
        %v7322 = vpop.f32.mrb[0].mxu0
        %7323 = vdwg.mxu0
        %v7324 = vadd.f32 %v7186, %v7294
        %v7325 = vadd.f32 %v7187, %v7297
        %v7326 = vadd.f32 %v7188, %v7302
        %v7327 = vadd.f32 %v7189, %v7305
        %v7328 = vadd.f32 %v7190, %v7310
        %v7329 = vadd.f32 %v7191, %v7313
        %v7330 = vadd.f32 %v7192, %v7318
        %v7331 = vadd.f32 %v7193, %v7321
        %s7332 = scalar_lea.vmem [#allocation5], 2624
        %v7333 = vld [vmem:[%s7332] sm:$0xf]
        %v7334 = vld [vmem:[%s7332 + $0x4] sm:$0xf]
        %v7335 = vld [vmem:[%s7332 + $0x8] sm:$0xf]
        %v7336 = vld [vmem:[%s7332 + $0xc] sm:$0xf]
        %v7337 = vld [vmem:[%s7332 + $0x10] sm:$0xf]
        %v7338 = vld [vmem:[%s7332 + $0x14] sm:$0xf]
        %v7339 = vld [vmem:[%s7332 + $0x18] sm:$0xf]
        %v7340 = vld [vmem:[%s7332 + $0x1c] sm:$0xf]
        %v7341 = vld [vmem:[%s7332 + $0x20] sm:$0xf]
        %v7342 = vld [vmem:[%s7332 + $0x24] sm:$0xf]
        %v7343 = vld [vmem:[%s7332 + $0x28] sm:$0xf]
        %v7344 = vld [vmem:[%s7332 + $0x2c] sm:$0xf]
        %v7345 = vld [vmem:[%s7332 + $0x30] sm:$0xf]
        %v7346 = vld [vmem:[%s7332 + $0x34] sm:$0xf]
        %v7347 = vld [vmem:[%s7332 + $0x38] sm:$0xf]
        %v7348 = vld [vmem:[%s7332 + $0x3c] sm:$0xf]
        %v7365 = vunpack.c.l.b16 %v7333
        %v7366 = vunpack.c.l.b16 %v7334
        %v7367 = vunpack.c.l.b16 %v7335
        %v7368 = vunpack.c.l.b16 %v7336
        %v7369 = vunpack.c.l.b16 %v7337
        %v7370 = vunpack.c.l.b16 %v7338
        %v7371 = vunpack.c.l.b16 %v7339
        %v7372 = vunpack.c.l.b16 %v7340
        %v7373 = vunpack.c.l.b16 %v7341
        %v7374 = vunpack.c.l.b16 %v7342
        %v7375 = vunpack.c.l.b16 %v7343
        %v7376 = vunpack.c.l.b16 %v7344
        %v7377 = vunpack.c.l.b16 %v7345
        %v7378 = vunpack.c.l.b16 %v7346
        %v7379 = vunpack.c.l.b16 %v7347
        %v7380 = vunpack.c.l.b16 %v7348
        %v7381 = vpack.c.b16 %v7366, %v7365
        %v7382 = vpack.c.b16 %v7368, %v7367
        %v7383 = vpack.c.b16 %v7370, %v7369
        %v7384 = vpack.c.b16 %v7372, %v7371
        %v7385 = vpack.c.b16 %v7374, %v7373
        %v7386 = vpack.c.b16 %v7376, %v7375
        %v7387 = vpack.c.b16 %v7378, %v7377
        %v7388 = vpack.c.b16 %v7380, %v7379
        %7397 = vmatprep.subr.bf16.mxu0 0
        %7398 = vmatpush1.bf16.msra.mxu0 %v7381
        %7399 = vmatprep.subr.bf16.mxu0 0
        %7400 = vmatpush1.bf16.msra.mxu0 %v7382
        %7401 = vmatprep.subr.bf16.mxu0 0
        %7402 = vmatpush1.bf16.msra.mxu0 %v7383
        %7403 = vmatprep.subr.bf16.mxu0 0
        %7404 = vmatpush1.bf16.msra.mxu0 %v7384
        %7405 = vmatprep.subr.bf16.mxu0 0
        %7406 = vmatpush1.bf16.msra.mxu0 %v7385
        %7407 = vmatprep.subr.bf16.mxu0 0
        %7408 = vmatpush1.bf16.msra.mxu0 %v7386
        %7409 = vmatprep.subr.bf16.mxu0 0
        %7410 = vmatpush1.bf16.msra.mxu0 %v7387
        %7411 = vmatprep.subr.bf16.mxu0 0
        %7412 = vmatpush1.bf16.msra.mxu0 %v7388
        %7413 = vmatprep.subr.bf16.mxu0 0
        %7414 = vmatpush1.bf16.msra.mxu0 0
        %7415 = vmatprep.subr.bf16.mxu0 0
        %7416 = vmatpush1.bf16.msra.mxu0 0
        %7417 = vmatprep.subr.bf16.mxu0 0
        %7418 = vmatpush1.bf16.msra.mxu0 0
        %7419 = vmatprep.subr.bf16.mxu0 0
        %7420 = vmatpush1.bf16.msra.mxu0 0
        %7421 = vmatprep.subr.bf16.mxu0 0
        %7422 = vmatpush1.bf16.msra.mxu0 0
        %7423 = vmatprep.subr.bf16.mxu0 0
        %7424 = vmatpush1.bf16.msra.mxu0 0
        %7425 = vmatprep.subr.bf16.mxu0 0
        %7426 = vmatpush1.bf16.msra.mxu0 0
        %7427 = vmatprep.subr.bf16.mxu0 0
        %7428 = vmatpush1.bf16.msra.mxu0 0
        %7429 = vmatprep.mubr.bf16.mxu0 0
        %7430 = vmatmul.mubr.bf16.gmra.mrb[0].mxu0 %v1758
        %v7431 = vpop.f32.mrb[0].mxu0
        %v7432 = vadd.f32 0.0, %v7431
        %v7433 = vpop.f32.mrb[0].mxu0
        %v7434 = vpop.f32.mrb[0].mxu0
        %v7435 = vadd.f32 0.0, %v7434
        %v7436 = vpop.f32.mrb[0].mxu0
        %7437 = vmatprep.mubr.bf16.mxu0 0
        %7438 = vmatmul.mubr.bf16.gmra.mrb[0].mxu0 %v1759
        %v7439 = vpop.f32.mrb[0].mxu0
        %v7440 = vadd.f32 0.0, %v7439
        %v7441 = vpop.f32.mrb[0].mxu0
        %v7442 = vpop.f32.mrb[0].mxu0
        %v7443 = vadd.f32 0.0, %v7442
        %v7444 = vpop.f32.mrb[0].mxu0
        %7445 = vmatprep.mubr.bf16.mxu0 0
        %7446 = vmatmul.mubr.bf16.gmra.mrb[0].mxu0 %v1760
        %v7447 = vpop.f32.mrb[0].mxu0
        %v7448 = vadd.f32 0.0, %v7447
        %v7449 = vpop.f32.mrb[0].mxu0
        %v7450 = vpop.f32.mrb[0].mxu0
        %v7451 = vadd.f32 0.0, %v7450
        %v7452 = vpop.f32.mrb[0].mxu0
        %7453 = vmatprep.mubr.bf16.mxu0 0
        %7454 = vmatmul.mubr.bf16.gmra.mrb[0].mxu0 %v1761
        %v7455 = vpop.f32.mrb[0].mxu0
        %v7456 = vadd.f32 0.0, %v7455
        %v7457 = vpop.f32.mrb[0].mxu0
        %v7458 = vpop.f32.mrb[0].mxu0
        %v7459 = vadd.f32 0.0, %v7458
        %v7460 = vpop.f32.mrb[0].mxu0
        %7461 = vdwg.mxu0
        %v7462 = vadd.f32 %v7324, %v7432
        %v7463 = vadd.f32 %v7325, %v7435
        %v7464 = vadd.f32 %v7326, %v7440
        %v7465 = vadd.f32 %v7327, %v7443
        %v7466 = vadd.f32 %v7328, %v7448
        %v7467 = vadd.f32 %v7329, %v7451
        %v7468 = vadd.f32 %v7330, %v7456
        %v7469 = vadd.f32 %v7331, %v7459
        %s7470 = scalar_lea.vmem [#allocation5], 2816
        %v7471 = vld [vmem:[%s7470] sm:$0xf]
        %v7472 = vld [vmem:[%s7470 + $0x4] sm:$0xf]
        %v7473 = vld [vmem:[%s7470 + $0x8] sm:$0xf]
        %v7474 = vld [vmem:[%s7470 + $0xc] sm:$0xf]
        %v7475 = vld [vmem:[%s7470 + $0x10] sm:$0xf]
        %v7476 = vld [vmem:[%s7470 + $0x14] sm:$0xf]
        %v7477 = vld [vmem:[%s7470 + $0x18] sm:$0xf]
        %v7478 = vld [vmem:[%s7470 + $0x1c] sm:$0xf]
        %v7479 = vld [vmem:[%s7470 + $0x20] sm:$0xf]
        %v7480 = vld [vmem:[%s7470 + $0x24] sm:$0xf]
        %v7481 = vld [vmem:[%s7470 + $0x28] sm:$0xf]
        %v7482 = vld [vmem:[%s7470 + $0x2c] sm:$0xf]
        %v7483 = vld [vmem:[%s7470 + $0x30] sm:$0xf]
        %v7484 = vld [vmem:[%s7470 + $0x34] sm:$0xf]
        %v7485 = vld [vmem:[%s7470 + $0x38] sm:$0xf]
        %v7486 = vld [vmem:[%s7470 + $0x3c] sm:$0xf]
        %v7503 = vunpack.c.l.b16 %v7471
        %v7504 = vunpack.c.l.b16 %v7472
        %v7505 = vunpack.c.l.b16 %v7473
        %v7506 = vunpack.c.l.b16 %v7474
        %v7507 = vunpack.c.l.b16 %v7475
        %v7508 = vunpack.c.l.b16 %v7476
        %v7509 = vunpack.c.l.b16 %v7477
        %v7510 = vunpack.c.l.b16 %v7478
        %v7511 = vunpack.c.l.b16 %v7479
        %v7512 = vunpack.c.l.b16 %v7480
        %v7513 = vunpack.c.l.b16 %v7481
        %v7514 = vunpack.c.l.b16 %v7482
        %v7515 = vunpack.c.l.b16 %v7483
        %v7516 = vunpack.c.l.b16 %v7484
        %v7517 = vunpack.c.l.b16 %v7485
        %v7518 = vunpack.c.l.b16 %v7486
        %v7519 = vpack.c.b16 %v7504, %v7503
        %v7520 = vpack.c.b16 %v7506, %v7505
        %v7521 = vpack.c.b16 %v7508, %v7507
        %v7522 = vpack.c.b16 %v7510, %v7509
        %v7523 = vpack.c.b16 %v7512, %v7511
        %v7524 = vpack.c.b16 %v7514, %v7513
        %v7525 = vpack.c.b16 %v7516, %v7515
        %v7526 = vpack.c.b16 %v7518, %v7517
        %7535 = vmatprep.subr.bf16.mxu0 0
        %7536 = vmatpush1.bf16.msra.mxu0 %v7519
        %7537 = vmatprep.subr.bf16.mxu0 0
        %7538 = vmatpush1.bf16.msra.mxu0 %v7520
        %7539 = vmatprep.subr.bf16.mxu0 0
        %7540 = vmatpush1.bf16.msra.mxu0 %v7521
        %7541 = vmatprep.subr.bf16.mxu0 0
        %7542 = vmatpush1.bf16.msra.mxu0 %v7522
        %7543 = vmatprep.subr.bf16.mxu0 0
        %7544 = vmatpush1.bf16.msra.mxu0 %v7523
        %7545 = vmatprep.subr.bf16.mxu0 0
        %7546 = vmatpush1.bf16.msra.mxu0 %v7524
        %7547 = vmatprep.subr.bf16.mxu0 0
        %7548 = vmatpush1.bf16.msra.mxu0 %v7525
        %7549 = vmatprep.subr.bf16.mxu0 0
        %7550 = vmatpush1.bf16.msra.mxu0 %v7526
        %7551 = vmatprep.subr.bf16.mxu0 0
        %7552 = vmatpush1.bf16.msra.mxu0 0
        %7553 = vmatprep.subr.bf16.mxu0 0
        %7554 = vmatpush1.bf16.msra.mxu0 0
        %7555 = vmatprep.subr.bf16.mxu0 0
        %7556 = vmatpush1.bf16.msra.mxu0 0
        %7557 = vmatprep.subr.bf16.mxu0 0
        %7558 = vmatpush1.bf16.msra.mxu0 0
        %7559 = vmatprep.subr.bf16.mxu0 0
        %7560 = vmatpush1.bf16.msra.mxu0 0
        %7561 = vmatprep.subr.bf16.mxu0 0
        %7562 = vmatpush1.bf16.msra.mxu0 0
        %7563 = vmatprep.subr.bf16.mxu0 0
        %7564 = vmatpush1.bf16.msra.mxu0 0
        %7565 = vmatprep.subr.bf16.mxu0 0
        %7566 = vmatpush1.bf16.msra.mxu0 0
        %7567 = vmatprep.mubr.bf16.mxu0 0
        %7568 = vmatmul.mubr.bf16.gmra.mrb[0].mxu0 %v1929
        %v7569 = vpop.f32.mrb[0].mxu0
        %v7570 = vadd.f32 0.0, %v7569
        %v7571 = vpop.f32.mrb[0].mxu0
        %v7572 = vpop.f32.mrb[0].mxu0
        %v7573 = vadd.f32 0.0, %v7572
        %v7574 = vpop.f32.mrb[0].mxu0
        %7575 = vmatprep.mubr.bf16.mxu0 0
        %7576 = vmatmul.mubr.bf16.gmra.mrb[0].mxu0 %v1930
        %v7577 = vpop.f32.mrb[0].mxu0
        %v7578 = vadd.f32 0.0, %v7577
        %v7579 = vpop.f32.mrb[0].mxu0
        %v7580 = vpop.f32.mrb[0].mxu0
        %v7581 = vadd.f32 0.0, %v7580
        %v7582 = vpop.f32.mrb[0].mxu0
        %7583 = vmatprep.mubr.bf16.mxu0 0
        %7584 = vmatmul.mubr.bf16.gmra.mrb[0].mxu0 %v1931
        %v7585 = vpop.f32.mrb[0].mxu0
        %v7586 = vadd.f32 0.0, %v7585
        %v7587 = vpop.f32.mrb[0].mxu0
        %v7588 = vpop.f32.mrb[0].mxu0
        %v7589 = vadd.f32 0.0, %v7588
        %v7590 = vpop.f32.mrb[0].mxu0
        %7591 = vmatprep.mubr.bf16.mxu0 0
        %7592 = vmatmul.mubr.bf16.gmra.mrb[0].mxu0 %v1932
        %v7593 = vpop.f32.mrb[0].mxu0
        %v7594 = vadd.f32 0.0, %v7593
        %v7595 = vpop.f32.mrb[0].mxu0
        %v7596 = vpop.f32.mrb[0].mxu0
        %v7597 = vadd.f32 0.0, %v7596
        %v7598 = vpop.f32.mrb[0].mxu0
        %7599 = vdwg.mxu0
        %v7600 = vadd.f32 %v7462, %v7570
        %v7601 = vadd.f32 %v7463, %v7573
        %v7602 = vadd.f32 %v7464, %v7578
        %v7603 = vadd.f32 %v7465, %v7581
        %v7604 = vadd.f32 %v7466, %v7586
        %v7605 = vadd.f32 %v7467, %v7589
        %v7606 = vadd.f32 %v7468, %v7594
        %v7607 = vadd.f32 %v7469, %v7597
        %s7608 = scalar_lea.vmem [#allocation7], 4
        %v7609 = vld [vmem:[%s7608] sm:$0x1]
        %v7611 = vlaneseq
        %v7612 = vshrl.u32 %v7611, 7
        %v7613 = vsub.s32 0, %v7612
        %v7614 = vrot.slane %v7609, %v7613
        %v7616 = vadd.f32 %v7600, %v7614
        %v7617 = vadd.f32 %v7601, %v7614
        %v7618 = vadd.f32 %v7602, %v7614
        %v7619 = vadd.f32 %v7603, %v7614
        %v7620 = vadd.f32 %v7604, %v7614
        %v7621 = vadd.f32 %v7605, %v7614
        %v7622 = vadd.f32 %v7606, %v7614
        %v7623 = vadd.f32 %v7607, %v7614
        %v7624 = vmax.f32 %v7616, 0.0
        %v7625 = vmax.f32 %v7617, 0.0
        %v7626 = vmax.f32 %v7618, 0.0
        %v7627 = vmax.f32 %v7619, 0.0
        %v7628 = vmax.f32 %v7620, 0.0
        %v7629 = vmax.f32 %v7621, 0.0
        %v7630 = vmax.f32 %v7622, 0.0
        %v7631 = vmax.f32 %v7623, 0.0
        %v7632 = vpack.c.bf16 %v7625, %v7624
        %v7633 = vpack.c.bf16 %v7627, %v7626
        %v7634 = vpack.c.bf16 %v7629, %v7628
        %v7635 = vpack.c.bf16 %v7631, %v7630
        %s7636 = scalar_lea.vmem [#allocation8], 256
        %v7637 = vld [vmem:[%s7636] sm:$0xf]
        %v7638 = vld [vmem:[%s7636 + $0x4] sm:$0xf]
        %v7639 = vld [vmem:[%s7636 + $0x8] sm:$0xf]
        %v7640 = vld [vmem:[%s7636 + $0xc] sm:$0xf]
        %v7641 = vld [vmem:[%s7636 + $0x10] sm:$0xf]
        %v7642 = vld [vmem:[%s7636 + $0x14] sm:$0xf]
        %v7643 = vld [vmem:[%s7636 + $0x18] sm:$0xf]
        %v7644 = vld [vmem:[%s7636 + $0x1c] sm:$0xf]
        %v7645 = vld [vmem:[%s7636 + $0x20] sm:$0xf]
        %v7646 = vld [vmem:[%s7636 + $0x24] sm:$0xf]
        %v7647 = vld [vmem:[%s7636 + $0x28] sm:$0xf]
        %v7648 = vld [vmem:[%s7636 + $0x2c] sm:$0xf]
        %v7649 = vld [vmem:[%s7636 + $0x30] sm:$0xf]
        %v7650 = vld [vmem:[%s7636 + $0x34] sm:$0xf]
        %v7651 = vld [vmem:[%s7636 + $0x38] sm:$0xf]
        %v7652 = vld [vmem:[%s7636 + $0x3c] sm:$0xf]
        %v7669 = vunpack.c.l.b16 %v7637
        %v7670 = vunpack.c.l.b16 %v7638
        %v7671 = vunpack.c.l.b16 %v7639
        %v7672 = vunpack.c.l.b16 %v7640
        %v7673 = vunpack.c.l.b16 %v7641
        %v7674 = vunpack.c.l.b16 %v7642
        %v7675 = vunpack.c.l.b16 %v7643
        %v7676 = vunpack.c.l.b16 %v7644
        %v7677 = vunpack.c.l.b16 %v7645
        %v7678 = vunpack.c.l.b16 %v7646
        %v7679 = vunpack.c.l.b16 %v7647
        %v7680 = vunpack.c.l.b16 %v7648
        %v7681 = vunpack.c.l.b16 %v7649
        %v7682 = vunpack.c.l.b16 %v7650
        %v7683 = vunpack.c.l.b16 %v7651
        %v7684 = vunpack.c.l.b16 %v7652
        %v7685 = vpack.c.b16 %v7670, %v7669
        %v7686 = vpack.c.b16 %v7672, %v7671
        %v7687 = vpack.c.b16 %v7674, %v7673
        %v7688 = vpack.c.b16 %v7676, %v7675
        %v7689 = vpack.c.b16 %v7678, %v7677
        %v7690 = vpack.c.b16 %v7680, %v7679
        %v7691 = vpack.c.b16 %v7682, %v7681
        %v7692 = vpack.c.b16 %v7684, %v7683
        %7701 = vmatprep.subr.bf16.mxu0 0
        %7702 = vmatpush1.bf16.msra.mxu0 %v7685
        %7703 = vmatprep.subr.bf16.mxu0 0
        %7704 = vmatpush1.bf16.msra.mxu0 %v7686
        %7705 = vmatprep.subr.bf16.mxu0 0
        %7706 = vmatpush1.bf16.msra.mxu0 %v7687
        %7707 = vmatprep.subr.bf16.mxu0 0
        %7708 = vmatpush1.bf16.msra.mxu0 %v7688
        %7709 = vmatprep.subr.bf16.mxu0 0
        %7710 = vmatpush1.bf16.msra.mxu0 %v7689
        %7711 = vmatprep.subr.bf16.mxu0 0
        %7712 = vmatpush1.bf16.msra.mxu0 %v7690
        %7713 = vmatprep.subr.bf16.mxu0 0
        %7714 = vmatpush1.bf16.msra.mxu0 %v7691
        %7715 = vmatprep.subr.bf16.mxu0 0
        %7716 = vmatpush1.bf16.msra.mxu0 %v7692
        %7717 = vmatprep.subr.bf16.mxu0 0
        %7718 = vmatpush1.bf16.msra.mxu0 0
        %7719 = vmatprep.subr.bf16.mxu0 0
        %7720 = vmatpush1.bf16.msra.mxu0 0
        %7721 = vmatprep.subr.bf16.mxu0 0
        %7722 = vmatpush1.bf16.msra.mxu0 0
        %7723 = vmatprep.subr.bf16.mxu0 0
        %7724 = vmatpush1.bf16.msra.mxu0 0
        %7725 = vmatprep.subr.bf16.mxu0 0
        %7726 = vmatpush1.bf16.msra.mxu0 0
        %7727 = vmatprep.subr.bf16.mxu0 0
        %7728 = vmatpush1.bf16.msra.mxu0 0
        %7729 = vmatprep.subr.bf16.mxu0 0
        %7730 = vmatpush1.bf16.msra.mxu0 0
        %7731 = vmatprep.subr.bf16.mxu0 0
        %7732 = vmatpush1.bf16.msra.mxu0 0
        %7733 = vmatprep.mubr.bf16.mxu0 0
        %7734 = vmatmul.mubr.bf16.gmra.mrb[0].mxu0 %v7632
        %v7735 = vpop.f32.mrb[0].mxu0
        %v7736 = vadd.f32 0.0, %v7735
        %v7737 = vpop.f32.mrb[0].mxu0
        %v7738 = vpop.f32.mrb[0].mxu0
        %v7739 = vadd.f32 0.0, %v7738
        %v7740 = vpop.f32.mrb[0].mxu0
        %7741 = vmatprep.mubr.bf16.mxu0 0
        %7742 = vmatmul.mubr.bf16.gmra.mrb[0].mxu0 %v7633
        %v7743 = vpop.f32.mrb[0].mxu0
        %v7744 = vadd.f32 0.0, %v7743
        %v7745 = vpop.f32.mrb[0].mxu0
        %v7746 = vpop.f32.mrb[0].mxu0
        %v7747 = vadd.f32 0.0, %v7746
        %v7748 = vpop.f32.mrb[0].mxu0
        %7749 = vmatprep.mubr.bf16.mxu0 0
        %7750 = vmatmul.mubr.bf16.gmra.mrb[0].mxu0 %v7634
        %v7751 = vpop.f32.mrb[0].mxu0
        %v7752 = vadd.f32 0.0, %v7751
        %v7753 = vpop.f32.mrb[0].mxu0
        %v7754 = vpop.f32.mrb[0].mxu0
        %v7755 = vadd.f32 0.0, %v7754
        %v7756 = vpop.f32.mrb[0].mxu0
        %7757 = vmatprep.mubr.bf16.mxu0 0
        %7758 = vmatmul.mubr.bf16.gmra.mrb[0].mxu0 %v7635
        %v7759 = vpop.f32.mrb[0].mxu0
        %v7760 = vadd.f32 0.0, %v7759
        %v7761 = vpop.f32.mrb[0].mxu0
        %v7762 = vpop.f32.mrb[0].mxu0
        %v7763 = vadd.f32 0.0, %v7762
        %v7764 = vpop.f32.mrb[0].mxu0
        %7765 = vdwg.mxu0
        %v7766 = vadd.f32 %v6374, %v7736
        %v7767 = vadd.f32 %v6375, %v7739
        %v7768 = vadd.f32 %v6376, %v7744
        %v7769 = vadd.f32 %v6377, %v7747
        %v7770 = vadd.f32 %v6378, %v7752
        %v7771 = vadd.f32 %v6379, %v7755
        %v7772 = vadd.f32 %v6380, %v7760
        %v7773 = vadd.f32 %v6381, %v7763
        %s7774 = scalar_lea.vmem [#allocation5], 2880
        %v7775 = vld [vmem:[%s7774] sm:$0xf]
        %v7776 = vld [vmem:[%s7774 + $0x4] sm:$0xf]
        %v7777 = vld [vmem:[%s7774 + $0x8] sm:$0xf]
        %v7778 = vld [vmem:[%s7774 + $0xc] sm:$0xf]
        %v7779 = vld [vmem:[%s7774 + $0x10] sm:$0xf]
        %v7780 = vld [vmem:[%s7774 + $0x14] sm:$0xf]
        %v7781 = vld [vmem:[%s7774 + $0x18] sm:$0xf]
        %v7782 = vld [vmem:[%s7774 + $0x1c] sm:$0xf]
        %v7783 = vld [vmem:[%s7774 + $0x20] sm:$0xf]
        %v7784 = vld [vmem:[%s7774 + $0x24] sm:$0xf]
        %v7785 = vld [vmem:[%s7774 + $0x28] sm:$0xf]
        %v7786 = vld [vmem:[%s7774 + $0x2c] sm:$0xf]
        %v7787 = vld [vmem:[%s7774 + $0x30] sm:$0xf]
        %v7788 = vld [vmem:[%s7774 + $0x34] sm:$0xf]
        %v7789 = vld [vmem:[%s7774 + $0x38] sm:$0xf]
        %v7790 = vld [vmem:[%s7774 + $0x3c] sm:$0xf]
        %s7791 = scalar_lea.vmem [#allocation5], 3072
        %v7792 = vld [vmem:[%s7791] sm:$0xf]
        %v7793 = vld [vmem:[%s7791 + $0x4] sm:$0xf]
        %v7794 = vld [vmem:[%s7791 + $0x8] sm:$0xf]
        %v7795 = vld [vmem:[%s7791 + $0xc] sm:$0xf]
        %v7796 = vld [vmem:[%s7791 + $0x10] sm:$0xf]
        %v7797 = vld [vmem:[%s7791 + $0x14] sm:$0xf]
        %v7798 = vld [vmem:[%s7791 + $0x18] sm:$0xf]
        %v7799 = vld [vmem:[%s7791 + $0x1c] sm:$0xf]
        %v7800 = vld [vmem:[%s7791 + $0x20] sm:$0xf]
        %v7801 = vld [vmem:[%s7791 + $0x24] sm:$0xf]
        %v7802 = vld [vmem:[%s7791 + $0x28] sm:$0xf]
        %v7803 = vld [vmem:[%s7791 + $0x2c] sm:$0xf]
        %v7804 = vld [vmem:[%s7791 + $0x30] sm:$0xf]
        %v7805 = vld [vmem:[%s7791 + $0x34] sm:$0xf]
        %v7806 = vld [vmem:[%s7791 + $0x38] sm:$0xf]
        %v7807 = vld [vmem:[%s7791 + $0x3c] sm:$0xf]
        %v7824 = vunpack.c.l.b16 %v7792
        %v7825 = vunpack.c.l.b16 %v7793
        %v7826 = vunpack.c.l.b16 %v7794
        %v7827 = vunpack.c.l.b16 %v7795
        %v7828 = vunpack.c.l.b16 %v7796
        %v7829 = vunpack.c.l.b16 %v7797
        %v7830 = vunpack.c.l.b16 %v7798
        %v7831 = vunpack.c.l.b16 %v7799
        %v7832 = vunpack.c.l.b16 %v7800
        %v7833 = vunpack.c.l.b16 %v7801
        %v7834 = vunpack.c.l.b16 %v7802
        %v7835 = vunpack.c.l.b16 %v7803
        %v7836 = vunpack.c.l.b16 %v7804
        %v7837 = vunpack.c.l.b16 %v7805
        %v7838 = vunpack.c.l.b16 %v7806
        %v7839 = vunpack.c.l.b16 %v7807
        %v7840 = vpack.c.b16 %v7825, %v7824
        %v7841 = vpack.c.b16 %v7827, %v7826
        %v7842 = vpack.c.b16 %v7829, %v7828
        %v7843 = vpack.c.b16 %v7831, %v7830
        %v7844 = vpack.c.b16 %v7833, %v7832
        %v7845 = vpack.c.b16 %v7835, %v7834
        %v7846 = vpack.c.b16 %v7837, %v7836
        %v7847 = vpack.c.b16 %v7839, %v7838
        %7856 = vmatprep.subr.bf16.mxu0 0
        %7857 = vmatpush1.bf16.msra.mxu0 %v7840
        %7858 = vmatprep.subr.bf16.mxu0 0
        %7859 = vmatpush1.bf16.msra.mxu0 %v7841
        %7860 = vmatprep.subr.bf16.mxu0 0
        %7861 = vmatpush1.bf16.msra.mxu0 %v7842
        %7862 = vmatprep.subr.bf16.mxu0 0
        %7863 = vmatpush1.bf16.msra.mxu0 %v7843
        %7864 = vmatprep.subr.bf16.mxu0 0
        %7865 = vmatpush1.bf16.msra.mxu0 %v7844
        %7866 = vmatprep.subr.bf16.mxu0 0
        %7867 = vmatpush1.bf16.msra.mxu0 %v7845
        %7868 = vmatprep.subr.bf16.mxu0 0
        %7869 = vmatpush1.bf16.msra.mxu0 %v7846
        %7870 = vmatprep.subr.bf16.mxu0 0
        %7871 = vmatpush1.bf16.msra.mxu0 %v7847
        %7872 = vmatprep.subr.bf16.mxu0 0
        %7873 = vmatpush1.bf16.msra.mxu0 0
        %7874 = vmatprep.subr.bf16.mxu0 0
        %7875 = vmatpush1.bf16.msra.mxu0 0
        %7876 = vmatprep.subr.bf16.mxu0 0
        %7877 = vmatpush1.bf16.msra.mxu0 0
        %7878 = vmatprep.subr.bf16.mxu0 0
        %7879 = vmatpush1.bf16.msra.mxu0 0
        %7880 = vmatprep.subr.bf16.mxu0 0
        %7881 = vmatpush1.bf16.msra.mxu0 0
        %7882 = vmatprep.subr.bf16.mxu0 0
        %7883 = vmatpush1.bf16.msra.mxu0 0
        %7884 = vmatprep.subr.bf16.mxu0 0
        %7885 = vmatpush1.bf16.msra.mxu0 0
        %7886 = vmatprep.subr.bf16.mxu0 0
        %7887 = vmatpush1.bf16.msra.mxu0 0
        %7888 = vmatprep.mubr.bf16.mxu0 0
        %7889 = vmatmul.mubr.bf16.gmra.mrb[0].mxu0 %v605
        %v7890 = vpop.f32.mrb[0].mxu0
        %v7891 = vadd.f32 0.0, %v7890
        %v7892 = vpop.f32.mrb[0].mxu0
        %v7893 = vpop.f32.mrb[0].mxu0
        %v7894 = vadd.f32 0.0, %v7893
        %v7895 = vpop.f32.mrb[0].mxu0
        %7896 = vmatprep.mubr.bf16.mxu0 0
        %7897 = vmatmul.mubr.bf16.gmra.mrb[0].mxu0 %v606
        %v7898 = vpop.f32.mrb[0].mxu0
        %v7899 = vadd.f32 0.0, %v7898
        %v7900 = vpop.f32.mrb[0].mxu0
        %v7901 = vpop.f32.mrb[0].mxu0
        %v7902 = vadd.f32 0.0, %v7901
        %v7903 = vpop.f32.mrb[0].mxu0
        %7904 = vmatprep.mubr.bf16.mxu0 0
        %7905 = vmatmul.mubr.bf16.gmra.mrb[0].mxu0 %v607
        %v7906 = vpop.f32.mrb[0].mxu0
        %v7907 = vadd.f32 0.0, %v7906
        %v7908 = vpop.f32.mrb[0].mxu0
        %v7909 = vpop.f32.mrb[0].mxu0
        %v7910 = vadd.f32 0.0, %v7909
        %v7911 = vpop.f32.mrb[0].mxu0
        %7912 = vmatprep.mubr.bf16.mxu0 0
        %7913 = vmatmul.mubr.bf16.gmra.mrb[0].mxu0 %v608
        %v7914 = vpop.f32.mrb[0].mxu0
        %v7915 = vadd.f32 0.0, %v7914
        %v7916 = vpop.f32.mrb[0].mxu0
        %v7917 = vpop.f32.mrb[0].mxu0
        %v7918 = vadd.f32 0.0, %v7917
        %v7919 = vpop.f32.mrb[0].mxu0
        %7920 = vdwg.mxu0
        %v7937 = vunpack.c.l.b16 %v7775
        %v7938 = vunpack.c.l.b16 %v7776
        %v7939 = vunpack.c.l.b16 %v7777
        %v7940 = vunpack.c.l.b16 %v7778
        %v7941 = vunpack.c.l.b16 %v7779
        %v7942 = vunpack.c.l.b16 %v7780
        %v7943 = vunpack.c.l.b16 %v7781
        %v7944 = vunpack.c.l.b16 %v7782
        %v7945 = vunpack.c.l.b16 %v7783
        %v7946 = vunpack.c.l.b16 %v7784
        %v7947 = vunpack.c.l.b16 %v7785
        %v7948 = vunpack.c.l.b16 %v7786
        %v7949 = vunpack.c.l.b16 %v7787
        %v7950 = vunpack.c.l.b16 %v7788
        %v7951 = vunpack.c.l.b16 %v7789
        %v7952 = vunpack.c.l.b16 %v7790
        %v7953 = vpack.c.b16 %v7938, %v7937
        %v7954 = vpack.c.b16 %v7940, %v7939
        %v7955 = vpack.c.b16 %v7942, %v7941
        %v7956 = vpack.c.b16 %v7944, %v7943
        %v7957 = vpack.c.b16 %v7946, %v7945
        %v7958 = vpack.c.b16 %v7948, %v7947
        %v7959 = vpack.c.b16 %v7950, %v7949
        %v7960 = vpack.c.b16 %v7952, %v7951
        %7969 = vmatprep.subr.bf16.mxu0 0
        %7970 = vmatpush1.bf16.msra.mxu0 %v7953
        %7971 = vmatprep.subr.bf16.mxu0 0
        %7972 = vmatpush1.bf16.msra.mxu0 %v7954
        %7973 = vmatprep.subr.bf16.mxu0 0
        %7974 = vmatpush1.bf16.msra.mxu0 %v7955
        %7975 = vmatprep.subr.bf16.mxu0 0
        %7976 = vmatpush1.bf16.msra.mxu0 %v7956
        %7977 = vmatprep.subr.bf16.mxu0 0
        %7978 = vmatpush1.bf16.msra.mxu0 %v7957
        %7979 = vmatprep.subr.bf16.mxu0 0
        %7980 = vmatpush1.bf16.msra.mxu0 %v7958
        %7981 = vmatprep.subr.bf16.mxu0 0
        %7982 = vmatpush1.bf16.msra.mxu0 %v7959
        %7983 = vmatprep.subr.bf16.mxu0 0
        %7984 = vmatpush1.bf16.msra.mxu0 %v7960
        %7985 = vmatprep.subr.bf16.mxu0 0
        %7986 = vmatpush1.bf16.msra.mxu0 0
        %7987 = vmatprep.subr.bf16.mxu0 0
        %7988 = vmatpush1.bf16.msra.mxu0 0
        %7989 = vmatprep.subr.bf16.mxu0 0
        %7990 = vmatpush1.bf16.msra.mxu0 0
        %7991 = vmatprep.subr.bf16.mxu0 0
        %7992 = vmatpush1.bf16.msra.mxu0 0
        %7993 = vmatprep.subr.bf16.mxu0 0
        %7994 = vmatpush1.bf16.msra.mxu0 0
        %7995 = vmatprep.subr.bf16.mxu0 0
        %7996 = vmatpush1.bf16.msra.mxu0 0
        %7997 = vmatprep.subr.bf16.mxu0 0
        %7998 = vmatpush1.bf16.msra.mxu0 0
        %7999 = vmatprep.subr.bf16.mxu0 0
        %8000 = vmatpush1.bf16.msra.mxu0 0
        %8001 = vmatprep.mubr.bf16.mxu0 0
        %8002 = vmatmul.mubr.bf16.gmra.mrb[0].mxu0 %v742
        %v8003 = vpop.f32.mrb[0].mxu0
        %v8004 = vadd.f32 %v7891, %v8003
        %v8005 = vpop.f32.mrb[0].mxu0
        %v8006 = vpop.f32.mrb[0].mxu0
        %v8007 = vadd.f32 %v7894, %v8006
        %v8008 = vpop.f32.mrb[0].mxu0
        %8009 = vmatprep.mubr.bf16.mxu0 0
        %8010 = vmatmul.mubr.bf16.gmra.mrb[0].mxu0 %v743
        %v8011 = vpop.f32.mrb[0].mxu0
        %v8012 = vadd.f32 %v7899, %v8011
        %v8013 = vpop.f32.mrb[0].mxu0
        %v8014 = vpop.f32.mrb[0].mxu0
        %v8015 = vadd.f32 %v7902, %v8014
        %v8016 = vpop.f32.mrb[0].mxu0
        %8017 = vmatprep.mubr.bf16.mxu0 0
        %8018 = vmatmul.mubr.bf16.gmra.mrb[0].mxu0 %v744
        %v8019 = vpop.f32.mrb[0].mxu0
        %v8020 = vadd.f32 %v7907, %v8019
        %v8021 = vpop.f32.mrb[0].mxu0
        %v8022 = vpop.f32.mrb[0].mxu0
        %v8023 = vadd.f32 %v7910, %v8022
        %v8024 = vpop.f32.mrb[0].mxu0
        %8025 = vmatprep.mubr.bf16.mxu0 0
        %8026 = vmatmul.mubr.bf16.gmra.mrb[0].mxu0 %v745
        %v8027 = vpop.f32.mrb[0].mxu0
        %v8028 = vadd.f32 %v7915, %v8027
        %v8029 = vpop.f32.mrb[0].mxu0
        %v8030 = vpop.f32.mrb[0].mxu0
        %v8031 = vadd.f32 %v7918, %v8030
        %v8032 = vpop.f32.mrb[0].mxu0
        %8033 = vdwg.mxu0
        %s8034 = scalar_lea.vmem [#allocation5], 3264
        %v8035 = vld [vmem:[%s8034] sm:$0xf]
        %v8036 = vld [vmem:[%s8034 + $0x4] sm:$0xf]
        %v8037 = vld [vmem:[%s8034 + $0x8] sm:$0xf]
        %v8038 = vld [vmem:[%s8034 + $0xc] sm:$0xf]
        %v8039 = vld [vmem:[%s8034 + $0x10] sm:$0xf]
        %v8040 = vld [vmem:[%s8034 + $0x14] sm:$0xf]
        %v8041 = vld [vmem:[%s8034 + $0x18] sm:$0xf]
        %v8042 = vld [vmem:[%s8034 + $0x1c] sm:$0xf]
        %v8043 = vld [vmem:[%s8034 + $0x20] sm:$0xf]
        %v8044 = vld [vmem:[%s8034 + $0x24] sm:$0xf]
        %v8045 = vld [vmem:[%s8034 + $0x28] sm:$0xf]
        %v8046 = vld [vmem:[%s8034 + $0x2c] sm:$0xf]
        %v8047 = vld [vmem:[%s8034 + $0x30] sm:$0xf]
        %v8048 = vld [vmem:[%s8034 + $0x34] sm:$0xf]
        %v8049 = vld [vmem:[%s8034 + $0x38] sm:$0xf]
        %v8050 = vld [vmem:[%s8034 + $0x3c] sm:$0xf]
        %v8067 = vunpack.c.l.b16 %v8035
        %v8068 = vunpack.c.l.b16 %v8036
        %v8069 = vunpack.c.l.b16 %v8037
        %v8070 = vunpack.c.l.b16 %v8038
        %v8071 = vunpack.c.l.b16 %v8039
        %v8072 = vunpack.c.l.b16 %v8040
        %v8073 = vunpack.c.l.b16 %v8041
        %v8074 = vunpack.c.l.b16 %v8042
        %v8075 = vunpack.c.l.b16 %v8043
        %v8076 = vunpack.c.l.b16 %v8044
        %v8077 = vunpack.c.l.b16 %v8045
        %v8078 = vunpack.c.l.b16 %v8046
        %v8079 = vunpack.c.l.b16 %v8047
        %v8080 = vunpack.c.l.b16 %v8048
        %v8081 = vunpack.c.l.b16 %v8049
        %v8082 = vunpack.c.l.b16 %v8050
        %v8083 = vpack.c.b16 %v8068, %v8067
        %v8084 = vpack.c.b16 %v8070, %v8069
        %v8085 = vpack.c.b16 %v8072, %v8071
        %v8086 = vpack.c.b16 %v8074, %v8073
        %v8087 = vpack.c.b16 %v8076, %v8075
        %v8088 = vpack.c.b16 %v8078, %v8077
        %v8089 = vpack.c.b16 %v8080, %v8079
        %v8090 = vpack.c.b16 %v8082, %v8081
        %8099 = vmatprep.subr.bf16.mxu0 0
        %8100 = vmatpush1.bf16.msra.mxu0 %v8083
        %8101 = vmatprep.subr.bf16.mxu0 0
        %8102 = vmatpush1.bf16.msra.mxu0 %v8084
        %8103 = vmatprep.subr.bf16.mxu0 0
        %8104 = vmatpush1.bf16.msra.mxu0 %v8085
        %8105 = vmatprep.subr.bf16.mxu0 0
        %8106 = vmatpush1.bf16.msra.mxu0 %v8086
        %8107 = vmatprep.subr.bf16.mxu0 0
        %8108 = vmatpush1.bf16.msra.mxu0 %v8087
        %8109 = vmatprep.subr.bf16.mxu0 0
        %8110 = vmatpush1.bf16.msra.mxu0 %v8088
        %8111 = vmatprep.subr.bf16.mxu0 0
        %8112 = vmatpush1.bf16.msra.mxu0 %v8089
        %8113 = vmatprep.subr.bf16.mxu0 0
        %8114 = vmatpush1.bf16.msra.mxu0 %v8090
        %8115 = vmatprep.subr.bf16.mxu0 0
        %8116 = vmatpush1.bf16.msra.mxu0 0
        %8117 = vmatprep.subr.bf16.mxu0 0
        %8118 = vmatpush1.bf16.msra.mxu0 0
        %8119 = vmatprep.subr.bf16.mxu0 0
        %8120 = vmatpush1.bf16.msra.mxu0 0
        %8121 = vmatprep.subr.bf16.mxu0 0
        %8122 = vmatpush1.bf16.msra.mxu0 0
        %8123 = vmatprep.subr.bf16.mxu0 0
        %8124 = vmatpush1.bf16.msra.mxu0 0
        %8125 = vmatprep.subr.bf16.mxu0 0
        %8126 = vmatpush1.bf16.msra.mxu0 0
        %8127 = vmatprep.subr.bf16.mxu0 0
        %8128 = vmatpush1.bf16.msra.mxu0 0
        %8129 = vmatprep.subr.bf16.mxu0 0
        %8130 = vmatpush1.bf16.msra.mxu0 0
        %8131 = vmatprep.mubr.bf16.mxu0 0
        %8132 = vmatmul.mubr.bf16.gmra.mrb[0].mxu0 %v905
        %v8133 = vpop.f32.mrb[0].mxu0
        %v8134 = vadd.f32 0.0, %v8133
        %v8135 = vpop.f32.mrb[0].mxu0
        %v8136 = vpop.f32.mrb[0].mxu0
        %v8137 = vadd.f32 0.0, %v8136
        %v8138 = vpop.f32.mrb[0].mxu0
        %8139 = vmatprep.mubr.bf16.mxu0 0
        %8140 = vmatmul.mubr.bf16.gmra.mrb[0].mxu0 %v906
        %v8141 = vpop.f32.mrb[0].mxu0
        %v8142 = vadd.f32 0.0, %v8141
        %v8143 = vpop.f32.mrb[0].mxu0
        %v8144 = vpop.f32.mrb[0].mxu0
        %v8145 = vadd.f32 0.0, %v8144
        %v8146 = vpop.f32.mrb[0].mxu0
        %8147 = vmatprep.mubr.bf16.mxu0 0
        %8148 = vmatmul.mubr.bf16.gmra.mrb[0].mxu0 %v907
        %v8149 = vpop.f32.mrb[0].mxu0
        %v8150 = vadd.f32 0.0, %v8149
        %v8151 = vpop.f32.mrb[0].mxu0
        %v8152 = vpop.f32.mrb[0].mxu0
        %v8153 = vadd.f32 0.0, %v8152
        %v8154 = vpop.f32.mrb[0].mxu0
        %8155 = vmatprep.mubr.bf16.mxu0 0
        %8156 = vmatmul.mubr.bf16.gmra.mrb[0].mxu0 %v908
        %v8157 = vpop.f32.mrb[0].mxu0
        %v8158 = vadd.f32 0.0, %v8157
        %v8159 = vpop.f32.mrb[0].mxu0
        %v8160 = vpop.f32.mrb[0].mxu0
        %v8161 = vadd.f32 0.0, %v8160
        %v8162 = vpop.f32.mrb[0].mxu0
        %8163 = vdwg.mxu0
        %v8164 = vadd.f32 %v8004, %v8134
        %v8165 = vadd.f32 %v8007, %v8137
        %v8166 = vadd.f32 %v8012, %v8142
        %v8167 = vadd.f32 %v8015, %v8145
        %v8168 = vadd.f32 %v8020, %v8150
        %v8169 = vadd.f32 %v8023, %v8153
        %v8170 = vadd.f32 %v8028, %v8158
        %v8171 = vadd.f32 %v8031, %v8161
        %s8172 = scalar_lea.vmem [#allocation5], 2944
        %v8173 = vld [vmem:[%s8172] sm:$0xf]
        %v8174 = vld [vmem:[%s8172 + $0x4] sm:$0xf]
        %v8175 = vld [vmem:[%s8172 + $0x8] sm:$0xf]
        %v8176 = vld [vmem:[%s8172 + $0xc] sm:$0xf]
        %v8177 = vld [vmem:[%s8172 + $0x10] sm:$0xf]
        %v8178 = vld [vmem:[%s8172 + $0x14] sm:$0xf]
        %v8179 = vld [vmem:[%s8172 + $0x18] sm:$0xf]
        %v8180 = vld [vmem:[%s8172 + $0x1c] sm:$0xf]
        %v8181 = vld [vmem:[%s8172 + $0x20] sm:$0xf]
        %v8182 = vld [vmem:[%s8172 + $0x24] sm:$0xf]
        %v8183 = vld [vmem:[%s8172 + $0x28] sm:$0xf]
        %v8184 = vld [vmem:[%s8172 + $0x2c] sm:$0xf]
        %v8185 = vld [vmem:[%s8172 + $0x30] sm:$0xf]
        %v8186 = vld [vmem:[%s8172 + $0x34] sm:$0xf]
        %v8187 = vld [vmem:[%s8172 + $0x38] sm:$0xf]
        %v8188 = vld [vmem:[%s8172 + $0x3c] sm:$0xf]
        %v8205 = vunpack.c.l.b16 %v8173
        %v8206 = vunpack.c.l.b16 %v8174
        %v8207 = vunpack.c.l.b16 %v8175
        %v8208 = vunpack.c.l.b16 %v8176
        %v8209 = vunpack.c.l.b16 %v8177
        %v8210 = vunpack.c.l.b16 %v8178
        %v8211 = vunpack.c.l.b16 %v8179
        %v8212 = vunpack.c.l.b16 %v8180
        %v8213 = vunpack.c.l.b16 %v8181
        %v8214 = vunpack.c.l.b16 %v8182
        %v8215 = vunpack.c.l.b16 %v8183
        %v8216 = vunpack.c.l.b16 %v8184
        %v8217 = vunpack.c.l.b16 %v8185
        %v8218 = vunpack.c.l.b16 %v8186
        %v8219 = vunpack.c.l.b16 %v8187
        %v8220 = vunpack.c.l.b16 %v8188
        %v8221 = vpack.c.b16 %v8206, %v8205
        %v8222 = vpack.c.b16 %v8208, %v8207
        %v8223 = vpack.c.b16 %v8210, %v8209
        %v8224 = vpack.c.b16 %v8212, %v8211
        %v8225 = vpack.c.b16 %v8214, %v8213
        %v8226 = vpack.c.b16 %v8216, %v8215
        %v8227 = vpack.c.b16 %v8218, %v8217
        %v8228 = vpack.c.b16 %v8220, %v8219
        %8237 = vmatprep.subr.bf16.mxu0 0
        %8238 = vmatpush1.bf16.msra.mxu0 %v8221
        %8239 = vmatprep.subr.bf16.mxu0 0
        %8240 = vmatpush1.bf16.msra.mxu0 %v8222
        %8241 = vmatprep.subr.bf16.mxu0 0
        %8242 = vmatpush1.bf16.msra.mxu0 %v8223
        %8243 = vmatprep.subr.bf16.mxu0 0
        %8244 = vmatpush1.bf16.msra.mxu0 %v8224
        %8245 = vmatprep.subr.bf16.mxu0 0
        %8246 = vmatpush1.bf16.msra.mxu0 %v8225
        %8247 = vmatprep.subr.bf16.mxu0 0
        %8248 = vmatpush1.bf16.msra.mxu0 %v8226
        %8249 = vmatprep.subr.bf16.mxu0 0
        %8250 = vmatpush1.bf16.msra.mxu0 %v8227
        %8251 = vmatprep.subr.bf16.mxu0 0
        %8252 = vmatpush1.bf16.msra.mxu0 %v8228
        %8253 = vmatprep.subr.bf16.mxu0 0
        %8254 = vmatpush1.bf16.msra.mxu0 0
        %8255 = vmatprep.subr.bf16.mxu0 0
        %8256 = vmatpush1.bf16.msra.mxu0 0
        %8257 = vmatprep.subr.bf16.mxu0 0
        %8258 = vmatpush1.bf16.msra.mxu0 0
        %8259 = vmatprep.subr.bf16.mxu0 0
        %8260 = vmatpush1.bf16.msra.mxu0 0
        %8261 = vmatprep.subr.bf16.mxu0 0
        %8262 = vmatpush1.bf16.msra.mxu0 0
        %8263 = vmatprep.subr.bf16.mxu0 0
        %8264 = vmatpush1.bf16.msra.mxu0 0
        %8265 = vmatprep.subr.bf16.mxu0 0
        %8266 = vmatpush1.bf16.msra.mxu0 0
        %8267 = vmatprep.subr.bf16.mxu0 0
        %8268 = vmatpush1.bf16.msra.mxu0 0
        %8269 = vmatprep.mubr.bf16.mxu0 0
        %8270 = vmatmul.mubr.bf16.gmra.mrb[0].mxu0 %v1076
        %v8271 = vpop.f32.mrb[0].mxu0
        %v8272 = vadd.f32 0.0, %v8271
        %v8273 = vpop.f32.mrb[0].mxu0
        %v8274 = vpop.f32.mrb[0].mxu0
        %v8275 = vadd.f32 0.0, %v8274
        %v8276 = vpop.f32.mrb[0].mxu0
        %8277 = vmatprep.mubr.bf16.mxu0 0
        %8278 = vmatmul.mubr.bf16.gmra.mrb[0].mxu0 %v1077
        %v8279 = vpop.f32.mrb[0].mxu0
        %v8280 = vadd.f32 0.0, %v8279
        %v8281 = vpop.f32.mrb[0].mxu0
        %v8282 = vpop.f32.mrb[0].mxu0
        %v8283 = vadd.f32 0.0, %v8282
        %v8284 = vpop.f32.mrb[0].mxu0
        %8285 = vmatprep.mubr.bf16.mxu0 0
        %8286 = vmatmul.mubr.bf16.gmra.mrb[0].mxu0 %v1078
        %v8287 = vpop.f32.mrb[0].mxu0
        %v8288 = vadd.f32 0.0, %v8287
        %v8289 = vpop.f32.mrb[0].mxu0
        %v8290 = vpop.f32.mrb[0].mxu0
        %v8291 = vadd.f32 0.0, %v8290
        %v8292 = vpop.f32.mrb[0].mxu0
        %8293 = vmatprep.mubr.bf16.mxu0 0
        %8294 = vmatmul.mubr.bf16.gmra.mrb[0].mxu0 %v1079
        %v8295 = vpop.f32.mrb[0].mxu0
        %v8296 = vadd.f32 0.0, %v8295
        %v8297 = vpop.f32.mrb[0].mxu0
        %v8298 = vpop.f32.mrb[0].mxu0
        %v8299 = vadd.f32 0.0, %v8298
        %v8300 = vpop.f32.mrb[0].mxu0
        %8301 = vdwg.mxu0
        %v8302 = vadd.f32 %v8164, %v8272
        %v8303 = vadd.f32 %v8165, %v8275
        %v8304 = vadd.f32 %v8166, %v8280
        %v8305 = vadd.f32 %v8167, %v8283
        %v8306 = vadd.f32 %v8168, %v8288
        %v8307 = vadd.f32 %v8169, %v8291
        %v8308 = vadd.f32 %v8170, %v8296
        %v8309 = vadd.f32 %v8171, %v8299
        %s8310 = scalar_lea.vmem [#allocation5], 3136
        %v8311 = vld [vmem:[%s8310] sm:$0xf]
        %v8312 = vld [vmem:[%s8310 + $0x4] sm:$0xf]
        %v8313 = vld [vmem:[%s8310 + $0x8] sm:$0xf]
        %v8314 = vld [vmem:[%s8310 + $0xc] sm:$0xf]
        %v8315 = vld [vmem:[%s8310 + $0x10] sm:$0xf]
        %v8316 = vld [vmem:[%s8310 + $0x14] sm:$0xf]
        %v8317 = vld [vmem:[%s8310 + $0x18] sm:$0xf]
        %v8318 = vld [vmem:[%s8310 + $0x1c] sm:$0xf]
        %v8319 = vld [vmem:[%s8310 + $0x20] sm:$0xf]
        %v8320 = vld [vmem:[%s8310 + $0x24] sm:$0xf]
        %v8321 = vld [vmem:[%s8310 + $0x28] sm:$0xf]
        %v8322 = vld [vmem:[%s8310 + $0x2c] sm:$0xf]
        %v8323 = vld [vmem:[%s8310 + $0x30] sm:$0xf]
        %v8324 = vld [vmem:[%s8310 + $0x34] sm:$0xf]
        %v8325 = vld [vmem:[%s8310 + $0x38] sm:$0xf]
        %v8326 = vld [vmem:[%s8310 + $0x3c] sm:$0xf]
        %v8343 = vunpack.c.l.b16 %v8311
        %v8344 = vunpack.c.l.b16 %v8312
        %v8345 = vunpack.c.l.b16 %v8313
        %v8346 = vunpack.c.l.b16 %v8314
        %v8347 = vunpack.c.l.b16 %v8315
        %v8348 = vunpack.c.l.b16 %v8316
        %v8349 = vunpack.c.l.b16 %v8317
        %v8350 = vunpack.c.l.b16 %v8318
        %v8351 = vunpack.c.l.b16 %v8319
        %v8352 = vunpack.c.l.b16 %v8320
        %v8353 = vunpack.c.l.b16 %v8321
        %v8354 = vunpack.c.l.b16 %v8322
        %v8355 = vunpack.c.l.b16 %v8323
        %v8356 = vunpack.c.l.b16 %v8324
        %v8357 = vunpack.c.l.b16 %v8325
        %v8358 = vunpack.c.l.b16 %v8326
        %v8359 = vpack.c.b16 %v8344, %v8343
        %v8360 = vpack.c.b16 %v8346, %v8345
        %v8361 = vpack.c.b16 %v8348, %v8347
        %v8362 = vpack.c.b16 %v8350, %v8349
        %v8363 = vpack.c.b16 %v8352, %v8351
        %v8364 = vpack.c.b16 %v8354, %v8353
        %v8365 = vpack.c.b16 %v8356, %v8355
        %v8366 = vpack.c.b16 %v8358, %v8357
        %8375 = vmatprep.subr.bf16.mxu0 0
        %8376 = vmatpush1.bf16.msra.mxu0 %v8359
        %8377 = vmatprep.subr.bf16.mxu0 0
        %8378 = vmatpush1.bf16.msra.mxu0 %v8360
        %8379 = vmatprep.subr.bf16.mxu0 0
        %8380 = vmatpush1.bf16.msra.mxu0 %v8361
        %8381 = vmatprep.subr.bf16.mxu0 0
        %8382 = vmatpush1.bf16.msra.mxu0 %v8362
        %8383 = vmatprep.subr.bf16.mxu0 0
        %8384 = vmatpush1.bf16.msra.mxu0 %v8363
        %8385 = vmatprep.subr.bf16.mxu0 0
        %8386 = vmatpush1.bf16.msra.mxu0 %v8364
        %8387 = vmatprep.subr.bf16.mxu0 0
        %8388 = vmatpush1.bf16.msra.mxu0 %v8365
        %8389 = vmatprep.subr.bf16.mxu0 0
        %8390 = vmatpush1.bf16.msra.mxu0 %v8366
        %8391 = vmatprep.subr.bf16.mxu0 0
        %8392 = vmatpush1.bf16.msra.mxu0 0
        %8393 = vmatprep.subr.bf16.mxu0 0
        %8394 = vmatpush1.bf16.msra.mxu0 0
        %8395 = vmatprep.subr.bf16.mxu0 0
        %8396 = vmatpush1.bf16.msra.mxu0 0
        %8397 = vmatprep.subr.bf16.mxu0 0
        %8398 = vmatpush1.bf16.msra.mxu0 0
        %8399 = vmatprep.subr.bf16.mxu0 0
        %8400 = vmatpush1.bf16.msra.mxu0 0
        %8401 = vmatprep.subr.bf16.mxu0 0
        %8402 = vmatpush1.bf16.msra.mxu0 0
        %8403 = vmatprep.subr.bf16.mxu0 0
        %8404 = vmatpush1.bf16.msra.mxu0 0
        %8405 = vmatprep.subr.bf16.mxu0 0
        %8406 = vmatpush1.bf16.msra.mxu0 0
        %8407 = vmatprep.mubr.bf16.mxu0 0
        %8408 = vmatmul.mubr.bf16.gmra.mrb[0].mxu0 %v1246
        %v8409 = vpop.f32.mrb[0].mxu0
        %v8410 = vadd.f32 0.0, %v8409
        %v8411 = vpop.f32.mrb[0].mxu0
        %v8412 = vpop.f32.mrb[0].mxu0
        %v8413 = vadd.f32 0.0, %v8412
        %v8414 = vpop.f32.mrb[0].mxu0
        %8415 = vmatprep.mubr.bf16.mxu0 0
        %8416 = vmatmul.mubr.bf16.gmra.mrb[0].mxu0 %v1247
        %v8417 = vpop.f32.mrb[0].mxu0
        %v8418 = vadd.f32 0.0, %v8417
        %v8419 = vpop.f32.mrb[0].mxu0
        %v8420 = vpop.f32.mrb[0].mxu0
        %v8421 = vadd.f32 0.0, %v8420
        %v8422 = vpop.f32.mrb[0].mxu0
        %8423 = vmatprep.mubr.bf16.mxu0 0
        %8424 = vmatmul.mubr.bf16.gmra.mrb[0].mxu0 %v1248
        %v8425 = vpop.f32.mrb[0].mxu0
        %v8426 = vadd.f32 0.0, %v8425
        %v8427 = vpop.f32.mrb[0].mxu0
        %v8428 = vpop.f32.mrb[0].mxu0
        %v8429 = vadd.f32 0.0, %v8428
        %v8430 = vpop.f32.mrb[0].mxu0
        %8431 = vmatprep.mubr.bf16.mxu0 0
        %8432 = vmatmul.mubr.bf16.gmra.mrb[0].mxu0 %v1249
        %v8433 = vpop.f32.mrb[0].mxu0
        %v8434 = vadd.f32 0.0, %v8433
        %v8435 = vpop.f32.mrb[0].mxu0
        %v8436 = vpop.f32.mrb[0].mxu0
        %v8437 = vadd.f32 0.0, %v8436
        %v8438 = vpop.f32.mrb[0].mxu0
        %8439 = vdwg.mxu0
        %v8440 = vadd.f32 %v8302, %v8410
        %v8441 = vadd.f32 %v8303, %v8413
        %v8442 = vadd.f32 %v8304, %v8418
        %v8443 = vadd.f32 %v8305, %v8421
        %v8444 = vadd.f32 %v8306, %v8426
        %v8445 = vadd.f32 %v8307, %v8429
        %v8446 = vadd.f32 %v8308, %v8434
        %v8447 = vadd.f32 %v8309, %v8437
        %s8448 = scalar_lea.vmem [#allocation5], 3328
        %v8449 = vld [vmem:[%s8448] sm:$0xf]
        %v8450 = vld [vmem:[%s8448 + $0x4] sm:$0xf]
        %v8451 = vld [vmem:[%s8448 + $0x8] sm:$0xf]
        %v8452 = vld [vmem:[%s8448 + $0xc] sm:$0xf]
        %v8453 = vld [vmem:[%s8448 + $0x10] sm:$0xf]
        %v8454 = vld [vmem:[%s8448 + $0x14] sm:$0xf]
        %v8455 = vld [vmem:[%s8448 + $0x18] sm:$0xf]
        %v8456 = vld [vmem:[%s8448 + $0x1c] sm:$0xf]
        %v8457 = vld [vmem:[%s8448 + $0x20] sm:$0xf]
        %v8458 = vld [vmem:[%s8448 + $0x24] sm:$0xf]
        %v8459 = vld [vmem:[%s8448 + $0x28] sm:$0xf]
        %v8460 = vld [vmem:[%s8448 + $0x2c] sm:$0xf]
        %v8461 = vld [vmem:[%s8448 + $0x30] sm:$0xf]
        %v8462 = vld [vmem:[%s8448 + $0x34] sm:$0xf]
        %v8463 = vld [vmem:[%s8448 + $0x38] sm:$0xf]
        %v8464 = vld [vmem:[%s8448 + $0x3c] sm:$0xf]
        %v8481 = vunpack.c.l.b16 %v8449
        %v8482 = vunpack.c.l.b16 %v8450
        %v8483 = vunpack.c.l.b16 %v8451
        %v8484 = vunpack.c.l.b16 %v8452
        %v8485 = vunpack.c.l.b16 %v8453
        %v8486 = vunpack.c.l.b16 %v8454
        %v8487 = vunpack.c.l.b16 %v8455
        %v8488 = vunpack.c.l.b16 %v8456
        %v8489 = vunpack.c.l.b16 %v8457
        %v8490 = vunpack.c.l.b16 %v8458
        %v8491 = vunpack.c.l.b16 %v8459
        %v8492 = vunpack.c.l.b16 %v8460
        %v8493 = vunpack.c.l.b16 %v8461
        %v8494 = vunpack.c.l.b16 %v8462
        %v8495 = vunpack.c.l.b16 %v8463
        %v8496 = vunpack.c.l.b16 %v8464
        %v8497 = vpack.c.b16 %v8482, %v8481
        %v8498 = vpack.c.b16 %v8484, %v8483
        %v8499 = vpack.c.b16 %v8486, %v8485
        %v8500 = vpack.c.b16 %v8488, %v8487
        %v8501 = vpack.c.b16 %v8490, %v8489
        %v8502 = vpack.c.b16 %v8492, %v8491
        %v8503 = vpack.c.b16 %v8494, %v8493
        %v8504 = vpack.c.b16 %v8496, %v8495
        %8513 = vmatprep.subr.bf16.mxu0 0
        %8514 = vmatpush1.bf16.msra.mxu0 %v8497
        %8515 = vmatprep.subr.bf16.mxu0 0
        %8516 = vmatpush1.bf16.msra.mxu0 %v8498
        %8517 = vmatprep.subr.bf16.mxu0 0
        %8518 = vmatpush1.bf16.msra.mxu0 %v8499
        %8519 = vmatprep.subr.bf16.mxu0 0
        %8520 = vmatpush1.bf16.msra.mxu0 %v8500
        %8521 = vmatprep.subr.bf16.mxu0 0
        %8522 = vmatpush1.bf16.msra.mxu0 %v8501
        %8523 = vmatprep.subr.bf16.mxu0 0
        %8524 = vmatpush1.bf16.msra.mxu0 %v8502
        %8525 = vmatprep.subr.bf16.mxu0 0
        %8526 = vmatpush1.bf16.msra.mxu0 %v8503
        %8527 = vmatprep.subr.bf16.mxu0 0
        %8528 = vmatpush1.bf16.msra.mxu0 %v8504
        %8529 = vmatprep.subr.bf16.mxu0 0
        %8530 = vmatpush1.bf16.msra.mxu0 0
        %8531 = vmatprep.subr.bf16.mxu0 0
        %8532 = vmatpush1.bf16.msra.mxu0 0
        %8533 = vmatprep.subr.bf16.mxu0 0
        %8534 = vmatpush1.bf16.msra.mxu0 0
        %8535 = vmatprep.subr.bf16.mxu0 0
        %8536 = vmatpush1.bf16.msra.mxu0 0
        %8537 = vmatprep.subr.bf16.mxu0 0
        %8538 = vmatpush1.bf16.msra.mxu0 0
        %8539 = vmatprep.subr.bf16.mxu0 0
        %8540 = vmatpush1.bf16.msra.mxu0 0
        %8541 = vmatprep.subr.bf16.mxu0 0
        %8542 = vmatpush1.bf16.msra.mxu0 0
        %8543 = vmatprep.subr.bf16.mxu0 0
        %8544 = vmatpush1.bf16.msra.mxu0 0
        %8545 = vmatprep.mubr.bf16.mxu0 0
        %8546 = vmatmul.mubr.bf16.gmra.mrb[0].mxu0 %v1417
        %v8547 = vpop.f32.mrb[0].mxu0
        %v8548 = vadd.f32 0.0, %v8547
        %v8549 = vpop.f32.mrb[0].mxu0
        %v8550 = vpop.f32.mrb[0].mxu0
        %v8551 = vadd.f32 0.0, %v8550
        %v8552 = vpop.f32.mrb[0].mxu0
        %8553 = vmatprep.mubr.bf16.mxu0 0
        %8554 = vmatmul.mubr.bf16.gmra.mrb[0].mxu0 %v1418
        %v8555 = vpop.f32.mrb[0].mxu0
        %v8556 = vadd.f32 0.0, %v8555
        %v8557 = vpop.f32.mrb[0].mxu0
        %v8558 = vpop.f32.mrb[0].mxu0
        %v8559 = vadd.f32 0.0, %v8558
        %v8560 = vpop.f32.mrb[0].mxu0
        %8561 = vmatprep.mubr.bf16.mxu0 0
        %8562 = vmatmul.mubr.bf16.gmra.mrb[0].mxu0 %v1419
        %v8563 = vpop.f32.mrb[0].mxu0
        %v8564 = vadd.f32 0.0, %v8563
        %v8565 = vpop.f32.mrb[0].mxu0
        %v8566 = vpop.f32.mrb[0].mxu0
        %v8567 = vadd.f32 0.0, %v8566
        %v8568 = vpop.f32.mrb[0].mxu0
        %8569 = vmatprep.mubr.bf16.mxu0 0
        %8570 = vmatmul.mubr.bf16.gmra.mrb[0].mxu0 %v1420
        %v8571 = vpop.f32.mrb[0].mxu0
        %v8572 = vadd.f32 0.0, %v8571
        %v8573 = vpop.f32.mrb[0].mxu0
        %v8574 = vpop.f32.mrb[0].mxu0
        %v8575 = vadd.f32 0.0, %v8574
        %v8576 = vpop.f32.mrb[0].mxu0
        %8577 = vdwg.mxu0
        %v8578 = vadd.f32 %v8440, %v8548
        %v8579 = vadd.f32 %v8441, %v8551
        %v8580 = vadd.f32 %v8442, %v8556
        %v8581 = vadd.f32 %v8443, %v8559
        %v8582 = vadd.f32 %v8444, %v8564
        %v8583 = vadd.f32 %v8445, %v8567
        %v8584 = vadd.f32 %v8446, %v8572
        %v8585 = vadd.f32 %v8447, %v8575
        %s8586 = scalar_lea.vmem [#allocation5], 3008
        %v8587 = vld [vmem:[%s8586] sm:$0xf]
        %v8588 = vld [vmem:[%s8586 + $0x4] sm:$0xf]
        %v8589 = vld [vmem:[%s8586 + $0x8] sm:$0xf]
        %v8590 = vld [vmem:[%s8586 + $0xc] sm:$0xf]
        %v8591 = vld [vmem:[%s8586 + $0x10] sm:$0xf]
        %v8592 = vld [vmem:[%s8586 + $0x14] sm:$0xf]
        %v8593 = vld [vmem:[%s8586 + $0x18] sm:$0xf]
        %v8594 = vld [vmem:[%s8586 + $0x1c] sm:$0xf]
        %v8595 = vld [vmem:[%s8586 + $0x20] sm:$0xf]
        %v8596 = vld [vmem:[%s8586 + $0x24] sm:$0xf]
        %v8597 = vld [vmem:[%s8586 + $0x28] sm:$0xf]
        %v8598 = vld [vmem:[%s8586 + $0x2c] sm:$0xf]
        %v8599 = vld [vmem:[%s8586 + $0x30] sm:$0xf]
        %v8600 = vld [vmem:[%s8586 + $0x34] sm:$0xf]
        %v8601 = vld [vmem:[%s8586 + $0x38] sm:$0xf]
        %v8602 = vld [vmem:[%s8586 + $0x3c] sm:$0xf]
        %v8619 = vunpack.c.l.b16 %v8587
        %v8620 = vunpack.c.l.b16 %v8588
        %v8621 = vunpack.c.l.b16 %v8589
        %v8622 = vunpack.c.l.b16 %v8590
        %v8623 = vunpack.c.l.b16 %v8591
        %v8624 = vunpack.c.l.b16 %v8592
        %v8625 = vunpack.c.l.b16 %v8593
        %v8626 = vunpack.c.l.b16 %v8594
        %v8627 = vunpack.c.l.b16 %v8595
        %v8628 = vunpack.c.l.b16 %v8596
        %v8629 = vunpack.c.l.b16 %v8597
        %v8630 = vunpack.c.l.b16 %v8598
        %v8631 = vunpack.c.l.b16 %v8599
        %v8632 = vunpack.c.l.b16 %v8600
        %v8633 = vunpack.c.l.b16 %v8601
        %v8634 = vunpack.c.l.b16 %v8602
        %v8635 = vpack.c.b16 %v8620, %v8619
        %v8636 = vpack.c.b16 %v8622, %v8621
        %v8637 = vpack.c.b16 %v8624, %v8623
        %v8638 = vpack.c.b16 %v8626, %v8625
        %v8639 = vpack.c.b16 %v8628, %v8627
        %v8640 = vpack.c.b16 %v8630, %v8629
        %v8641 = vpack.c.b16 %v8632, %v8631
        %v8642 = vpack.c.b16 %v8634, %v8633
        %8651 = vmatprep.subr.bf16.mxu0 0
        %8652 = vmatpush1.bf16.msra.mxu0 %v8635
        %8653 = vmatprep.subr.bf16.mxu0 0
        %8654 = vmatpush1.bf16.msra.mxu0 %v8636
        %8655 = vmatprep.subr.bf16.mxu0 0
        %8656 = vmatpush1.bf16.msra.mxu0 %v8637
        %8657 = vmatprep.subr.bf16.mxu0 0
        %8658 = vmatpush1.bf16.msra.mxu0 %v8638
        %8659 = vmatprep.subr.bf16.mxu0 0
        %8660 = vmatpush1.bf16.msra.mxu0 %v8639
        %8661 = vmatprep.subr.bf16.mxu0 0
        %8662 = vmatpush1.bf16.msra.mxu0 %v8640
        %8663 = vmatprep.subr.bf16.mxu0 0
        %8664 = vmatpush1.bf16.msra.mxu0 %v8641
        %8665 = vmatprep.subr.bf16.mxu0 0
        %8666 = vmatpush1.bf16.msra.mxu0 %v8642
        %8667 = vmatprep.subr.bf16.mxu0 0
        %8668 = vmatpush1.bf16.msra.mxu0 0
        %8669 = vmatprep.subr.bf16.mxu0 0
        %8670 = vmatpush1.bf16.msra.mxu0 0
        %8671 = vmatprep.subr.bf16.mxu0 0
        %8672 = vmatpush1.bf16.msra.mxu0 0
        %8673 = vmatprep.subr.bf16.mxu0 0
        %8674 = vmatpush1.bf16.msra.mxu0 0
        %8675 = vmatprep.subr.bf16.mxu0 0
        %8676 = vmatpush1.bf16.msra.mxu0 0
        %8677 = vmatprep.subr.bf16.mxu0 0
        %8678 = vmatpush1.bf16.msra.mxu0 0
        %8679 = vmatprep.subr.bf16.mxu0 0
        %8680 = vmatpush1.bf16.msra.mxu0 0
        %8681 = vmatprep.subr.bf16.mxu0 0
        %8682 = vmatpush1.bf16.msra.mxu0 0
        %8683 = vmatprep.mubr.bf16.mxu0 0
        %8684 = vmatmul.mubr.bf16.gmra.mrb[0].mxu0 %v1588
        %v8685 = vpop.f32.mrb[0].mxu0
        %v8686 = vadd.f32 0.0, %v8685
        %v8687 = vpop.f32.mrb[0].mxu0
        %v8688 = vpop.f32.mrb[0].mxu0
        %v8689 = vadd.f32 0.0, %v8688
        %v8690 = vpop.f32.mrb[0].mxu0
        %8691 = vmatprep.mubr.bf16.mxu0 0
        %8692 = vmatmul.mubr.bf16.gmra.mrb[0].mxu0 %v1589
        %v8693 = vpop.f32.mrb[0].mxu0
        %v8694 = vadd.f32 0.0, %v8693
        %v8695 = vpop.f32.mrb[0].mxu0
        %v8696 = vpop.f32.mrb[0].mxu0
        %v8697 = vadd.f32 0.0, %v8696
        %v8698 = vpop.f32.mrb[0].mxu0
        %8699 = vmatprep.mubr.bf16.mxu0 0
        %8700 = vmatmul.mubr.bf16.gmra.mrb[0].mxu0 %v1590
        %v8701 = vpop.f32.mrb[0].mxu0
        %v8702 = vadd.f32 0.0, %v8701
        %v8703 = vpop.f32.mrb[0].mxu0
        %v8704 = vpop.f32.mrb[0].mxu0
        %v8705 = vadd.f32 0.0, %v8704
        %v8706 = vpop.f32.mrb[0].mxu0
        %8707 = vmatprep.mubr.bf16.mxu0 0
        %8708 = vmatmul.mubr.bf16.gmra.mrb[0].mxu0 %v1591
        %v8709 = vpop.f32.mrb[0].mxu0
        %v8710 = vadd.f32 0.0, %v8709
        %v8711 = vpop.f32.mrb[0].mxu0
        %v8712 = vpop.f32.mrb[0].mxu0
        %v8713 = vadd.f32 0.0, %v8712
        %v8714 = vpop.f32.mrb[0].mxu0
        %8715 = vdwg.mxu0
        %v8716 = vadd.f32 %v8578, %v8686
        %v8717 = vadd.f32 %v8579, %v8689
        %v8718 = vadd.f32 %v8580, %v8694
        %v8719 = vadd.f32 %v8581, %v8697
        %v8720 = vadd.f32 %v8582, %v8702
        %v8721 = vadd.f32 %v8583, %v8705
        %v8722 = vadd.f32 %v8584, %v8710
        %v8723 = vadd.f32 %v8585, %v8713
        %s8724 = scalar_lea.vmem [#allocation5], 3200
        %v8725 = vld [vmem:[%s8724] sm:$0xf]
        %v8726 = vld [vmem:[%s8724 + $0x4] sm:$0xf]
        %v8727 = vld [vmem:[%s8724 + $0x8] sm:$0xf]
        %v8728 = vld [vmem:[%s8724 + $0xc] sm:$0xf]
        %v8729 = vld [vmem:[%s8724 + $0x10] sm:$0xf]
        %v8730 = vld [vmem:[%s8724 + $0x14] sm:$0xf]
        %v8731 = vld [vmem:[%s8724 + $0x18] sm:$0xf]
        %v8732 = vld [vmem:[%s8724 + $0x1c] sm:$0xf]
        %v8733 = vld [vmem:[%s8724 + $0x20] sm:$0xf]
        %v8734 = vld [vmem:[%s8724 + $0x24] sm:$0xf]
        %v8735 = vld [vmem:[%s8724 + $0x28] sm:$0xf]
        %v8736 = vld [vmem:[%s8724 + $0x2c] sm:$0xf]
        %v8737 = vld [vmem:[%s8724 + $0x30] sm:$0xf]
        %v8738 = vld [vmem:[%s8724 + $0x34] sm:$0xf]
        %v8739 = vld [vmem:[%s8724 + $0x38] sm:$0xf]
        %v8740 = vld [vmem:[%s8724 + $0x3c] sm:$0xf]
        %v8757 = vunpack.c.l.b16 %v8725
        %v8758 = vunpack.c.l.b16 %v8726
        %v8759 = vunpack.c.l.b16 %v8727
        %v8760 = vunpack.c.l.b16 %v8728
        %v8761 = vunpack.c.l.b16 %v8729
        %v8762 = vunpack.c.l.b16 %v8730
        %v8763 = vunpack.c.l.b16 %v8731
        %v8764 = vunpack.c.l.b16 %v8732
        %v8765 = vunpack.c.l.b16 %v8733
        %v8766 = vunpack.c.l.b16 %v8734
        %v8767 = vunpack.c.l.b16 %v8735
        %v8768 = vunpack.c.l.b16 %v8736
        %v8769 = vunpack.c.l.b16 %v8737
        %v8770 = vunpack.c.l.b16 %v8738
        %v8771 = vunpack.c.l.b16 %v8739
        %v8772 = vunpack.c.l.b16 %v8740
        %v8773 = vpack.c.b16 %v8758, %v8757
        %v8774 = vpack.c.b16 %v8760, %v8759
        %v8775 = vpack.c.b16 %v8762, %v8761
        %v8776 = vpack.c.b16 %v8764, %v8763
        %v8777 = vpack.c.b16 %v8766, %v8765
        %v8778 = vpack.c.b16 %v8768, %v8767
        %v8779 = vpack.c.b16 %v8770, %v8769
        %v8780 = vpack.c.b16 %v8772, %v8771
        %8789 = vmatprep.subr.bf16.mxu0 0
        %8790 = vmatpush1.bf16.msra.mxu0 %v8773
        %8791 = vmatprep.subr.bf16.mxu0 0
        %8792 = vmatpush1.bf16.msra.mxu0 %v8774
        %8793 = vmatprep.subr.bf16.mxu0 0
        %8794 = vmatpush1.bf16.msra.mxu0 %v8775
        %8795 = vmatprep.subr.bf16.mxu0 0
        %8796 = vmatpush1.bf16.msra.mxu0 %v8776
        %8797 = vmatprep.subr.bf16.mxu0 0
        %8798 = vmatpush1.bf16.msra.mxu0 %v8777
        %8799 = vmatprep.subr.bf16.mxu0 0
        %8800 = vmatpush1.bf16.msra.mxu0 %v8778
        %8801 = vmatprep.subr.bf16.mxu0 0
        %8802 = vmatpush1.bf16.msra.mxu0 %v8779
        %8803 = vmatprep.subr.bf16.mxu0 0
        %8804 = vmatpush1.bf16.msra.mxu0 %v8780
        %8805 = vmatprep.subr.bf16.mxu0 0
        %8806 = vmatpush1.bf16.msra.mxu0 0
        %8807 = vmatprep.subr.bf16.mxu0 0
        %8808 = vmatpush1.bf16.msra.mxu0 0
        %8809 = vmatprep.subr.bf16.mxu0 0
        %8810 = vmatpush1.bf16.msra.mxu0 0
        %8811 = vmatprep.subr.bf16.mxu0 0
        %8812 = vmatpush1.bf16.msra.mxu0 0
        %8813 = vmatprep.subr.bf16.mxu0 0
        %8814 = vmatpush1.bf16.msra.mxu0 0
        %8815 = vmatprep.subr.bf16.mxu0 0
        %8816 = vmatpush1.bf16.msra.mxu0 0
        %8817 = vmatprep.subr.bf16.mxu0 0
        %8818 = vmatpush1.bf16.msra.mxu0 0
        %8819 = vmatprep.subr.bf16.mxu0 0
        %8820 = vmatpush1.bf16.msra.mxu0 0
        %8821 = vmatprep.mubr.bf16.mxu0 0
        %8822 = vmatmul.mubr.bf16.gmra.mrb[0].mxu0 %v1758
        %v8823 = vpop.f32.mrb[0].mxu0
        %v8824 = vadd.f32 0.0, %v8823
        %v8825 = vpop.f32.mrb[0].mxu0
        %v8826 = vpop.f32.mrb[0].mxu0
        %v8827 = vadd.f32 0.0, %v8826
        %v8828 = vpop.f32.mrb[0].mxu0
        %8829 = vmatprep.mubr.bf16.mxu0 0
        %8830 = vmatmul.mubr.bf16.gmra.mrb[0].mxu0 %v1759
        %v8831 = vpop.f32.mrb[0].mxu0
        %v8832 = vadd.f32 0.0, %v8831
        %v8833 = vpop.f32.mrb[0].mxu0
        %v8834 = vpop.f32.mrb[0].mxu0
        %v8835 = vadd.f32 0.0, %v8834
        %v8836 = vpop.f32.mrb[0].mxu0
        %8837 = vmatprep.mubr.bf16.mxu0 0
        %8838 = vmatmul.mubr.bf16.gmra.mrb[0].mxu0 %v1760
        %v8839 = vpop.f32.mrb[0].mxu0
        %v8840 = vadd.f32 0.0, %v8839
        %v8841 = vpop.f32.mrb[0].mxu0
        %v8842 = vpop.f32.mrb[0].mxu0
        %v8843 = vadd.f32 0.0, %v8842
        %v8844 = vpop.f32.mrb[0].mxu0
        %8845 = vmatprep.mubr.bf16.mxu0 0
        %8846 = vmatmul.mubr.bf16.gmra.mrb[0].mxu0 %v1761
        %v8847 = vpop.f32.mrb[0].mxu0
        %v8848 = vadd.f32 0.0, %v8847
        %v8849 = vpop.f32.mrb[0].mxu0
        %v8850 = vpop.f32.mrb[0].mxu0
        %v8851 = vadd.f32 0.0, %v8850
        %v8852 = vpop.f32.mrb[0].mxu0
        %8853 = vdwg.mxu0
        %v8854 = vadd.f32 %v8716, %v8824
        %v8855 = vadd.f32 %v8717, %v8827
        %v8856 = vadd.f32 %v8718, %v8832
        %v8857 = vadd.f32 %v8719, %v8835
        %v8858 = vadd.f32 %v8720, %v8840
        %v8859 = vadd.f32 %v8721, %v8843
        %v8860 = vadd.f32 %v8722, %v8848
        %v8861 = vadd.f32 %v8723, %v8851
        %s8862 = scalar_lea.vmem [#allocation5], 3392
        %v8863 = vld [vmem:[%s8862] sm:$0xf]
        %v8864 = vld [vmem:[%s8862 + $0x4] sm:$0xf]
        %v8865 = vld [vmem:[%s8862 + $0x8] sm:$0xf]
        %v8866 = vld [vmem:[%s8862 + $0xc] sm:$0xf]
        %v8867 = vld [vmem:[%s8862 + $0x10] sm:$0xf]
        %v8868 = vld [vmem:[%s8862 + $0x14] sm:$0xf]
        %v8869 = vld [vmem:[%s8862 + $0x18] sm:$0xf]
        %v8870 = vld [vmem:[%s8862 + $0x1c] sm:$0xf]
        %v8871 = vld [vmem:[%s8862 + $0x20] sm:$0xf]
        %v8872 = vld [vmem:[%s8862 + $0x24] sm:$0xf]
        %v8873 = vld [vmem:[%s8862 + $0x28] sm:$0xf]
        %v8874 = vld [vmem:[%s8862 + $0x2c] sm:$0xf]
        %v8875 = vld [vmem:[%s8862 + $0x30] sm:$0xf]
        %v8876 = vld [vmem:[%s8862 + $0x34] sm:$0xf]
        %v8877 = vld [vmem:[%s8862 + $0x38] sm:$0xf]
        %v8878 = vld [vmem:[%s8862 + $0x3c] sm:$0xf]
        %v8895 = vunpack.c.l.b16 %v8863
        %v8896 = vunpack.c.l.b16 %v8864
        %v8897 = vunpack.c.l.b16 %v8865
        %v8898 = vunpack.c.l.b16 %v8866
        %v8899 = vunpack.c.l.b16 %v8867
        %v8900 = vunpack.c.l.b16 %v8868
        %v8901 = vunpack.c.l.b16 %v8869
        %v8902 = vunpack.c.l.b16 %v8870
        %v8903 = vunpack.c.l.b16 %v8871
        %v8904 = vunpack.c.l.b16 %v8872
        %v8905 = vunpack.c.l.b16 %v8873
        %v8906 = vunpack.c.l.b16 %v8874
        %v8907 = vunpack.c.l.b16 %v8875
        %v8908 = vunpack.c.l.b16 %v8876
        %v8909 = vunpack.c.l.b16 %v8877
        %v8910 = vunpack.c.l.b16 %v8878
        %v8911 = vpack.c.b16 %v8896, %v8895
        %v8912 = vpack.c.b16 %v8898, %v8897
        %v8913 = vpack.c.b16 %v8900, %v8899
        %v8914 = vpack.c.b16 %v8902, %v8901
        %v8915 = vpack.c.b16 %v8904, %v8903
        %v8916 = vpack.c.b16 %v8906, %v8905
        %v8917 = vpack.c.b16 %v8908, %v8907
        %v8918 = vpack.c.b16 %v8910, %v8909
        %8927 = vmatprep.subr.bf16.mxu0 0
        %8928 = vmatpush1.bf16.msra.mxu0 %v8911
        %8929 = vmatprep.subr.bf16.mxu0 0
        %8930 = vmatpush1.bf16.msra.mxu0 %v8912
        %8931 = vmatprep.subr.bf16.mxu0 0
        %8932 = vmatpush1.bf16.msra.mxu0 %v8913
        %8933 = vmatprep.subr.bf16.mxu0 0
        %8934 = vmatpush1.bf16.msra.mxu0 %v8914
        %8935 = vmatprep.subr.bf16.mxu0 0
        %8936 = vmatpush1.bf16.msra.mxu0 %v8915
        %8937 = vmatprep.subr.bf16.mxu0 0
        %8938 = vmatpush1.bf16.msra.mxu0 %v8916
        %8939 = vmatprep.subr.bf16.mxu0 0
        %8940 = vmatpush1.bf16.msra.mxu0 %v8917
        %8941 = vmatprep.subr.bf16.mxu0 0
        %8942 = vmatpush1.bf16.msra.mxu0 %v8918
        %8943 = vmatprep.subr.bf16.mxu0 0
        %8944 = vmatpush1.bf16.msra.mxu0 0
        %8945 = vmatprep.subr.bf16.mxu0 0
        %8946 = vmatpush1.bf16.msra.mxu0 0
        %8947 = vmatprep.subr.bf16.mxu0 0
        %8948 = vmatpush1.bf16.msra.mxu0 0
        %8949 = vmatprep.subr.bf16.mxu0 0
        %8950 = vmatpush1.bf16.msra.mxu0 0
        %8951 = vmatprep.subr.bf16.mxu0 0
        %8952 = vmatpush1.bf16.msra.mxu0 0
        %8953 = vmatprep.subr.bf16.mxu0 0
        %8954 = vmatpush1.bf16.msra.mxu0 0
        %8955 = vmatprep.subr.bf16.mxu0 0
        %8956 = vmatpush1.bf16.msra.mxu0 0
        %8957 = vmatprep.subr.bf16.mxu0 0
        %8958 = vmatpush1.bf16.msra.mxu0 0
        %8959 = vmatprep.mubr.bf16.mxu0 0
        %8960 = vmatmul.mubr.bf16.gmra.mrb[0].mxu0 %v1929
        %v8961 = vpop.f32.mrb[0].mxu0
        %v8962 = vadd.f32 0.0, %v8961
        %v8963 = vpop.f32.mrb[0].mxu0
        %v8964 = vpop.f32.mrb[0].mxu0
        %v8965 = vadd.f32 0.0, %v8964
        %v8966 = vpop.f32.mrb[0].mxu0
        %8967 = vmatprep.mubr.bf16.mxu0 0
        %8968 = vmatmul.mubr.bf16.gmra.mrb[0].mxu0 %v1930
        %v8969 = vpop.f32.mrb[0].mxu0
        %v8970 = vadd.f32 0.0, %v8969
        %v8971 = vpop.f32.mrb[0].mxu0
        %v8972 = vpop.f32.mrb[0].mxu0
        %v8973 = vadd.f32 0.0, %v8972
        %v8974 = vpop.f32.mrb[0].mxu0
        %8975 = vmatprep.mubr.bf16.mxu0 0
        %8976 = vmatmul.mubr.bf16.gmra.mrb[0].mxu0 %v1931
        %v8977 = vpop.f32.mrb[0].mxu0
        %v8978 = vadd.f32 0.0, %v8977
        %v8979 = vpop.f32.mrb[0].mxu0
        %v8980 = vpop.f32.mrb[0].mxu0
        %v8981 = vadd.f32 0.0, %v8980
        %v8982 = vpop.f32.mrb[0].mxu0
        %8983 = vmatprep.mubr.bf16.mxu0 0
        %8984 = vmatmul.mubr.bf16.gmra.mrb[0].mxu0 %v1932
        %v8985 = vpop.f32.mrb[0].mxu0
        %v8986 = vadd.f32 0.0, %v8985
        %v8987 = vpop.f32.mrb[0].mxu0
        %v8988 = vpop.f32.mrb[0].mxu0
        %v8989 = vadd.f32 0.0, %v8988
        %v8990 = vpop.f32.mrb[0].mxu0
        %8991 = vdwg.mxu0
        %v8992 = vadd.f32 %v8854, %v8962
        %v8993 = vadd.f32 %v8855, %v8965
        %v8994 = vadd.f32 %v8856, %v8970
        %v8995 = vadd.f32 %v8857, %v8973
        %v8996 = vadd.f32 %v8858, %v8978
        %v8997 = vadd.f32 %v8859, %v8981
        %v8998 = vadd.f32 %v8860, %v8986
        %v8999 = vadd.f32 %v8861, %v8989
        %s9000 = scalar_lea.vmem [#allocation7], 5
        %v9001 = vld [vmem:[%s9000] sm:$0x1]
        %v9003 = vlaneseq
        %v9004 = vshrl.u32 %v9003, 7
        %v9005 = vsub.s32 0, %v9004
        %v9006 = vrot.slane %v9001, %v9005
        %v9008 = vadd.f32 %v8992, %v9006
        %v9009 = vadd.f32 %v8993, %v9006
        %v9010 = vadd.f32 %v8994, %v9006
        %v9011 = vadd.f32 %v8995, %v9006
        %v9012 = vadd.f32 %v8996, %v9006
        %v9013 = vadd.f32 %v8997, %v9006
        %v9014 = vadd.f32 %v8998, %v9006
        %v9015 = vadd.f32 %v8999, %v9006
        %v9016 = vmax.f32 %v9008, 0.0
        %v9017 = vmax.f32 %v9009, 0.0
        %v9018 = vmax.f32 %v9010, 0.0
        %v9019 = vmax.f32 %v9011, 0.0
        %v9020 = vmax.f32 %v9012, 0.0
        %v9021 = vmax.f32 %v9013, 0.0
        %v9022 = vmax.f32 %v9014, 0.0
        %v9023 = vmax.f32 %v9015, 0.0
        %v9024 = vpack.c.bf16 %v9017, %v9016
        %v9025 = vpack.c.bf16 %v9019, %v9018
        %v9026 = vpack.c.bf16 %v9021, %v9020
        %v9027 = vpack.c.bf16 %v9023, %v9022
        %s9028 = scalar_lea.vmem [#allocation8], 320
        %v9029 = vld [vmem:[%s9028] sm:$0xf]
        %v9030 = vld [vmem:[%s9028 + $0x4] sm:$0xf]
        %v9031 = vld [vmem:[%s9028 + $0x8] sm:$0xf]
        %v9032 = vld [vmem:[%s9028 + $0xc] sm:$0xf]
        %v9033 = vld [vmem:[%s9028 + $0x10] sm:$0xf]
        %v9034 = vld [vmem:[%s9028 + $0x14] sm:$0xf]
        %v9035 = vld [vmem:[%s9028 + $0x18] sm:$0xf]
        %v9036 = vld [vmem:[%s9028 + $0x1c] sm:$0xf]
        %v9037 = vld [vmem:[%s9028 + $0x20] sm:$0xf]
        %v9038 = vld [vmem:[%s9028 + $0x24] sm:$0xf]
        %v9039 = vld [vmem:[%s9028 + $0x28] sm:$0xf]
        %v9040 = vld [vmem:[%s9028 + $0x2c] sm:$0xf]
        %v9041 = vld [vmem:[%s9028 + $0x30] sm:$0xf]
        %v9042 = vld [vmem:[%s9028 + $0x34] sm:$0xf]
        %v9043 = vld [vmem:[%s9028 + $0x38] sm:$0xf]
        %v9044 = vld [vmem:[%s9028 + $0x3c] sm:$0xf]
        %v9061 = vunpack.c.l.b16 %v9029
        %v9062 = vunpack.c.l.b16 %v9030
        %v9063 = vunpack.c.l.b16 %v9031
        %v9064 = vunpack.c.l.b16 %v9032
        %v9065 = vunpack.c.l.b16 %v9033
        %v9066 = vunpack.c.l.b16 %v9034
        %v9067 = vunpack.c.l.b16 %v9035
        %v9068 = vunpack.c.l.b16 %v9036
        %v9069 = vunpack.c.l.b16 %v9037
        %v9070 = vunpack.c.l.b16 %v9038
        %v9071 = vunpack.c.l.b16 %v9039
        %v9072 = vunpack.c.l.b16 %v9040
        %v9073 = vunpack.c.l.b16 %v9041
        %v9074 = vunpack.c.l.b16 %v9042
        %v9075 = vunpack.c.l.b16 %v9043
        %v9076 = vunpack.c.l.b16 %v9044
        %v9077 = vpack.c.b16 %v9062, %v9061
        %v9078 = vpack.c.b16 %v9064, %v9063
        %v9079 = vpack.c.b16 %v9066, %v9065
        %v9080 = vpack.c.b16 %v9068, %v9067
        %v9081 = vpack.c.b16 %v9070, %v9069
        %v9082 = vpack.c.b16 %v9072, %v9071
        %v9083 = vpack.c.b16 %v9074, %v9073
        %v9084 = vpack.c.b16 %v9076, %v9075
        %9093 = vmatprep.subr.bf16.mxu0 0
        %9094 = vmatpush1.bf16.msra.mxu0 %v9077
        %9095 = vmatprep.subr.bf16.mxu0 0
        %9096 = vmatpush1.bf16.msra.mxu0 %v9078
        %9097 = vmatprep.subr.bf16.mxu0 0
        %9098 = vmatpush1.bf16.msra.mxu0 %v9079
        %9099 = vmatprep.subr.bf16.mxu0 0
        %9100 = vmatpush1.bf16.msra.mxu0 %v9080
        %9101 = vmatprep.subr.bf16.mxu0 0
        %9102 = vmatpush1.bf16.msra.mxu0 %v9081
        %9103 = vmatprep.subr.bf16.mxu0 0
        %9104 = vmatpush1.bf16.msra.mxu0 %v9082
        %9105 = vmatprep.subr.bf16.mxu0 0
        %9106 = vmatpush1.bf16.msra.mxu0 %v9083
        %9107 = vmatprep.subr.bf16.mxu0 0
        %9108 = vmatpush1.bf16.msra.mxu0 %v9084
        %9109 = vmatprep.subr.bf16.mxu0 0
        %9110 = vmatpush1.bf16.msra.mxu0 0
        %9111 = vmatprep.subr.bf16.mxu0 0
        %9112 = vmatpush1.bf16.msra.mxu0 0
        %9113 = vmatprep.subr.bf16.mxu0 0
        %9114 = vmatpush1.bf16.msra.mxu0 0
        %9115 = vmatprep.subr.bf16.mxu0 0
        %9116 = vmatpush1.bf16.msra.mxu0 0
        %9117 = vmatprep.subr.bf16.mxu0 0
        %9118 = vmatpush1.bf16.msra.mxu0 0
        %9119 = vmatprep.subr.bf16.mxu0 0
        %9120 = vmatpush1.bf16.msra.mxu0 0
        %9121 = vmatprep.subr.bf16.mxu0 0
        %9122 = vmatpush1.bf16.msra.mxu0 0
        %9123 = vmatprep.subr.bf16.mxu0 0
        %9124 = vmatpush1.bf16.msra.mxu0 0
        %9125 = vmatprep.mubr.bf16.mxu0 0
        %9126 = vmatmul.mubr.bf16.gmra.mrb[0].mxu0 %v9024
        %v9127 = vpop.f32.mrb[0].mxu0
        %v9128 = vadd.f32 0.0, %v9127
        %v9129 = vpop.f32.mrb[0].mxu0
        %v9130 = vpop.f32.mrb[0].mxu0
        %v9131 = vadd.f32 0.0, %v9130
        %v9132 = vpop.f32.mrb[0].mxu0
        %9133 = vmatprep.mubr.bf16.mxu0 0
        %9134 = vmatmul.mubr.bf16.gmra.mrb[0].mxu0 %v9025
        %v9135 = vpop.f32.mrb[0].mxu0
        %v9136 = vadd.f32 0.0, %v9135
        %v9137 = vpop.f32.mrb[0].mxu0
        %v9138 = vpop.f32.mrb[0].mxu0
        %v9139 = vadd.f32 0.0, %v9138
        %v9140 = vpop.f32.mrb[0].mxu0
        %9141 = vmatprep.mubr.bf16.mxu0 0
        %9142 = vmatmul.mubr.bf16.gmra.mrb[0].mxu0 %v9026
        %v9143 = vpop.f32.mrb[0].mxu0
        %v9144 = vadd.f32 0.0, %v9143
        %v9145 = vpop.f32.mrb[0].mxu0
        %v9146 = vpop.f32.mrb[0].mxu0
        %v9147 = vadd.f32 0.0, %v9146
        %v9148 = vpop.f32.mrb[0].mxu0
        %9149 = vmatprep.mubr.bf16.mxu0 0
        %9150 = vmatmul.mubr.bf16.gmra.mrb[0].mxu0 %v9027
        %v9151 = vpop.f32.mrb[0].mxu0
        %v9152 = vadd.f32 0.0, %v9151
        %v9153 = vpop.f32.mrb[0].mxu0
        %v9154 = vpop.f32.mrb[0].mxu0
        %v9155 = vadd.f32 0.0, %v9154
        %v9156 = vpop.f32.mrb[0].mxu0
        %9157 = vdwg.mxu0
        %v9158 = vadd.f32 %v7766, %v9128
        %v9159 = vadd.f32 %v7767, %v9131
        %v9160 = vadd.f32 %v7768, %v9136
        %v9161 = vadd.f32 %v7769, %v9139
        %v9162 = vadd.f32 %v7770, %v9144
        %v9163 = vadd.f32 %v7771, %v9147
        %v9164 = vadd.f32 %v7772, %v9152
        %v9165 = vadd.f32 %v7773, %v9155
        %s9166 = scalar_lea.vmem [#allocation5], 3456
        %v9167 = vld [vmem:[%s9166] sm:$0xf]
        %v9168 = vld [vmem:[%s9166 + $0x4] sm:$0xf]
        %v9169 = vld [vmem:[%s9166 + $0x8] sm:$0xf]
        %v9170 = vld [vmem:[%s9166 + $0xc] sm:$0xf]
        %v9171 = vld [vmem:[%s9166 + $0x10] sm:$0xf]
        %v9172 = vld [vmem:[%s9166 + $0x14] sm:$0xf]
        %v9173 = vld [vmem:[%s9166 + $0x18] sm:$0xf]
        %v9174 = vld [vmem:[%s9166 + $0x1c] sm:$0xf]
        %v9175 = vld [vmem:[%s9166 + $0x20] sm:$0xf]
        %v9176 = vld [vmem:[%s9166 + $0x24] sm:$0xf]
        %v9177 = vld [vmem:[%s9166 + $0x28] sm:$0xf]
        %v9178 = vld [vmem:[%s9166 + $0x2c] sm:$0xf]
        %v9179 = vld [vmem:[%s9166 + $0x30] sm:$0xf]
        %v9180 = vld [vmem:[%s9166 + $0x34] sm:$0xf]
        %v9181 = vld [vmem:[%s9166 + $0x38] sm:$0xf]
        %v9182 = vld [vmem:[%s9166 + $0x3c] sm:$0xf]
        %s9183 = scalar_lea.vmem [#allocation5], 3648
        %v9184 = vld [vmem:[%s9183] sm:$0xf]
        %v9185 = vld [vmem:[%s9183 + $0x4] sm:$0xf]
        %v9186 = vld [vmem:[%s9183 + $0x8] sm:$0xf]
        %v9187 = vld [vmem:[%s9183 + $0xc] sm:$0xf]
        %v9188 = vld [vmem:[%s9183 + $0x10] sm:$0xf]
        %v9189 = vld [vmem:[%s9183 + $0x14] sm:$0xf]
        %v9190 = vld [vmem:[%s9183 + $0x18] sm:$0xf]
        %v9191 = vld [vmem:[%s9183 + $0x1c] sm:$0xf]
        %v9192 = vld [vmem:[%s9183 + $0x20] sm:$0xf]
        %v9193 = vld [vmem:[%s9183 + $0x24] sm:$0xf]
        %v9194 = vld [vmem:[%s9183 + $0x28] sm:$0xf]
        %v9195 = vld [vmem:[%s9183 + $0x2c] sm:$0xf]
        %v9196 = vld [vmem:[%s9183 + $0x30] sm:$0xf]
        %v9197 = vld [vmem:[%s9183 + $0x34] sm:$0xf]
        %v9198 = vld [vmem:[%s9183 + $0x38] sm:$0xf]
        %v9199 = vld [vmem:[%s9183 + $0x3c] sm:$0xf]
        %v9216 = vunpack.c.l.b16 %v9184
        %v9217 = vunpack.c.l.b16 %v9185
        %v9218 = vunpack.c.l.b16 %v9186
        %v9219 = vunpack.c.l.b16 %v9187
        %v9220 = vunpack.c.l.b16 %v9188
        %v9221 = vunpack.c.l.b16 %v9189
        %v9222 = vunpack.c.l.b16 %v9190
        %v9223 = vunpack.c.l.b16 %v9191
        %v9224 = vunpack.c.l.b16 %v9192
        %v9225 = vunpack.c.l.b16 %v9193
        %v9226 = vunpack.c.l.b16 %v9194
        %v9227 = vunpack.c.l.b16 %v9195
        %v9228 = vunpack.c.l.b16 %v9196
        %v9229 = vunpack.c.l.b16 %v9197
        %v9230 = vunpack.c.l.b16 %v9198
        %v9231 = vunpack.c.l.b16 %v9199
        %v9232 = vpack.c.b16 %v9217, %v9216
        %v9233 = vpack.c.b16 %v9219, %v9218
        %v9234 = vpack.c.b16 %v9221, %v9220
        %v9235 = vpack.c.b16 %v9223, %v9222
        %v9236 = vpack.c.b16 %v9225, %v9224
        %v9237 = vpack.c.b16 %v9227, %v9226
        %v9238 = vpack.c.b16 %v9229, %v9228
        %v9239 = vpack.c.b16 %v9231, %v9230
        %9248 = vmatprep.subr.bf16.mxu0 0
        %9249 = vmatpush1.bf16.msra.mxu0 %v9232
        %9250 = vmatprep.subr.bf16.mxu0 0
        %9251 = vmatpush1.bf16.msra.mxu0 %v9233
        %9252 = vmatprep.subr.bf16.mxu0 0
        %9253 = vmatpush1.bf16.msra.mxu0 %v9234
        %9254 = vmatprep.subr.bf16.mxu0 0
        %9255 = vmatpush1.bf16.msra.mxu0 %v9235
        %9256 = vmatprep.subr.bf16.mxu0 0
        %9257 = vmatpush1.bf16.msra.mxu0 %v9236
        %9258 = vmatprep.subr.bf16.mxu0 0
        %9259 = vmatpush1.bf16.msra.mxu0 %v9237
        %9260 = vmatprep.subr.bf16.mxu0 0
        %9261 = vmatpush1.bf16.msra.mxu0 %v9238
        %9262 = vmatprep.subr.bf16.mxu0 0
        %9263 = vmatpush1.bf16.msra.mxu0 %v9239
        %9264 = vmatprep.subr.bf16.mxu0 0
        %9265 = vmatpush1.bf16.msra.mxu0 0
        %9266 = vmatprep.subr.bf16.mxu0 0
        %9267 = vmatpush1.bf16.msra.mxu0 0
        %9268 = vmatprep.subr.bf16.mxu0 0
        %9269 = vmatpush1.bf16.msra.mxu0 0
        %9270 = vmatprep.subr.bf16.mxu0 0
        %9271 = vmatpush1.bf16.msra.mxu0 0
        %9272 = vmatprep.subr.bf16.mxu0 0
        %9273 = vmatpush1.bf16.msra.mxu0 0
        %9274 = vmatprep.subr.bf16.mxu0 0
        %9275 = vmatpush1.bf16.msra.mxu0 0
        %9276 = vmatprep.subr.bf16.mxu0 0
        %9277 = vmatpush1.bf16.msra.mxu0 0
        %9278 = vmatprep.subr.bf16.mxu0 0
        %9279 = vmatpush1.bf16.msra.mxu0 0
        %9280 = vmatprep.mubr.bf16.mxu0 0
        %9281 = vmatmul.mubr.bf16.gmra.mrb[0].mxu0 %v605
        %v9282 = vpop.f32.mrb[0].mxu0
        %v9283 = vadd.f32 0.0, %v9282
        %v9284 = vpop.f32.mrb[0].mxu0
        %v9285 = vpop.f32.mrb[0].mxu0
        %v9286 = vadd.f32 0.0, %v9285
        %v9287 = vpop.f32.mrb[0].mxu0
        %9288 = vmatprep.mubr.bf16.mxu0 0
        %9289 = vmatmul.mubr.bf16.gmra.mrb[0].mxu0 %v606
        %v9290 = vpop.f32.mrb[0].mxu0
        %v9291 = vadd.f32 0.0, %v9290
        %v9292 = vpop.f32.mrb[0].mxu0
        %v9293 = vpop.f32.mrb[0].mxu0
        %v9294 = vadd.f32 0.0, %v9293
        %v9295 = vpop.f32.mrb[0].mxu0
        %9296 = vmatprep.mubr.bf16.mxu0 0
        %9297 = vmatmul.mubr.bf16.gmra.mrb[0].mxu0 %v607
        %v9298 = vpop.f32.mrb[0].mxu0
        %v9299 = vadd.f32 0.0, %v9298
        %v9300 = vpop.f32.mrb[0].mxu0
        %v9301 = vpop.f32.mrb[0].mxu0
        %v9302 = vadd.f32 0.0, %v9301
        %v9303 = vpop.f32.mrb[0].mxu0
        %9304 = vmatprep.mubr.bf16.mxu0 0
        %9305 = vmatmul.mubr.bf16.gmra.mrb[0].mxu0 %v608
        %v9306 = vpop.f32.mrb[0].mxu0
        %v9307 = vadd.f32 0.0, %v9306
        %v9308 = vpop.f32.mrb[0].mxu0
        %v9309 = vpop.f32.mrb[0].mxu0
        %v9310 = vadd.f32 0.0, %v9309
        %v9311 = vpop.f32.mrb[0].mxu0
        %9312 = vdwg.mxu0
        %v9329 = vunpack.c.l.b16 %v9167
        %v9330 = vunpack.c.l.b16 %v9168
        %v9331 = vunpack.c.l.b16 %v9169
        %v9332 = vunpack.c.l.b16 %v9170
        %v9333 = vunpack.c.l.b16 %v9171
        %v9334 = vunpack.c.l.b16 %v9172
        %v9335 = vunpack.c.l.b16 %v9173
        %v9336 = vunpack.c.l.b16 %v9174
        %v9337 = vunpack.c.l.b16 %v9175
        %v9338 = vunpack.c.l.b16 %v9176
        %v9339 = vunpack.c.l.b16 %v9177
        %v9340 = vunpack.c.l.b16 %v9178
        %v9341 = vunpack.c.l.b16 %v9179
        %v9342 = vunpack.c.l.b16 %v9180
        %v9343 = vunpack.c.l.b16 %v9181
        %v9344 = vunpack.c.l.b16 %v9182
        %v9345 = vpack.c.b16 %v9330, %v9329
        %v9346 = vpack.c.b16 %v9332, %v9331
        %v9347 = vpack.c.b16 %v9334, %v9333
        %v9348 = vpack.c.b16 %v9336, %v9335
        %v9349 = vpack.c.b16 %v9338, %v9337
        %v9350 = vpack.c.b16 %v9340, %v9339
        %v9351 = vpack.c.b16 %v9342, %v9341
        %v9352 = vpack.c.b16 %v9344, %v9343
        %9361 = vmatprep.subr.bf16.mxu0 0
        %9362 = vmatpush1.bf16.msra.mxu0 %v9345
        %9363 = vmatprep.subr.bf16.mxu0 0
        %9364 = vmatpush1.bf16.msra.mxu0 %v9346
        %9365 = vmatprep.subr.bf16.mxu0 0
        %9366 = vmatpush1.bf16.msra.mxu0 %v9347
        %9367 = vmatprep.subr.bf16.mxu0 0
        %9368 = vmatpush1.bf16.msra.mxu0 %v9348
        %9369 = vmatprep.subr.bf16.mxu0 0
        %9370 = vmatpush1.bf16.msra.mxu0 %v9349
        %9371 = vmatprep.subr.bf16.mxu0 0
        %9372 = vmatpush1.bf16.msra.mxu0 %v9350
        %9373 = vmatprep.subr.bf16.mxu0 0
        %9374 = vmatpush1.bf16.msra.mxu0 %v9351
        %9375 = vmatprep.subr.bf16.mxu0 0
        %9376 = vmatpush1.bf16.msra.mxu0 %v9352
        %9377 = vmatprep.subr.bf16.mxu0 0
        %9378 = vmatpush1.bf16.msra.mxu0 0
        %9379 = vmatprep.subr.bf16.mxu0 0
        %9380 = vmatpush1.bf16.msra.mxu0 0
        %9381 = vmatprep.subr.bf16.mxu0 0
        %9382 = vmatpush1.bf16.msra.mxu0 0
        %9383 = vmatprep.subr.bf16.mxu0 0
        %9384 = vmatpush1.bf16.msra.mxu0 0
        %9385 = vmatprep.subr.bf16.mxu0 0
        %9386 = vmatpush1.bf16.msra.mxu0 0
        %9387 = vmatprep.subr.bf16.mxu0 0
        %9388 = vmatpush1.bf16.msra.mxu0 0
        %9389 = vmatprep.subr.bf16.mxu0 0
        %9390 = vmatpush1.bf16.msra.mxu0 0
        %9391 = vmatprep.subr.bf16.mxu0 0
        %9392 = vmatpush1.bf16.msra.mxu0 0
        %9393 = vmatprep.mubr.bf16.mxu0 0
        %9394 = vmatmul.mubr.bf16.gmra.mrb[0].mxu0 %v742
        %v9395 = vpop.f32.mrb[0].mxu0
        %v9396 = vadd.f32 %v9283, %v9395
        %v9397 = vpop.f32.mrb[0].mxu0
        %v9398 = vpop.f32.mrb[0].mxu0
        %v9399 = vadd.f32 %v9286, %v9398
        %v9400 = vpop.f32.mrb[0].mxu0
        %9401 = vmatprep.mubr.bf16.mxu0 0
        %9402 = vmatmul.mubr.bf16.gmra.mrb[0].mxu0 %v743
        %v9403 = vpop.f32.mrb[0].mxu0
        %v9404 = vadd.f32 %v9291, %v9403
        %v9405 = vpop.f32.mrb[0].mxu0
        %v9406 = vpop.f32.mrb[0].mxu0
        %v9407 = vadd.f32 %v9294, %v9406
        %v9408 = vpop.f32.mrb[0].mxu0
        %9409 = vmatprep.mubr.bf16.mxu0 0
        %9410 = vmatmul.mubr.bf16.gmra.mrb[0].mxu0 %v744
        %v9411 = vpop.f32.mrb[0].mxu0
        %v9412 = vadd.f32 %v9299, %v9411
        %v9413 = vpop.f32.mrb[0].mxu0
        %v9414 = vpop.f32.mrb[0].mxu0
        %v9415 = vadd.f32 %v9302, %v9414
        %v9416 = vpop.f32.mrb[0].mxu0
        %9417 = vmatprep.mubr.bf16.mxu0 0
        %9418 = vmatmul.mubr.bf16.gmra.mrb[0].mxu0 %v745
        %v9419 = vpop.f32.mrb[0].mxu0
        %v9420 = vadd.f32 %v9307, %v9419
        %v9421 = vpop.f32.mrb[0].mxu0
        %v9422 = vpop.f32.mrb[0].mxu0
        %v9423 = vadd.f32 %v9310, %v9422
        %v9424 = vpop.f32.mrb[0].mxu0
        %9425 = vdwg.mxu0
        %s9426 = scalar_lea.vmem [#allocation5], 3840
        %v9427 = vld [vmem:[%s9426] sm:$0xf]
        %v9428 = vld [vmem:[%s9426 + $0x4] sm:$0xf]
        %v9429 = vld [vmem:[%s9426 + $0x8] sm:$0xf]
        %v9430 = vld [vmem:[%s9426 + $0xc] sm:$0xf]
        %v9431 = vld [vmem:[%s9426 + $0x10] sm:$0xf]
        %v9432 = vld [vmem:[%s9426 + $0x14] sm:$0xf]
        %v9433 = vld [vmem:[%s9426 + $0x18] sm:$0xf]
        %v9434 = vld [vmem:[%s9426 + $0x1c] sm:$0xf]
        %v9435 = vld [vmem:[%s9426 + $0x20] sm:$0xf]
        %v9436 = vld [vmem:[%s9426 + $0x24] sm:$0xf]
        %v9437 = vld [vmem:[%s9426 + $0x28] sm:$0xf]
        %v9438 = vld [vmem:[%s9426 + $0x2c] sm:$0xf]
        %v9439 = vld [vmem:[%s9426 + $0x30] sm:$0xf]
        %v9440 = vld [vmem:[%s9426 + $0x34] sm:$0xf]
        %v9441 = vld [vmem:[%s9426 + $0x38] sm:$0xf]
        %v9442 = vld [vmem:[%s9426 + $0x3c] sm:$0xf]
        %v9459 = vunpack.c.l.b16 %v9427
        %v9460 = vunpack.c.l.b16 %v9428
        %v9461 = vunpack.c.l.b16 %v9429
        %v9462 = vunpack.c.l.b16 %v9430
        %v9463 = vunpack.c.l.b16 %v9431
        %v9464 = vunpack.c.l.b16 %v9432
        %v9465 = vunpack.c.l.b16 %v9433
        %v9466 = vunpack.c.l.b16 %v9434
        %v9467 = vunpack.c.l.b16 %v9435
        %v9468 = vunpack.c.l.b16 %v9436
        %v9469 = vunpack.c.l.b16 %v9437
        %v9470 = vunpack.c.l.b16 %v9438
        %v9471 = vunpack.c.l.b16 %v9439
        %v9472 = vunpack.c.l.b16 %v9440
        %v9473 = vunpack.c.l.b16 %v9441
        %v9474 = vunpack.c.l.b16 %v9442
        %v9475 = vpack.c.b16 %v9460, %v9459
        %v9476 = vpack.c.b16 %v9462, %v9461
        %v9477 = vpack.c.b16 %v9464, %v9463
        %v9478 = vpack.c.b16 %v9466, %v9465
        %v9479 = vpack.c.b16 %v9468, %v9467
        %v9480 = vpack.c.b16 %v9470, %v9469
        %v9481 = vpack.c.b16 %v9472, %v9471
        %v9482 = vpack.c.b16 %v9474, %v9473
        %9491 = vmatprep.subr.bf16.mxu0 0
        %9492 = vmatpush1.bf16.msra.mxu0 %v9475
        %9493 = vmatprep.subr.bf16.mxu0 0
        %9494 = vmatpush1.bf16.msra.mxu0 %v9476
        %9495 = vmatprep.subr.bf16.mxu0 0
        %9496 = vmatpush1.bf16.msra.mxu0 %v9477
        %9497 = vmatprep.subr.bf16.mxu0 0
        %9498 = vmatpush1.bf16.msra.mxu0 %v9478
        %9499 = vmatprep.subr.bf16.mxu0 0
        %9500 = vmatpush1.bf16.msra.mxu0 %v9479
        %9501 = vmatprep.subr.bf16.mxu0 0
        %9502 = vmatpush1.bf16.msra.mxu0 %v9480
        %9503 = vmatprep.subr.bf16.mxu0 0
        %9504 = vmatpush1.bf16.msra.mxu0 %v9481
        %9505 = vmatprep.subr.bf16.mxu0 0
        %9506 = vmatpush1.bf16.msra.mxu0 %v9482
        %9507 = vmatprep.subr.bf16.mxu0 0
        %9508 = vmatpush1.bf16.msra.mxu0 0
        %9509 = vmatprep.subr.bf16.mxu0 0
        %9510 = vmatpush1.bf16.msra.mxu0 0
        %9511 = vmatprep.subr.bf16.mxu0 0
        %9512 = vmatpush1.bf16.msra.mxu0 0
        %9513 = vmatprep.subr.bf16.mxu0 0
        %9514 = vmatpush1.bf16.msra.mxu0 0
        %9515 = vmatprep.subr.bf16.mxu0 0
        %9516 = vmatpush1.bf16.msra.mxu0 0
        %9517 = vmatprep.subr.bf16.mxu0 0
        %9518 = vmatpush1.bf16.msra.mxu0 0
        %9519 = vmatprep.subr.bf16.mxu0 0
        %9520 = vmatpush1.bf16.msra.mxu0 0
        %9521 = vmatprep.subr.bf16.mxu0 0
        %9522 = vmatpush1.bf16.msra.mxu0 0
        %9523 = vmatprep.mubr.bf16.mxu0 0
        %9524 = vmatmul.mubr.bf16.gmra.mrb[0].mxu0 %v905
        %v9525 = vpop.f32.mrb[0].mxu0
        %v9526 = vadd.f32 0.0, %v9525
        %v9527 = vpop.f32.mrb[0].mxu0
        %v9528 = vpop.f32.mrb[0].mxu0
        %v9529 = vadd.f32 0.0, %v9528
        %v9530 = vpop.f32.mrb[0].mxu0
        %9531 = vmatprep.mubr.bf16.mxu0 0
        %9532 = vmatmul.mubr.bf16.gmra.mrb[0].mxu0 %v906
        %v9533 = vpop.f32.mrb[0].mxu0
        %v9534 = vadd.f32 0.0, %v9533
        %v9535 = vpop.f32.mrb[0].mxu0
        %v9536 = vpop.f32.mrb[0].mxu0
        %v9537 = vadd.f32 0.0, %v9536
        %v9538 = vpop.f32.mrb[0].mxu0
        %9539 = vmatprep.mubr.bf16.mxu0 0
        %9540 = vmatmul.mubr.bf16.gmra.mrb[0].mxu0 %v907
        %v9541 = vpop.f32.mrb[0].mxu0
        %v9542 = vadd.f32 0.0, %v9541
        %v9543 = vpop.f32.mrb[0].mxu0
        %v9544 = vpop.f32.mrb[0].mxu0
        %v9545 = vadd.f32 0.0, %v9544
        %v9546 = vpop.f32.mrb[0].mxu0
        %9547 = vmatprep.mubr.bf16.mxu0 0
        %9548 = vmatmul.mubr.bf16.gmra.mrb[0].mxu0 %v908
        %v9549 = vpop.f32.mrb[0].mxu0
        %v9550 = vadd.f32 0.0, %v9549
        %v9551 = vpop.f32.mrb[0].mxu0
        %v9552 = vpop.f32.mrb[0].mxu0
        %v9553 = vadd.f32 0.0, %v9552
        %v9554 = vpop.f32.mrb[0].mxu0
        %9555 = vdwg.mxu0
        %v9556 = vadd.f32 %v9396, %v9526
        %v9557 = vadd.f32 %v9399, %v9529
        %v9558 = vadd.f32 %v9404, %v9534
        %v9559 = vadd.f32 %v9407, %v9537
        %v9560 = vadd.f32 %v9412, %v9542
        %v9561 = vadd.f32 %v9415, %v9545
        %v9562 = vadd.f32 %v9420, %v9550
        %v9563 = vadd.f32 %v9423, %v9553
        %s9564 = scalar_lea.vmem [#allocation5], 3520
        %v9565 = vld [vmem:[%s9564] sm:$0xf]
        %v9566 = vld [vmem:[%s9564 + $0x4] sm:$0xf]
        %v9567 = vld [vmem:[%s9564 + $0x8] sm:$0xf]
        %v9568 = vld [vmem:[%s9564 + $0xc] sm:$0xf]
        %v9569 = vld [vmem:[%s9564 + $0x10] sm:$0xf]
        %v9570 = vld [vmem:[%s9564 + $0x14] sm:$0xf]
        %v9571 = vld [vmem:[%s9564 + $0x18] sm:$0xf]
        %v9572 = vld [vmem:[%s9564 + $0x1c] sm:$0xf]
        %v9573 = vld [vmem:[%s9564 + $0x20] sm:$0xf]
        %v9574 = vld [vmem:[%s9564 + $0x24] sm:$0xf]
        %v9575 = vld [vmem:[%s9564 + $0x28] sm:$0xf]
        %v9576 = vld [vmem:[%s9564 + $0x2c] sm:$0xf]
        %v9577 = vld [vmem:[%s9564 + $0x30] sm:$0xf]
        %v9578 = vld [vmem:[%s9564 + $0x34] sm:$0xf]
        %v9579 = vld [vmem:[%s9564 + $0x38] sm:$0xf]
        %v9580 = vld [vmem:[%s9564 + $0x3c] sm:$0xf]
        %v9597 = vunpack.c.l.b16 %v9565
        %v9598 = vunpack.c.l.b16 %v9566
        %v9599 = vunpack.c.l.b16 %v9567
        %v9600 = vunpack.c.l.b16 %v9568
        %v9601 = vunpack.c.l.b16 %v9569
        %v9602 = vunpack.c.l.b16 %v9570
        %v9603 = vunpack.c.l.b16 %v9571
        %v9604 = vunpack.c.l.b16 %v9572
        %v9605 = vunpack.c.l.b16 %v9573
        %v9606 = vunpack.c.l.b16 %v9574
        %v9607 = vunpack.c.l.b16 %v9575
        %v9608 = vunpack.c.l.b16 %v9576
        %v9609 = vunpack.c.l.b16 %v9577
        %v9610 = vunpack.c.l.b16 %v9578
        %v9611 = vunpack.c.l.b16 %v9579
        %v9612 = vunpack.c.l.b16 %v9580
        %v9613 = vpack.c.b16 %v9598, %v9597
        %v9614 = vpack.c.b16 %v9600, %v9599
        %v9615 = vpack.c.b16 %v9602, %v9601
        %v9616 = vpack.c.b16 %v9604, %v9603
        %v9617 = vpack.c.b16 %v9606, %v9605
        %v9618 = vpack.c.b16 %v9608, %v9607
        %v9619 = vpack.c.b16 %v9610, %v9609
        %v9620 = vpack.c.b16 %v9612, %v9611
        %9629 = vmatprep.subr.bf16.mxu0 0
        %9630 = vmatpush1.bf16.msra.mxu0 %v9613
        %9631 = vmatprep.subr.bf16.mxu0 0
        %9632 = vmatpush1.bf16.msra.mxu0 %v9614
        %9633 = vmatprep.subr.bf16.mxu0 0
        %9634 = vmatpush1.bf16.msra.mxu0 %v9615
        %9635 = vmatprep.subr.bf16.mxu0 0
        %9636 = vmatpush1.bf16.msra.mxu0 %v9616
        %9637 = vmatprep.subr.bf16.mxu0 0
        %9638 = vmatpush1.bf16.msra.mxu0 %v9617
        %9639 = vmatprep.subr.bf16.mxu0 0
        %9640 = vmatpush1.bf16.msra.mxu0 %v9618
        %9641 = vmatprep.subr.bf16.mxu0 0
        %9642 = vmatpush1.bf16.msra.mxu0 %v9619
        %9643 = vmatprep.subr.bf16.mxu0 0
        %9644 = vmatpush1.bf16.msra.mxu0 %v9620
        %9645 = vmatprep.subr.bf16.mxu0 0
        %9646 = vmatpush1.bf16.msra.mxu0 0
        %9647 = vmatprep.subr.bf16.mxu0 0
        %9648 = vmatpush1.bf16.msra.mxu0 0
        %9649 = vmatprep.subr.bf16.mxu0 0
        %9650 = vmatpush1.bf16.msra.mxu0 0
        %9651 = vmatprep.subr.bf16.mxu0 0
        %9652 = vmatpush1.bf16.msra.mxu0 0
        %9653 = vmatprep.subr.bf16.mxu0 0
        %9654 = vmatpush1.bf16.msra.mxu0 0
        %9655 = vmatprep.subr.bf16.mxu0 0
        %9656 = vmatpush1.bf16.msra.mxu0 0
        %9657 = vmatprep.subr.bf16.mxu0 0
        %9658 = vmatpush1.bf16.msra.mxu0 0
        %9659 = vmatprep.subr.bf16.mxu0 0
        %9660 = vmatpush1.bf16.msra.mxu0 0
        %9661 = vmatprep.mubr.bf16.mxu0 0
        %9662 = vmatmul.mubr.bf16.gmra.mrb[0].mxu0 %v1076
        %v9663 = vpop.f32.mrb[0].mxu0
        %v9664 = vadd.f32 0.0, %v9663
        %v9665 = vpop.f32.mrb[0].mxu0
        %v9666 = vpop.f32.mrb[0].mxu0
        %v9667 = vadd.f32 0.0, %v9666
        %v9668 = vpop.f32.mrb[0].mxu0
        %9669 = vmatprep.mubr.bf16.mxu0 0
        %9670 = vmatmul.mubr.bf16.gmra.mrb[0].mxu0 %v1077
        %v9671 = vpop.f32.mrb[0].mxu0
        %v9672 = vadd.f32 0.0, %v9671
        %v9673 = vpop.f32.mrb[0].mxu0
        %v9674 = vpop.f32.mrb[0].mxu0
        %v9675 = vadd.f32 0.0, %v9674
        %v9676 = vpop.f32.mrb[0].mxu0
        %9677 = vmatprep.mubr.bf16.mxu0 0
        %9678 = vmatmul.mubr.bf16.gmra.mrb[0].mxu0 %v1078
        %v9679 = vpop.f32.mrb[0].mxu0
        %v9680 = vadd.f32 0.0, %v9679
        %v9681 = vpop.f32.mrb[0].mxu0
        %v9682 = vpop.f32.mrb[0].mxu0
        %v9683 = vadd.f32 0.0, %v9682
        %v9684 = vpop.f32.mrb[0].mxu0
        %9685 = vmatprep.mubr.bf16.mxu0 0
        %9686 = vmatmul.mubr.bf16.gmra.mrb[0].mxu0 %v1079
        %v9687 = vpop.f32.mrb[0].mxu0
        %v9688 = vadd.f32 0.0, %v9687
        %v9689 = vpop.f32.mrb[0].mxu0
        %v9690 = vpop.f32.mrb[0].mxu0
        %v9691 = vadd.f32 0.0, %v9690
        %v9692 = vpop.f32.mrb[0].mxu0
        %9693 = vdwg.mxu0
        %v9694 = vadd.f32 %v9556, %v9664
        %v9695 = vadd.f32 %v9557, %v9667
        %v9696 = vadd.f32 %v9558, %v9672
        %v9697 = vadd.f32 %v9559, %v9675
        %v9698 = vadd.f32 %v9560, %v9680
        %v9699 = vadd.f32 %v9561, %v9683
        %v9700 = vadd.f32 %v9562, %v9688
        %v9701 = vadd.f32 %v9563, %v9691
        %s9702 = scalar_lea.vmem [#allocation5], 3712
        %v9703 = vld [vmem:[%s9702] sm:$0xf]
        %v9704 = vld [vmem:[%s9702 + $0x4] sm:$0xf]
        %v9705 = vld [vmem:[%s9702 + $0x8] sm:$0xf]
        %v9706 = vld [vmem:[%s9702 + $0xc] sm:$0xf]
        %v9707 = vld [vmem:[%s9702 + $0x10] sm:$0xf]
        %v9708 = vld [vmem:[%s9702 + $0x14] sm:$0xf]
        %v9709 = vld [vmem:[%s9702 + $0x18] sm:$0xf]
        %v9710 = vld [vmem:[%s9702 + $0x1c] sm:$0xf]
        %v9711 = vld [vmem:[%s9702 + $0x20] sm:$0xf]
        %v9712 = vld [vmem:[%s9702 + $0x24] sm:$0xf]
        %v9713 = vld [vmem:[%s9702 + $0x28] sm:$0xf]
        %v9714 = vld [vmem:[%s9702 + $0x2c] sm:$0xf]
        %v9715 = vld [vmem:[%s9702 + $0x30] sm:$0xf]
        %v9716 = vld [vmem:[%s9702 + $0x34] sm:$0xf]
        %v9717 = vld [vmem:[%s9702 + $0x38] sm:$0xf]
        %v9718 = vld [vmem:[%s9702 + $0x3c] sm:$0xf]
        %v9735 = vunpack.c.l.b16 %v9703
        %v9736 = vunpack.c.l.b16 %v9704
        %v9737 = vunpack.c.l.b16 %v9705
        %v9738 = vunpack.c.l.b16 %v9706
        %v9739 = vunpack.c.l.b16 %v9707
        %v9740 = vunpack.c.l.b16 %v9708
        %v9741 = vunpack.c.l.b16 %v9709
        %v9742 = vunpack.c.l.b16 %v9710
        %v9743 = vunpack.c.l.b16 %v9711
        %v9744 = vunpack.c.l.b16 %v9712
        %v9745 = vunpack.c.l.b16 %v9713
        %v9746 = vunpack.c.l.b16 %v9714
        %v9747 = vunpack.c.l.b16 %v9715
        %v9748 = vunpack.c.l.b16 %v9716
        %v9749 = vunpack.c.l.b16 %v9717
        %v9750 = vunpack.c.l.b16 %v9718
        %v9751 = vpack.c.b16 %v9736, %v9735
        %v9752 = vpack.c.b16 %v9738, %v9737
        %v9753 = vpack.c.b16 %v9740, %v9739
        %v9754 = vpack.c.b16 %v9742, %v9741
        %v9755 = vpack.c.b16 %v9744, %v9743
        %v9756 = vpack.c.b16 %v9746, %v9745
        %v9757 = vpack.c.b16 %v9748, %v9747
        %v9758 = vpack.c.b16 %v9750, %v9749
        %9767 = vmatprep.subr.bf16.mxu0 0
        %9768 = vmatpush1.bf16.msra.mxu0 %v9751
        %9769 = vmatprep.subr.bf16.mxu0 0
        %9770 = vmatpush1.bf16.msra.mxu0 %v9752
        %9771 = vmatprep.subr.bf16.mxu0 0
        %9772 = vmatpush1.bf16.msra.mxu0 %v9753
        %9773 = vmatprep.subr.bf16.mxu0 0
        %9774 = vmatpush1.bf16.msra.mxu0 %v9754
        %9775 = vmatprep.subr.bf16.mxu0 0
        %9776 = vmatpush1.bf16.msra.mxu0 %v9755
        %9777 = vmatprep.subr.bf16.mxu0 0
        %9778 = vmatpush1.bf16.msra.mxu0 %v9756
        %9779 = vmatprep.subr.bf16.mxu0 0
        %9780 = vmatpush1.bf16.msra.mxu0 %v9757
        %9781 = vmatprep.subr.bf16.mxu0 0
        %9782 = vmatpush1.bf16.msra.mxu0 %v9758
        %9783 = vmatprep.subr.bf16.mxu0 0
        %9784 = vmatpush1.bf16.msra.mxu0 0
        %9785 = vmatprep.subr.bf16.mxu0 0
        %9786 = vmatpush1.bf16.msra.mxu0 0
        %9787 = vmatprep.subr.bf16.mxu0 0
        %9788 = vmatpush1.bf16.msra.mxu0 0
        %9789 = vmatprep.subr.bf16.mxu0 0
        %9790 = vmatpush1.bf16.msra.mxu0 0
        %9791 = vmatprep.subr.bf16.mxu0 0
        %9792 = vmatpush1.bf16.msra.mxu0 0
        %9793 = vmatprep.subr.bf16.mxu0 0
        %9794 = vmatpush1.bf16.msra.mxu0 0
        %9795 = vmatprep.subr.bf16.mxu0 0
        %9796 = vmatpush1.bf16.msra.mxu0 0
        %9797 = vmatprep.subr.bf16.mxu0 0
        %9798 = vmatpush1.bf16.msra.mxu0 0
        %9799 = vmatprep.mubr.bf16.mxu0 0
        %9800 = vmatmul.mubr.bf16.gmra.mrb[0].mxu0 %v1246
        %v9801 = vpop.f32.mrb[0].mxu0
        %v9802 = vadd.f32 0.0, %v9801
        %v9803 = vpop.f32.mrb[0].mxu0
        %v9804 = vpop.f32.mrb[0].mxu0
        %v9805 = vadd.f32 0.0, %v9804
        %v9806 = vpop.f32.mrb[0].mxu0
        %9807 = vmatprep.mubr.bf16.mxu0 0
        %9808 = vmatmul.mubr.bf16.gmra.mrb[0].mxu0 %v1247
        %v9809 = vpop.f32.mrb[0].mxu0
        %v9810 = vadd.f32 0.0, %v9809
        %v9811 = vpop.f32.mrb[0].mxu0
        %v9812 = vpop.f32.mrb[0].mxu0
        %v9813 = vadd.f32 0.0, %v9812
        %v9814 = vpop.f32.mrb[0].mxu0
        %9815 = vmatprep.mubr.bf16.mxu0 0
        %9816 = vmatmul.mubr.bf16.gmra.mrb[0].mxu0 %v1248
        %v9817 = vpop.f32.mrb[0].mxu0
        %v9818 = vadd.f32 0.0, %v9817
        %v9819 = vpop.f32.mrb[0].mxu0
        %v9820 = vpop.f32.mrb[0].mxu0
        %v9821 = vadd.f32 0.0, %v9820
        %v9822 = vpop.f32.mrb[0].mxu0
        %9823 = vmatprep.mubr.bf16.mxu0 0
        %9824 = vmatmul.mubr.bf16.gmra.mrb[0].mxu0 %v1249
        %v9825 = vpop.f32.mrb[0].mxu0
        %v9826 = vadd.f32 0.0, %v9825
        %v9827 = vpop.f32.mrb[0].mxu0
        %v9828 = vpop.f32.mrb[0].mxu0
        %v9829 = vadd.f32 0.0, %v9828
        %v9830 = vpop.f32.mrb[0].mxu0
        %9831 = vdwg.mxu0
        %v9832 = vadd.f32 %v9694, %v9802
        %v9833 = vadd.f32 %v9695, %v9805
        %v9834 = vadd.f32 %v9696, %v9810
        %v9835 = vadd.f32 %v9697, %v9813
        %v9836 = vadd.f32 %v9698, %v9818
        %v9837 = vadd.f32 %v9699, %v9821
        %v9838 = vadd.f32 %v9700, %v9826
        %v9839 = vadd.f32 %v9701, %v9829
        %s9840 = scalar_lea.vmem [#allocation5], 3904
        %v9841 = vld [vmem:[%s9840] sm:$0xf]
        %v9842 = vld [vmem:[%s9840 + $0x4] sm:$0xf]
        %v9843 = vld [vmem:[%s9840 + $0x8] sm:$0xf]
        %v9844 = vld [vmem:[%s9840 + $0xc] sm:$0xf]
        %v9845 = vld [vmem:[%s9840 + $0x10] sm:$0xf]
        %v9846 = vld [vmem:[%s9840 + $0x14] sm:$0xf]
        %v9847 = vld [vmem:[%s9840 + $0x18] sm:$0xf]
        %v9848 = vld [vmem:[%s9840 + $0x1c] sm:$0xf]
        %v9849 = vld [vmem:[%s9840 + $0x20] sm:$0xf]
        %v9850 = vld [vmem:[%s9840 + $0x24] sm:$0xf]
        %v9851 = vld [vmem:[%s9840 + $0x28] sm:$0xf]
        %v9852 = vld [vmem:[%s9840 + $0x2c] sm:$0xf]
        %v9853 = vld [vmem:[%s9840 + $0x30] sm:$0xf]
        %v9854 = vld [vmem:[%s9840 + $0x34] sm:$0xf]
        %v9855 = vld [vmem:[%s9840 + $0x38] sm:$0xf]
        %v9856 = vld [vmem:[%s9840 + $0x3c] sm:$0xf]
        %v9873 = vunpack.c.l.b16 %v9841
        %v9874 = vunpack.c.l.b16 %v9842
        %v9875 = vunpack.c.l.b16 %v9843
        %v9876 = vunpack.c.l.b16 %v9844
        %v9877 = vunpack.c.l.b16 %v9845
        %v9878 = vunpack.c.l.b16 %v9846
        %v9879 = vunpack.c.l.b16 %v9847
        %v9880 = vunpack.c.l.b16 %v9848
        %v9881 = vunpack.c.l.b16 %v9849
        %v9882 = vunpack.c.l.b16 %v9850
        %v9883 = vunpack.c.l.b16 %v9851
        %v9884 = vunpack.c.l.b16 %v9852
        %v9885 = vunpack.c.l.b16 %v9853
        %v9886 = vunpack.c.l.b16 %v9854
        %v9887 = vunpack.c.l.b16 %v9855
        %v9888 = vunpack.c.l.b16 %v9856
        %v9889 = vpack.c.b16 %v9874, %v9873
        %v9890 = vpack.c.b16 %v9876, %v9875
        %v9891 = vpack.c.b16 %v9878, %v9877
        %v9892 = vpack.c.b16 %v9880, %v9879
        %v9893 = vpack.c.b16 %v9882, %v9881
        %v9894 = vpack.c.b16 %v9884, %v9883
        %v9895 = vpack.c.b16 %v9886, %v9885
        %v9896 = vpack.c.b16 %v9888, %v9887
        %9905 = vmatprep.subr.bf16.mxu0 0
        %9906 = vmatpush1.bf16.msra.mxu0 %v9889
        %9907 = vmatprep.subr.bf16.mxu0 0
        %9908 = vmatpush1.bf16.msra.mxu0 %v9890
        %9909 = vmatprep.subr.bf16.mxu0 0
        %9910 = vmatpush1.bf16.msra.mxu0 %v9891
        %9911 = vmatprep.subr.bf16.mxu0 0
        %9912 = vmatpush1.bf16.msra.mxu0 %v9892
        %9913 = vmatprep.subr.bf16.mxu0 0
        %9914 = vmatpush1.bf16.msra.mxu0 %v9893
        %9915 = vmatprep.subr.bf16.mxu0 0
        %9916 = vmatpush1.bf16.msra.mxu0 %v9894
        %9917 = vmatprep.subr.bf16.mxu0 0
        %9918 = vmatpush1.bf16.msra.mxu0 %v9895
        %9919 = vmatprep.subr.bf16.mxu0 0
        %9920 = vmatpush1.bf16.msra.mxu0 %v9896
        %9921 = vmatprep.subr.bf16.mxu0 0
        %9922 = vmatpush1.bf16.msra.mxu0 0
        %9923 = vmatprep.subr.bf16.mxu0 0
        %9924 = vmatpush1.bf16.msra.mxu0 0
        %9925 = vmatprep.subr.bf16.mxu0 0
        %9926 = vmatpush1.bf16.msra.mxu0 0
        %9927 = vmatprep.subr.bf16.mxu0 0
        %9928 = vmatpush1.bf16.msra.mxu0 0
        %9929 = vmatprep.subr.bf16.mxu0 0
        %9930 = vmatpush1.bf16.msra.mxu0 0
        %9931 = vmatprep.subr.bf16.mxu0 0
        %9932 = vmatpush1.bf16.msra.mxu0 0
        %9933 = vmatprep.subr.bf16.mxu0 0
        %9934 = vmatpush1.bf16.msra.mxu0 0
        %9935 = vmatprep.subr.bf16.mxu0 0
        %9936 = vmatpush1.bf16.msra.mxu0 0
        %9937 = vmatprep.mubr.bf16.mxu0 0
        %9938 = vmatmul.mubr.bf16.gmra.mrb[0].mxu0 %v1417
        %v9939 = vpop.f32.mrb[0].mxu0
        %v9940 = vadd.f32 0.0, %v9939
        %v9941 = vpop.f32.mrb[0].mxu0
        %v9942 = vpop.f32.mrb[0].mxu0
        %v9943 = vadd.f32 0.0, %v9942
        %v9944 = vpop.f32.mrb[0].mxu0
        %9945 = vmatprep.mubr.bf16.mxu0 0
        %9946 = vmatmul.mubr.bf16.gmra.mrb[0].mxu0 %v1418
        %v9947 = vpop.f32.mrb[0].mxu0
        %v9948 = vadd.f32 0.0, %v9947
        %v9949 = vpop.f32.mrb[0].mxu0
        %v9950 = vpop.f32.mrb[0].mxu0
        %v9951 = vadd.f32 0.0, %v9950
        %v9952 = vpop.f32.mrb[0].mxu0
        %9953 = vmatprep.mubr.bf16.mxu0 0
        %9954 = vmatmul.mubr.bf16.gmra.mrb[0].mxu0 %v1419
        %v9955 = vpop.f32.mrb[0].mxu0
        %v9956 = vadd.f32 0.0, %v9955
        %v9957 = vpop.f32.mrb[0].mxu0
        %v9958 = vpop.f32.mrb[0].mxu0
        %v9959 = vadd.f32 0.0, %v9958
        %v9960 = vpop.f32.mrb[0].mxu0
        %9961 = vmatprep.mubr.bf16.mxu0 0
        %9962 = vmatmul.mubr.bf16.gmra.mrb[0].mxu0 %v1420
        %v9963 = vpop.f32.mrb[0].mxu0
        %v9964 = vadd.f32 0.0, %v9963
        %v9965 = vpop.f32.mrb[0].mxu0
        %v9966 = vpop.f32.mrb[0].mxu0
        %v9967 = vadd.f32 0.0, %v9966
        %v9968 = vpop.f32.mrb[0].mxu0
        %9969 = vdwg.mxu0
        %v9970 = vadd.f32 %v9832, %v9940
        %v9971 = vadd.f32 %v9833, %v9943
        %v9972 = vadd.f32 %v9834, %v9948
        %v9973 = vadd.f32 %v9835, %v9951
        %v9974 = vadd.f32 %v9836, %v9956
        %v9975 = vadd.f32 %v9837, %v9959
        %v9976 = vadd.f32 %v9838, %v9964
        %v9977 = vadd.f32 %v9839, %v9967
        %s9978 = scalar_lea.vmem [#allocation5], 3584
        %v9979 = vld [vmem:[%s9978] sm:$0xf]
        %v9980 = vld [vmem:[%s9978 + $0x4] sm:$0xf]
        %v9981 = vld [vmem:[%s9978 + $0x8] sm:$0xf]
        %v9982 = vld [vmem:[%s9978 + $0xc] sm:$0xf]
        %v9983 = vld [vmem:[%s9978 + $0x10] sm:$0xf]
        %v9984 = vld [vmem:[%s9978 + $0x14] sm:$0xf]
        %v9985 = vld [vmem:[%s9978 + $0x18] sm:$0xf]
        %v9986 = vld [vmem:[%s9978 + $0x1c] sm:$0xf]
        %v9987 = vld [vmem:[%s9978 + $0x20] sm:$0xf]
        %v9988 = vld [vmem:[%s9978 + $0x24] sm:$0xf]
        %v9989 = vld [vmem:[%s9978 + $0x28] sm:$0xf]
        %v9990 = vld [vmem:[%s9978 + $0x2c] sm:$0xf]
        %v9991 = vld [vmem:[%s9978 + $0x30] sm:$0xf]
        %v9992 = vld [vmem:[%s9978 + $0x34] sm:$0xf]
        %v9993 = vld [vmem:[%s9978 + $0x38] sm:$0xf]
        %v9994 = vld [vmem:[%s9978 + $0x3c] sm:$0xf]
        %v10011 = vunpack.c.l.b16 %v9979
        %v10012 = vunpack.c.l.b16 %v9980
        %v10013 = vunpack.c.l.b16 %v9981
        %v10014 = vunpack.c.l.b16 %v9982
        %v10015 = vunpack.c.l.b16 %v9983
        %v10016 = vunpack.c.l.b16 %v9984
        %v10017 = vunpack.c.l.b16 %v9985
        %v10018 = vunpack.c.l.b16 %v9986
        %v10019 = vunpack.c.l.b16 %v9987
        %v10020 = vunpack.c.l.b16 %v9988
        %v10021 = vunpack.c.l.b16 %v9989
        %v10022 = vunpack.c.l.b16 %v9990
        %v10023 = vunpack.c.l.b16 %v9991
        %v10024 = vunpack.c.l.b16 %v9992
        %v10025 = vunpack.c.l.b16 %v9993
        %v10026 = vunpack.c.l.b16 %v9994
        %v10027 = vpack.c.b16 %v10012, %v10011
        %v10028 = vpack.c.b16 %v10014, %v10013
        %v10029 = vpack.c.b16 %v10016, %v10015
        %v10030 = vpack.c.b16 %v10018, %v10017
        %v10031 = vpack.c.b16 %v10020, %v10019
        %v10032 = vpack.c.b16 %v10022, %v10021
        %v10033 = vpack.c.b16 %v10024, %v10023
        %v10034 = vpack.c.b16 %v10026, %v10025
        %10043 = vmatprep.subr.bf16.mxu0 0
        %10044 = vmatpush1.bf16.msra.mxu0 %v10027
        %10045 = vmatprep.subr.bf16.mxu0 0
        %10046 = vmatpush1.bf16.msra.mxu0 %v10028
        %10047 = vmatprep.subr.bf16.mxu0 0
        %10048 = vmatpush1.bf16.msra.mxu0 %v10029
        %10049 = vmatprep.subr.bf16.mxu0 0
        %10050 = vmatpush1.bf16.msra.mxu0 %v10030
        %10051 = vmatprep.subr.bf16.mxu0 0
        %10052 = vmatpush1.bf16.msra.mxu0 %v10031
        %10053 = vmatprep.subr.bf16.mxu0 0
        %10054 = vmatpush1.bf16.msra.mxu0 %v10032
        %10055 = vmatprep.subr.bf16.mxu0 0
        %10056 = vmatpush1.bf16.msra.mxu0 %v10033
        %10057 = vmatprep.subr.bf16.mxu0 0
        %10058 = vmatpush1.bf16.msra.mxu0 %v10034
        %10059 = vmatprep.subr.bf16.mxu0 0
        %10060 = vmatpush1.bf16.msra.mxu0 0
        %10061 = vmatprep.subr.bf16.mxu0 0
        %10062 = vmatpush1.bf16.msra.mxu0 0
        %10063 = vmatprep.subr.bf16.mxu0 0
        %10064 = vmatpush1.bf16.msra.mxu0 0
        %10065 = vmatprep.subr.bf16.mxu0 0
        %10066 = vmatpush1.bf16.msra.mxu0 0
        %10067 = vmatprep.subr.bf16.mxu0 0
        %10068 = vmatpush1.bf16.msra.mxu0 0
        %10069 = vmatprep.subr.bf16.mxu0 0
        %10070 = vmatpush1.bf16.msra.mxu0 0
        %10071 = vmatprep.subr.bf16.mxu0 0
        %10072 = vmatpush1.bf16.msra.mxu0 0
        %10073 = vmatprep.subr.bf16.mxu0 0
        %10074 = vmatpush1.bf16.msra.mxu0 0
        %10075 = vmatprep.mubr.bf16.mxu0 0
        %10076 = vmatmul.mubr.bf16.gmra.mrb[0].mxu0 %v1588
        %v10077 = vpop.f32.mrb[0].mxu0
        %v10078 = vadd.f32 0.0, %v10077
        %v10079 = vpop.f32.mrb[0].mxu0
        %v10080 = vpop.f32.mrb[0].mxu0
        %v10081 = vadd.f32 0.0, %v10080
        %v10082 = vpop.f32.mrb[0].mxu0
        %10083 = vmatprep.mubr.bf16.mxu0 0
        %10084 = vmatmul.mubr.bf16.gmra.mrb[0].mxu0 %v1589
        %v10085 = vpop.f32.mrb[0].mxu0
        %v10086 = vadd.f32 0.0, %v10085
        %v10087 = vpop.f32.mrb[0].mxu0
        %v10088 = vpop.f32.mrb[0].mxu0
        %v10089 = vadd.f32 0.0, %v10088
        %v10090 = vpop.f32.mrb[0].mxu0
        %10091 = vmatprep.mubr.bf16.mxu0 0
        %10092 = vmatmul.mubr.bf16.gmra.mrb[0].mxu0 %v1590
        %v10093 = vpop.f32.mrb[0].mxu0
        %v10094 = vadd.f32 0.0, %v10093
        %v10095 = vpop.f32.mrb[0].mxu0
        %v10096 = vpop.f32.mrb[0].mxu0
        %v10097 = vadd.f32 0.0, %v10096
        %v10098 = vpop.f32.mrb[0].mxu0
        %10099 = vmatprep.mubr.bf16.mxu0 0
        %10100 = vmatmul.mubr.bf16.gmra.mrb[0].mxu0 %v1591
        %v10101 = vpop.f32.mrb[0].mxu0
        %v10102 = vadd.f32 0.0, %v10101
        %v10103 = vpop.f32.mrb[0].mxu0
        %v10104 = vpop.f32.mrb[0].mxu0
        %v10105 = vadd.f32 0.0, %v10104
        %v10106 = vpop.f32.mrb[0].mxu0
        %10107 = vdwg.mxu0
        %v10108 = vadd.f32 %v9970, %v10078
        %v10109 = vadd.f32 %v9971, %v10081
        %v10110 = vadd.f32 %v9972, %v10086
        %v10111 = vadd.f32 %v9973, %v10089
        %v10112 = vadd.f32 %v9974, %v10094
        %v10113 = vadd.f32 %v9975, %v10097
        %v10114 = vadd.f32 %v9976, %v10102
        %v10115 = vadd.f32 %v9977, %v10105
        %s10116 = scalar_lea.vmem [#allocation5], 3776
        %v10117 = vld [vmem:[%s10116] sm:$0xf]
        %v10118 = vld [vmem:[%s10116 + $0x4] sm:$0xf]
        %v10119 = vld [vmem:[%s10116 + $0x8] sm:$0xf]
        %v10120 = vld [vmem:[%s10116 + $0xc] sm:$0xf]
        %v10121 = vld [vmem:[%s10116 + $0x10] sm:$0xf]
        %v10122 = vld [vmem:[%s10116 + $0x14] sm:$0xf]
        %v10123 = vld [vmem:[%s10116 + $0x18] sm:$0xf]
        %v10124 = vld [vmem:[%s10116 + $0x1c] sm:$0xf]
        %v10125 = vld [vmem:[%s10116 + $0x20] sm:$0xf]
        %v10126 = vld [vmem:[%s10116 + $0x24] sm:$0xf]
        %v10127 = vld [vmem:[%s10116 + $0x28] sm:$0xf]
        %v10128 = vld [vmem:[%s10116 + $0x2c] sm:$0xf]
        %v10129 = vld [vmem:[%s10116 + $0x30] sm:$0xf]
        %v10130 = vld [vmem:[%s10116 + $0x34] sm:$0xf]
        %v10131 = vld [vmem:[%s10116 + $0x38] sm:$0xf]
        %v10132 = vld [vmem:[%s10116 + $0x3c] sm:$0xf]
        %v10149 = vunpack.c.l.b16 %v10117
        %v10150 = vunpack.c.l.b16 %v10118
        %v10151 = vunpack.c.l.b16 %v10119
        %v10152 = vunpack.c.l.b16 %v10120
        %v10153 = vunpack.c.l.b16 %v10121
        %v10154 = vunpack.c.l.b16 %v10122
        %v10155 = vunpack.c.l.b16 %v10123
        %v10156 = vunpack.c.l.b16 %v10124
        %v10157 = vunpack.c.l.b16 %v10125
        %v10158 = vunpack.c.l.b16 %v10126
        %v10159 = vunpack.c.l.b16 %v10127
        %v10160 = vunpack.c.l.b16 %v10128
        %v10161 = vunpack.c.l.b16 %v10129
        %v10162 = vunpack.c.l.b16 %v10130
        %v10163 = vunpack.c.l.b16 %v10131
        %v10164 = vunpack.c.l.b16 %v10132
        %v10165 = vpack.c.b16 %v10150, %v10149
        %v10166 = vpack.c.b16 %v10152, %v10151
        %v10167 = vpack.c.b16 %v10154, %v10153
        %v10168 = vpack.c.b16 %v10156, %v10155
        %v10169 = vpack.c.b16 %v10158, %v10157
        %v10170 = vpack.c.b16 %v10160, %v10159
        %v10171 = vpack.c.b16 %v10162, %v10161
        %v10172 = vpack.c.b16 %v10164, %v10163
        %10181 = vmatprep.subr.bf16.mxu0 0
        %10182 = vmatpush1.bf16.msra.mxu0 %v10165
        %10183 = vmatprep.subr.bf16.mxu0 0
        %10184 = vmatpush1.bf16.msra.mxu0 %v10166
        %10185 = vmatprep.subr.bf16.mxu0 0
        %10186 = vmatpush1.bf16.msra.mxu0 %v10167
        %10187 = vmatprep.subr.bf16.mxu0 0
        %10188 = vmatpush1.bf16.msra.mxu0 %v10168
        %10189 = vmatprep.subr.bf16.mxu0 0
        %10190 = vmatpush1.bf16.msra.mxu0 %v10169
        %10191 = vmatprep.subr.bf16.mxu0 0
        %10192 = vmatpush1.bf16.msra.mxu0 %v10170
        %10193 = vmatprep.subr.bf16.mxu0 0
        %10194 = vmatpush1.bf16.msra.mxu0 %v10171
        %10195 = vmatprep.subr.bf16.mxu0 0
        %10196 = vmatpush1.bf16.msra.mxu0 %v10172
        %10197 = vmatprep.subr.bf16.mxu0 0
        %10198 = vmatpush1.bf16.msra.mxu0 0
        %10199 = vmatprep.subr.bf16.mxu0 0
        %10200 = vmatpush1.bf16.msra.mxu0 0
        %10201 = vmatprep.subr.bf16.mxu0 0
        %10202 = vmatpush1.bf16.msra.mxu0 0
        %10203 = vmatprep.subr.bf16.mxu0 0
        %10204 = vmatpush1.bf16.msra.mxu0 0
        %10205 = vmatprep.subr.bf16.mxu0 0
        %10206 = vmatpush1.bf16.msra.mxu0 0
        %10207 = vmatprep.subr.bf16.mxu0 0
        %10208 = vmatpush1.bf16.msra.mxu0 0
        %10209 = vmatprep.subr.bf16.mxu0 0
        %10210 = vmatpush1.bf16.msra.mxu0 0
        %10211 = vmatprep.subr.bf16.mxu0 0
        %10212 = vmatpush1.bf16.msra.mxu0 0
        %10213 = vmatprep.mubr.bf16.mxu0 0
        %10214 = vmatmul.mubr.bf16.gmra.mrb[0].mxu0 %v1758
        %v10215 = vpop.f32.mrb[0].mxu0
        %v10216 = vadd.f32 0.0, %v10215
        %v10217 = vpop.f32.mrb[0].mxu0
        %v10218 = vpop.f32.mrb[0].mxu0
        %v10219 = vadd.f32 0.0, %v10218
        %v10220 = vpop.f32.mrb[0].mxu0
        %10221 = vmatprep.mubr.bf16.mxu0 0
        %10222 = vmatmul.mubr.bf16.gmra.mrb[0].mxu0 %v1759
        %v10223 = vpop.f32.mrb[0].mxu0
        %v10224 = vadd.f32 0.0, %v10223
        %v10225 = vpop.f32.mrb[0].mxu0
        %v10226 = vpop.f32.mrb[0].mxu0
        %v10227 = vadd.f32 0.0, %v10226
        %v10228 = vpop.f32.mrb[0].mxu0
        %10229 = vmatprep.mubr.bf16.mxu0 0
        %10230 = vmatmul.mubr.bf16.gmra.mrb[0].mxu0 %v1760
        %v10231 = vpop.f32.mrb[0].mxu0
        %v10232 = vadd.f32 0.0, %v10231
        %v10233 = vpop.f32.mrb[0].mxu0
        %v10234 = vpop.f32.mrb[0].mxu0
        %v10235 = vadd.f32 0.0, %v10234
        %v10236 = vpop.f32.mrb[0].mxu0
        %10237 = vmatprep.mubr.bf16.mxu0 0
        %10238 = vmatmul.mubr.bf16.gmra.mrb[0].mxu0 %v1761
        %v10239 = vpop.f32.mrb[0].mxu0
        %v10240 = vadd.f32 0.0, %v10239
        %v10241 = vpop.f32.mrb[0].mxu0
        %v10242 = vpop.f32.mrb[0].mxu0
        %v10243 = vadd.f32 0.0, %v10242
        %v10244 = vpop.f32.mrb[0].mxu0
        %10245 = vdwg.mxu0
        %v10246 = vadd.f32 %v10108, %v10216
        %v10247 = vadd.f32 %v10109, %v10219
        %v10248 = vadd.f32 %v10110, %v10224
        %v10249 = vadd.f32 %v10111, %v10227
        %v10250 = vadd.f32 %v10112, %v10232
        %v10251 = vadd.f32 %v10113, %v10235
        %v10252 = vadd.f32 %v10114, %v10240
        %v10253 = vadd.f32 %v10115, %v10243
        %s10254 = scalar_lea.vmem [#allocation5], 3968
        %v10255 = vld [vmem:[%s10254] sm:$0xf]
        %v10256 = vld [vmem:[%s10254 + $0x4] sm:$0xf]
        %v10257 = vld [vmem:[%s10254 + $0x8] sm:$0xf]
        %v10258 = vld [vmem:[%s10254 + $0xc] sm:$0xf]
        %v10259 = vld [vmem:[%s10254 + $0x10] sm:$0xf]
        %v10260 = vld [vmem:[%s10254 + $0x14] sm:$0xf]
        %v10261 = vld [vmem:[%s10254 + $0x18] sm:$0xf]
        %v10262 = vld [vmem:[%s10254 + $0x1c] sm:$0xf]
        %v10263 = vld [vmem:[%s10254 + $0x20] sm:$0xf]
        %v10264 = vld [vmem:[%s10254 + $0x24] sm:$0xf]
        %v10265 = vld [vmem:[%s10254 + $0x28] sm:$0xf]
        %v10266 = vld [vmem:[%s10254 + $0x2c] sm:$0xf]
        %v10267 = vld [vmem:[%s10254 + $0x30] sm:$0xf]
        %v10268 = vld [vmem:[%s10254 + $0x34] sm:$0xf]
        %v10269 = vld [vmem:[%s10254 + $0x38] sm:$0xf]
        %v10270 = vld [vmem:[%s10254 + $0x3c] sm:$0xf]
        %v10287 = vunpack.c.l.b16 %v10255
        %v10288 = vunpack.c.l.b16 %v10256
        %v10289 = vunpack.c.l.b16 %v10257
        %v10290 = vunpack.c.l.b16 %v10258
        %v10291 = vunpack.c.l.b16 %v10259
        %v10292 = vunpack.c.l.b16 %v10260
        %v10293 = vunpack.c.l.b16 %v10261
        %v10294 = vunpack.c.l.b16 %v10262
        %v10295 = vunpack.c.l.b16 %v10263
        %v10296 = vunpack.c.l.b16 %v10264
        %v10297 = vunpack.c.l.b16 %v10265
        %v10298 = vunpack.c.l.b16 %v10266
        %v10299 = vunpack.c.l.b16 %v10267
        %v10300 = vunpack.c.l.b16 %v10268
        %v10301 = vunpack.c.l.b16 %v10269
        %v10302 = vunpack.c.l.b16 %v10270
        %v10303 = vpack.c.b16 %v10288, %v10287
        %v10304 = vpack.c.b16 %v10290, %v10289
        %v10305 = vpack.c.b16 %v10292, %v10291
        %v10306 = vpack.c.b16 %v10294, %v10293
        %v10307 = vpack.c.b16 %v10296, %v10295
        %v10308 = vpack.c.b16 %v10298, %v10297
        %v10309 = vpack.c.b16 %v10300, %v10299
        %v10310 = vpack.c.b16 %v10302, %v10301
        %10319 = vmatprep.subr.bf16.mxu0 0
        %10320 = vmatpush1.bf16.msra.mxu0 %v10303
        %10321 = vmatprep.subr.bf16.mxu0 0
        %10322 = vmatpush1.bf16.msra.mxu0 %v10304
        %10323 = vmatprep.subr.bf16.mxu0 0
        %10324 = vmatpush1.bf16.msra.mxu0 %v10305
        %10325 = vmatprep.subr.bf16.mxu0 0
        %10326 = vmatpush1.bf16.msra.mxu0 %v10306
        %10327 = vmatprep.subr.bf16.mxu0 0
        %10328 = vmatpush1.bf16.msra.mxu0 %v10307
        %10329 = vmatprep.subr.bf16.mxu0 0
        %10330 = vmatpush1.bf16.msra.mxu0 %v10308
        %10331 = vmatprep.subr.bf16.mxu0 0
        %10332 = vmatpush1.bf16.msra.mxu0 %v10309
        %10333 = vmatprep.subr.bf16.mxu0 0
        %10334 = vmatpush1.bf16.msra.mxu0 %v10310
        %10335 = vmatprep.subr.bf16.mxu0 0
        %10336 = vmatpush1.bf16.msra.mxu0 0
        %10337 = vmatprep.subr.bf16.mxu0 0
        %10338 = vmatpush1.bf16.msra.mxu0 0
        %10339 = vmatprep.subr.bf16.mxu0 0
        %10340 = vmatpush1.bf16.msra.mxu0 0
        %10341 = vmatprep.subr.bf16.mxu0 0
        %10342 = vmatpush1.bf16.msra.mxu0 0
        %10343 = vmatprep.subr.bf16.mxu0 0
        %10344 = vmatpush1.bf16.msra.mxu0 0
        %10345 = vmatprep.subr.bf16.mxu0 0
        %10346 = vmatpush1.bf16.msra.mxu0 0
        %10347 = vmatprep.subr.bf16.mxu0 0
        %10348 = vmatpush1.bf16.msra.mxu0 0
        %10349 = vmatprep.subr.bf16.mxu0 0
        %10350 = vmatpush1.bf16.msra.mxu0 0
        %10351 = vmatprep.mubr.bf16.mxu0 0
        %10352 = vmatmul.mubr.bf16.gmra.mrb[0].mxu0 %v1929
        %v10353 = vpop.f32.mrb[0].mxu0
        %v10354 = vadd.f32 0.0, %v10353
        %v10355 = vpop.f32.mrb[0].mxu0
        %v10356 = vpop.f32.mrb[0].mxu0
        %v10357 = vadd.f32 0.0, %v10356
        %v10358 = vpop.f32.mrb[0].mxu0
        %10359 = vmatprep.mubr.bf16.mxu0 0
        %10360 = vmatmul.mubr.bf16.gmra.mrb[0].mxu0 %v1930
        %v10361 = vpop.f32.mrb[0].mxu0
        %v10362 = vadd.f32 0.0, %v10361
        %v10363 = vpop.f32.mrb[0].mxu0
        %v10364 = vpop.f32.mrb[0].mxu0
        %v10365 = vadd.f32 0.0, %v10364
        %v10366 = vpop.f32.mrb[0].mxu0
        %10367 = vmatprep.mubr.bf16.mxu0 0
        %10368 = vmatmul.mubr.bf16.gmra.mrb[0].mxu0 %v1931
        %v10369 = vpop.f32.mrb[0].mxu0
        %v10370 = vadd.f32 0.0, %v10369
        %v10371 = vpop.f32.mrb[0].mxu0
        %v10372 = vpop.f32.mrb[0].mxu0
        %v10373 = vadd.f32 0.0, %v10372
        %v10374 = vpop.f32.mrb[0].mxu0
        %10375 = vmatprep.mubr.bf16.mxu0 0
        %10376 = vmatmul.mubr.bf16.gmra.mrb[0].mxu0 %v1932
        %v10377 = vpop.f32.mrb[0].mxu0
        %v10378 = vadd.f32 0.0, %v10377
        %v10379 = vpop.f32.mrb[0].mxu0
        %v10380 = vpop.f32.mrb[0].mxu0
        %v10381 = vadd.f32 0.0, %v10380
        %v10382 = vpop.f32.mrb[0].mxu0
        %10383 = vdwg.mxu0
        %v10384 = vadd.f32 %v10246, %v10354
        %v10385 = vadd.f32 %v10247, %v10357
        %v10386 = vadd.f32 %v10248, %v10362
        %v10387 = vadd.f32 %v10249, %v10365
        %v10388 = vadd.f32 %v10250, %v10370
        %v10389 = vadd.f32 %v10251, %v10373
        %v10390 = vadd.f32 %v10252, %v10378
        %v10391 = vadd.f32 %v10253, %v10381
        %s10392 = scalar_lea.vmem [#allocation7], 6
        %v10393 = vld [vmem:[%s10392] sm:$0x1]
        %v10395 = vlaneseq
        %v10396 = vshrl.u32 %v10395, 7
        %v10397 = vsub.s32 0, %v10396
        %v10398 = vrot.slane %v10393, %v10397
        %v10400 = vadd.f32 %v10384, %v10398
        %v10401 = vadd.f32 %v10385, %v10398
        %v10402 = vadd.f32 %v10386, %v10398
        %v10403 = vadd.f32 %v10387, %v10398
        %v10404 = vadd.f32 %v10388, %v10398
        %v10405 = vadd.f32 %v10389, %v10398
        %v10406 = vadd.f32 %v10390, %v10398
        %v10407 = vadd.f32 %v10391, %v10398
        %v10408 = vmax.f32 %v10400, 0.0
        %v10409 = vmax.f32 %v10401, 0.0
        %v10410 = vmax.f32 %v10402, 0.0
        %v10411 = vmax.f32 %v10403, 0.0
        %v10412 = vmax.f32 %v10404, 0.0
        %v10413 = vmax.f32 %v10405, 0.0
        %v10414 = vmax.f32 %v10406, 0.0
        %v10415 = vmax.f32 %v10407, 0.0
        %v10416 = vpack.c.bf16 %v10409, %v10408
        %v10417 = vpack.c.bf16 %v10411, %v10410
        %v10418 = vpack.c.bf16 %v10413, %v10412
        %v10419 = vpack.c.bf16 %v10415, %v10414
        %s10420 = scalar_lea.vmem [#allocation8], 384
        %v10421 = vld [vmem:[%s10420] sm:$0xf]
        %v10422 = vld [vmem:[%s10420 + $0x4] sm:$0xf]
        %v10423 = vld [vmem:[%s10420 + $0x8] sm:$0xf]
        %v10424 = vld [vmem:[%s10420 + $0xc] sm:$0xf]
        %v10425 = vld [vmem:[%s10420 + $0x10] sm:$0xf]
        %v10426 = vld [vmem:[%s10420 + $0x14] sm:$0xf]
        %v10427 = vld [vmem:[%s10420 + $0x18] sm:$0xf]
        %v10428 = vld [vmem:[%s10420 + $0x1c] sm:$0xf]
        %v10429 = vld [vmem:[%s10420 + $0x20] sm:$0xf]
        %v10430 = vld [vmem:[%s10420 + $0x24] sm:$0xf]
        %v10431 = vld [vmem:[%s10420 + $0x28] sm:$0xf]
        %v10432 = vld [vmem:[%s10420 + $0x2c] sm:$0xf]
        %v10433 = vld [vmem:[%s10420 + $0x30] sm:$0xf]
        %v10434 = vld [vmem:[%s10420 + $0x34] sm:$0xf]
        %v10435 = vld [vmem:[%s10420 + $0x38] sm:$0xf]
        %v10436 = vld [vmem:[%s10420 + $0x3c] sm:$0xf]
        %v10453 = vunpack.c.l.b16 %v10421
        %v10454 = vunpack.c.l.b16 %v10422
        %v10455 = vunpack.c.l.b16 %v10423
        %v10456 = vunpack.c.l.b16 %v10424
        %v10457 = vunpack.c.l.b16 %v10425
        %v10458 = vunpack.c.l.b16 %v10426
        %v10459 = vunpack.c.l.b16 %v10427
        %v10460 = vunpack.c.l.b16 %v10428
        %v10461 = vunpack.c.l.b16 %v10429
        %v10462 = vunpack.c.l.b16 %v10430
        %v10463 = vunpack.c.l.b16 %v10431
        %v10464 = vunpack.c.l.b16 %v10432
        %v10465 = vunpack.c.l.b16 %v10433
        %v10466 = vunpack.c.l.b16 %v10434
        %v10467 = vunpack.c.l.b16 %v10435
        %v10468 = vunpack.c.l.b16 %v10436
        %v10469 = vpack.c.b16 %v10454, %v10453
        %v10470 = vpack.c.b16 %v10456, %v10455
        %v10471 = vpack.c.b16 %v10458, %v10457
        %v10472 = vpack.c.b16 %v10460, %v10459
        %v10473 = vpack.c.b16 %v10462, %v10461
        %v10474 = vpack.c.b16 %v10464, %v10463
        %v10475 = vpack.c.b16 %v10466, %v10465
        %v10476 = vpack.c.b16 %v10468, %v10467
        %10485 = vmatprep.subr.bf16.mxu0 0
        %10486 = vmatpush1.bf16.msra.mxu0 %v10469
        %10487 = vmatprep.subr.bf16.mxu0 0
        %10488 = vmatpush1.bf16.msra.mxu0 %v10470
        %10489 = vmatprep.subr.bf16.mxu0 0
        %10490 = vmatpush1.bf16.msra.mxu0 %v10471
        %10491 = vmatprep.subr.bf16.mxu0 0
        %10492 = vmatpush1.bf16.msra.mxu0 %v10472
        %10493 = vmatprep.subr.bf16.mxu0 0
        %10494 = vmatpush1.bf16.msra.mxu0 %v10473
        %10495 = vmatprep.subr.bf16.mxu0 0
        %10496 = vmatpush1.bf16.msra.mxu0 %v10474
        %10497 = vmatprep.subr.bf16.mxu0 0
        %10498 = vmatpush1.bf16.msra.mxu0 %v10475
        %10499 = vmatprep.subr.bf16.mxu0 0
        %10500 = vmatpush1.bf16.msra.mxu0 %v10476
        %10501 = vmatprep.subr.bf16.mxu0 0
        %10502 = vmatpush1.bf16.msra.mxu0 0
        %10503 = vmatprep.subr.bf16.mxu0 0
        %10504 = vmatpush1.bf16.msra.mxu0 0
        %10505 = vmatprep.subr.bf16.mxu0 0
        %10506 = vmatpush1.bf16.msra.mxu0 0
        %10507 = vmatprep.subr.bf16.mxu0 0
        %10508 = vmatpush1.bf16.msra.mxu0 0
        %10509 = vmatprep.subr.bf16.mxu0 0
        %10510 = vmatpush1.bf16.msra.mxu0 0
        %10511 = vmatprep.subr.bf16.mxu0 0
        %10512 = vmatpush1.bf16.msra.mxu0 0
        %10513 = vmatprep.subr.bf16.mxu0 0
        %10514 = vmatpush1.bf16.msra.mxu0 0
        %10515 = vmatprep.subr.bf16.mxu0 0
        %10516 = vmatpush1.bf16.msra.mxu0 0
        %10517 = vmatprep.mubr.bf16.mxu0 0
        %10518 = vmatmul.mubr.bf16.gmra.mrb[0].mxu0 %v10416
        %v10519 = vpop.f32.mrb[0].mxu0
        %v10520 = vadd.f32 0.0, %v10519
        %v10521 = vpop.f32.mrb[0].mxu0
        %v10522 = vpop.f32.mrb[0].mxu0
        %v10523 = vadd.f32 0.0, %v10522
        %v10524 = vpop.f32.mrb[0].mxu0
        %10525 = vmatprep.mubr.bf16.mxu0 0
        %10526 = vmatmul.mubr.bf16.gmra.mrb[0].mxu0 %v10417
        %v10527 = vpop.f32.mrb[0].mxu0
        %v10528 = vadd.f32 0.0, %v10527
        %v10529 = vpop.f32.mrb[0].mxu0
        %v10530 = vpop.f32.mrb[0].mxu0
        %v10531 = vadd.f32 0.0, %v10530
        %v10532 = vpop.f32.mrb[0].mxu0
        %10533 = vmatprep.mubr.bf16.mxu0 0
        %10534 = vmatmul.mubr.bf16.gmra.mrb[0].mxu0 %v10418
        %v10535 = vpop.f32.mrb[0].mxu0
        %v10536 = vadd.f32 0.0, %v10535
        %v10537 = vpop.f32.mrb[0].mxu0
        %v10538 = vpop.f32.mrb[0].mxu0
        %v10539 = vadd.f32 0.0, %v10538
        %v10540 = vpop.f32.mrb[0].mxu0
        %10541 = vmatprep.mubr.bf16.mxu0 0
        %10542 = vmatmul.mubr.bf16.gmra.mrb[0].mxu0 %v10419
        %v10543 = vpop.f32.mrb[0].mxu0
        %v10544 = vadd.f32 0.0, %v10543
        %v10545 = vpop.f32.mrb[0].mxu0
        %v10546 = vpop.f32.mrb[0].mxu0
        %v10547 = vadd.f32 0.0, %v10546
        %v10548 = vpop.f32.mrb[0].mxu0
        %10549 = vdwg.mxu0
        %v10550 = vadd.f32 %v9158, %v10520
        %v10551 = vadd.f32 %v9159, %v10523
        %v10552 = vadd.f32 %v9160, %v10528
        %v10553 = vadd.f32 %v9161, %v10531
        %v10554 = vadd.f32 %v9162, %v10536
        %v10555 = vadd.f32 %v9163, %v10539
        %v10556 = vadd.f32 %v9164, %v10544
        %v10557 = vadd.f32 %v9165, %v10547
        %v10558 = vld [vmem:[#allocation10] sm:$0x1]
        %v10560 = vlaneseq
        %v10561 = vshrl.u32 %v10560, 7
        %v10562 = vsub.s32 0, %v10561
        %v10563 = vrot.slane %v10558, %v10562
        %v10565 = vadd.f32 %v10550, %v10563
        %v10566 = vadd.f32 %v10551, %v10563
        %v10567 = vadd.f32 %v10552, %v10563
        %v10568 = vadd.f32 %v10553, %v10563
        %v10569 = vadd.f32 %v10554, %v10563
        %v10570 = vadd.f32 %v10555, %v10563
        %v10571 = vadd.f32 %v10556, %v10563
        %v10572 = vadd.f32 %v10557, %v10563
        %10573 = vst [vmem:[%s300] sm:$0xff] %v10565
        %10574 = vst [vmem:[%s300 + $0x8] sm:$0xff] %v10566
        %10575 = vst [vmem:[%s300 + $0x10] sm:$0xff] %v10567
        %10576 = vst [vmem:[%s300 + $0x18] sm:$0xff] %v10568
        %10577 = vst [vmem:[%s300 + $0x20] sm:$0xff] %v10569
        %10578 = vst [vmem:[%s300 + $0x28] sm:$0xff] %v10570
        %10579 = vst [vmem:[%s300 + $0x30] sm:$0xff] %v10571
        %10580 = vst [vmem:[%s300 + $0x38] sm:$0xff] %v10572
        %p10581 = scmp.lt.s32.totalorder %s21, 1
        %s10582 = scalar_select %p10581, %s21, 1
        %s10583 = smul.addr %s10582, 8
        %s10584 = smul.addr %s10583, 8
        %s10585 = scalar_lea.vmem %s5, %s10584
        // Predicated region
        $region61: #{heads_forward.1} parent=39 // pred_check
          %p10586 = pneg %p149
        $region62: #{heads_forward.1} parent=39 // pred_check_branch
          %10588 = sbr.rel (%p10586) target = $region64
        $region63: #{heads_forward.1} parent=39 // pred_region
          _
        $region64: #{heads_forward.1} parent=39 // pred_fallthru
          _
      $region40: #{heads_forward.1} parent=5 // pred_fallthru
        _
      %p10589 = scmp.le.s32.totalorder 2, %s16
      // Predicated region
      $region65: #{heads_forward.1} parent=5 // pred_check
        %p10590 = pneg %p10589
      $region66: #{heads_forward.1} parent=5 // pred_check_branch
        %10592 = sbr.rel (%p10590) target = $region68
      $region67: #{heads_forward.1} parent=5 // pred_region
        %s10593 = ssub.s32 %s16, 2
        // Predicated region
        $region69: #{heads_forward.1} parent=67 // pred_check
          %p10594 = pneg %p155
        $region70: #{heads_forward.1} parent=67 // pred_check_branch
          %10596 = sbr.rel (%p10594) target = $region72
        $region71: #{heads_forward.1} parent=67 // pred_region
          %p10597 = scmp.lt.s32.totalorder %s22, 1
          %s10598 = scalar_select %p10597, %s22, 1
          %s10599 = smul.addr %s10598, 8
          %s10600 = smul.addr %s10599, 8
          %s10601 = scalar_lea.vmem %s5, %s10600
        $region72: #{heads_forward.1} parent=67 // pred_fallthru
          _
      $region68: #{heads_forward.1} parent=5 // pred_fallthru
        _
    $region6: #{heads_forward.1} parent=1 // loop_footer
      %s20 = sadd.s32 1, %s16
    $region7: #{heads_forward.1} parent=1 // loop_footer_branch
      %15 = sbr.rel target = $region3
    $region8: #{heads_forward.1} parent=1 // loop_exit
      _
    %10602 = vsyncpa [#allocation4], 1
    %s10603 = scalar_lea.sflag [#allocation4], 1
    %10604 = vsyncpa %s10603, 1
    %10605 = vsyncpa [#allocation6], 1
    %10606 = vsyncpa [#allocation9], 1

</llo_original>
